<compile_context>
chip_gen: v6e
topology: v6e:2x2x1
jax: 0.10.0
libtpu: 0.0.40
codegen_flags: <defaults>
</compile_context>

<pallas_src>
import functools

import jax
import jax.numpy as jnp
from jax.experimental import pallas as pl
from jax.experimental.pallas import tpu as pltpu

# Same full-f32 matmul precision for the in-kernel MXU dots and the reference conv so the
# 1e-4 correctness check stays tight.
jax.config.update("jax_default_matmul_precision", "float32")


# ---------------------------------------------------------------------------
# Fused whole-network kernel: all layers for one batch element, resident in VMEM.
# ---------------------------------------------------------------------------
def _fused_denoise_kernel(x_ref, w_ref, scale_ref, bias_ref, out_ref,
                          act_ref, slab_ref, *,
                          kh, kw, H, W, ph, pw, cin, cmax, cout, num_layers):
    """x_ref     : (1, cin, H*W)            lane-dense channels-first input
       w_ref     : (L, cmax, kh*kw*cmax)    per-layer matmul weights (zero-padded channels)
       scale_ref : (L, cmax, 1)             folded BatchNorm scale (ones where no BN)
       bias_ref  : (L, cmax, 1)             folded conv-bias + BatchNorm shift
       out_ref   : (1, cout, H*W)           lane-dense channels-first output
       act_ref   : (cmax, H+2ph, W+2pw)     zero-padded activation scratch (reused across layers)
       slab_ref  : (kh*kw, cmax, H*W)       im2col scratch
    """
    HW = H * W
    K = kh * kw * cmax

    # Zero the padded activation buffer (borders + unused channel rows), then place the image.
    act_ref[...] = jnp.zeros_like(act_ref)
    act_ref[0:cin, ph:ph + H, pw:pw + W] = x_ref[0].reshape(cin, H, W)

    for l in range(num_layers):                                  # static unroll over layers
        # Build the im2col slab: one shifted (cmax, H, W) window per kernel tap.
        act = act_ref[...]                                       # (cmax, Hp, Wp)
        for dy in range(kh):
            for dx in range(kw):
                slab_ref[dy * kw + dx] = (
                    act[:, dy:dy + H, dx:dx + W].reshape(cmax, HW))
        slab = slab_ref[...].reshape(K, HW)                      # leading-dim merge only (cheap)

        # One MXU matmul per layer: (cmax, K) @ (K, HW), f32 accumulation.
        y = jnp.dot(w_ref[l], slab, preferred_element_type=jnp.float32)
        y = y * scale_ref[l] + bias_ref[l]                       # per-channel affine, (cmax,1) bcast

        if l < num_layers - 1:
            y = jnp.maximum(y, 0.0)                              # ReLU on all but back_conv
            act_ref[:, ph:ph + H, pw:pw + W] = y.reshape(cmax, H, W)
        else:
            out_ref[0] = y[0:cout, :].astype(out_ref.dtype)


# ---------------------------------------------------------------------------
# Parameter packing: pad every layer to cmax in/out channels, stack into single operands.
# ---------------------------------------------------------------------------
def _pack_params(params, *, kh, kw, cmax):
    layers = [params["first"]] + list(params["blocks"]) + [params["back"]]
    K = kh * kw * cmax
    ws, ss, bs = [], [], []
    for p in layers:
        w = p["w"]                                               # (kh, kw, cin_l, cout_l) HWIO
        cin_l, cout_l = w.shape[2], w.shape[3]
        w_p = jnp.zeros((kh, kw, cmax, cmax), jnp.float32).at[:, :, :cin_l, :cout_l].set(w)
        # row = out channel, column = (dy*kw + dx)*cmax + ci   (matches the im2col slab order)
        ws.append(jnp.transpose(w_p, (3, 0, 1, 2)).reshape(cmax, K))
        ss.append(jnp.zeros((cmax,), jnp.float32).at[:cout_l].set(p["scale"][0]))
        bs.append(jnp.zeros((cmax,), jnp.float32).at[:cout_l].set(p["bias"][0]))
    return jnp.stack(ws), jnp.stack(ss)[..., None], jnp.stack(bs)[..., None]


# ---------------------------------------------------------------------------
# Model forward (Pallas) and parameter init.
# ---------------------------------------------------------------------------
def non_blind_denoising_forward(params, x, *, kernel_size, use_2dim):
    """Pallas forward pass of NonBlindDenoisingModel.  x: (B, Cin, H, W) NCHW."""
    kh, kw = kernel_size
    assert use_2dim, "use_2dim=False relies on the undefined Padding layer (see TODO)"
    assert kh % 2 == 1 and kw % 2 == 1, "only odd kernel sizes reproduce 'same' padding"
    ph, pw = (kh - 1) // 2, (kw - 1) // 2

    B, in_ch, H, W = x.shape
    channel_num = params["first"]["w"].shape[3]
    out_ch = params["back"]["w"].shape[3]
    cmax = max(channel_num, in_ch, out_ch)
    num_layers = 2 + len(params["blocks"])
    HW = H * W
    K = kh * kw * cmax
    Hp, Wp = H + 2 * ph, W + 2 * pw

    w_all, scale_all, bias_all = _pack_params(params, kh=kh, kw=kw, cmax=cmax)
    x_flat = x.reshape(B, in_ch, HW).astype(jnp.float32)         # free row-major reshape

    kernel = functools.partial(
        _fused_denoise_kernel, kh=kh, kw=kw, H=H, W=W, ph=ph, pw=pw,
        cin=in_ch, cmax=cmax, cout=out_ch, num_layers=num_layers)

    out_flat = pl.pallas_call(
        kernel,
        out_shape=jax.ShapeDtypeStruct((B, out_ch, HW), jnp.float32),
        grid_spec=pltpu.PrefetchScalarGridSpec(
            num_scalar_prefetch=0,
            grid=(B,),
            in_specs=[
                pl.BlockSpec((1, in_ch, HW), lambda b: (b, 0, 0)),
                pl.BlockSpec((num_layers, cmax, K), lambda b: (0, 0, 0)),
                pl.BlockSpec((num_layers, cmax, 1), lambda b: (0, 0, 0)),
                pl.BlockSpec((num_layers, cmax, 1), lambda b: (0, 0, 0)),
            ],
            out_specs=pl.BlockSpec((1, out_ch, HW), lambda b: (b, 0, 0)),
            scratch_shapes=[
                pltpu.VMEM((cmax, Hp, Wp), jnp.float32),          # padded activation buffer
                pltpu.VMEM((kh * kw, cmax, HW), jnp.float32),     # im2col slab
            ],
        ),
        compiler_params=pltpu.CompilerParams(
            dimension_semantics=("parallel",),                    # batch axis -> both TCs on v7x
        ),
    )(x_flat, w_all, scale_all, bias_all)

    return out_flat.reshape(B, out_ch, H, W)


def init_nonblind_denoising_params(key, conv_num, channel_num, kernel_size, use_2dim):
    kh, kw = kernel_size
    in_ch = 3 if use_2dim else 2
    out_ch = 2 if use_2dim else 1
    eps = 1e-5

    def conv_init(k, cin, cout):
        k_w, k_b = jax.random.split(k)
        bound = 1.0 / float((cin * kh * kw) ** 0.5)
        w = jax.random.uniform(k_w, (kh, kw, cin, cout), jnp.float32, -bound, bound)
        b = jax.random.uniform(k_b, (cout,), jnp.float32, -bound, bound)
        return w, b

    keys = jax.random.split(key, conv_num + 2)

    w, b = conv_init(keys[0], in_ch, channel_num)
    first = {"w": w,
             "scale": jnp.ones((1, channel_num), jnp.float32),
             "bias": b.reshape(1, channel_num)}

    blocks = []
    for i in range(conv_num):
        k_conv, k_bn = jax.random.split(keys[1 + i])
        w, b = conv_init(k_conv, channel_num, channel_num)
        kg, kb, km, kv = jax.random.split(k_bn, 4)
        gamma = jax.random.uniform(kg, (channel_num,), jnp.float32, 0.5, 1.5)
        beta = 0.1 * jax.random.normal(kb, (channel_num,), jnp.float32)
        mean = 0.1 * jax.random.normal(km, (channel_num,), jnp.float32)
        var = jax.random.uniform(kv, (channel_num,), jnp.float32, 0.5, 1.5)
        s = gamma * jax.lax.rsqrt(var + eps)
        blocks.append({"w": w,
                       "scale": s.reshape(1, channel_num),
                       "bias": ((b - mean) * s + beta).reshape(1, channel_num)})

    w, b = conv_init(keys[-1], channel_num, out_ch)
    back = {"w": w,
            "scale": jnp.ones((1, out_ch), jnp.float32),
            "bias": b.reshape(1, out_ch)}

    return {"first": first, "blocks": blocks, "back": back}


# ---------------------------------------------------------------------------
# Pure-JAX reference.
# ---------------------------------------------------------------------------
def _reference_forward(params, x, *, kernel_size, use_2dim):
    kh, kw = kernel_size
    ph = (kh - 1) // 2
    pw = (kw - 1) // 2 if use_2dim else 0

    def layer(y, p, relu):
        w_oihw = jnp.transpose(p["w"], (3, 2, 0, 1))
        y = jax.lax.conv_general_dilated(
            y, w_oihw, window_strides=(1, 1),
            padding=((ph, ph), (pw, pw)),
            dimension_numbers=("NCHW", "OIHW", "NCHW"),
            precision=jax.lax.Precision.HIGHEST)
        y = y * p["scale"][0][None, :, None, None] + p["bias"][0][None, :, None, None]
        return jnp.maximum(y, 0.0) if relu else y

    y = layer(x, params["first"], True)
    for blk in params["blocks"]:
        y = layer(y, blk, True)
    return layer(y, params["back"], False)


if __name__ == "__main__":
    conv_num = 2
    channel_num = 4
    kernel_size = (3, 3)
    use_2dim = True

    B, H, W = 2, 16, 16
    in_ch = 3 if use_2dim else 2
    out_ch = 2 if use_2dim else 1

    key = jax.random.PRNGKey(0)
    k_params, k_x = jax.random.split(key)
    params = init_nonblind_denoising_params(
        k_params, conv_num, channel_num, kernel_size, use_2dim)
    x = jax.random.normal(k_x, (B, in_ch, H, W), dtype=jnp.float32)

    fwd = jax.jit(functools.partial(
        non_blind_denoising_forward, kernel_size=kernel_size, use_2dim=use_2dim))
    out = jax.block_until_ready(fwd(params, x))

    assert out.shape == (B, out_ch, H, W), out.shape

    ref = _reference_forward(params, x, kernel_size=kernel_size, use_2dim=use_2dim)
    max_err = float(jnp.max(jnp.abs(out - ref)))
    assert jnp.allclose(out, ref, rtol=1e-4, atol=1e-4), f"max abs err = {max_err}"

    print("KERNEL_OK")
</pallas_src>

<mosaic_0001>
module attributes {stable_mosaic.version = 11 : i64} {
  func.func @_fused_denoise_kernel(%arg0: i32, %arg1: memref<1x3x256xf32, #tpu.memory_space<vmem>>, %arg2: memref<4x4x36xf32, #tpu.memory_space<vmem>>, %arg3: memref<4x4x1xf32, #tpu.memory_space<vmem>>, %arg4: memref<4x4x1xf32, #tpu.memory_space<vmem>>, %arg5: memref<1x2x256xf32, #tpu.memory_space<vmem>>, %arg6: memref<4x18x18xf32, #tpu.memory_space<vmem>>, %arg7: memref<9x4x256xf32, #tpu.memory_space<vmem>>) attributes {dimension_semantics = [#tpu.dimension_semantics<parallel>], iteration_bounds = array<i64: 2>, scalar_prefetch = 0 : i64, scratch_operands = 2 : i64, tpu.core_type = #tpu.core_type<tc>, window_params = [{transform_indices = @transform_0, window_bounds = array<i64: 1, 3, 256>}, {pipeline_mode = #tpu.pipeline_mode<synchronous>, transform_indices = @transform_1, window_bounds = array<i64: 4, 4, 36>}, {pipeline_mode = #tpu.pipeline_mode<synchronous>, transform_indices = @transform_2, window_bounds = array<i64: 4, 4, 1>}, {pipeline_mode = #tpu.pipeline_mode<synchronous>, transform_indices = @transform_3, window_bounds = array<i64: 4, 4, 1>}, {transform_indices = @transform_4, window_bounds = array<i64: 1, 2, 256>}]} {
    %cst = arith.constant 0.000000e+00 : f32
    %0 = vector.broadcast %cst : f32 to vector<4x18x18xf32>
    %c0 = arith.constant 0 : index
    %c0_0 = arith.constant 0 : index
    %c0_1 = arith.constant 0 : index
    %1 = vector.load %arg6[%c0, %c0_0, %c0_1] : memref<4x18x18xf32, #tpu.memory_space<vmem>>, vector<4x18x18xf32>
    tpu.vector_store %arg6[%c0, %c0_0, %c0_1], %0 {strides = array<i32>} : memref<4x18x18xf32, #tpu.memory_space<vmem>>, vector<4x18x18xf32>,
    %c0_2 = arith.constant 0 : index
    %c0_3 = arith.constant 0 : index
    %c0_4 = arith.constant 0 : index
    %2 = vector.load %arg1[%c0_2, %c0_3, %c0_4] : memref<1x3x256xf32, #tpu.memory_space<vmem>>, vector<1x3x256xf32>
    %3 = vector.shape_cast %2 : vector<1x3x256xf32> to vector<3x256xf32>
    %4 = vector.shape_cast %3 : vector<3x256xf32> to vector<3x16x16xf32>
    %c0_5 = arith.constant 0 : index
    %c1 = arith.constant 1 : index
    %c1_6 = arith.constant 1 : index
    %5 = vector.load %arg6[%c0_5, %c1, %c1_6] : memref<4x18x18xf32, #tpu.memory_space<vmem>>, vector<3x16x16xf32>
    tpu.vector_store %arg6[%c0_5, %c1, %c1_6], %4 {strides = array<i32>} : memref<4x18x18xf32, #tpu.memory_space<vmem>>, vector<3x16x16xf32>,
    %c0_7 = arith.constant 0 : index
    %c0_8 = arith.constant 0 : index
    %c0_9 = arith.constant 0 : index
    %6 = vector.load %arg6[%c0_7, %c0_8, %c0_9] : memref<4x18x18xf32, #tpu.memory_space<vmem>>, vector<4x18x18xf32>
    %7 = vector.extract_strided_slice %6 {offsets = [0, 0, 0], sizes = [4, 16, 16], strides = [1, 1, 1]} : vector<4x18x18xf32> to vector<4x16x16xf32>
    %8 = vector.shape_cast %7 : vector<4x16x16xf32> to vector<4x256xf32>
    %c0_10 = arith.constant 0 : index
    %c0_11 = arith.constant 0 : index
    %c0_12 = arith.constant 0 : index
    %9 = vector.load %arg7[%c0_10, %c0_11, %c0_12] : memref<9x4x256xf32, #tpu.memory_space<vmem>>, vector<1x4x256xf32>
    %10 = vector.shape_cast %9 : vector<1x4x256xf32> to vector<4x256xf32>
    %11 = vector.shape_cast %8 : vector<4x256xf32> to vector<1x4x256xf32>
    tpu.vector_store %arg7[%c0_10, %c0_11, %c0_12], %11 {strides = array<i32>} : memref<9x4x256xf32, #tpu.memory_space<vmem>>, vector<1x4x256xf32>,
    %12 = vector.extract_strided_slice %6 {offsets = [0, 0, 1], sizes = [4, 16, 16], strides = [1, 1, 1]} : vector<4x18x18xf32> to vector<4x16x16xf32>
    %13 = vector.shape_cast %12 : vector<4x16x16xf32> to vector<4x256xf32>
    %c1_13 = arith.constant 1 : index
    %c0_14 = arith.constant 0 : index
    %c0_15 = arith.constant 0 : index
    %14 = vector.load %arg7[%c1_13, %c0_14, %c0_15] : memref<9x4x256xf32, #tpu.memory_space<vmem>>, vector<1x4x256xf32>
    %15 = vector.shape_cast %14 : vector<1x4x256xf32> to vector<4x256xf32>
    %16 = vector.shape_cast %13 : vector<4x256xf32> to vector<1x4x256xf32>
    tpu.vector_store %arg7[%c1_13, %c0_14, %c0_15], %16 {strides = array<i32>} : memref<9x4x256xf32, #tpu.memory_space<vmem>>, vector<1x4x256xf32>,
    %17 = vector.extract_strided_slice %6 {offsets = [0, 0, 2], sizes = [4, 16, 16], strides = [1, 1, 1]} : vector<4x18x18xf32> to vector<4x16x16xf32>
    %18 = vector.shape_cast %17 : vector<4x16x16xf32> to vector<4x256xf32>
    %c2 = arith.constant 2 : index
    %c0_16 = arith.constant 0 : index
    %c0_17 = arith.constant 0 : index
    %19 = vector.load %arg7[%c2, %c0_16, %c0_17] : memref<9x4x256xf32, #tpu.memory_space<vmem>>, vector<1x4x256xf32>
    %20 = vector.shape_cast %19 : vector<1x4x256xf32> to vector<4x256xf32>
    %21 = vector.shape_cast %18 : vector<4x256xf32> to vector<1x4x256xf32>
    tpu.vector_store %arg7[%c2, %c0_16, %c0_17], %21 {strides = array<i32>} : memref<9x4x256xf32, #tpu.memory_space<vmem>>, vector<1x4x256xf32>,
    %22 = vector.extract_strided_slice %6 {offsets = [0, 1, 0], sizes = [4, 16, 16], strides = [1, 1, 1]} : vector<4x18x18xf32> to vector<4x16x16xf32>
    %23 = vector.shape_cast %22 : vector<4x16x16xf32> to vector<4x256xf32>
    %c3 = arith.constant 3 : index
    %c0_18 = arith.constant 0 : index
    %c0_19 = arith.constant 0 : index
    %24 = vector.load %arg7[%c3, %c0_18, %c0_19] : memref<9x4x256xf32, #tpu.memory_space<vmem>>, vector<1x4x256xf32>
    %25 = vector.shape_cast %24 : vector<1x4x256xf32> to vector<4x256xf32>
    %26 = vector.shape_cast %23 : vector<4x256xf32> to vector<1x4x256xf32>
    tpu.vector_store %arg7[%c3, %c0_18, %c0_19], %26 {strides = array<i32>} : memref<9x4x256xf32, #tpu.memory_space<vmem>>, vector<1x4x256xf32>,
    %27 = vector.extract_strided_slice %6 {offsets = [0, 1, 1], sizes = [4, 16, 16], strides = [1, 1, 1]} : vector<4x18x18xf32> to vector<4x16x16xf32>
    %28 = vector.shape_cast %27 : vector<4x16x16xf32> to vector<4x256xf32>
    %c4 = arith.constant 4 : index
    %c0_20 = arith.constant 0 : index
    %c0_21 = arith.constant 0 : index
    %29 = vector.load %arg7[%c4, %c0_20, %c0_21] : memref<9x4x256xf32, #tpu.memory_space<vmem>>, vector<1x4x256xf32>
    %30 = vector.shape_cast %29 : vector<1x4x256xf32> to vector<4x256xf32>
    %31 = vector.shape_cast %28 : vector<4x256xf32> to vector<1x4x256xf32>
    tpu.vector_store %arg7[%c4, %c0_20, %c0_21], %31 {strides = array<i32>} : memref<9x4x256xf32, #tpu.memory_space<vmem>>, vector<1x4x256xf32>,
    %32 = vector.extract_strided_slice %6 {offsets = [0, 1, 2], sizes = [4, 16, 16], strides = [1, 1, 1]} : vector<4x18x18xf32> to vector<4x16x16xf32>
    %33 = vector.shape_cast %32 : vector<4x16x16xf32> to vector<4x256xf32>
    %c5 = arith.constant 5 : index
    %c0_22 = arith.constant 0 : index
    %c0_23 = arith.constant 0 : index
    %34 = vector.load %arg7[%c5, %c0_22, %c0_23] : memref<9x4x256xf32, #tpu.memory_space<vmem>>, vector<1x4x256xf32>
    %35 = vector.shape_cast %34 : vector<1x4x256xf32> to vector<4x256xf32>
    %36 = vector.shape_cast %33 : vector<4x256xf32> to vector<1x4x256xf32>
    tpu.vector_store %arg7[%c5, %c0_22, %c0_23], %36 {strides = array<i32>} : memref<9x4x256xf32, #tpu.memory_space<vmem>>, vector<1x4x256xf32>,
    %37 = vector.extract_strided_slice %6 {offsets = [0, 2, 0], sizes = [4, 16, 16], strides = [1, 1, 1]} : vector<4x18x18xf32> to vector<4x16x16xf32>
    %38 = vector.shape_cast %37 : vector<4x16x16xf32> to vector<4x256xf32>
    %c6 = arith.constant 6 : index
    %c0_24 = arith.constant 0 : index
    %c0_25 = arith.constant 0 : index
    %39 = vector.load %arg7[%c6, %c0_24, %c0_25] : memref<9x4x256xf32, #tpu.memory_space<vmem>>, vector<1x4x256xf32>
    %40 = vector.shape_cast %39 : vector<1x4x256xf32> to vector<4x256xf32>
    %41 = vector.shape_cast %38 : vector<4x256xf32> to vector<1x4x256xf32>
    tpu.vector_store %arg7[%c6, %c0_24, %c0_25], %41 {strides = array<i32>} : memref<9x4x256xf32, #tpu.memory_space<vmem>>, vector<1x4x256xf32>,
    %42 = vector.extract_strided_slice %6 {offsets = [0, 2, 1], sizes = [4, 16, 16], strides = [1, 1, 1]} : vector<4x18x18xf32> to vector<4x16x16xf32>
    %43 = vector.shape_cast %42 : vector<4x16x16xf32> to vector<4x256xf32>
    %c7 = arith.constant 7 : index
    %c0_26 = arith.constant 0 : index
    %c0_27 = arith.constant 0 : index
    %44 = vector.load %arg7[%c7, %c0_26, %c0_27] : memref<9x4x256xf32, #tpu.memory_space<vmem>>, vector<1x4x256xf32>
    %45 = vector.shape_cast %44 : vector<1x4x256xf32> to vector<4x256xf32>
    %46 = vector.shape_cast %43 : vector<4x256xf32> to vector<1x4x256xf32>
    tpu.vector_store %arg7[%c7, %c0_26, %c0_27], %46 {strides = array<i32>} : memref<9x4x256xf32, #tpu.memory_space<vmem>>, vector<1x4x256xf32>,
    %47 = vector.extract_strided_slice %6 {offsets = [0, 2, 2], sizes = [4, 16, 16], strides = [1, 1, 1]} : vector<4x18x18xf32> to vector<4x16x16xf32>
    %48 = vector.shape_cast %47 : vector<4x16x16xf32> to vector<4x256xf32>
    %c8 = arith.constant 8 : index
    %c0_28 = arith.constant 0 : index
    %c0_29 = arith.constant 0 : index
    %49 = vector.load %arg7[%c8, %c0_28, %c0_29] : memref<9x4x256xf32, #tpu.memory_space<vmem>>, vector<1x4x256xf32>
    %50 = vector.shape_cast %49 : vector<1x4x256xf32> to vector<4x256xf32>
    %51 = vector.shape_cast %48 : vector<4x256xf32> to vector<1x4x256xf32>
    tpu.vector_store %arg7[%c8, %c0_28, %c0_29], %51 {strides = array<i32>} : memref<9x4x256xf32, #tpu.memory_space<vmem>>, vector<1x4x256xf32>,
    %c0_30 = arith.constant 0 : index
    %c0_31 = arith.constant 0 : index
    %c0_32 = arith.constant 0 : index
    %52 = vector.load %arg7[%c0_30, %c0_31, %c0_32] : memref<9x4x256xf32, #tpu.memory_space<vmem>>, vector<9x4x256xf32>
    %53 = vector.shape_cast %52 : vector<9x4x256xf32> to vector<36x256xf32>
    %c0_33 = arith.constant 0 : index
    %c0_34 = arith.constant 0 : index
    %c0_35 = arith.constant 0 : index
    %54 = vector.load %arg2[%c0_33, %c0_34, %c0_35] : memref<4x4x36xf32, #tpu.memory_space<vmem>>, vector<1x4x36xf32>
    %55 = vector.shape_cast %54 : vector<1x4x36xf32> to vector<4x36xf32>
    %cst_36 = arith.constant dense<0.000000e+00> : vector<4x256xf32>
    %56 = tpu.matmul %55, %53, %cst_36 {dimension_numbers = #tpu.dot_dimension_numbers<[1], [0], [0], [1], [0, 0, 1, 1], [], []>, precision = #tpu.contract_precision<fp32>} : vector<4x36xf32>, vector<36x256xf32>, vector<4x256xf32> -> vector<4x256xf32>
    %c0_37 = arith.constant 0 : index
    %c0_38 = arith.constant 0 : index
    %c0_39 = arith.constant 0 : index
    %57 = vector.load %arg3[%c0_37, %c0_38, %c0_39] : memref<4x4x1xf32, #tpu.memory_space<vmem>>, vector<1x4x1xf32>
    %58 = vector.shape_cast %57 : vector<1x4x1xf32> to vector<4x1xf32>
    %59 = vector.broadcast %58 : vector<4x1xf32> to vector<4x256xf32>
    %60 = arith.mulf %56, %59 : vector<4x256xf32>
    %c0_40 = arith.constant 0 : index
    %c0_41 = arith.constant 0 : index
    %c0_42 = arith.constant 0 : index
    %61 = vector.load %arg4[%c0_40, %c0_41, %c0_42] : memref<4x4x1xf32, #tpu.memory_space<vmem>>, vector<1x4x1xf32>
    %62 = vector.shape_cast %61 : vector<1x4x1xf32> to vector<4x1xf32>
    %63 = vector.broadcast %62 : vector<4x1xf32> to vector<4x256xf32>
    %64 = arith.addf %60, %63 : vector<4x256xf32>
    %cst_43 = arith.constant 0.000000e+00 : f32
    %65 = vector.broadcast %cst_43 : f32 to vector<4x256xf32>
    %66 = arith.maximumf %64, %65 : vector<4x256xf32>
    %67 = vector.shape_cast %66 : vector<4x256xf32> to vector<4x16x16xf32>
    %c0_44 = arith.constant 0 : index
    %c1_45 = arith.constant 1 : index
    %c1_46 = arith.constant 1 : index
    %68 = vector.load %arg6[%c0_44, %c1_45, %c1_46] : memref<4x18x18xf32, #tpu.memory_space<vmem>>, vector<4x16x16xf32>
    tpu.vector_store %arg6[%c0_44, %c1_45, %c1_46], %67 {strides = array<i32>} : memref<4x18x18xf32, #tpu.memory_space<vmem>>, vector<4x16x16xf32>,
    %c0_47 = arith.constant 0 : index
    %c0_48 = arith.constant 0 : index
    %c0_49 = arith.constant 0 : index
    %69 = vector.load %arg6[%c0_47, %c0_48, %c0_49] : memref<4x18x18xf32, #tpu.memory_space<vmem>>, vector<4x18x18xf32>
    %70 = vector.extract_strided_slice %69 {offsets = [0, 0, 0], sizes = [4, 16, 16], strides = [1, 1, 1]} : vector<4x18x18xf32> to vector<4x16x16xf32>
    %71 = vector.shape_cast %70 : vector<4x16x16xf32> to vector<4x256xf32>
    %c0_50 = arith.constant 0 : index
    %c0_51 = arith.constant 0 : index
    %c0_52 = arith.constant 0 : index
    %72 = vector.load %arg7[%c0_50, %c0_51, %c0_52] : memref<9x4x256xf32, #tpu.memory_space<vmem>>, vector<1x4x256xf32>
    %73 = vector.shape_cast %72 : vector<1x4x256xf32> to vector<4x256xf32>
    %74 = vector.shape_cast %71 : vector<4x256xf32> to vector<1x4x256xf32>
    tpu.vector_store %arg7[%c0_50, %c0_51, %c0_52], %74 {strides = array<i32>} : memref<9x4x256xf32, #tpu.memory_space<vmem>>, vector<1x4x256xf32>,
    %75 = vector.extract_strided_slice %69 {offsets = [0, 0, 1], sizes = [4, 16, 16], strides = [1, 1, 1]} : vector<4x18x18xf32> to vector<4x16x16xf32>
    %76 = vector.shape_cast %75 : vector<4x16x16xf32> to vector<4x256xf32>
    %c1_53 = arith.constant 1 : index
    %c0_54 = arith.constant 0 : index
    %c0_55 = arith.constant 0 : index
    %77 = vector.load %arg7[%c1_53, %c0_54, %c0_55] : memref<9x4x256xf32, #tpu.memory_space<vmem>>, vector<1x4x256xf32>
    %78 = vector.shape_cast %77 : vector<1x4x256xf32> to vector<4x256xf32>
    %79 = vector.shape_cast %76 : vector<4x256xf32> to vector<1x4x256xf32>
    tpu.vector_store %arg7[%c1_53, %c0_54, %c0_55], %79 {strides = array<i32>} : memref<9x4x256xf32, #tpu.memory_space<vmem>>, vector<1x4x256xf32>,
    %80 = vector.extract_strided_slice %69 {offsets = [0, 0, 2], sizes = [4, 16, 16], strides = [1, 1, 1]} : vector<4x18x18xf32> to vector<4x16x16xf32>
    %81 = vector.shape_cast %80 : vector<4x16x16xf32> to vector<4x256xf32>
    %c2_56 = arith.constant 2 : index
    %c0_57 = arith.constant 0 : index
    %c0_58 = arith.constant 0 : index
    %82 = vector.load %arg7[%c2_56, %c0_57, %c0_58] : memref<9x4x256xf32, #tpu.memory_space<vmem>>, vector<1x4x256xf32>
    %83 = vector.shape_cast %82 : vector<1x4x256xf32> to vector<4x256xf32>
    %84 = vector.shape_cast %81 : vector<4x256xf32> to vector<1x4x256xf32>
    tpu.vector_store %arg7[%c2_56, %c0_57, %c0_58], %84 {strides = array<i32>} : memref<9x4x256xf32, #tpu.memory_space<vmem>>, vector<1x4x256xf32>,
    %85 = vector.extract_strided_slice %69 {offsets = [0, 1, 0], sizes = [4, 16, 16], strides = [1, 1, 1]} : vector<4x18x18xf32> to vector<4x16x16xf32>
    %86 = vector.shape_cast %85 : vector<4x16x16xf32> to vector<4x256xf32>
    %c3_59 = arith.constant 3 : index
    %c0_60 = arith.constant 0 : index
    %c0_61 = arith.constant 0 : index
    %87 = vector.load %arg7[%c3_59, %c0_60, %c0_61] : memref<9x4x256xf32, #tpu.memory_space<vmem>>, vector<1x4x256xf32>
    %88 = vector.shape_cast %87 : vector<1x4x256xf32> to vector<4x256xf32>
    %89 = vector.shape_cast %86 : vector<4x256xf32> to vector<1x4x256xf32>
    tpu.vector_store %arg7[%c3_59, %c0_60, %c0_61], %89 {strides = array<i32>} : memref<9x4x256xf32, #tpu.memory_space<vmem>>, vector<1x4x256xf32>,
    %90 = vector.extract_strided_slice %69 {offsets = [0, 1, 1], sizes = [4, 16, 16], strides = [1, 1, 1]} : vector<4x18x18xf32> to vector<4x16x16xf32>
    %91 = vector.shape_cast %90 : vector<4x16x16xf32> to vector<4x256xf32>
    %c4_62 = arith.constant 4 : index
    %c0_63 = arith.constant 0 : index
    %c0_64 = arith.constant 0 : index
    %92 = vector.load %arg7[%c4_62, %c0_63, %c0_64] : memref<9x4x256xf32, #tpu.memory_space<vmem>>, vector<1x4x256xf32>
    %93 = vector.shape_cast %92 : vector<1x4x256xf32> to vector<4x256xf32>
    %94 = vector.shape_cast %91 : vector<4x256xf32> to vector<1x4x256xf32>
    tpu.vector_store %arg7[%c4_62, %c0_63, %c0_64], %94 {strides = array<i32>} : memref<9x4x256xf32, #tpu.memory_space<vmem>>, vector<1x4x256xf32>,
    %95 = vector.extract_strided_slice %69 {offsets = [0, 1, 2], sizes = [4, 16, 16], strides = [1, 1, 1]} : vector<4x18x18xf32> to vector<4x16x16xf32>
    %96 = vector.shape_cast %95 : vector<4x16x16xf32> to vector<4x256xf32>
    %c5_65 = arith.constant 5 : index
    %c0_66 = arith.constant 0 : index
    %c0_67 = arith.constant 0 : index
    %97 = vector.load %arg7[%c5_65, %c0_66, %c0_67] : memref<9x4x256xf32, #tpu.memory_space<vmem>>, vector<1x4x256xf32>
    %98 = vector.shape_cast %97 : vector<1x4x256xf32> to vector<4x256xf32>
    %99 = vector.shape_cast %96 : vector<4x256xf32> to vector<1x4x256xf32>
    tpu.vector_store %arg7[%c5_65, %c0_66, %c0_67], %99 {strides = array<i32>} : memref<9x4x256xf32, #tpu.memory_space<vmem>>, vector<1x4x256xf32>,
    %100 = vector.extract_strided_slice %69 {offsets = [0, 2, 0], sizes = [4, 16, 16], strides = [1, 1, 1]} : vector<4x18x18xf32> to vector<4x16x16xf32>
    %101 = vector.shape_cast %100 : vector<4x16x16xf32> to vector<4x256xf32>
    %c6_68 = arith.constant 6 : index
    %c0_69 = arith.constant 0 : index
    %c0_70 = arith.constant 0 : index
    %102 = vector.load %arg7[%c6_68, %c0_69, %c0_70] : memref<9x4x256xf32, #tpu.memory_space<vmem>>, vector<1x4x256xf32>
    %103 = vector.shape_cast %102 : vector<1x4x256xf32> to vector<4x256xf32>
    %104 = vector.shape_cast %101 : vector<4x256xf32> to vector<1x4x256xf32>
    tpu.vector_store %arg7[%c6_68, %c0_69, %c0_70], %104 {strides = array<i32>} : memref<9x4x256xf32, #tpu.memory_space<vmem>>, vector<1x4x256xf32>,
    %105 = vector.extract_strided_slice %69 {offsets = [0, 2, 1], sizes = [4, 16, 16], strides = [1, 1, 1]} : vector<4x18x18xf32> to vector<4x16x16xf32>
    %106 = vector.shape_cast %105 : vector<4x16x16xf32> to vector<4x256xf32>
    %c7_71 = arith.constant 7 : index
    %c0_72 = arith.constant 0 : index
    %c0_73 = arith.constant 0 : index
    %107 = vector.load %arg7[%c7_71, %c0_72, %c0_73] : memref<9x4x256xf32, #tpu.memory_space<vmem>>, vector<1x4x256xf32>
    %108 = vector.shape_cast %107 : vector<1x4x256xf32> to vector<4x256xf32>
    %109 = vector.shape_cast %106 : vector<4x256xf32> to vector<1x4x256xf32>
    tpu.vector_store %arg7[%c7_71, %c0_72, %c0_73], %109 {strides = array<i32>} : memref<9x4x256xf32, #tpu.memory_space<vmem>>, vector<1x4x256xf32>,
    %110 = vector.extract_strided_slice %69 {offsets = [0, 2, 2], sizes = [4, 16, 16], strides = [1, 1, 1]} : vector<4x18x18xf32> to vector<4x16x16xf32>
    %111 = vector.shape_cast %110 : vector<4x16x16xf32> to vector<4x256xf32>
    %c8_74 = arith.constant 8 : index
    %c0_75 = arith.constant 0 : index
    %c0_76 = arith.constant 0 : index
    %112 = vector.load %arg7[%c8_74, %c0_75, %c0_76] : memref<9x4x256xf32, #tpu.memory_space<vmem>>, vector<1x4x256xf32>
    %113 = vector.shape_cast %112 : vector<1x4x256xf32> to vector<4x256xf32>
    %114 = vector.shape_cast %111 : vector<4x256xf32> to vector<1x4x256xf32>
    tpu.vector_store %arg7[%c8_74, %c0_75, %c0_76], %114 {strides = array<i32>} : memref<9x4x256xf32, #tpu.memory_space<vmem>>, vector<1x4x256xf32>,
    %c0_77 = arith.constant 0 : index
    %c0_78 = arith.constant 0 : index
    %c0_79 = arith.constant 0 : index
    %115 = vector.load %arg7[%c0_77, %c0_78, %c0_79] : memref<9x4x256xf32, #tpu.memory_space<vmem>>, vector<9x4x256xf32>
    %116 = vector.shape_cast %115 : vector<9x4x256xf32> to vector<36x256xf32>
    %c1_80 = arith.constant 1 : index
    %c0_81 = arith.constant 0 : index
    %c0_82 = arith.constant 0 : index
    %117 = vector.load %arg2[%c1_80, %c0_81, %c0_82] : memref<4x4x36xf32, #tpu.memory_space<vmem>>, vector<1x4x36xf32>
    %118 = vector.shape_cast %117 : vector<1x4x36xf32> to vector<4x36xf32>
    %cst_83 = arith.constant dense<0.000000e+00> : vector<4x256xf32>
    %119 = tpu.matmul %118, %116, %cst_83 {dimension_numbers = #tpu.dot_dimension_numbers<[1], [0], [0], [1], [0, 0, 1, 1], [], []>, precision = #tpu.contract_precision<fp32>} : vector<4x36xf32>, vector<36x256xf32>, vector<4x256xf32> -> vector<4x256xf32>
    %c1_84 = arith.constant 1 : index
    %c0_85 = arith.constant 0 : index
    %c0_86 = arith.constant 0 : index
    %120 = vector.load %arg3[%c1_84, %c0_85, %c0_86] : memref<4x4x1xf32, #tpu.memory_space<vmem>>, vector<1x4x1xf32>
    %121 = vector.shape_cast %120 : vector<1x4x1xf32> to vector<4x1xf32>
    %122 = vector.broadcast %121 : vector<4x1xf32> to vector<4x256xf32>
    %123 = arith.mulf %119, %122 : vector<4x256xf32>
    %c1_87 = arith.constant 1 : index
    %c0_88 = arith.constant 0 : index
    %c0_89 = arith.constant 0 : index
    %124 = vector.load %arg4[%c1_87, %c0_88, %c0_89] : memref<4x4x1xf32, #tpu.memory_space<vmem>>, vector<1x4x1xf32>
    %125 = vector.shape_cast %124 : vector<1x4x1xf32> to vector<4x1xf32>
    %126 = vector.broadcast %125 : vector<4x1xf32> to vector<4x256xf32>
    %127 = arith.addf %123, %126 : vector<4x256xf32>
    %cst_90 = arith.constant 0.000000e+00 : f32
    %128 = vector.broadcast %cst_90 : f32 to vector<4x256xf32>
    %129 = arith.maximumf %127, %128 : vector<4x256xf32>
    %130 = vector.shape_cast %129 : vector<4x256xf32> to vector<4x16x16xf32>
    %c0_91 = arith.constant 0 : index
    %c1_92 = arith.constant 1 : index
    %c1_93 = arith.constant 1 : index
    %131 = vector.load %arg6[%c0_91, %c1_92, %c1_93] : memref<4x18x18xf32, #tpu.memory_space<vmem>>, vector<4x16x16xf32>
    tpu.vector_store %arg6[%c0_91, %c1_92, %c1_93], %130 {strides = array<i32>} : memref<4x18x18xf32, #tpu.memory_space<vmem>>, vector<4x16x16xf32>,
    %c0_94 = arith.constant 0 : index
    %c0_95 = arith.constant 0 : index
    %c0_96 = arith.constant 0 : index
    %132 = vector.load %arg6[%c0_94, %c0_95, %c0_96] : memref<4x18x18xf32, #tpu.memory_space<vmem>>, vector<4x18x18xf32>
    %133 = vector.extract_strided_slice %132 {offsets = [0, 0, 0], sizes = [4, 16, 16], strides = [1, 1, 1]} : vector<4x18x18xf32> to vector<4x16x16xf32>
    %134 = vector.shape_cast %133 : vector<4x16x16xf32> to vector<4x256xf32>
    %c0_97 = arith.constant 0 : index
    %c0_98 = arith.constant 0 : index
    %c0_99 = arith.constant 0 : index
    %135 = vector.load %arg7[%c0_97, %c0_98, %c0_99] : memref<9x4x256xf32, #tpu.memory_space<vmem>>, vector<1x4x256xf32>
    %136 = vector.shape_cast %135 : vector<1x4x256xf32> to vector<4x256xf32>
    %137 = vector.shape_cast %134 : vector<4x256xf32> to vector<1x4x256xf32>
    tpu.vector_store %arg7[%c0_97, %c0_98, %c0_99], %137 {strides = array<i32>} : memref<9x4x256xf32, #tpu.memory_space<vmem>>, vector<1x4x256xf32>,
    %138 = vector.extract_strided_slice %132 {offsets = [0, 0, 1], sizes = [4, 16, 16], strides = [1, 1, 1]} : vector<4x18x18xf32> to vector<4x16x16xf32>
    %139 = vector.shape_cast %138 : vector<4x16x16xf32> to vector<4x256xf32>
    %c1_100 = arith.constant 1 : index
    %c0_101 = arith.constant 0 : index
    %c0_102 = arith.constant 0 : index
    %140 = vector.load %arg7[%c1_100, %c0_101, %c0_102] : memref<9x4x256xf32, #tpu.memory_space<vmem>>, vector<1x4x256xf32>
    %141 = vector.shape_cast %140 : vector<1x4x256xf32> to vector<4x256xf32>
    %142 = vector.shape_cast %139 : vector<4x256xf32> to vector<1x4x256xf32>
    tpu.vector_store %arg7[%c1_100, %c0_101, %c0_102], %142 {strides = array<i32>} : memref<9x4x256xf32, #tpu.memory_space<vmem>>, vector<1x4x256xf32>,
    %143 = vector.extract_strided_slice %132 {offsets = [0, 0, 2], sizes = [4, 16, 16], strides = [1, 1, 1]} : vector<4x18x18xf32> to vector<4x16x16xf32>
    %144 = vector.shape_cast %143 : vector<4x16x16xf32> to vector<4x256xf32>
    %c2_103 = arith.constant 2 : index
    %c0_104 = arith.constant 0 : index
    %c0_105 = arith.constant 0 : index
    %145 = vector.load %arg7[%c2_103, %c0_104, %c0_105] : memref<9x4x256xf32, #tpu.memory_space<vmem>>, vector<1x4x256xf32>
    %146 = vector.shape_cast %145 : vector<1x4x256xf32> to vector<4x256xf32>
    %147 = vector.shape_cast %144 : vector<4x256xf32> to vector<1x4x256xf32>
    tpu.vector_store %arg7[%c2_103, %c0_104, %c0_105], %147 {strides = array<i32>} : memref<9x4x256xf32, #tpu.memory_space<vmem>>, vector<1x4x256xf32>,
    %148 = vector.extract_strided_slice %132 {offsets = [0, 1, 0], sizes = [4, 16, 16], strides = [1, 1, 1]} : vector<4x18x18xf32> to vector<4x16x16xf32>
    %149 = vector.shape_cast %148 : vector<4x16x16xf32> to vector<4x256xf32>
    %c3_106 = arith.constant 3 : index
    %c0_107 = arith.constant 0 : index
    %c0_108 = arith.constant 0 : index
    %150 = vector.load %arg7[%c3_106, %c0_107, %c0_108] : memref<9x4x256xf32, #tpu.memory_space<vmem>>, vector<1x4x256xf32>
    %151 = vector.shape_cast %150 : vector<1x4x256xf32> to vector<4x256xf32>
    %152 = vector.shape_cast %149 : vector<4x256xf32> to vector<1x4x256xf32>
    tpu.vector_store %arg7[%c3_106, %c0_107, %c0_108], %152 {strides = array<i32>} : memref<9x4x256xf32, #tpu.memory_space<vmem>>, vector<1x4x256xf32>,
    %153 = vector.extract_strided_slice %132 {offsets = [0, 1, 1], sizes = [4, 16, 16], strides = [1, 1, 1]} : vector<4x18x18xf32> to vector<4x16x16xf32>
    %154 = vector.shape_cast %153 : vector<4x16x16xf32> to vector<4x256xf32>
    %c4_109 = arith.constant 4 : index
    %c0_110 = arith.constant 0 : index
    %c0_111 = arith.constant 0 : index
    %155 = vector.load %arg7[%c4_109, %c0_110, %c0_111] : memref<9x4x256xf32, #tpu.memory_space<vmem>>, vector<1x4x256xf32>
    %156 = vector.shape_cast %155 : vector<1x4x256xf32> to vector<4x256xf32>
    %157 = vector.shape_cast %154 : vector<4x256xf32> to vector<1x4x256xf32>
    tpu.vector_store %arg7[%c4_109, %c0_110, %c0_111], %157 {strides = array<i32>} : memref<9x4x256xf32, #tpu.memory_space<vmem>>, vector<1x4x256xf32>,
    %158 = vector.extract_strided_slice %132 {offsets = [0, 1, 2], sizes = [4, 16, 16], strides = [1, 1, 1]} : vector<4x18x18xf32> to vector<4x16x16xf32>
    %159 = vector.shape_cast %158 : vector<4x16x16xf32> to vector<4x256xf32>
    %c5_112 = arith.constant 5 : index
    %c0_113 = arith.constant 0 : index
    %c0_114 = arith.constant 0 : index
    %160 = vector.load %arg7[%c5_112, %c0_113, %c0_114] : memref<9x4x256xf32, #tpu.memory_space<vmem>>, vector<1x4x256xf32>
    %161 = vector.shape_cast %160 : vector<1x4x256xf32> to vector<4x256xf32>
    %162 = vector.shape_cast %159 : vector<4x256xf32> to vector<1x4x256xf32>
    tpu.vector_store %arg7[%c5_112, %c0_113, %c0_114], %162 {strides = array<i32>} : memref<9x4x256xf32, #tpu.memory_space<vmem>>, vector<1x4x256xf32>,
    %163 = vector.extract_strided_slice %132 {offsets = [0, 2, 0], sizes = [4, 16, 16], strides = [1, 1, 1]} : vector<4x18x18xf32> to vector<4x16x16xf32>
    %164 = vector.shape_cast %163 : vector<4x16x16xf32> to vector<4x256xf32>
    %c6_115 = arith.constant 6 : index
    %c0_116 = arith.constant 0 : index
    %c0_117 = arith.constant 0 : index
    %165 = vector.load %arg7[%c6_115, %c0_116, %c0_117] : memref<9x4x256xf32, #tpu.memory_space<vmem>>, vector<1x4x256xf32>
    %166 = vector.shape_cast %165 : vector<1x4x256xf32> to vector<4x256xf32>
    %167 = vector.shape_cast %164 : vector<4x256xf32> to vector<1x4x256xf32>
    tpu.vector_store %arg7[%c6_115, %c0_116, %c0_117], %167 {strides = array<i32>} : memref<9x4x256xf32, #tpu.memory_space<vmem>>, vector<1x4x256xf32>,
    %168 = vector.extract_strided_slice %132 {offsets = [0, 2, 1], sizes = [4, 16, 16], strides = [1, 1, 1]} : vector<4x18x18xf32> to vector<4x16x16xf32>
    %169 = vector.shape_cast %168 : vector<4x16x16xf32> to vector<4x256xf32>
    %c7_118 = arith.constant 7 : index
    %c0_119 = arith.constant 0 : index
    %c0_120 = arith.constant 0 : index
    %170 = vector.load %arg7[%c7_118, %c0_119, %c0_120] : memref<9x4x256xf32, #tpu.memory_space<vmem>>, vector<1x4x256xf32>
    %171 = vector.shape_cast %170 : vector<1x4x256xf32> to vector<4x256xf32>
    %172 = vector.shape_cast %169 : vector<4x256xf32> to vector<1x4x256xf32>
    tpu.vector_store %arg7[%c7_118, %c0_119, %c0_120], %172 {strides = array<i32>} : memref<9x4x256xf32, #tpu.memory_space<vmem>>, vector<1x4x256xf32>,
    %173 = vector.extract_strided_slice %132 {offsets = [0, 2, 2], sizes = [4, 16, 16], strides = [1, 1, 1]} : vector<4x18x18xf32> to vector<4x16x16xf32>
    %174 = vector.shape_cast %173 : vector<4x16x16xf32> to vector<4x256xf32>
    %c8_121 = arith.constant 8 : index
    %c0_122 = arith.constant 0 : index
    %c0_123 = arith.constant 0 : index
    %175 = vector.load %arg7[%c8_121, %c0_122, %c0_123] : memref<9x4x256xf32, #tpu.memory_space<vmem>>, vector<1x4x256xf32>
    %176 = vector.shape_cast %175 : vector<1x4x256xf32> to vector<4x256xf32>
    %177 = vector.shape_cast %174 : vector<4x256xf32> to vector<1x4x256xf32>
    tpu.vector_store %arg7[%c8_121, %c0_122, %c0_123], %177 {strides = array<i32>} : memref<9x4x256xf32, #tpu.memory_space<vmem>>, vector<1x4x256xf32>,
    %c0_124 = arith.constant 0 : index
    %c0_125 = arith.constant 0 : index
    %c0_126 = arith.constant 0 : index
    %178 = vector.load %arg7[%c0_124, %c0_125, %c0_126] : memref<9x4x256xf32, #tpu.memory_space<vmem>>, vector<9x4x256xf32>
    %179 = vector.shape_cast %178 : vector<9x4x256xf32> to vector<36x256xf32>
    %c2_127 = arith.constant 2 : index
    %c0_128 = arith.constant 0 : index
    %c0_129 = arith.constant 0 : index
    %180 = vector.load %arg2[%c2_127, %c0_128, %c0_129] : memref<4x4x36xf32, #tpu.memory_space<vmem>>, vector<1x4x36xf32>
    %181 = vector.shape_cast %180 : vector<1x4x36xf32> to vector<4x36xf32>
    %cst_130 = arith.constant dense<0.000000e+00> : vector<4x256xf32>
    %182 = tpu.matmul %181, %179, %cst_130 {dimension_numbers = #tpu.dot_dimension_numbers<[1], [0], [0], [1], [0, 0, 1, 1], [], []>, precision = #tpu.contract_precision<fp32>} : vector<4x36xf32>, vector<36x256xf32>, vector<4x256xf32> -> vector<4x256xf32>
    %c2_131 = arith.constant 2 : index
    %c0_132 = arith.constant 0 : index
    %c0_133 = arith.constant 0 : index
    %183 = vector.load %arg3[%c2_131, %c0_132, %c0_133] : memref<4x4x1xf32, #tpu.memory_space<vmem>>, vector<1x4x1xf32>
    %184 = vector.shape_cast %183 : vector<1x4x1xf32> to vector<4x1xf32>
    %185 = vector.broadcast %184 : vector<4x1xf32> to vector<4x256xf32>
    %186 = arith.mulf %182, %185 : vector<4x256xf32>
    %c2_134 = arith.constant 2 : index
    %c0_135 = arith.constant 0 : index
    %c0_136 = arith.constant 0 : index
    %187 = vector.load %arg4[%c2_134, %c0_135, %c0_136] : memref<4x4x1xf32, #tpu.memory_space<vmem>>, vector<1x4x1xf32>
    %188 = vector.shape_cast %187 : vector<1x4x1xf32> to vector<4x1xf32>
    %189 = vector.broadcast %188 : vector<4x1xf32> to vector<4x256xf32>
    %190 = arith.addf %186, %189 : vector<4x256xf32>
    %cst_137 = arith.constant 0.000000e+00 : f32
    %191 = vector.broadcast %cst_137 : f32 to vector<4x256xf32>
    %192 = arith.maximumf %190, %191 : vector<4x256xf32>
    %193 = vector.shape_cast %192 : vector<4x256xf32> to vector<4x16x16xf32>
    %c0_138 = arith.constant 0 : index
    %c1_139 = arith.constant 1 : index
    %c1_140 = arith.constant 1 : index
    %194 = vector.load %arg6[%c0_138, %c1_139, %c1_140] : memref<4x18x18xf32, #tpu.memory_space<vmem>>, vector<4x16x16xf32>
    tpu.vector_store %arg6[%c0_138, %c1_139, %c1_140], %193 {strides = array<i32>} : memref<4x18x18xf32, #tpu.memory_space<vmem>>, vector<4x16x16xf32>,
    %c0_141 = arith.constant 0 : index
    %c0_142 = arith.constant 0 : index
    %c0_143 = arith.constant 0 : index
    %195 = vector.load %arg6[%c0_141, %c0_142, %c0_143] : memref<4x18x18xf32, #tpu.memory_space<vmem>>, vector<4x18x18xf32>
    %196 = vector.extract_strided_slice %195 {offsets = [0, 0, 0], sizes = [4, 16, 16], strides = [1, 1, 1]} : vector<4x18x18xf32> to vector<4x16x16xf32>
    %197 = vector.shape_cast %196 : vector<4x16x16xf32> to vector<4x256xf32>
    %c0_144 = arith.constant 0 : index
    %c0_145 = arith.constant 0 : index
    %c0_146 = arith.constant 0 : index
    %198 = vector.load %arg7[%c0_144, %c0_145, %c0_146] : memref<9x4x256xf32, #tpu.memory_space<vmem>>, vector<1x4x256xf32>
    %199 = vector.shape_cast %198 : vector<1x4x256xf32> to vector<4x256xf32>
    %200 = vector.shape_cast %197 : vector<4x256xf32> to vector<1x4x256xf32>
    tpu.vector_store %arg7[%c0_144, %c0_145, %c0_146], %200 {strides = array<i32>} : memref<9x4x256xf32, #tpu.memory_space<vmem>>, vector<1x4x256xf32>,
    %201 = vector.extract_strided_slice %195 {offsets = [0, 0, 1], sizes = [4, 16, 16], strides = [1, 1, 1]} : vector<4x18x18xf32> to vector<4x16x16xf32>
    %202 = vector.shape_cast %201 : vector<4x16x16xf32> to vector<4x256xf32>
    %c1_147 = arith.constant 1 : index
    %c0_148 = arith.constant 0 : index
    %c0_149 = arith.constant 0 : index
    %203 = vector.load %arg7[%c1_147, %c0_148, %c0_149] : memref<9x4x256xf32, #tpu.memory_space<vmem>>, vector<1x4x256xf32>
    %204 = vector.shape_cast %203 : vector<1x4x256xf32> to vector<4x256xf32>
    %205 = vector.shape_cast %202 : vector<4x256xf32> to vector<1x4x256xf32>
    tpu.vector_store %arg7[%c1_147, %c0_148, %c0_149], %205 {strides = array<i32>} : memref<9x4x256xf32, #tpu.memory_space<vmem>>, vector<1x4x256xf32>,
    %206 = vector.extract_strided_slice %195 {offsets = [0, 0, 2], sizes = [4, 16, 16], strides = [1, 1, 1]} : vector<4x18x18xf32> to vector<4x16x16xf32>
    %207 = vector.shape_cast %206 : vector<4x16x16xf32> to vector<4x256xf32>
    %c2_150 = arith.constant 2 : index
    %c0_151 = arith.constant 0 : index
    %c0_152 = arith.constant 0 : index
    %208 = vector.load %arg7[%c2_150, %c0_151, %c0_152] : memref<9x4x256xf32, #tpu.memory_space<vmem>>, vector<1x4x256xf32>
    %209 = vector.shape_cast %208 : vector<1x4x256xf32> to vector<4x256xf32>
    %210 = vector.shape_cast %207 : vector<4x256xf32> to vector<1x4x256xf32>
    tpu.vector_store %arg7[%c2_150, %c0_151, %c0_152], %210 {strides = array<i32>} : memref<9x4x256xf32, #tpu.memory_space<vmem>>, vector<1x4x256xf32>,
    %211 = vector.extract_strided_slice %195 {offsets = [0, 1, 0], sizes = [4, 16, 16], strides = [1, 1, 1]} : vector<4x18x18xf32> to vector<4x16x16xf32>
    %212 = vector.shape_cast %211 : vector<4x16x16xf32> to vector<4x256xf32>
    %c3_153 = arith.constant 3 : index
    %c0_154 = arith.constant 0 : index
    %c0_155 = arith.constant 0 : index
    %213 = vector.load %arg7[%c3_153, %c0_154, %c0_155] : memref<9x4x256xf32, #tpu.memory_space<vmem>>, vector<1x4x256xf32>
    %214 = vector.shape_cast %213 : vector<1x4x256xf32> to vector<4x256xf32>
    %215 = vector.shape_cast %212 : vector<4x256xf32> to vector<1x4x256xf32>
    tpu.vector_store %arg7[%c3_153, %c0_154, %c0_155], %215 {strides = array<i32>} : memref<9x4x256xf32, #tpu.memory_space<vmem>>, vector<1x4x256xf32>,
    %216 = vector.extract_strided_slice %195 {offsets = [0, 1, 1], sizes = [4, 16, 16], strides = [1, 1, 1]} : vector<4x18x18xf32> to vector<4x16x16xf32>
    %217 = vector.shape_cast %216 : vector<4x16x16xf32> to vector<4x256xf32>
    %c4_156 = arith.constant 4 : index
    %c0_157 = arith.constant 0 : index
    %c0_158 = arith.constant 0 : index
    %218 = vector.load %arg7[%c4_156, %c0_157, %c0_158] : memref<9x4x256xf32, #tpu.memory_space<vmem>>, vector<1x4x256xf32>
    %219 = vector.shape_cast %218 : vector<1x4x256xf32> to vector<4x256xf32>
    %220 = vector.shape_cast %217 : vector<4x256xf32> to vector<1x4x256xf32>
    tpu.vector_store %arg7[%c4_156, %c0_157, %c0_158], %220 {strides = array<i32>} : memref<9x4x256xf32, #tpu.memory_space<vmem>>, vector<1x4x256xf32>,
    %221 = vector.extract_strided_slice %195 {offsets = [0, 1, 2], sizes = [4, 16, 16], strides = [1, 1, 1]} : vector<4x18x18xf32> to vector<4x16x16xf32>
    %222 = vector.shape_cast %221 : vector<4x16x16xf32> to vector<4x256xf32>
    %c5_159 = arith.constant 5 : index
    %c0_160 = arith.constant 0 : index
    %c0_161 = arith.constant 0 : index
    %223 = vector.load %arg7[%c5_159, %c0_160, %c0_161] : memref<9x4x256xf32, #tpu.memory_space<vmem>>, vector<1x4x256xf32>
    %224 = vector.shape_cast %223 : vector<1x4x256xf32> to vector<4x256xf32>
    %225 = vector.shape_cast %222 : vector<4x256xf32> to vector<1x4x256xf32>
    tpu.vector_store %arg7[%c5_159, %c0_160, %c0_161], %225 {strides = array<i32>} : memref<9x4x256xf32, #tpu.memory_space<vmem>>, vector<1x4x256xf32>,
    %226 = vector.extract_strided_slice %195 {offsets = [0, 2, 0], sizes = [4, 16, 16], strides = [1, 1, 1]} : vector<4x18x18xf32> to vector<4x16x16xf32>
    %227 = vector.shape_cast %226 : vector<4x16x16xf32> to vector<4x256xf32>
    %c6_162 = arith.constant 6 : index
    %c0_163 = arith.constant 0 : index
    %c0_164 = arith.constant 0 : index
    %228 = vector.load %arg7[%c6_162, %c0_163, %c0_164] : memref<9x4x256xf32, #tpu.memory_space<vmem>>, vector<1x4x256xf32>
    %229 = vector.shape_cast %228 : vector<1x4x256xf32> to vector<4x256xf32>
    %230 = vector.shape_cast %227 : vector<4x256xf32> to vector<1x4x256xf32>
    tpu.vector_store %arg7[%c6_162, %c0_163, %c0_164], %230 {strides = array<i32>} : memref<9x4x256xf32, #tpu.memory_space<vmem>>, vector<1x4x256xf32>,
    %231 = vector.extract_strided_slice %195 {offsets = [0, 2, 1], sizes = [4, 16, 16], strides = [1, 1, 1]} : vector<4x18x18xf32> to vector<4x16x16xf32>
    %232 = vector.shape_cast %231 : vector<4x16x16xf32> to vector<4x256xf32>
    %c7_165 = arith.constant 7 : index
    %c0_166 = arith.constant 0 : index
    %c0_167 = arith.constant 0 : index
    %233 = vector.load %arg7[%c7_165, %c0_166, %c0_167] : memref<9x4x256xf32, #tpu.memory_space<vmem>>, vector<1x4x256xf32>
    %234 = vector.shape_cast %233 : vector<1x4x256xf32> to vector<4x256xf32>
    %235 = vector.shape_cast %232 : vector<4x256xf32> to vector<1x4x256xf32>
    tpu.vector_store %arg7[%c7_165, %c0_166, %c0_167], %235 {strides = array<i32>} : memref<9x4x256xf32, #tpu.memory_space<vmem>>, vector<1x4x256xf32>,
    %236 = vector.extract_strided_slice %195 {offsets = [0, 2, 2], sizes = [4, 16, 16], strides = [1, 1, 1]} : vector<4x18x18xf32> to vector<4x16x16xf32>
    %237 = vector.shape_cast %236 : vector<4x16x16xf32> to vector<4x256xf32>
    %c8_168 = arith.constant 8 : index
    %c0_169 = arith.constant 0 : index
    %c0_170 = arith.constant 0 : index
    %238 = vector.load %arg7[%c8_168, %c0_169, %c0_170] : memref<9x4x256xf32, #tpu.memory_space<vmem>>, vector<1x4x256xf32>
    %239 = vector.shape_cast %238 : vector<1x4x256xf32> to vector<4x256xf32>
    %240 = vector.shape_cast %237 : vector<4x256xf32> to vector<1x4x256xf32>
    tpu.vector_store %arg7[%c8_168, %c0_169, %c0_170], %240 {strides = array<i32>} : memref<9x4x256xf32, #tpu.memory_space<vmem>>, vector<1x4x256xf32>,
    %c0_171 = arith.constant 0 : index
    %c0_172 = arith.constant 0 : index
    %c0_173 = arith.constant 0 : index
    %241 = vector.load %arg7[%c0_171, %c0_172, %c0_173] : memref<9x4x256xf32, #tpu.memory_space<vmem>>, vector<9x4x256xf32>
    %242 = vector.shape_cast %241 : vector<9x4x256xf32> to vector<36x256xf32>
    %c3_174 = arith.constant 3 : index
    %c0_175 = arith.constant 0 : index
    %c0_176 = arith.constant 0 : index
    %243 = vector.load %arg2[%c3_174, %c0_175, %c0_176] : memref<4x4x36xf32, #tpu.memory_space<vmem>>, vector<1x4x36xf32>
    %244 = vector.shape_cast %243 : vector<1x4x36xf32> to vector<4x36xf32>
    %cst_177 = arith.constant dense<0.000000e+00> : vector<4x256xf32>
    %245 = tpu.matmul %244, %242, %cst_177 {dimension_numbers = #tpu.dot_dimension_numbers<[1], [0], [0], [1], [0, 0, 1, 1], [], []>, precision = #tpu.contract_precision<fp32>} : vector<4x36xf32>, vector<36x256xf32>, vector<4x256xf32> -> vector<4x256xf32>
    %c3_178 = arith.constant 3 : index
    %c0_179 = arith.constant 0 : index
    %c0_180 = arith.constant 0 : index
    %246 = vector.load %arg3[%c3_178, %c0_179, %c0_180] : memref<4x4x1xf32, #tpu.memory_space<vmem>>, vector<1x4x1xf32>
    %247 = vector.shape_cast %246 : vector<1x4x1xf32> to vector<4x1xf32>
    %248 = vector.broadcast %247 : vector<4x1xf32> to vector<4x256xf32>
    %249 = arith.mulf %245, %248 : vector<4x256xf32>
    %c3_181 = arith.constant 3 : index
    %c0_182 = arith.constant 0 : index
    %c0_183 = arith.constant 0 : index
    %250 = vector.load %arg4[%c3_181, %c0_182, %c0_183] : memref<4x4x1xf32, #tpu.memory_space<vmem>>, vector<1x4x1xf32>
    %251 = vector.shape_cast %250 : vector<1x4x1xf32> to vector<4x1xf32>
    %252 = vector.broadcast %251 : vector<4x1xf32> to vector<4x256xf32>
    %253 = arith.addf %249, %252 : vector<4x256xf32>
    %254 = vector.extract_strided_slice %253 {offsets = [0, 0], sizes = [2, 256], strides = [1, 1]} : vector<4x256xf32> to vector<2x256xf32>
    %c0_184 = arith.constant 0 : index
    %c0_185 = arith.constant 0 : index
    %c0_186 = arith.constant 0 : index
    %255 = vector.load %arg5[%c0_184, %c0_185, %c0_186] : memref<1x2x256xf32, #tpu.memory_space<vmem>>, vector<1x2x256xf32>
    %256 = vector.shape_cast %255 : vector<1x2x256xf32> to vector<2x256xf32>
    %257 = vector.shape_cast %254 : vector<2x256xf32> to vector<1x2x256xf32>
    tpu.vector_store %arg5[%c0_184, %c0_185, %c0_186], %257 {strides = array<i32>} : memref<1x2x256xf32, #tpu.memory_space<vmem>>, vector<1x2x256xf32>,
    return
  }
  func.func @transform_0(%arg0: i32) -> (i32, i32, i32) {
    %c0_i32 = arith.constant 0 : i32
    %c0_i32_0 = arith.constant 0 : i32
    %c0_i32_1 = arith.constant 0 : i32
    return %arg0, %c0_i32, %c0_i32_0 : i32, i32, i32
  }
  func.func @transform_1(%arg0: i32) -> (i32, i32, i32) {
    %c0_i32 = arith.constant 0 : i32
    %c0_i32_0 = arith.constant 0 : i32
    %c0_i32_1 = arith.constant 0 : i32
    %c0_i32_2 = arith.constant 0 : i32
    return %c0_i32, %c0_i32_0, %c0_i32_1 : i32, i32, i32
  }
  func.func @transform_2(%arg0: i32) -> (i32, i32, i32) {
    %c0_i32 = arith.constant 0 : i32
    %c0_i32_0 = arith.constant 0 : i32
    %c0_i32_1 = arith.constant 0 : i32
    %c0_i32_2 = arith.constant 0 : i32
    return %c0_i32, %c0_i32_0, %c0_i32_1 : i32, i32, i32
  }
  func.func @transform_3(%arg0: i32) -> (i32, i32, i32) {
    %c0_i32 = arith.constant 0 : i32
    %c0_i32_0 = arith.constant 0 : i32
    %c0_i32_1 = arith.constant 0 : i32
    %c0_i32_2 = arith.constant 0 : i32
    return %c0_i32, %c0_i32_0, %c0_i32_1 : i32, i32, i32
  }
  func.func @transform_4(%arg0: i32) -> (i32, i32, i32) {
    %c0_i32 = arith.constant 0 : i32
    %c0_i32_0 = arith.constant 0 : i32
    %c0_i32_1 = arith.constant 0 : i32
    return %arg0, %c0_i32, %c0_i32_0 : i32, i32, i32
  }
}

</mosaic_0001>

<llo_original>
// kernel: non_blind_denoising_forward.1
$region0: #{non_blind_denoising_forward.1}
  #allocation0 [shape = 'u32[]', space=smem, size = 0x4, offset = 0x4, fixed_abs, tag = 'smem constant byte address 0x4 - core index']
  #allocation1 [shape = 'u32[144,128]{1,0:T(1,128)}', space=vmem, size = 0x12000, scoped, tag = 'internal scratch']
  #allocation2 [shape = 'f32[4,18,18]{2,1,0:T(8,128)}', space=vmem, size = 0xc000, scoped, tag = 'scratch operand']
  #allocation3 [shape = 'f32[9,4,256]{2,1,0:T(4,128)}', space=vmem, size = 0x9000, scoped, tag = 'scratch operand']
  %s0 = inlined_call_operand.vmem [shape: f32[2,3,256], index: 0, kind: input, shape index: {}]
  %s1 = inlined_call_operand.vmem [shape: f32[4,4,36], index: 1, kind: input, shape index: {}]
  %s2 = inlined_call_operand.vmem [shape: f32[4,4,1], index: 2, kind: input, shape index: {}]
  %s3 = inlined_call_operand.vmem [shape: f32[4,4,1], index: 3, kind: input, shape index: {}]
  %s4 = inlined_call_operand.vmem [shape: f32[2,2,256], index: 4, kind: output, shape index: {}]
  %s5 = sld [smem:[#allocation0]]
  $region49: #{non_blind_denoising_forward.1} parent=0
    _
  %s7 = ssub.s32 1, %s5
  %s8 = scalar_select 0, %s7, %s5
  loop: start=0, step=1, limit=4
  $region2: #{non_blind_denoising_forward.1} parent=0 // loop_pre_header
    _
  $region3: #{non_blind_denoising_forward.1} parent=0 // loop_header
    %s10 = sphi 0, %s14
    %p11 = scmp.ge.s32.totalorder %s10, 4
    %s20 = sphi 0, %s22
    %s23 = sphi 0, %s20
    %s24 = sphi 0, %s23
    %s40 = sphi 0, %s24
    %s44 = sphi 0, %s44
    %s46 = sphi 0, %s44
    %s47 = sphi 0, %s46
    %s61 = sphi 0, %s47
    %s65 = sphi 0, %s65
    %s67 = sphi 0, %s65
    %s68 = sphi 0, %s67
    %s82 = sphi 0, %s68
    %s86 = sphi 0, %s86
    %s88 = sphi 0, %s86
    %s89 = sphi 0, %s88
    %s103 = sphi 0, %s89
    %s109 = sphi 0, %s111
    %s112 = sphi 0, %s109
    %s113 = sphi 0, %s112
    %s129 = sphi 0, %s113
  $region4: #{non_blind_denoising_forward.1} parent=0 // loop_header_branch
    %13 = sbr.rel (%p11) target = $region8
  $region5: #{non_blind_denoising_forward.1} parent=0 // loop_body
    %s15 = ssub.s32 %s10, 1
    %s16 = ssub.s32 %s10, 2
    %s17 = sadd.s32 %s10, 1
    %s18 = ssub.s32 %s10, %s17
    %p19 = scmp.eq.s32.totalorder %s18, 0
    %s21 = sadd.s32 %s20, 1
    %s22 = scalar_select %p19, %s20, %s21
    %p25 = pneg %p19
    %p26 = scmp.eq.s32.totalorder %s10, 1
    %p27 = por %p25, %p26
    %p28 = scmp.ne.s32.totalorder %s20, %s23
    %p29 = scmp.eq.s32.totalorder %s10, 0
    %p30 = por %p28, %p29
    %p31 = scmp.ne.s32.totalorder %s20, %s23
    %p32 = scmp.eq.s32.totalorder %s15, 1
    %p33 = por %p31, %p32
    %p34 = scmp.ne.s32.totalorder %s23, %s24
    %p35 = scmp.eq.s32.totalorder %s15, 0
    %p36 = por %p34, %p35
    %p37 = scmp.ne.s32.totalorder %s23, %s24
    %p38 = scmp.eq.s32.totalorder %s16, 1
    %p39 = por %p37, %p38
    %p41 = scmp.ne.s32.totalorder %s24, %s40
    %p42 = scmp.eq.s32.totalorder %s16, 0
    %p43 = por %p41, %p42
    %s45 = sadd.s32 %s44, 1
    %p48 = scmp.eq.s32.totalorder %s10, 1
    %p49 = scmp.ne.s32.totalorder %s44, %s46
    %p50 = scmp.eq.s32.totalorder %s10, 0
    %p51 = por %p49, %p50
    %p52 = scmp.ne.s32.totalorder %s44, %s46
    %p53 = scmp.eq.s32.totalorder %s15, 1
    %p54 = por %p52, %p53
    %p55 = scmp.ne.s32.totalorder %s46, %s47
    %p56 = scmp.eq.s32.totalorder %s15, 0
    %p57 = por %p55, %p56
    %p58 = scmp.ne.s32.totalorder %s46, %s47
    %p59 = scmp.eq.s32.totalorder %s16, 1
    %p60 = por %p58, %p59
    %p62 = scmp.ne.s32.totalorder %s47, %s61
    %p63 = scmp.eq.s32.totalorder %s16, 0
    %p64 = por %p62, %p63
    %s66 = sadd.s32 %s65, 1
    %p69 = scmp.eq.s32.totalorder %s10, 1
    %p70 = scmp.ne.s32.totalorder %s65, %s67
    %p71 = scmp.eq.s32.totalorder %s10, 0
    %p72 = por %p70, %p71
    %p73 = scmp.ne.s32.totalorder %s65, %s67
    %p74 = scmp.eq.s32.totalorder %s15, 1
    %p75 = por %p73, %p74
    %p76 = scmp.ne.s32.totalorder %s67, %s68
    %p77 = scmp.eq.s32.totalorder %s15, 0
    %p78 = por %p76, %p77
    %p79 = scmp.ne.s32.totalorder %s67, %s68
    %p80 = scmp.eq.s32.totalorder %s16, 1
    %p81 = por %p79, %p80
    %p83 = scmp.ne.s32.totalorder %s68, %s82
    %p84 = scmp.eq.s32.totalorder %s16, 0
    %p85 = por %p83, %p84
    %s87 = sadd.s32 %s86, 1
    %p90 = scmp.eq.s32.totalorder %s10, 1
    %p91 = scmp.ne.s32.totalorder %s86, %s88
    %p92 = scmp.eq.s32.totalorder %s10, 0
    %p93 = por %p91, %p92
    %p94 = scmp.ne.s32.totalorder %s86, %s88
    %p95 = scmp.eq.s32.totalorder %s15, 1
    %p96 = por %p94, %p95
    %p97 = scmp.ne.s32.totalorder %s88, %s89
    %p98 = scmp.eq.s32.totalorder %s15, 0
    %p99 = por %p97, %p98
    %p100 = scmp.ne.s32.totalorder %s88, %s89
    %p101 = scmp.eq.s32.totalorder %s16, 1
    %p102 = por %p100, %p101
    %p104 = scmp.ne.s32.totalorder %s89, %s103
    %p105 = scmp.eq.s32.totalorder %s16, 0
    %p106 = por %p104, %p105
    %s107 = ssub.s32 %s10, %s17
    %p108 = scmp.eq.s32.totalorder %s107, 0
    %s110 = sadd.s32 %s109, 1
    %s111 = scalar_select %p108, %s109, %s110
    %p114 = pneg %p108
    %p115 = scmp.eq.s32.totalorder %s10, 1
    %p116 = por %p114, %p115
    %p117 = scmp.ne.s32.totalorder %s109, %s112
    %p118 = scmp.eq.s32.totalorder %s10, 0
    %p119 = por %p117, %p118
    %p120 = scmp.ne.s32.totalorder %s109, %s112
    %p121 = scmp.eq.s32.totalorder %s15, 1
    %p122 = por %p120, %p121
    %p123 = scmp.ne.s32.totalorder %s112, %s113
    %p124 = scmp.eq.s32.totalorder %s15, 0
    %p125 = por %p123, %p124
    %p126 = scmp.ne.s32.totalorder %s112, %s113
    %p127 = scmp.eq.s32.totalorder %s16, 1
    %p128 = por %p126, %p127
    %p130 = scmp.ne.s32.totalorder %s113, %s129
    %p131 = scmp.eq.s32.totalorder %s16, 0
    %p132 = por %p130, %p131
    %p133 = scmp.le.s32.totalorder 1, %s10
    %p134 = scmp.lt.s32.totalorder %s10, 3
    %p135 = pnand %p133, %p134
    %p136 = pneg %p135
    // Predicated region
    $region9: #{non_blind_denoising_forward.1} parent=5 // pred_check
      _
    $region10: #{non_blind_denoising_forward.1} parent=5 // pred_check_branch
      %138 = sbr.rel (%p135) target = $region12
    $region11: #{non_blind_denoising_forward.1} parent=5 // pred_region
      %s139 = ssub.s32 %s10, 1
      // Predicated region
      $region13: #{non_blind_denoising_forward.1} parent=11 // pred_check
        %p140 = pneg %p57
      $region14: #{non_blind_denoising_forward.1} parent=11 // pred_check_branch
        %142 = sbr.rel (%p140) target = $region16
      $region15: #{non_blind_denoising_forward.1} parent=11 // pred_region
        _
      $region16: #{non_blind_denoising_forward.1} parent=11 // pred_fallthru
        _
      // Predicated region
      $region17: #{non_blind_denoising_forward.1} parent=11 // pred_check
        %p143 = pneg %p78
      $region18: #{non_blind_denoising_forward.1} parent=11 // pred_check_branch
        %145 = sbr.rel (%p143) target = $region20
      $region19: #{non_blind_denoising_forward.1} parent=11 // pred_region
        _
      $region20: #{non_blind_denoising_forward.1} parent=11 // pred_fallthru
        _
      // Predicated region
      $region21: #{non_blind_denoising_forward.1} parent=11 // pred_check
        %p146 = pneg %p99
      $region22: #{non_blind_denoising_forward.1} parent=11 // pred_check_branch
        %148 = sbr.rel (%p146) target = $region24
      $region23: #{non_blind_denoising_forward.1} parent=11 // pred_region
        _
      $region24: #{non_blind_denoising_forward.1} parent=11 // pred_fallthru
        _
    $region12: #{non_blind_denoising_forward.1} parent=5 // pred_fallthru
      _
    %p149 = scmp.lt.s32.totalorder %s10, 2
    // Predicated region
    $region25: #{non_blind_denoising_forward.1} parent=5 // pred_check
      %p150 = pneg %p149
    $region26: #{non_blind_denoising_forward.1} parent=5 // pred_check_branch
      %152 = sbr.rel (%p150) target = $region28
    $region27: #{non_blind_denoising_forward.1} parent=5 // pred_region
      // Predicated region
      $region29: #{non_blind_denoising_forward.1} parent=27 // pred_check
        %p153 = pneg %p30
      $region30: #{non_blind_denoising_forward.1} parent=27 // pred_check_branch
        %155 = sbr.rel (%p153) target = $region32
      $region31: #{non_blind_denoising_forward.1} parent=27 // pred_region
        %p156 = scmp.lt.s32.totalorder %s10, 1
        %s157 = scalar_select %p156, %s10, 1
        %s158 = smul.addr %s157, 2
        %s159 = smul.addr %s158, 4
        %s160 = scalar_lea.vmem %s0, %s159
      $region32: #{non_blind_denoising_forward.1} parent=27 // pred_fallthru
        _
    $region28: #{non_blind_denoising_forward.1} parent=5 // pred_fallthru
      _
    %p161 = scmp.le.s32.totalorder 1, %s10
    %p162 = scmp.lt.s32.totalorder %s10, 3
    %p163 = pnand %p161, %p162
    %p164 = pneg %p163
    // Predicated region
    $region33: #{non_blind_denoising_forward.1} parent=5 // pred_check
      _
    $region34: #{non_blind_denoising_forward.1} parent=5 // pred_check_branch
      %166 = sbr.rel (%p163) target = $region36
    $region35: #{non_blind_denoising_forward.1} parent=5 // pred_region
      %s167 = ssub.s32 %s10, 1
      %p168 = scmp.lt.s32.totalorder %s15, 1
      %s169 = scalar_select %p168, %s15, 1
      %s170 = smul.addr %s169, 2
      %s171 = smul.addr %s170, 4
      %s172 = scalar_lea.vmem %s0, %s171
      %p173 = pneg %p36
      %p174 = pneg %p33
      %p175 = pneg %p57
      %p176 = pneg %p54
      %p177 = pneg %p78
      %p178 = pneg %p75
      %p179 = pneg %p99
      %p180 = pneg %p96
      %p181 = pneg %p125
      %p182 = pneg %p122
      %p183 = scmp.lt.s32.totalorder %s15, 1
      %s184 = scalar_select %p183, %s15, 1
      %s185 = smul.addr %s184, 2
      %s186 = smul.addr %s185, 2
      %s187 = scalar_lea.vmem %s4, %s186
      %p188 = scmp.lt.s32.totalorder %s15, 1
      %s189 = scalar_select %p188, %s15, 1
      %s190 = smul.addr %s189, 2
      %s191 = smul.addr %s190, 4
      %s192 = scalar_lea.vmem %s0, %s191
      %p193 = scmp.lt.s32.totalorder %s15, 1
      %s194 = scalar_select %p193, %s15, 1
      %s195 = smul.addr %s194, 2
      %s196 = smul.addr %s195, 2
      %s197 = scalar_lea.vmem %s4, %s196
      %vm198 = vcmask 146432
      %199 = vst.msk [vmem:[#allocation2] sm:$0xff] %vm198, 0.0
      %200 = vst.msk [vmem:[#allocation2 + $0x8] sm:$0xff] %vm198, 0.0
      %vm201 = vcmask 140288
      %202 = vst.msk [vmem:[#allocation2 + $0x10] sm:$0x3] %vm201, 0.0
      %203 = vst.msk [vmem:[#allocation2 + $0x18] sm:$0xff] %vm198, 0.0
      %204 = vst.msk [vmem:[#allocation2 + $0x20] sm:$0xff] %vm198, 0.0
      %205 = vst.msk [vmem:[#allocation2 + $0x28] sm:$0x3] %vm201, 0.0
      %206 = vst.msk [vmem:[#allocation2 + $0x30] sm:$0xff] %vm198, 0.0
      %207 = vst.msk [vmem:[#allocation2 + $0x38] sm:$0xff] %vm198, 0.0
      %208 = vst.msk [vmem:[#allocation2 + $0x40] sm:$0x3] %vm201, 0.0
      %209 = vst.msk [vmem:[#allocation2 + $0x48] sm:$0xff] %vm198, 0.0
      %210 = vst.msk [vmem:[#allocation2 + $0x50] sm:$0xff] %vm198, 0.0
      %211 = vst.msk [vmem:[#allocation2 + $0x58] sm:$0x3] %vm201, 0.0
      %v212 = vld [vmem:[%s192] sm:$0x77]
      %v214 = vrot.slane %v212, 4
      %216 = vrot.lane.b32.xlu0 %v212, 112
      %v217 = vpop.permute.xlu0 %216
      %v218 = vrot.slane %v217, 4
      %220 = vrot.lane.b32.xlu0 %v212, 96
      %v221 = vpop.permute.xlu0 %220
      %v222 = vrot.slane %v221, 4
      %224 = vrot.lane.b32.xlu0 %v212, 80
      %v225 = vpop.permute.xlu0 %224
      %v226 = vrot.slane %v225, 4
      %228 = vrot.lane.b32.xlu0 %v212, 64
      %v229 = vpop.permute.xlu0 %228
      %v230 = vrot.slane %v229, 4
      %232 = vrot.lane.b32.xlu0 %v212, 48
      %v233 = vpop.permute.xlu0 %232
      %v234 = vrot.slane %v233, 4
      %236 = vrot.lane.b32.xlu0 %v212, 32
      %v237 = vpop.permute.xlu0 %236
      %v238 = vrot.slane %v237, 4
      %240 = vrot.lane.b32.xlu0 %v212, 16
      %v241 = vpop.permute.xlu0 %240
      %v242 = vrot.slane %v241, 4
      %v251 = vcombine.low %v212, %v221
      %v253 = vunpack.c.l.s4 1983009808
      %v254 = vunpack.c.0.s8 %v253
      %v255 = vlaneseq
      %v256 = vshrl.u32 %v255, 7
      %v257 = vsub.s32 %v254, %v256
      %v258 = vrot.slane %v251, %v257
      %v259 = vcombine.low %v217, %v225
      %v261 = vunpack.c.l.s4 1983009808
      %v262 = vunpack.c.0.s8 %v261
      %v263 = vlaneseq
      %v264 = vshrl.u32 %v263, 7
      %v265 = vsub.s32 %v262, %v264
      %v266 = vrot.slane %v259, %v265
      %v267 = vcombine.low %v258, %v266
      %v268 = vcombine.high %v258, %v266
      %v270 = vunpack.c.l.s4 1934713408
      %v271 = vunpack.c.0.s8 %v270
      %v272 = vlaneseq
      %v273 = vshrl.u32 %v272, 7
      %v274 = vsub.s32 %v271, %v273
      %v275 = vrot.slane %v267, %v274
      %v276 = vcombine.high %v275, 0.0
      %v278 = vunpack.c.l.s4 1934713408
      %v279 = vunpack.c.0.s8 %v278
      %v280 = vlaneseq
      %v281 = vshrl.u32 %v280, 7
      %v282 = vsub.s32 %v279, %v281
      %v283 = vrot.slane %v268, %v282
      %v284 = vcombine.low %v229, %v237
      %v286 = vunpack.c.l.s4 1983009808
      %v287 = vunpack.c.0.s8 %v286
      %v288 = vlaneseq
      %v289 = vshrl.u32 %v288, 7
      %v290 = vsub.s32 %v287, %v289
      %v291 = vrot.slane %v284, %v290
      %v292 = vcombine.low %v233, %v241
      %v294 = vunpack.c.l.s4 1983009808
      %v295 = vunpack.c.0.s8 %v294
      %v296 = vlaneseq
      %v297 = vshrl.u32 %v296, 7
      %v298 = vsub.s32 %v295, %v297
      %v299 = vrot.slane %v292, %v298
      %v300 = vcombine.low %v291, %v299
      %v301 = vcombine.high %v291, %v299
      %v303 = vunpack.c.l.s4 1934713408
      %v304 = vunpack.c.0.s8 %v303
      %v305 = vlaneseq
      %v306 = vshrl.u32 %v305, 7
      %v307 = vsub.s32 %v304, %v306
      %v308 = vrot.slane %v300, %v307
      %v309 = vcombine.high %v308, 0.0
      %v311 = vunpack.c.l.s4 1934713408
      %v312 = vunpack.c.0.s8 %v311
      %v313 = vlaneseq
      %v314 = vshrl.u32 %v313, 7
      %v315 = vsub.s32 %v312, %v314
      %v316 = vrot.slane %v301, %v315
      %v317 = vcombine.low %v214, %v222
      %v319 = vunpack.c.l.s4 1983009808
      %v320 = vunpack.c.0.s8 %v319
      %v321 = vlaneseq
      %v322 = vshrl.u32 %v321, 7
      %v323 = vsub.s32 %v320, %v322
      %v324 = vrot.slane %v317, %v323
      %v325 = vcombine.low %v218, %v226
      %v327 = vunpack.c.l.s4 1983009808
      %v328 = vunpack.c.0.s8 %v327
      %v329 = vlaneseq
      %v330 = vshrl.u32 %v329, 7
      %v331 = vsub.s32 %v328, %v330
      %v332 = vrot.slane %v325, %v331
      %v333 = vcombine.low %v324, %v332
      %v334 = vcombine.high %v324, %v332
      %v336 = vunpack.c.l.s4 1934713408
      %v337 = vunpack.c.0.s8 %v336
      %v338 = vlaneseq
      %v339 = vshrl.u32 %v338, 7
      %v340 = vsub.s32 %v337, %v339
      %v341 = vrot.slane %v333, %v340
      %v342 = vcombine.high %v341, 0.0
      %v344 = vunpack.c.l.s4 1934713408
      %v345 = vunpack.c.0.s8 %v344
      %v346 = vlaneseq
      %v347 = vshrl.u32 %v346, 7
      %v348 = vsub.s32 %v345, %v347
      %v349 = vrot.slane %v334, %v348
      %v350 = vcombine.low %v230, %v238
      %v352 = vunpack.c.l.s4 1983009808
      %v353 = vunpack.c.0.s8 %v352
      %v354 = vlaneseq
      %v355 = vshrl.u32 %v354, 7
      %v356 = vsub.s32 %v353, %v355
      %v357 = vrot.slane %v350, %v356
      %v358 = vcombine.low %v234, %v242
      %v360 = vunpack.c.l.s4 1983009808
      %v361 = vunpack.c.0.s8 %v360
      %v362 = vlaneseq
      %v363 = vshrl.u32 %v362, 7
      %v364 = vsub.s32 %v361, %v363
      %v365 = vrot.slane %v358, %v364
      %v366 = vcombine.low %v357, %v365
      %v367 = vcombine.high %v357, %v365
      %v369 = vunpack.c.l.s4 1934713408
      %v370 = vunpack.c.0.s8 %v369
      %v371 = vlaneseq
      %v372 = vshrl.u32 %v371, 7
      %v373 = vsub.s32 %v370, %v372
      %v374 = vrot.slane %v366, %v373
      %v375 = vcombine.high %v374, 0.0
      %v377 = vunpack.c.l.s4 1934713408
      %v378 = vunpack.c.0.s8 %v377
      %v379 = vlaneseq
      %v380 = vshrl.u32 %v379, 7
      %v381 = vsub.s32 %v378, %v380
      %v382 = vrot.slane %v367, %v381
      %v395 = vcombine.low %v275, %v308
      %v396 = vcombine.low %v341, %v374
      %v397 = vcombine.low %v276, %v309
      %v398 = vcombine.low %v342, %v375
      %v399 = vcombine.low %v283, %v316
      %v400 = vcombine.low %v349, %v382
      %401 = vrot.lane.b32.xlu0 %v395, 1
      %v402 = vpop.permute.xlu0 %401
      %403 = vrot.lane.b32.xlu0 %v396, 1
      %v404 = vpop.permute.xlu0 %403
      %405 = vrot.lane.b32.xlu0 %v397, 1
      %v406 = vpop.permute.xlu0 %405
      %407 = vrot.lane.b32.xlu0 %v398, 1
      %v408 = vpop.permute.xlu0 %407
      %409 = vrot.lane.b32.xlu0 %v399, 1
      %v410 = vpop.permute.xlu0 %409
      %411 = vrot.lane.b32.xlu0 %v400, 1
      %v412 = vpop.permute.xlu0 %411
      %vm419 = vcmask 138248
      %420 = vst.msk [vmem:[#allocation2 + $0x1] sm:$0xff] %vm419, %v402
      %421 = vst.msk [vmem:[#allocation2 + $0x9] sm:$0xff] %vm419, %v404
      %422 = vst.msk [vmem:[#allocation2 + $0x19] sm:$0xff] %vm419, %v406
      %423 = vst.msk [vmem:[#allocation2 + $0x21] sm:$0xff] %vm419, %v408
      %424 = vst.msk [vmem:[#allocation2 + $0x31] sm:$0xff] %vm419, %v410
      %425 = vst.msk [vmem:[#allocation2 + $0x39] sm:$0xff] %vm419, %v412
      %v426 = vld [vmem:[#allocation2] sm:$0xff]
      %v427 = vld [vmem:[#allocation2 + $0x8] sm:$0xff]
      %v428 = vld [vmem:[#allocation2 + $0x10] sm:$0x3]
      %v429 = vld [vmem:[#allocation2 + $0x18] sm:$0xff]
      %v430 = vld [vmem:[#allocation2 + $0x20] sm:$0xff]
      %v431 = vld [vmem:[#allocation2 + $0x28] sm:$0x3]
      %v432 = vld [vmem:[#allocation2 + $0x30] sm:$0xff]
      %v433 = vld [vmem:[#allocation2 + $0x38] sm:$0xff]
      %v434 = vld [vmem:[#allocation2 + $0x40] sm:$0x3]
      %v435 = vld [vmem:[#allocation2 + $0x48] sm:$0xff]
      %v436 = vld [vmem:[#allocation2 + $0x50] sm:$0xff]
      %v437 = vld [vmem:[#allocation2 + $0x58] sm:$0x3]
      %v438 = vcombine.low %v426, %v432
      %v439 = vcombine.high %v426, %v432
      %v441 = vunpack.c.l.s4 1983009808
      %v442 = vunpack.c.0.s8 %v441
      %v443 = vlaneseq
      %v444 = vshrl.u32 %v443, 7
      %v445 = vsub.s32 %v442, %v444
      %v446 = vrot.slane %v438, %v445
      %v448 = vunpack.c.l.s4 1983009808
      %v449 = vunpack.c.0.s8 %v448
      %v450 = vlaneseq
      %v451 = vshrl.u32 %v450, 7
      %v452 = vsub.s32 %v449, %v451
      %v453 = vrot.slane %v439, %v452
      %v454 = vcombine.low %v429, %v435
      %v455 = vcombine.high %v429, %v435
      %v457 = vunpack.c.l.s4 1983009808
      %v458 = vunpack.c.0.s8 %v457
      %v459 = vlaneseq
      %v460 = vshrl.u32 %v459, 7
      %v461 = vsub.s32 %v458, %v460
      %v462 = vrot.slane %v454, %v461
      %v464 = vunpack.c.l.s4 1983009808
      %v465 = vunpack.c.0.s8 %v464
      %v466 = vlaneseq
      %v467 = vshrl.u32 %v466, 7
      %v468 = vsub.s32 %v465, %v467
      %v469 = vrot.slane %v455, %v468
      %v470 = vcombine.low %v446, %v462
      %v471 = vcombine.high %v446, %v462
      %v473 = vunpack.c.l.s4 1934713408
      %v474 = vunpack.c.0.s8 %v473
      %v475 = vlaneseq
      %v476 = vshrl.u32 %v475, 7
      %v477 = vsub.s32 %v474, %v476
      %v478 = vrot.slane %v470, %v477
      %v480 = vunpack.c.l.s4 1934713408
      %v481 = vunpack.c.0.s8 %v480
      %v482 = vlaneseq
      %v483 = vshrl.u32 %v482, 7
      %v484 = vsub.s32 %v481, %v483
      %v485 = vrot.slane %v471, %v484
      %v486 = vcombine.low %v453, %v469
      %v487 = vcombine.high %v453, %v469
      %v489 = vunpack.c.l.s4 1934713408
      %v490 = vunpack.c.0.s8 %v489
      %v491 = vlaneseq
      %v492 = vshrl.u32 %v491, 7
      %v493 = vsub.s32 %v490, %v492
      %v494 = vrot.slane %v486, %v493
      %v496 = vunpack.c.l.s4 1934713408
      %v497 = vunpack.c.0.s8 %v496
      %v498 = vlaneseq
      %v499 = vshrl.u32 %v498, 7
      %v500 = vsub.s32 %v497, %v499
      %v501 = vrot.slane %v487, %v500
      %v502 = vcombine.high %v478, 0.0
      %v503 = vcombine.high %v485, 0.0
      %v504 = vcombine.high %v494, 0.0
      %v505 = vcombine.high %v501, 0.0
      %v506 = vcombine.low %v427, %v433
      %v507 = vcombine.high %v427, %v433
      %v509 = vunpack.c.l.s4 1983009808
      %v510 = vunpack.c.0.s8 %v509
      %v511 = vlaneseq
      %v512 = vshrl.u32 %v511, 7
      %v513 = vsub.s32 %v510, %v512
      %v514 = vrot.slane %v506, %v513
      %v516 = vunpack.c.l.s4 1983009808
      %v517 = vunpack.c.0.s8 %v516
      %v518 = vlaneseq
      %v519 = vshrl.u32 %v518, 7
      %v520 = vsub.s32 %v517, %v519
      %v521 = vrot.slane %v507, %v520
      %v522 = vcombine.low %v430, %v436
      %v523 = vcombine.high %v430, %v436
      %v525 = vunpack.c.l.s4 1983009808
      %v526 = vunpack.c.0.s8 %v525
      %v527 = vlaneseq
      %v528 = vshrl.u32 %v527, 7
      %v529 = vsub.s32 %v526, %v528
      %v530 = vrot.slane %v522, %v529
      %v532 = vunpack.c.l.s4 1983009808
      %v533 = vunpack.c.0.s8 %v532
      %v534 = vlaneseq
      %v535 = vshrl.u32 %v534, 7
      %v536 = vsub.s32 %v533, %v535
      %v537 = vrot.slane %v523, %v536
      %v538 = vcombine.low %v514, %v530
      %v539 = vcombine.high %v514, %v530
      %v541 = vunpack.c.l.s4 1934713408
      %v542 = vunpack.c.0.s8 %v541
      %v543 = vlaneseq
      %v544 = vshrl.u32 %v543, 7
      %v545 = vsub.s32 %v542, %v544
      %v546 = vrot.slane %v538, %v545
      %v548 = vunpack.c.l.s4 1934713408
      %v549 = vunpack.c.0.s8 %v548
      %v550 = vlaneseq
      %v551 = vshrl.u32 %v550, 7
      %v552 = vsub.s32 %v549, %v551
      %v553 = vrot.slane %v539, %v552
      %v554 = vcombine.low %v521, %v537
      %v555 = vcombine.high %v521, %v537
      %v557 = vunpack.c.l.s4 1934713408
      %v558 = vunpack.c.0.s8 %v557
      %v559 = vlaneseq
      %v560 = vshrl.u32 %v559, 7
      %v561 = vsub.s32 %v558, %v560
      %v562 = vrot.slane %v554, %v561
      %v564 = vunpack.c.l.s4 1934713408
      %v565 = vunpack.c.0.s8 %v564
      %v566 = vlaneseq
      %v567 = vshrl.u32 %v566, 7
      %v568 = vsub.s32 %v565, %v567
      %v569 = vrot.slane %v555, %v568
      %v570 = vcombine.high %v546, 0.0
      %v571 = vcombine.high %v553, 0.0
      %v572 = vcombine.high %v562, 0.0
      %v573 = vcombine.high %v569, 0.0
      %575 = vrot.lane.b32.xlu0 %v502, 16
      %v576 = vpop.permute.xlu0 %575
      %579 = vrot.lane.b32.xlu0 %v485, 32
      %v580 = vpop.permute.xlu0 %579
      %583 = vrot.lane.b32.xlu0 %v503, 48
      %v584 = vpop.permute.xlu0 %583
      %587 = vrot.lane.b32.xlu0 %v494, 64
      %v588 = vpop.permute.xlu0 %587
      %591 = vrot.lane.b32.xlu0 %v504, 80
      %v592 = vpop.permute.xlu0 %591
      %595 = vrot.lane.b32.xlu0 %v501, 96
      %v596 = vpop.permute.xlu0 %595
      %599 = vrot.lane.b32.xlu0 %v505, 112
      %v600 = vpop.permute.xlu0 %599
      %603 = vrot.lane.b32.xlu0 %v570, 16
      %v604 = vpop.permute.xlu0 %603
      %607 = vrot.lane.b32.xlu0 %v553, 32
      %v608 = vpop.permute.xlu0 %607
      %611 = vrot.lane.b32.xlu0 %v571, 48
      %v612 = vpop.permute.xlu0 %611
      %615 = vrot.lane.b32.xlu0 %v562, 64
      %v616 = vpop.permute.xlu0 %615
      %619 = vrot.lane.b32.xlu0 %v572, 80
      %v620 = vpop.permute.xlu0 %619
      %623 = vrot.lane.b32.xlu0 %v569, 96
      %v624 = vpop.permute.xlu0 %623
      %627 = vrot.lane.b32.xlu0 %v573, 112
      %v628 = vpop.permute.xlu0 %627
      %vm630 = vcmask 130048
      %v631 = vsel %vm630, %v478, %v576
      %vm632 = vcmask 261120
      %v633 = vsel %vm632, %v631, %v580
      %vm634 = vcmask 392192
      %v635 = vsel %vm634, %v633, %v584
      %vm636 = vcmask 523264
      %v637 = vsel %vm636, %v635, %v588
      %vm638 = vcmask 654336
      %v639 = vsel %vm638, %v637, %v592
      %vm640 = vcmask 785408
      %v641 = vsel %vm640, %v639, %v596
      %vm642 = vcmask 916480
      %v643 = vsel %vm642, %v641, %v600
      %v644 = vsel %vm630, %v546, %v604
      %v645 = vsel %vm632, %v644, %v608
      %v646 = vsel %vm634, %v645, %v612
      %v647 = vsel %vm636, %v646, %v616
      %v648 = vsel %vm638, %v647, %v620
      %v649 = vsel %vm640, %v648, %v624
      %v650 = vsel %vm642, %v649, %v628
      %v653 = vcombine.low %v643, %v650
      %655 = vst [vmem:[#allocation3] sm:$0xff] %v653
      %664 = vrot.lane.b32.xlu0 %v426, 127
      %v665 = vpop.permute.xlu0 %664
      %666 = vrot.lane.b32.xlu0 %v427, 127
      %v667 = vpop.permute.xlu0 %666
      %668 = vrot.lane.b32.xlu0 %v429, 127
      %v669 = vpop.permute.xlu0 %668
      %670 = vrot.lane.b32.xlu0 %v430, 127
      %v671 = vpop.permute.xlu0 %670
      %672 = vrot.lane.b32.xlu0 %v432, 127
      %v673 = vpop.permute.xlu0 %672
      %674 = vrot.lane.b32.xlu0 %v433, 127
      %v675 = vpop.permute.xlu0 %674
      %676 = vrot.lane.b32.xlu0 %v435, 127
      %v677 = vpop.permute.xlu0 %676
      %678 = vrot.lane.b32.xlu0 %v436, 127
      %v679 = vpop.permute.xlu0 %678
      %v688 = vcombine.low %v665, %v673
      %v689 = vcombine.high %v665, %v673
      %v691 = vunpack.c.l.s4 1983009808
      %v692 = vunpack.c.0.s8 %v691
      %v693 = vlaneseq
      %v694 = vshrl.u32 %v693, 7
      %v695 = vsub.s32 %v692, %v694
      %v696 = vrot.slane %v688, %v695
      %v698 = vunpack.c.l.s4 1983009808
      %v699 = vunpack.c.0.s8 %v698
      %v700 = vlaneseq
      %v701 = vshrl.u32 %v700, 7
      %v702 = vsub.s32 %v699, %v701
      %v703 = vrot.slane %v689, %v702
      %v704 = vcombine.low %v669, %v677
      %v705 = vcombine.high %v669, %v677
      %v707 = vunpack.c.l.s4 1983009808
      %v708 = vunpack.c.0.s8 %v707
      %v709 = vlaneseq
      %v710 = vshrl.u32 %v709, 7
      %v711 = vsub.s32 %v708, %v710
      %v712 = vrot.slane %v704, %v711
      %v714 = vunpack.c.l.s4 1983009808
      %v715 = vunpack.c.0.s8 %v714
      %v716 = vlaneseq
      %v717 = vshrl.u32 %v716, 7
      %v718 = vsub.s32 %v715, %v717
      %v719 = vrot.slane %v705, %v718
      %v720 = vcombine.low %v696, %v712
      %v721 = vcombine.high %v696, %v712
      %v723 = vunpack.c.l.s4 1934713408
      %v724 = vunpack.c.0.s8 %v723
      %v725 = vlaneseq
      %v726 = vshrl.u32 %v725, 7
      %v727 = vsub.s32 %v724, %v726
      %v728 = vrot.slane %v720, %v727
      %v730 = vunpack.c.l.s4 1934713408
      %v731 = vunpack.c.0.s8 %v730
      %v732 = vlaneseq
      %v733 = vshrl.u32 %v732, 7
      %v734 = vsub.s32 %v731, %v733
      %v735 = vrot.slane %v721, %v734
      %v736 = vcombine.low %v703, %v719
      %v737 = vcombine.high %v703, %v719
      %v739 = vunpack.c.l.s4 1934713408
      %v740 = vunpack.c.0.s8 %v739
      %v741 = vlaneseq
      %v742 = vshrl.u32 %v741, 7
      %v743 = vsub.s32 %v740, %v742
      %v744 = vrot.slane %v736, %v743
      %v746 = vunpack.c.l.s4 1934713408
      %v747 = vunpack.c.0.s8 %v746
      %v748 = vlaneseq
      %v749 = vshrl.u32 %v748, 7
      %v750 = vsub.s32 %v747, %v749
      %v751 = vrot.slane %v737, %v750
      %v752 = vcombine.high %v728, 0.0
      %v753 = vcombine.high %v735, 0.0
      %v754 = vcombine.high %v744, 0.0
      %v755 = vcombine.high %v751, 0.0
      %v756 = vcombine.low %v667, %v675
      %v757 = vcombine.high %v667, %v675
      %v759 = vunpack.c.l.s4 1983009808
      %v760 = vunpack.c.0.s8 %v759
      %v761 = vlaneseq
      %v762 = vshrl.u32 %v761, 7
      %v763 = vsub.s32 %v760, %v762
      %v764 = vrot.slane %v756, %v763
      %v766 = vunpack.c.l.s4 1983009808
      %v767 = vunpack.c.0.s8 %v766
      %v768 = vlaneseq
      %v769 = vshrl.u32 %v768, 7
      %v770 = vsub.s32 %v767, %v769
      %v771 = vrot.slane %v757, %v770
      %v772 = vcombine.low %v671, %v679
      %v773 = vcombine.high %v671, %v679
      %v775 = vunpack.c.l.s4 1983009808
      %v776 = vunpack.c.0.s8 %v775
      %v777 = vlaneseq
      %v778 = vshrl.u32 %v777, 7
      %v779 = vsub.s32 %v776, %v778
      %v780 = vrot.slane %v772, %v779
      %v782 = vunpack.c.l.s4 1983009808
      %v783 = vunpack.c.0.s8 %v782
      %v784 = vlaneseq
      %v785 = vshrl.u32 %v784, 7
      %v786 = vsub.s32 %v783, %v785
      %v787 = vrot.slane %v773, %v786
      %v788 = vcombine.low %v764, %v780
      %v789 = vcombine.high %v764, %v780
      %v791 = vunpack.c.l.s4 1934713408
      %v792 = vunpack.c.0.s8 %v791
      %v793 = vlaneseq
      %v794 = vshrl.u32 %v793, 7
      %v795 = vsub.s32 %v792, %v794
      %v796 = vrot.slane %v788, %v795
      %v798 = vunpack.c.l.s4 1934713408
      %v799 = vunpack.c.0.s8 %v798
      %v800 = vlaneseq
      %v801 = vshrl.u32 %v800, 7
      %v802 = vsub.s32 %v799, %v801
      %v803 = vrot.slane %v789, %v802
      %v804 = vcombine.low %v771, %v787
      %v805 = vcombine.high %v771, %v787
      %v807 = vunpack.c.l.s4 1934713408
      %v808 = vunpack.c.0.s8 %v807
      %v809 = vlaneseq
      %v810 = vshrl.u32 %v809, 7
      %v811 = vsub.s32 %v808, %v810
      %v812 = vrot.slane %v804, %v811
      %v814 = vunpack.c.l.s4 1934713408
      %v815 = vunpack.c.0.s8 %v814
      %v816 = vlaneseq
      %v817 = vshrl.u32 %v816, 7
      %v818 = vsub.s32 %v815, %v817
      %v819 = vrot.slane %v805, %v818
      %v820 = vcombine.high %v796, 0.0
      %v821 = vcombine.high %v803, 0.0
      %v822 = vcombine.high %v812, 0.0
      %v823 = vcombine.high %v819, 0.0
      %825 = vrot.lane.b32.xlu0 %v752, 16
      %v826 = vpop.permute.xlu0 %825
      %829 = vrot.lane.b32.xlu0 %v735, 32
      %v830 = vpop.permute.xlu0 %829
      %833 = vrot.lane.b32.xlu0 %v753, 48
      %v834 = vpop.permute.xlu0 %833
      %837 = vrot.lane.b32.xlu0 %v744, 64
      %v838 = vpop.permute.xlu0 %837
      %841 = vrot.lane.b32.xlu0 %v754, 80
      %v842 = vpop.permute.xlu0 %841
      %845 = vrot.lane.b32.xlu0 %v751, 96
      %v846 = vpop.permute.xlu0 %845
      %849 = vrot.lane.b32.xlu0 %v755, 112
      %v850 = vpop.permute.xlu0 %849
      %853 = vrot.lane.b32.xlu0 %v820, 16
      %v854 = vpop.permute.xlu0 %853
      %857 = vrot.lane.b32.xlu0 %v803, 32
      %v858 = vpop.permute.xlu0 %857
      %861 = vrot.lane.b32.xlu0 %v821, 48
      %v862 = vpop.permute.xlu0 %861
      %865 = vrot.lane.b32.xlu0 %v812, 64
      %v866 = vpop.permute.xlu0 %865
      %869 = vrot.lane.b32.xlu0 %v822, 80
      %v870 = vpop.permute.xlu0 %869
      %873 = vrot.lane.b32.xlu0 %v819, 96
      %v874 = vpop.permute.xlu0 %873
      %877 = vrot.lane.b32.xlu0 %v823, 112
      %v878 = vpop.permute.xlu0 %877
      %v880 = vsel %vm630, %v728, %v826
      %v881 = vsel %vm632, %v880, %v830
      %v882 = vsel %vm634, %v881, %v834
      %v883 = vsel %vm636, %v882, %v838
      %v884 = vsel %vm638, %v883, %v842
      %v885 = vsel %vm640, %v884, %v846
      %v886 = vsel %vm642, %v885, %v850
      %v887 = vsel %vm630, %v796, %v854
      %v888 = vsel %vm632, %v887, %v858
      %v889 = vsel %vm634, %v888, %v862
      %v890 = vsel %vm636, %v889, %v866
      %v891 = vsel %vm638, %v890, %v870
      %v892 = vsel %vm640, %v891, %v874
      %v893 = vsel %vm642, %v892, %v878
      %v896 = vcombine.low %v886, %v893
      %s898 = scalar_lea.vmem [#allocation3], 8
      %899 = vst [vmem:[%s898] sm:$0xff] %v896
      %900 = vrot.lane.b32.xlu0 %v426, 126
      %v901 = vpop.permute.xlu0 %900
      %902 = vrot.lane.b32.xlu0 %v427, 126
      %v903 = vpop.permute.xlu0 %902
      %904 = vrot.lane.b32.xlu0 %v429, 126
      %v905 = vpop.permute.xlu0 %904
      %906 = vrot.lane.b32.xlu0 %v430, 126
      %v907 = vpop.permute.xlu0 %906
      %908 = vrot.lane.b32.xlu0 %v432, 126
      %v909 = vpop.permute.xlu0 %908
      %910 = vrot.lane.b32.xlu0 %v433, 126
      %v911 = vpop.permute.xlu0 %910
      %912 = vrot.lane.b32.xlu0 %v435, 126
      %v913 = vpop.permute.xlu0 %912
      %914 = vrot.lane.b32.xlu0 %v436, 126
      %v915 = vpop.permute.xlu0 %914
      %v924 = vcombine.low %v901, %v909
      %v925 = vcombine.high %v901, %v909
      %v927 = vunpack.c.l.s4 1983009808
      %v928 = vunpack.c.0.s8 %v927
      %v929 = vlaneseq
      %v930 = vshrl.u32 %v929, 7
      %v931 = vsub.s32 %v928, %v930
      %v932 = vrot.slane %v924, %v931
      %v934 = vunpack.c.l.s4 1983009808
      %v935 = vunpack.c.0.s8 %v934
      %v936 = vlaneseq
      %v937 = vshrl.u32 %v936, 7
      %v938 = vsub.s32 %v935, %v937
      %v939 = vrot.slane %v925, %v938
      %v940 = vcombine.low %v905, %v913
      %v941 = vcombine.high %v905, %v913
      %v943 = vunpack.c.l.s4 1983009808
      %v944 = vunpack.c.0.s8 %v943
      %v945 = vlaneseq
      %v946 = vshrl.u32 %v945, 7
      %v947 = vsub.s32 %v944, %v946
      %v948 = vrot.slane %v940, %v947
      %v950 = vunpack.c.l.s4 1983009808
      %v951 = vunpack.c.0.s8 %v950
      %v952 = vlaneseq
      %v953 = vshrl.u32 %v952, 7
      %v954 = vsub.s32 %v951, %v953
      %v955 = vrot.slane %v941, %v954
      %v956 = vcombine.low %v932, %v948
      %v957 = vcombine.high %v932, %v948
      %v959 = vunpack.c.l.s4 1934713408
      %v960 = vunpack.c.0.s8 %v959
      %v961 = vlaneseq
      %v962 = vshrl.u32 %v961, 7
      %v963 = vsub.s32 %v960, %v962
      %v964 = vrot.slane %v956, %v963
      %v966 = vunpack.c.l.s4 1934713408
      %v967 = vunpack.c.0.s8 %v966
      %v968 = vlaneseq
      %v969 = vshrl.u32 %v968, 7
      %v970 = vsub.s32 %v967, %v969
      %v971 = vrot.slane %v957, %v970
      %v972 = vcombine.low %v939, %v955
      %v973 = vcombine.high %v939, %v955
      %v975 = vunpack.c.l.s4 1934713408
      %v976 = vunpack.c.0.s8 %v975
      %v977 = vlaneseq
      %v978 = vshrl.u32 %v977, 7
      %v979 = vsub.s32 %v976, %v978
      %v980 = vrot.slane %v972, %v979
      %v982 = vunpack.c.l.s4 1934713408
      %v983 = vunpack.c.0.s8 %v982
      %v984 = vlaneseq
      %v985 = vshrl.u32 %v984, 7
      %v986 = vsub.s32 %v983, %v985
      %v987 = vrot.slane %v973, %v986
      %v988 = vcombine.high %v964, 0.0
      %v989 = vcombine.high %v971, 0.0
      %v990 = vcombine.high %v980, 0.0
      %v991 = vcombine.high %v987, 0.0
      %v992 = vcombine.low %v903, %v911
      %v993 = vcombine.high %v903, %v911
      %v995 = vunpack.c.l.s4 1983009808
      %v996 = vunpack.c.0.s8 %v995
      %v997 = vlaneseq
      %v998 = vshrl.u32 %v997, 7
      %v999 = vsub.s32 %v996, %v998
      %v1000 = vrot.slane %v992, %v999
      %v1002 = vunpack.c.l.s4 1983009808
      %v1003 = vunpack.c.0.s8 %v1002
      %v1004 = vlaneseq
      %v1005 = vshrl.u32 %v1004, 7
      %v1006 = vsub.s32 %v1003, %v1005
      %v1007 = vrot.slane %v993, %v1006
      %v1008 = vcombine.low %v907, %v915
      %v1009 = vcombine.high %v907, %v915
      %v1011 = vunpack.c.l.s4 1983009808
      %v1012 = vunpack.c.0.s8 %v1011
      %v1013 = vlaneseq
      %v1014 = vshrl.u32 %v1013, 7
      %v1015 = vsub.s32 %v1012, %v1014
      %v1016 = vrot.slane %v1008, %v1015
      %v1018 = vunpack.c.l.s4 1983009808
      %v1019 = vunpack.c.0.s8 %v1018
      %v1020 = vlaneseq
      %v1021 = vshrl.u32 %v1020, 7
      %v1022 = vsub.s32 %v1019, %v1021
      %v1023 = vrot.slane %v1009, %v1022
      %v1024 = vcombine.low %v1000, %v1016
      %v1025 = vcombine.high %v1000, %v1016
      %v1027 = vunpack.c.l.s4 1934713408
      %v1028 = vunpack.c.0.s8 %v1027
      %v1029 = vlaneseq
      %v1030 = vshrl.u32 %v1029, 7
      %v1031 = vsub.s32 %v1028, %v1030
      %v1032 = vrot.slane %v1024, %v1031
      %v1034 = vunpack.c.l.s4 1934713408
      %v1035 = vunpack.c.0.s8 %v1034
      %v1036 = vlaneseq
      %v1037 = vshrl.u32 %v1036, 7
      %v1038 = vsub.s32 %v1035, %v1037
      %v1039 = vrot.slane %v1025, %v1038
      %v1040 = vcombine.low %v1007, %v1023
      %v1041 = vcombine.high %v1007, %v1023
      %v1043 = vunpack.c.l.s4 1934713408
      %v1044 = vunpack.c.0.s8 %v1043
      %v1045 = vlaneseq
      %v1046 = vshrl.u32 %v1045, 7
      %v1047 = vsub.s32 %v1044, %v1046
      %v1048 = vrot.slane %v1040, %v1047
      %v1050 = vunpack.c.l.s4 1934713408
      %v1051 = vunpack.c.0.s8 %v1050
      %v1052 = vlaneseq
      %v1053 = vshrl.u32 %v1052, 7
      %v1054 = vsub.s32 %v1051, %v1053
      %v1055 = vrot.slane %v1041, %v1054
      %v1056 = vcombine.high %v1032, 0.0
      %v1057 = vcombine.high %v1039, 0.0
      %v1058 = vcombine.high %v1048, 0.0
      %v1059 = vcombine.high %v1055, 0.0
      %1061 = vrot.lane.b32.xlu0 %v988, 16
      %v1062 = vpop.permute.xlu0 %1061
      %1065 = vrot.lane.b32.xlu0 %v971, 32
      %v1066 = vpop.permute.xlu0 %1065
      %1069 = vrot.lane.b32.xlu0 %v989, 48
      %v1070 = vpop.permute.xlu0 %1069
      %1073 = vrot.lane.b32.xlu0 %v980, 64
      %v1074 = vpop.permute.xlu0 %1073
      %1077 = vrot.lane.b32.xlu0 %v990, 80
      %v1078 = vpop.permute.xlu0 %1077
      %1081 = vrot.lane.b32.xlu0 %v987, 96
      %v1082 = vpop.permute.xlu0 %1081
      %1085 = vrot.lane.b32.xlu0 %v991, 112
      %v1086 = vpop.permute.xlu0 %1085
      %1089 = vrot.lane.b32.xlu0 %v1056, 16
      %v1090 = vpop.permute.xlu0 %1089
      %1093 = vrot.lane.b32.xlu0 %v1039, 32
      %v1094 = vpop.permute.xlu0 %1093
      %1097 = vrot.lane.b32.xlu0 %v1057, 48
      %v1098 = vpop.permute.xlu0 %1097
      %1101 = vrot.lane.b32.xlu0 %v1048, 64
      %v1102 = vpop.permute.xlu0 %1101
      %1105 = vrot.lane.b32.xlu0 %v1058, 80
      %v1106 = vpop.permute.xlu0 %1105
      %1109 = vrot.lane.b32.xlu0 %v1055, 96
      %v1110 = vpop.permute.xlu0 %1109
      %1113 = vrot.lane.b32.xlu0 %v1059, 112
      %v1114 = vpop.permute.xlu0 %1113
      %v1116 = vsel %vm630, %v964, %v1062
      %v1117 = vsel %vm632, %v1116, %v1066
      %v1118 = vsel %vm634, %v1117, %v1070
      %v1119 = vsel %vm636, %v1118, %v1074
      %v1120 = vsel %vm638, %v1119, %v1078
      %v1121 = vsel %vm640, %v1120, %v1082
      %v1122 = vsel %vm642, %v1121, %v1086
      %v1123 = vsel %vm630, %v1032, %v1090
      %v1124 = vsel %vm632, %v1123, %v1094
      %v1125 = vsel %vm634, %v1124, %v1098
      %v1126 = vsel %vm636, %v1125, %v1102
      %v1127 = vsel %vm638, %v1126, %v1106
      %v1128 = vsel %vm640, %v1127, %v1110
      %v1129 = vsel %vm642, %v1128, %v1114
      %v1132 = vcombine.low %v1122, %v1129
      %s1134 = scalar_lea.vmem [#allocation3], 16
      %1135 = vst [vmem:[%s1134] sm:$0xff] %v1132
      %vm1140 = vcmask 1046528
      %v1141 = vrot.slane %v426, 1
      %v1142 = vrot.slane %v427, 1
      %v1143 = vsel %vm1140, %v1141, %v1142
      %v1144 = vrot.slane %v428, 1
      %v1145 = vsel %vm1140, %v1142, %v1144
      %v1146 = vrot.slane %v429, 1
      %v1147 = vrot.slane %v430, 1
      %v1148 = vsel %vm1140, %v1146, %v1147
      %v1149 = vrot.slane %v431, 1
      %v1150 = vsel %vm1140, %v1147, %v1149
      %v1151 = vrot.slane %v432, 1
      %v1152 = vrot.slane %v433, 1
      %v1153 = vsel %vm1140, %v1151, %v1152
      %v1154 = vrot.slane %v434, 1
      %v1155 = vsel %vm1140, %v1152, %v1154
      %v1156 = vrot.slane %v435, 1
      %v1157 = vrot.slane %v436, 1
      %v1158 = vsel %vm1140, %v1156, %v1157
      %v1159 = vrot.slane %v437, 1
      %v1160 = vsel %vm1140, %v1157, %v1159
      %v1169 = vcombine.low %v1143, %v1153
      %v1170 = vcombine.high %v1143, %v1153
      %v1172 = vunpack.c.l.s4 1983009808
      %v1173 = vunpack.c.0.s8 %v1172
      %v1174 = vlaneseq
      %v1175 = vshrl.u32 %v1174, 7
      %v1176 = vsub.s32 %v1173, %v1175
      %v1177 = vrot.slane %v1169, %v1176
      %v1179 = vunpack.c.l.s4 1983009808
      %v1180 = vunpack.c.0.s8 %v1179
      %v1181 = vlaneseq
      %v1182 = vshrl.u32 %v1181, 7
      %v1183 = vsub.s32 %v1180, %v1182
      %v1184 = vrot.slane %v1170, %v1183
      %v1185 = vcombine.low %v1148, %v1158
      %v1186 = vcombine.high %v1148, %v1158
      %v1188 = vunpack.c.l.s4 1983009808
      %v1189 = vunpack.c.0.s8 %v1188
      %v1190 = vlaneseq
      %v1191 = vshrl.u32 %v1190, 7
      %v1192 = vsub.s32 %v1189, %v1191
      %v1193 = vrot.slane %v1185, %v1192
      %v1195 = vunpack.c.l.s4 1983009808
      %v1196 = vunpack.c.0.s8 %v1195
      %v1197 = vlaneseq
      %v1198 = vshrl.u32 %v1197, 7
      %v1199 = vsub.s32 %v1196, %v1198
      %v1200 = vrot.slane %v1186, %v1199
      %v1201 = vcombine.low %v1177, %v1193
      %v1202 = vcombine.high %v1177, %v1193
      %v1204 = vunpack.c.l.s4 1934713408
      %v1205 = vunpack.c.0.s8 %v1204
      %v1206 = vlaneseq
      %v1207 = vshrl.u32 %v1206, 7
      %v1208 = vsub.s32 %v1205, %v1207
      %v1209 = vrot.slane %v1201, %v1208
      %v1211 = vunpack.c.l.s4 1934713408
      %v1212 = vunpack.c.0.s8 %v1211
      %v1213 = vlaneseq
      %v1214 = vshrl.u32 %v1213, 7
      %v1215 = vsub.s32 %v1212, %v1214
      %v1216 = vrot.slane %v1202, %v1215
      %v1217 = vcombine.low %v1184, %v1200
      %v1218 = vcombine.high %v1184, %v1200
      %v1220 = vunpack.c.l.s4 1934713408
      %v1221 = vunpack.c.0.s8 %v1220
      %v1222 = vlaneseq
      %v1223 = vshrl.u32 %v1222, 7
      %v1224 = vsub.s32 %v1221, %v1223
      %v1225 = vrot.slane %v1217, %v1224
      %v1227 = vunpack.c.l.s4 1934713408
      %v1228 = vunpack.c.0.s8 %v1227
      %v1229 = vlaneseq
      %v1230 = vshrl.u32 %v1229, 7
      %v1231 = vsub.s32 %v1228, %v1230
      %v1232 = vrot.slane %v1218, %v1231
      %v1233 = vcombine.high %v1209, 0.0
      %v1234 = vcombine.high %v1216, 0.0
      %v1235 = vcombine.high %v1225, 0.0
      %v1236 = vcombine.high %v1232, 0.0
      %v1237 = vcombine.low %v1145, %v1155
      %v1238 = vcombine.high %v1145, %v1155
      %v1240 = vunpack.c.l.s4 1983009808
      %v1241 = vunpack.c.0.s8 %v1240
      %v1242 = vlaneseq
      %v1243 = vshrl.u32 %v1242, 7
      %v1244 = vsub.s32 %v1241, %v1243
      %v1245 = vrot.slane %v1237, %v1244
      %v1247 = vunpack.c.l.s4 1983009808
      %v1248 = vunpack.c.0.s8 %v1247
      %v1249 = vlaneseq
      %v1250 = vshrl.u32 %v1249, 7
      %v1251 = vsub.s32 %v1248, %v1250
      %v1252 = vrot.slane %v1238, %v1251
      %v1253 = vcombine.low %v1150, %v1160
      %v1254 = vcombine.high %v1150, %v1160
      %v1256 = vunpack.c.l.s4 1983009808
      %v1257 = vunpack.c.0.s8 %v1256
      %v1258 = vlaneseq
      %v1259 = vshrl.u32 %v1258, 7
      %v1260 = vsub.s32 %v1257, %v1259
      %v1261 = vrot.slane %v1253, %v1260
      %v1263 = vunpack.c.l.s4 1983009808
      %v1264 = vunpack.c.0.s8 %v1263
      %v1265 = vlaneseq
      %v1266 = vshrl.u32 %v1265, 7
      %v1267 = vsub.s32 %v1264, %v1266
      %v1268 = vrot.slane %v1254, %v1267
      %v1269 = vcombine.low %v1245, %v1261
      %v1270 = vcombine.high %v1245, %v1261
      %v1272 = vunpack.c.l.s4 1934713408
      %v1273 = vunpack.c.0.s8 %v1272
      %v1274 = vlaneseq
      %v1275 = vshrl.u32 %v1274, 7
      %v1276 = vsub.s32 %v1273, %v1275
      %v1277 = vrot.slane %v1269, %v1276
      %v1279 = vunpack.c.l.s4 1934713408
      %v1280 = vunpack.c.0.s8 %v1279
      %v1281 = vlaneseq
      %v1282 = vshrl.u32 %v1281, 7
      %v1283 = vsub.s32 %v1280, %v1282
      %v1284 = vrot.slane %v1270, %v1283
      %v1285 = vcombine.low %v1252, %v1268
      %v1286 = vcombine.high %v1252, %v1268
      %v1288 = vunpack.c.l.s4 1934713408
      %v1289 = vunpack.c.0.s8 %v1288
      %v1290 = vlaneseq
      %v1291 = vshrl.u32 %v1290, 7
      %v1292 = vsub.s32 %v1289, %v1291
      %v1293 = vrot.slane %v1285, %v1292
      %v1295 = vunpack.c.l.s4 1934713408
      %v1296 = vunpack.c.0.s8 %v1295
      %v1297 = vlaneseq
      %v1298 = vshrl.u32 %v1297, 7
      %v1299 = vsub.s32 %v1296, %v1298
      %v1300 = vrot.slane %v1286, %v1299
      %v1301 = vcombine.high %v1277, 0.0
      %v1302 = vcombine.high %v1284, 0.0
      %v1303 = vcombine.high %v1293, 0.0
      %v1304 = vcombine.high %v1300, 0.0
      %1306 = vrot.lane.b32.xlu0 %v1233, 16
      %v1307 = vpop.permute.xlu0 %1306
      %1310 = vrot.lane.b32.xlu0 %v1216, 32
      %v1311 = vpop.permute.xlu0 %1310
      %1314 = vrot.lane.b32.xlu0 %v1234, 48
      %v1315 = vpop.permute.xlu0 %1314
      %1318 = vrot.lane.b32.xlu0 %v1225, 64
      %v1319 = vpop.permute.xlu0 %1318
      %1322 = vrot.lane.b32.xlu0 %v1235, 80
      %v1323 = vpop.permute.xlu0 %1322
      %1326 = vrot.lane.b32.xlu0 %v1232, 96
      %v1327 = vpop.permute.xlu0 %1326
      %1330 = vrot.lane.b32.xlu0 %v1236, 112
      %v1331 = vpop.permute.xlu0 %1330
      %1334 = vrot.lane.b32.xlu0 %v1301, 16
      %v1335 = vpop.permute.xlu0 %1334
      %1338 = vrot.lane.b32.xlu0 %v1284, 32
      %v1339 = vpop.permute.xlu0 %1338
      %1342 = vrot.lane.b32.xlu0 %v1302, 48
      %v1343 = vpop.permute.xlu0 %1342
      %1346 = vrot.lane.b32.xlu0 %v1293, 64
      %v1347 = vpop.permute.xlu0 %1346
      %1350 = vrot.lane.b32.xlu0 %v1303, 80
      %v1351 = vpop.permute.xlu0 %1350
      %1354 = vrot.lane.b32.xlu0 %v1300, 96
      %v1355 = vpop.permute.xlu0 %1354
      %1358 = vrot.lane.b32.xlu0 %v1304, 112
      %v1359 = vpop.permute.xlu0 %1358
      %v1361 = vsel %vm630, %v1209, %v1307
      %v1362 = vsel %vm632, %v1361, %v1311
      %v1363 = vsel %vm634, %v1362, %v1315
      %v1364 = vsel %vm636, %v1363, %v1319
      %v1365 = vsel %vm638, %v1364, %v1323
      %v1366 = vsel %vm640, %v1365, %v1327
      %v1367 = vsel %vm642, %v1366, %v1331
      %v1368 = vsel %vm630, %v1277, %v1335
      %v1369 = vsel %vm632, %v1368, %v1339
      %v1370 = vsel %vm634, %v1369, %v1343
      %v1371 = vsel %vm636, %v1370, %v1347
      %v1372 = vsel %vm638, %v1371, %v1351
      %v1373 = vsel %vm640, %v1372, %v1355
      %v1374 = vsel %vm642, %v1373, %v1359
      %v1377 = vcombine.low %v1367, %v1374
      %s1379 = scalar_lea.vmem [#allocation3], 24
      %1380 = vst [vmem:[%s1379] sm:$0xff] %v1377
      %1381 = vrot.lane.b32.xlu0 %v1143, 127
      %v1382 = vpop.permute.xlu0 %1381
      %1383 = vrot.lane.b32.xlu0 %v1145, 127
      %v1384 = vpop.permute.xlu0 %1383
      %1385 = vrot.lane.b32.xlu0 %v1148, 127
      %v1386 = vpop.permute.xlu0 %1385
      %1387 = vrot.lane.b32.xlu0 %v1150, 127
      %v1388 = vpop.permute.xlu0 %1387
      %1389 = vrot.lane.b32.xlu0 %v1153, 127
      %v1390 = vpop.permute.xlu0 %1389
      %1391 = vrot.lane.b32.xlu0 %v1155, 127
      %v1392 = vpop.permute.xlu0 %1391
      %1393 = vrot.lane.b32.xlu0 %v1158, 127
      %v1394 = vpop.permute.xlu0 %1393
      %1395 = vrot.lane.b32.xlu0 %v1160, 127
      %v1396 = vpop.permute.xlu0 %1395
      %v1405 = vcombine.low %v1382, %v1390
      %v1406 = vcombine.high %v1382, %v1390
      %v1408 = vunpack.c.l.s4 1983009808
      %v1409 = vunpack.c.0.s8 %v1408
      %v1410 = vlaneseq
      %v1411 = vshrl.u32 %v1410, 7
      %v1412 = vsub.s32 %v1409, %v1411
      %v1413 = vrot.slane %v1405, %v1412
      %v1415 = vunpack.c.l.s4 1983009808
      %v1416 = vunpack.c.0.s8 %v1415
      %v1417 = vlaneseq
      %v1418 = vshrl.u32 %v1417, 7
      %v1419 = vsub.s32 %v1416, %v1418
      %v1420 = vrot.slane %v1406, %v1419
      %v1421 = vcombine.low %v1386, %v1394
      %v1422 = vcombine.high %v1386, %v1394
      %v1424 = vunpack.c.l.s4 1983009808
      %v1425 = vunpack.c.0.s8 %v1424
      %v1426 = vlaneseq
      %v1427 = vshrl.u32 %v1426, 7
      %v1428 = vsub.s32 %v1425, %v1427
      %v1429 = vrot.slane %v1421, %v1428
      %v1431 = vunpack.c.l.s4 1983009808
      %v1432 = vunpack.c.0.s8 %v1431
      %v1433 = vlaneseq
      %v1434 = vshrl.u32 %v1433, 7
      %v1435 = vsub.s32 %v1432, %v1434
      %v1436 = vrot.slane %v1422, %v1435
      %v1437 = vcombine.low %v1413, %v1429
      %v1438 = vcombine.high %v1413, %v1429
      %v1440 = vunpack.c.l.s4 1934713408
      %v1441 = vunpack.c.0.s8 %v1440
      %v1442 = vlaneseq
      %v1443 = vshrl.u32 %v1442, 7
      %v1444 = vsub.s32 %v1441, %v1443
      %v1445 = vrot.slane %v1437, %v1444
      %v1447 = vunpack.c.l.s4 1934713408
      %v1448 = vunpack.c.0.s8 %v1447
      %v1449 = vlaneseq
      %v1450 = vshrl.u32 %v1449, 7
      %v1451 = vsub.s32 %v1448, %v1450
      %v1452 = vrot.slane %v1438, %v1451
      %v1453 = vcombine.low %v1420, %v1436
      %v1454 = vcombine.high %v1420, %v1436
      %v1456 = vunpack.c.l.s4 1934713408
      %v1457 = vunpack.c.0.s8 %v1456
      %v1458 = vlaneseq
      %v1459 = vshrl.u32 %v1458, 7
      %v1460 = vsub.s32 %v1457, %v1459
      %v1461 = vrot.slane %v1453, %v1460
      %v1463 = vunpack.c.l.s4 1934713408
      %v1464 = vunpack.c.0.s8 %v1463
      %v1465 = vlaneseq
      %v1466 = vshrl.u32 %v1465, 7
      %v1467 = vsub.s32 %v1464, %v1466
      %v1468 = vrot.slane %v1454, %v1467
      %v1469 = vcombine.high %v1445, 0.0
      %v1470 = vcombine.high %v1452, 0.0
      %v1471 = vcombine.high %v1461, 0.0
      %v1472 = vcombine.high %v1468, 0.0
      %v1473 = vcombine.low %v1384, %v1392
      %v1474 = vcombine.high %v1384, %v1392
      %v1476 = vunpack.c.l.s4 1983009808
      %v1477 = vunpack.c.0.s8 %v1476
      %v1478 = vlaneseq
      %v1479 = vshrl.u32 %v1478, 7
      %v1480 = vsub.s32 %v1477, %v1479
      %v1481 = vrot.slane %v1473, %v1480
      %v1483 = vunpack.c.l.s4 1983009808
      %v1484 = vunpack.c.0.s8 %v1483
      %v1485 = vlaneseq
      %v1486 = vshrl.u32 %v1485, 7
      %v1487 = vsub.s32 %v1484, %v1486
      %v1488 = vrot.slane %v1474, %v1487
      %v1489 = vcombine.low %v1388, %v1396
      %v1490 = vcombine.high %v1388, %v1396
      %v1492 = vunpack.c.l.s4 1983009808
      %v1493 = vunpack.c.0.s8 %v1492
      %v1494 = vlaneseq
      %v1495 = vshrl.u32 %v1494, 7
      %v1496 = vsub.s32 %v1493, %v1495
      %v1497 = vrot.slane %v1489, %v1496
      %v1499 = vunpack.c.l.s4 1983009808
      %v1500 = vunpack.c.0.s8 %v1499
      %v1501 = vlaneseq
      %v1502 = vshrl.u32 %v1501, 7
      %v1503 = vsub.s32 %v1500, %v1502
      %v1504 = vrot.slane %v1490, %v1503
      %v1505 = vcombine.low %v1481, %v1497
      %v1506 = vcombine.high %v1481, %v1497
      %v1508 = vunpack.c.l.s4 1934713408
      %v1509 = vunpack.c.0.s8 %v1508
      %v1510 = vlaneseq
      %v1511 = vshrl.u32 %v1510, 7
      %v1512 = vsub.s32 %v1509, %v1511
      %v1513 = vrot.slane %v1505, %v1512
      %v1515 = vunpack.c.l.s4 1934713408
      %v1516 = vunpack.c.0.s8 %v1515
      %v1517 = vlaneseq
      %v1518 = vshrl.u32 %v1517, 7
      %v1519 = vsub.s32 %v1516, %v1518
      %v1520 = vrot.slane %v1506, %v1519
      %v1521 = vcombine.low %v1488, %v1504
      %v1522 = vcombine.high %v1488, %v1504
      %v1524 = vunpack.c.l.s4 1934713408
      %v1525 = vunpack.c.0.s8 %v1524
      %v1526 = vlaneseq
      %v1527 = vshrl.u32 %v1526, 7
      %v1528 = vsub.s32 %v1525, %v1527
      %v1529 = vrot.slane %v1521, %v1528
      %v1531 = vunpack.c.l.s4 1934713408
      %v1532 = vunpack.c.0.s8 %v1531
      %v1533 = vlaneseq
      %v1534 = vshrl.u32 %v1533, 7
      %v1535 = vsub.s32 %v1532, %v1534
      %v1536 = vrot.slane %v1522, %v1535
      %v1537 = vcombine.high %v1513, 0.0
      %v1538 = vcombine.high %v1520, 0.0
      %v1539 = vcombine.high %v1529, 0.0
      %v1540 = vcombine.high %v1536, 0.0
      %1542 = vrot.lane.b32.xlu0 %v1469, 16
      %v1543 = vpop.permute.xlu0 %1542
      %1546 = vrot.lane.b32.xlu0 %v1452, 32
      %v1547 = vpop.permute.xlu0 %1546
      %1550 = vrot.lane.b32.xlu0 %v1470, 48
      %v1551 = vpop.permute.xlu0 %1550
      %1554 = vrot.lane.b32.xlu0 %v1461, 64
      %v1555 = vpop.permute.xlu0 %1554
      %1558 = vrot.lane.b32.xlu0 %v1471, 80
      %v1559 = vpop.permute.xlu0 %1558
      %1562 = vrot.lane.b32.xlu0 %v1468, 96
      %v1563 = vpop.permute.xlu0 %1562
      %1566 = vrot.lane.b32.xlu0 %v1472, 112
      %v1567 = vpop.permute.xlu0 %1566
      %1570 = vrot.lane.b32.xlu0 %v1537, 16
      %v1571 = vpop.permute.xlu0 %1570
      %1574 = vrot.lane.b32.xlu0 %v1520, 32
      %v1575 = vpop.permute.xlu0 %1574
      %1578 = vrot.lane.b32.xlu0 %v1538, 48
      %v1579 = vpop.permute.xlu0 %1578
      %1582 = vrot.lane.b32.xlu0 %v1529, 64
      %v1583 = vpop.permute.xlu0 %1582
      %1586 = vrot.lane.b32.xlu0 %v1539, 80
      %v1587 = vpop.permute.xlu0 %1586
      %1590 = vrot.lane.b32.xlu0 %v1536, 96
      %v1591 = vpop.permute.xlu0 %1590
      %1594 = vrot.lane.b32.xlu0 %v1540, 112
      %v1595 = vpop.permute.xlu0 %1594
      %v1597 = vsel %vm630, %v1445, %v1543
      %v1598 = vsel %vm632, %v1597, %v1547
      %v1599 = vsel %vm634, %v1598, %v1551
      %v1600 = vsel %vm636, %v1599, %v1555
      %v1601 = vsel %vm638, %v1600, %v1559
      %v1602 = vsel %vm640, %v1601, %v1563
      %v1603 = vsel %vm642, %v1602, %v1567
      %v1604 = vsel %vm630, %v1513, %v1571
      %v1605 = vsel %vm632, %v1604, %v1575
      %v1606 = vsel %vm634, %v1605, %v1579
      %v1607 = vsel %vm636, %v1606, %v1583
      %v1608 = vsel %vm638, %v1607, %v1587
      %v1609 = vsel %vm640, %v1608, %v1591
      %v1610 = vsel %vm642, %v1609, %v1595
      %v1613 = vcombine.low %v1603, %v1610
      %s1615 = scalar_lea.vmem [#allocation3], 32
      %1616 = vst [vmem:[%s1615] sm:$0xff] %v1613
      %1617 = vrot.lane.b32.xlu0 %v1143, 126
      %v1618 = vpop.permute.xlu0 %1617
      %1619 = vrot.lane.b32.xlu0 %v1145, 126
      %v1620 = vpop.permute.xlu0 %1619
      %1621 = vrot.lane.b32.xlu0 %v1148, 126
      %v1622 = vpop.permute.xlu0 %1621
      %1623 = vrot.lane.b32.xlu0 %v1150, 126
      %v1624 = vpop.permute.xlu0 %1623
      %1625 = vrot.lane.b32.xlu0 %v1153, 126
      %v1626 = vpop.permute.xlu0 %1625
      %1627 = vrot.lane.b32.xlu0 %v1155, 126
      %v1628 = vpop.permute.xlu0 %1627
      %1629 = vrot.lane.b32.xlu0 %v1158, 126
      %v1630 = vpop.permute.xlu0 %1629
      %1631 = vrot.lane.b32.xlu0 %v1160, 126
      %v1632 = vpop.permute.xlu0 %1631
      %v1641 = vcombine.low %v1618, %v1626
      %v1642 = vcombine.high %v1618, %v1626
      %v1644 = vunpack.c.l.s4 1983009808
      %v1645 = vunpack.c.0.s8 %v1644
      %v1646 = vlaneseq
      %v1647 = vshrl.u32 %v1646, 7
      %v1648 = vsub.s32 %v1645, %v1647
      %v1649 = vrot.slane %v1641, %v1648
      %v1651 = vunpack.c.l.s4 1983009808
      %v1652 = vunpack.c.0.s8 %v1651
      %v1653 = vlaneseq
      %v1654 = vshrl.u32 %v1653, 7
      %v1655 = vsub.s32 %v1652, %v1654
      %v1656 = vrot.slane %v1642, %v1655
      %v1657 = vcombine.low %v1622, %v1630
      %v1658 = vcombine.high %v1622, %v1630
      %v1660 = vunpack.c.l.s4 1983009808
      %v1661 = vunpack.c.0.s8 %v1660
      %v1662 = vlaneseq
      %v1663 = vshrl.u32 %v1662, 7
      %v1664 = vsub.s32 %v1661, %v1663
      %v1665 = vrot.slane %v1657, %v1664
      %v1667 = vunpack.c.l.s4 1983009808
      %v1668 = vunpack.c.0.s8 %v1667
      %v1669 = vlaneseq
      %v1670 = vshrl.u32 %v1669, 7
      %v1671 = vsub.s32 %v1668, %v1670
      %v1672 = vrot.slane %v1658, %v1671
      %v1673 = vcombine.low %v1649, %v1665
      %v1674 = vcombine.high %v1649, %v1665
      %v1676 = vunpack.c.l.s4 1934713408
      %v1677 = vunpack.c.0.s8 %v1676
      %v1678 = vlaneseq
      %v1679 = vshrl.u32 %v1678, 7
      %v1680 = vsub.s32 %v1677, %v1679
      %v1681 = vrot.slane %v1673, %v1680
      %v1683 = vunpack.c.l.s4 1934713408
      %v1684 = vunpack.c.0.s8 %v1683
      %v1685 = vlaneseq
      %v1686 = vshrl.u32 %v1685, 7
      %v1687 = vsub.s32 %v1684, %v1686
      %v1688 = vrot.slane %v1674, %v1687
      %v1689 = vcombine.low %v1656, %v1672
      %v1690 = vcombine.high %v1656, %v1672
      %v1692 = vunpack.c.l.s4 1934713408
      %v1693 = vunpack.c.0.s8 %v1692
      %v1694 = vlaneseq
      %v1695 = vshrl.u32 %v1694, 7
      %v1696 = vsub.s32 %v1693, %v1695
      %v1697 = vrot.slane %v1689, %v1696
      %v1699 = vunpack.c.l.s4 1934713408
      %v1700 = vunpack.c.0.s8 %v1699
      %v1701 = vlaneseq
      %v1702 = vshrl.u32 %v1701, 7
      %v1703 = vsub.s32 %v1700, %v1702
      %v1704 = vrot.slane %v1690, %v1703
      %v1705 = vcombine.high %v1681, 0.0
      %v1706 = vcombine.high %v1688, 0.0
      %v1707 = vcombine.high %v1697, 0.0
      %v1708 = vcombine.high %v1704, 0.0
      %v1709 = vcombine.low %v1620, %v1628
      %v1710 = vcombine.high %v1620, %v1628
      %v1712 = vunpack.c.l.s4 1983009808
      %v1713 = vunpack.c.0.s8 %v1712
      %v1714 = vlaneseq
      %v1715 = vshrl.u32 %v1714, 7
      %v1716 = vsub.s32 %v1713, %v1715
      %v1717 = vrot.slane %v1709, %v1716
      %v1719 = vunpack.c.l.s4 1983009808
      %v1720 = vunpack.c.0.s8 %v1719
      %v1721 = vlaneseq
      %v1722 = vshrl.u32 %v1721, 7
      %v1723 = vsub.s32 %v1720, %v1722
      %v1724 = vrot.slane %v1710, %v1723
      %v1725 = vcombine.low %v1624, %v1632
      %v1726 = vcombine.high %v1624, %v1632
      %v1728 = vunpack.c.l.s4 1983009808
      %v1729 = vunpack.c.0.s8 %v1728
      %v1730 = vlaneseq
      %v1731 = vshrl.u32 %v1730, 7
      %v1732 = vsub.s32 %v1729, %v1731
      %v1733 = vrot.slane %v1725, %v1732
      %v1735 = vunpack.c.l.s4 1983009808
      %v1736 = vunpack.c.0.s8 %v1735
      %v1737 = vlaneseq
      %v1738 = vshrl.u32 %v1737, 7
      %v1739 = vsub.s32 %v1736, %v1738
      %v1740 = vrot.slane %v1726, %v1739
      %v1741 = vcombine.low %v1717, %v1733
      %v1742 = vcombine.high %v1717, %v1733
      %v1744 = vunpack.c.l.s4 1934713408
      %v1745 = vunpack.c.0.s8 %v1744
      %v1746 = vlaneseq
      %v1747 = vshrl.u32 %v1746, 7
      %v1748 = vsub.s32 %v1745, %v1747
      %v1749 = vrot.slane %v1741, %v1748
      %v1751 = vunpack.c.l.s4 1934713408
      %v1752 = vunpack.c.0.s8 %v1751
      %v1753 = vlaneseq
      %v1754 = vshrl.u32 %v1753, 7
      %v1755 = vsub.s32 %v1752, %v1754
      %v1756 = vrot.slane %v1742, %v1755
      %v1757 = vcombine.low %v1724, %v1740
      %v1758 = vcombine.high %v1724, %v1740
      %v1760 = vunpack.c.l.s4 1934713408
      %v1761 = vunpack.c.0.s8 %v1760
      %v1762 = vlaneseq
      %v1763 = vshrl.u32 %v1762, 7
      %v1764 = vsub.s32 %v1761, %v1763
      %v1765 = vrot.slane %v1757, %v1764
      %v1767 = vunpack.c.l.s4 1934713408
      %v1768 = vunpack.c.0.s8 %v1767
      %v1769 = vlaneseq
      %v1770 = vshrl.u32 %v1769, 7
      %v1771 = vsub.s32 %v1768, %v1770
      %v1772 = vrot.slane %v1758, %v1771
      %v1773 = vcombine.high %v1749, 0.0
      %v1774 = vcombine.high %v1756, 0.0
      %v1775 = vcombine.high %v1765, 0.0
      %v1776 = vcombine.high %v1772, 0.0
      %1778 = vrot.lane.b32.xlu0 %v1705, 16
      %v1779 = vpop.permute.xlu0 %1778
      %1782 = vrot.lane.b32.xlu0 %v1688, 32
      %v1783 = vpop.permute.xlu0 %1782
      %1786 = vrot.lane.b32.xlu0 %v1706, 48
      %v1787 = vpop.permute.xlu0 %1786
      %1790 = vrot.lane.b32.xlu0 %v1697, 64
      %v1791 = vpop.permute.xlu0 %1790
      %1794 = vrot.lane.b32.xlu0 %v1707, 80
      %v1795 = vpop.permute.xlu0 %1794
      %1798 = vrot.lane.b32.xlu0 %v1704, 96
      %v1799 = vpop.permute.xlu0 %1798
      %1802 = vrot.lane.b32.xlu0 %v1708, 112
      %v1803 = vpop.permute.xlu0 %1802
      %1806 = vrot.lane.b32.xlu0 %v1773, 16
      %v1807 = vpop.permute.xlu0 %1806
      %1810 = vrot.lane.b32.xlu0 %v1756, 32
      %v1811 = vpop.permute.xlu0 %1810
      %1814 = vrot.lane.b32.xlu0 %v1774, 48
      %v1815 = vpop.permute.xlu0 %1814
      %1818 = vrot.lane.b32.xlu0 %v1765, 64
      %v1819 = vpop.permute.xlu0 %1818
      %1822 = vrot.lane.b32.xlu0 %v1775, 80
      %v1823 = vpop.permute.xlu0 %1822
      %1826 = vrot.lane.b32.xlu0 %v1772, 96
      %v1827 = vpop.permute.xlu0 %1826
      %1830 = vrot.lane.b32.xlu0 %v1776, 112
      %v1831 = vpop.permute.xlu0 %1830
      %v1833 = vsel %vm630, %v1681, %v1779
      %v1834 = vsel %vm632, %v1833, %v1783
      %v1835 = vsel %vm634, %v1834, %v1787
      %v1836 = vsel %vm636, %v1835, %v1791
      %v1837 = vsel %vm638, %v1836, %v1795
      %v1838 = vsel %vm640, %v1837, %v1799
      %v1839 = vsel %vm642, %v1838, %v1803
      %v1840 = vsel %vm630, %v1749, %v1807
      %v1841 = vsel %vm632, %v1840, %v1811
      %v1842 = vsel %vm634, %v1841, %v1815
      %v1843 = vsel %vm636, %v1842, %v1819
      %v1844 = vsel %vm638, %v1843, %v1823
      %v1845 = vsel %vm640, %v1844, %v1827
      %v1846 = vsel %vm642, %v1845, %v1831
      %v1849 = vcombine.low %v1839, %v1846
      %s1851 = scalar_lea.vmem [#allocation3], 40
      %1852 = vst [vmem:[%s1851] sm:$0xff] %v1849
      %vm1853 = vcmask 1045504
      %v1854 = vrot.slane %v426, 2
      %v1855 = vrot.slane %v427, 2
      %v1856 = vsel %vm1853, %v1854, %v1855
      %v1857 = vrot.slane %v428, 2
      %v1858 = vsel %vm1853, %v1855, %v1857
      %v1859 = vrot.slane %v429, 2
      %v1860 = vrot.slane %v430, 2
      %v1861 = vsel %vm1853, %v1859, %v1860
      %v1862 = vrot.slane %v431, 2
      %v1863 = vsel %vm1853, %v1860, %v1862
      %v1864 = vrot.slane %v432, 2
      %v1865 = vrot.slane %v433, 2
      %v1866 = vsel %vm1853, %v1864, %v1865
      %v1867 = vrot.slane %v434, 2
      %v1868 = vsel %vm1853, %v1865, %v1867
      %v1869 = vrot.slane %v435, 2
      %v1870 = vrot.slane %v436, 2
      %v1871 = vsel %vm1853, %v1869, %v1870
      %v1872 = vrot.slane %v437, 2
      %v1873 = vsel %vm1853, %v1870, %v1872
      %v1882 = vcombine.low %v1856, %v1866
      %v1883 = vcombine.high %v1856, %v1866
      %v1885 = vunpack.c.l.s4 1983009808
      %v1886 = vunpack.c.0.s8 %v1885
      %v1887 = vlaneseq
      %v1888 = vshrl.u32 %v1887, 7
      %v1889 = vsub.s32 %v1886, %v1888
      %v1890 = vrot.slane %v1882, %v1889
      %v1892 = vunpack.c.l.s4 1983009808
      %v1893 = vunpack.c.0.s8 %v1892
      %v1894 = vlaneseq
      %v1895 = vshrl.u32 %v1894, 7
      %v1896 = vsub.s32 %v1893, %v1895
      %v1897 = vrot.slane %v1883, %v1896
      %v1898 = vcombine.low %v1861, %v1871
      %v1899 = vcombine.high %v1861, %v1871
      %v1901 = vunpack.c.l.s4 1983009808
      %v1902 = vunpack.c.0.s8 %v1901
      %v1903 = vlaneseq
      %v1904 = vshrl.u32 %v1903, 7
      %v1905 = vsub.s32 %v1902, %v1904
      %v1906 = vrot.slane %v1898, %v1905
      %v1908 = vunpack.c.l.s4 1983009808
      %v1909 = vunpack.c.0.s8 %v1908
      %v1910 = vlaneseq
      %v1911 = vshrl.u32 %v1910, 7
      %v1912 = vsub.s32 %v1909, %v1911
      %v1913 = vrot.slane %v1899, %v1912
      %v1914 = vcombine.low %v1890, %v1906
      %v1915 = vcombine.high %v1890, %v1906
      %v1917 = vunpack.c.l.s4 1934713408
      %v1918 = vunpack.c.0.s8 %v1917
      %v1919 = vlaneseq
      %v1920 = vshrl.u32 %v1919, 7
      %v1921 = vsub.s32 %v1918, %v1920
      %v1922 = vrot.slane %v1914, %v1921
      %v1924 = vunpack.c.l.s4 1934713408
      %v1925 = vunpack.c.0.s8 %v1924
      %v1926 = vlaneseq
      %v1927 = vshrl.u32 %v1926, 7
      %v1928 = vsub.s32 %v1925, %v1927
      %v1929 = vrot.slane %v1915, %v1928
      %v1930 = vcombine.low %v1897, %v1913
      %v1931 = vcombine.high %v1897, %v1913
      %v1933 = vunpack.c.l.s4 1934713408
      %v1934 = vunpack.c.0.s8 %v1933
      %v1935 = vlaneseq
      %v1936 = vshrl.u32 %v1935, 7
      %v1937 = vsub.s32 %v1934, %v1936
      %v1938 = vrot.slane %v1930, %v1937
      %v1940 = vunpack.c.l.s4 1934713408
      %v1941 = vunpack.c.0.s8 %v1940
      %v1942 = vlaneseq
      %v1943 = vshrl.u32 %v1942, 7
      %v1944 = vsub.s32 %v1941, %v1943
      %v1945 = vrot.slane %v1931, %v1944
      %v1946 = vcombine.high %v1922, 0.0
      %v1947 = vcombine.high %v1929, 0.0
      %v1948 = vcombine.high %v1938, 0.0
      %v1949 = vcombine.high %v1945, 0.0
      %v1950 = vcombine.low %v1858, %v1868
      %v1951 = vcombine.high %v1858, %v1868
      %v1953 = vunpack.c.l.s4 1983009808
      %v1954 = vunpack.c.0.s8 %v1953
      %v1955 = vlaneseq
      %v1956 = vshrl.u32 %v1955, 7
      %v1957 = vsub.s32 %v1954, %v1956
      %v1958 = vrot.slane %v1950, %v1957
      %v1960 = vunpack.c.l.s4 1983009808
      %v1961 = vunpack.c.0.s8 %v1960
      %v1962 = vlaneseq
      %v1963 = vshrl.u32 %v1962, 7
      %v1964 = vsub.s32 %v1961, %v1963
      %v1965 = vrot.slane %v1951, %v1964
      %v1966 = vcombine.low %v1863, %v1873
      %v1967 = vcombine.high %v1863, %v1873
      %v1969 = vunpack.c.l.s4 1983009808
      %v1970 = vunpack.c.0.s8 %v1969
      %v1971 = vlaneseq
      %v1972 = vshrl.u32 %v1971, 7
      %v1973 = vsub.s32 %v1970, %v1972
      %v1974 = vrot.slane %v1966, %v1973
      %v1976 = vunpack.c.l.s4 1983009808
      %v1977 = vunpack.c.0.s8 %v1976
      %v1978 = vlaneseq
      %v1979 = vshrl.u32 %v1978, 7
      %v1980 = vsub.s32 %v1977, %v1979
      %v1981 = vrot.slane %v1967, %v1980
      %v1982 = vcombine.low %v1958, %v1974
      %v1983 = vcombine.high %v1958, %v1974
      %v1985 = vunpack.c.l.s4 1934713408
      %v1986 = vunpack.c.0.s8 %v1985
      %v1987 = vlaneseq
      %v1988 = vshrl.u32 %v1987, 7
      %v1989 = vsub.s32 %v1986, %v1988
      %v1990 = vrot.slane %v1982, %v1989
      %v1992 = vunpack.c.l.s4 1934713408
      %v1993 = vunpack.c.0.s8 %v1992
      %v1994 = vlaneseq
      %v1995 = vshrl.u32 %v1994, 7
      %v1996 = vsub.s32 %v1993, %v1995
      %v1997 = vrot.slane %v1983, %v1996
      %v1998 = vcombine.low %v1965, %v1981
      %v1999 = vcombine.high %v1965, %v1981
      %v2001 = vunpack.c.l.s4 1934713408
      %v2002 = vunpack.c.0.s8 %v2001
      %v2003 = vlaneseq
      %v2004 = vshrl.u32 %v2003, 7
      %v2005 = vsub.s32 %v2002, %v2004
      %v2006 = vrot.slane %v1998, %v2005
      %v2008 = vunpack.c.l.s4 1934713408
      %v2009 = vunpack.c.0.s8 %v2008
      %v2010 = vlaneseq
      %v2011 = vshrl.u32 %v2010, 7
      %v2012 = vsub.s32 %v2009, %v2011
      %v2013 = vrot.slane %v1999, %v2012
      %v2014 = vcombine.high %v1990, 0.0
      %v2015 = vcombine.high %v1997, 0.0
      %v2016 = vcombine.high %v2006, 0.0
      %v2017 = vcombine.high %v2013, 0.0
      %2019 = vrot.lane.b32.xlu0 %v1946, 16
      %v2020 = vpop.permute.xlu0 %2019
      %2023 = vrot.lane.b32.xlu0 %v1929, 32
      %v2024 = vpop.permute.xlu0 %2023
      %2027 = vrot.lane.b32.xlu0 %v1947, 48
      %v2028 = vpop.permute.xlu0 %2027
      %2031 = vrot.lane.b32.xlu0 %v1938, 64
      %v2032 = vpop.permute.xlu0 %2031
      %2035 = vrot.lane.b32.xlu0 %v1948, 80
      %v2036 = vpop.permute.xlu0 %2035
      %2039 = vrot.lane.b32.xlu0 %v1945, 96
      %v2040 = vpop.permute.xlu0 %2039
      %2043 = vrot.lane.b32.xlu0 %v1949, 112
      %v2044 = vpop.permute.xlu0 %2043
      %2047 = vrot.lane.b32.xlu0 %v2014, 16
      %v2048 = vpop.permute.xlu0 %2047
      %2051 = vrot.lane.b32.xlu0 %v1997, 32
      %v2052 = vpop.permute.xlu0 %2051
      %2055 = vrot.lane.b32.xlu0 %v2015, 48
      %v2056 = vpop.permute.xlu0 %2055
      %2059 = vrot.lane.b32.xlu0 %v2006, 64
      %v2060 = vpop.permute.xlu0 %2059
      %2063 = vrot.lane.b32.xlu0 %v2016, 80
      %v2064 = vpop.permute.xlu0 %2063
      %2067 = vrot.lane.b32.xlu0 %v2013, 96
      %v2068 = vpop.permute.xlu0 %2067
      %2071 = vrot.lane.b32.xlu0 %v2017, 112
      %v2072 = vpop.permute.xlu0 %2071
      %v2074 = vsel %vm630, %v1922, %v2020
      %v2075 = vsel %vm632, %v2074, %v2024
      %v2076 = vsel %vm634, %v2075, %v2028
      %v2077 = vsel %vm636, %v2076, %v2032
      %v2078 = vsel %vm638, %v2077, %v2036
      %v2079 = vsel %vm640, %v2078, %v2040
      %v2080 = vsel %vm642, %v2079, %v2044
      %v2081 = vsel %vm630, %v1990, %v2048
      %v2082 = vsel %vm632, %v2081, %v2052
      %v2083 = vsel %vm634, %v2082, %v2056
      %v2084 = vsel %vm636, %v2083, %v2060
      %v2085 = vsel %vm638, %v2084, %v2064
      %v2086 = vsel %vm640, %v2085, %v2068
      %v2087 = vsel %vm642, %v2086, %v2072
      %v2090 = vcombine.low %v2080, %v2087
      %s2092 = scalar_lea.vmem [#allocation3], 48
      %2093 = vst [vmem:[%s2092] sm:$0xff] %v2090
      %2094 = vrot.lane.b32.xlu0 %v1856, 127
      %v2095 = vpop.permute.xlu0 %2094
      %2096 = vrot.lane.b32.xlu0 %v1858, 127
      %v2097 = vpop.permute.xlu0 %2096
      %2098 = vrot.lane.b32.xlu0 %v1861, 127
      %v2099 = vpop.permute.xlu0 %2098
      %2100 = vrot.lane.b32.xlu0 %v1863, 127
      %v2101 = vpop.permute.xlu0 %2100
      %2102 = vrot.lane.b32.xlu0 %v1866, 127
      %v2103 = vpop.permute.xlu0 %2102
      %2104 = vrot.lane.b32.xlu0 %v1868, 127
      %v2105 = vpop.permute.xlu0 %2104
      %2106 = vrot.lane.b32.xlu0 %v1871, 127
      %v2107 = vpop.permute.xlu0 %2106
      %2108 = vrot.lane.b32.xlu0 %v1873, 127
      %v2109 = vpop.permute.xlu0 %2108
      %v2118 = vcombine.low %v2095, %v2103
      %v2119 = vcombine.high %v2095, %v2103
      %v2121 = vunpack.c.l.s4 1983009808
      %v2122 = vunpack.c.0.s8 %v2121
      %v2123 = vlaneseq
      %v2124 = vshrl.u32 %v2123, 7
      %v2125 = vsub.s32 %v2122, %v2124
      %v2126 = vrot.slane %v2118, %v2125
      %v2128 = vunpack.c.l.s4 1983009808
      %v2129 = vunpack.c.0.s8 %v2128
      %v2130 = vlaneseq
      %v2131 = vshrl.u32 %v2130, 7
      %v2132 = vsub.s32 %v2129, %v2131
      %v2133 = vrot.slane %v2119, %v2132
      %v2134 = vcombine.low %v2099, %v2107
      %v2135 = vcombine.high %v2099, %v2107
      %v2137 = vunpack.c.l.s4 1983009808
      %v2138 = vunpack.c.0.s8 %v2137
      %v2139 = vlaneseq
      %v2140 = vshrl.u32 %v2139, 7
      %v2141 = vsub.s32 %v2138, %v2140
      %v2142 = vrot.slane %v2134, %v2141
      %v2144 = vunpack.c.l.s4 1983009808
      %v2145 = vunpack.c.0.s8 %v2144
      %v2146 = vlaneseq
      %v2147 = vshrl.u32 %v2146, 7
      %v2148 = vsub.s32 %v2145, %v2147
      %v2149 = vrot.slane %v2135, %v2148
      %v2150 = vcombine.low %v2126, %v2142
      %v2151 = vcombine.high %v2126, %v2142
      %v2153 = vunpack.c.l.s4 1934713408
      %v2154 = vunpack.c.0.s8 %v2153
      %v2155 = vlaneseq
      %v2156 = vshrl.u32 %v2155, 7
      %v2157 = vsub.s32 %v2154, %v2156
      %v2158 = vrot.slane %v2150, %v2157
      %v2160 = vunpack.c.l.s4 1934713408
      %v2161 = vunpack.c.0.s8 %v2160
      %v2162 = vlaneseq
      %v2163 = vshrl.u32 %v2162, 7
      %v2164 = vsub.s32 %v2161, %v2163
      %v2165 = vrot.slane %v2151, %v2164
      %v2166 = vcombine.low %v2133, %v2149
      %v2167 = vcombine.high %v2133, %v2149
      %v2169 = vunpack.c.l.s4 1934713408
      %v2170 = vunpack.c.0.s8 %v2169
      %v2171 = vlaneseq
      %v2172 = vshrl.u32 %v2171, 7
      %v2173 = vsub.s32 %v2170, %v2172
      %v2174 = vrot.slane %v2166, %v2173
      %v2176 = vunpack.c.l.s4 1934713408
      %v2177 = vunpack.c.0.s8 %v2176
      %v2178 = vlaneseq
      %v2179 = vshrl.u32 %v2178, 7
      %v2180 = vsub.s32 %v2177, %v2179
      %v2181 = vrot.slane %v2167, %v2180
      %v2182 = vcombine.high %v2158, 0.0
      %v2183 = vcombine.high %v2165, 0.0
      %v2184 = vcombine.high %v2174, 0.0
      %v2185 = vcombine.high %v2181, 0.0
      %v2186 = vcombine.low %v2097, %v2105
      %v2187 = vcombine.high %v2097, %v2105
      %v2189 = vunpack.c.l.s4 1983009808
      %v2190 = vunpack.c.0.s8 %v2189
      %v2191 = vlaneseq
      %v2192 = vshrl.u32 %v2191, 7
      %v2193 = vsub.s32 %v2190, %v2192
      %v2194 = vrot.slane %v2186, %v2193
      %v2196 = vunpack.c.l.s4 1983009808
      %v2197 = vunpack.c.0.s8 %v2196
      %v2198 = vlaneseq
      %v2199 = vshrl.u32 %v2198, 7
      %v2200 = vsub.s32 %v2197, %v2199
      %v2201 = vrot.slane %v2187, %v2200
      %v2202 = vcombine.low %v2101, %v2109
      %v2203 = vcombine.high %v2101, %v2109
      %v2205 = vunpack.c.l.s4 1983009808
      %v2206 = vunpack.c.0.s8 %v2205
      %v2207 = vlaneseq
      %v2208 = vshrl.u32 %v2207, 7
      %v2209 = vsub.s32 %v2206, %v2208
      %v2210 = vrot.slane %v2202, %v2209
      %v2212 = vunpack.c.l.s4 1983009808
      %v2213 = vunpack.c.0.s8 %v2212
      %v2214 = vlaneseq
      %v2215 = vshrl.u32 %v2214, 7
      %v2216 = vsub.s32 %v2213, %v2215
      %v2217 = vrot.slane %v2203, %v2216
      %v2218 = vcombine.low %v2194, %v2210
      %v2219 = vcombine.high %v2194, %v2210
      %v2221 = vunpack.c.l.s4 1934713408
      %v2222 = vunpack.c.0.s8 %v2221
      %v2223 = vlaneseq
      %v2224 = vshrl.u32 %v2223, 7
      %v2225 = vsub.s32 %v2222, %v2224
      %v2226 = vrot.slane %v2218, %v2225
      %v2228 = vunpack.c.l.s4 1934713408
      %v2229 = vunpack.c.0.s8 %v2228
      %v2230 = vlaneseq
      %v2231 = vshrl.u32 %v2230, 7
      %v2232 = vsub.s32 %v2229, %v2231
      %v2233 = vrot.slane %v2219, %v2232
      %v2234 = vcombine.low %v2201, %v2217
      %v2235 = vcombine.high %v2201, %v2217
      %v2237 = vunpack.c.l.s4 1934713408
      %v2238 = vunpack.c.0.s8 %v2237
      %v2239 = vlaneseq
      %v2240 = vshrl.u32 %v2239, 7
      %v2241 = vsub.s32 %v2238, %v2240
      %v2242 = vrot.slane %v2234, %v2241
      %v2244 = vunpack.c.l.s4 1934713408
      %v2245 = vunpack.c.0.s8 %v2244
      %v2246 = vlaneseq
      %v2247 = vshrl.u32 %v2246, 7
      %v2248 = vsub.s32 %v2245, %v2247
      %v2249 = vrot.slane %v2235, %v2248
      %v2250 = vcombine.high %v2226, 0.0
      %v2251 = vcombine.high %v2233, 0.0
      %v2252 = vcombine.high %v2242, 0.0
      %v2253 = vcombine.high %v2249, 0.0
      %2255 = vrot.lane.b32.xlu0 %v2182, 16
      %v2256 = vpop.permute.xlu0 %2255
      %2259 = vrot.lane.b32.xlu0 %v2165, 32
      %v2260 = vpop.permute.xlu0 %2259
      %2263 = vrot.lane.b32.xlu0 %v2183, 48
      %v2264 = vpop.permute.xlu0 %2263
      %2267 = vrot.lane.b32.xlu0 %v2174, 64
      %v2268 = vpop.permute.xlu0 %2267
      %2271 = vrot.lane.b32.xlu0 %v2184, 80
      %v2272 = vpop.permute.xlu0 %2271
      %2275 = vrot.lane.b32.xlu0 %v2181, 96
      %v2276 = vpop.permute.xlu0 %2275
      %2279 = vrot.lane.b32.xlu0 %v2185, 112
      %v2280 = vpop.permute.xlu0 %2279
      %2283 = vrot.lane.b32.xlu0 %v2250, 16
      %v2284 = vpop.permute.xlu0 %2283
      %2287 = vrot.lane.b32.xlu0 %v2233, 32
      %v2288 = vpop.permute.xlu0 %2287
      %2291 = vrot.lane.b32.xlu0 %v2251, 48
      %v2292 = vpop.permute.xlu0 %2291
      %2295 = vrot.lane.b32.xlu0 %v2242, 64
      %v2296 = vpop.permute.xlu0 %2295
      %2299 = vrot.lane.b32.xlu0 %v2252, 80
      %v2300 = vpop.permute.xlu0 %2299
      %2303 = vrot.lane.b32.xlu0 %v2249, 96
      %v2304 = vpop.permute.xlu0 %2303
      %2307 = vrot.lane.b32.xlu0 %v2253, 112
      %v2308 = vpop.permute.xlu0 %2307
      %v2310 = vsel %vm630, %v2158, %v2256
      %v2311 = vsel %vm632, %v2310, %v2260
      %v2312 = vsel %vm634, %v2311, %v2264
      %v2313 = vsel %vm636, %v2312, %v2268
      %v2314 = vsel %vm638, %v2313, %v2272
      %v2315 = vsel %vm640, %v2314, %v2276
      %v2316 = vsel %vm642, %v2315, %v2280
      %v2317 = vsel %vm630, %v2226, %v2284
      %v2318 = vsel %vm632, %v2317, %v2288
      %v2319 = vsel %vm634, %v2318, %v2292
      %v2320 = vsel %vm636, %v2319, %v2296
      %v2321 = vsel %vm638, %v2320, %v2300
      %v2322 = vsel %vm640, %v2321, %v2304
      %v2323 = vsel %vm642, %v2322, %v2308
      %v2326 = vcombine.low %v2316, %v2323
      %s2328 = scalar_lea.vmem [#allocation3], 56
      %2329 = vst [vmem:[%s2328] sm:$0xff] %v2326
      %2330 = vrot.lane.b32.xlu0 %v1856, 126
      %v2331 = vpop.permute.xlu0 %2330
      %2332 = vrot.lane.b32.xlu0 %v1858, 126
      %v2333 = vpop.permute.xlu0 %2332
      %2334 = vrot.lane.b32.xlu0 %v1861, 126
      %v2335 = vpop.permute.xlu0 %2334
      %2336 = vrot.lane.b32.xlu0 %v1863, 126
      %v2337 = vpop.permute.xlu0 %2336
      %2338 = vrot.lane.b32.xlu0 %v1866, 126
      %v2339 = vpop.permute.xlu0 %2338
      %2340 = vrot.lane.b32.xlu0 %v1868, 126
      %v2341 = vpop.permute.xlu0 %2340
      %2342 = vrot.lane.b32.xlu0 %v1871, 126
      %v2343 = vpop.permute.xlu0 %2342
      %2344 = vrot.lane.b32.xlu0 %v1873, 126
      %v2345 = vpop.permute.xlu0 %2344
      %v2354 = vcombine.low %v2331, %v2339
      %v2355 = vcombine.high %v2331, %v2339
      %v2357 = vunpack.c.l.s4 1983009808
      %v2358 = vunpack.c.0.s8 %v2357
      %v2359 = vlaneseq
      %v2360 = vshrl.u32 %v2359, 7
      %v2361 = vsub.s32 %v2358, %v2360
      %v2362 = vrot.slane %v2354, %v2361
      %v2364 = vunpack.c.l.s4 1983009808
      %v2365 = vunpack.c.0.s8 %v2364
      %v2366 = vlaneseq
      %v2367 = vshrl.u32 %v2366, 7
      %v2368 = vsub.s32 %v2365, %v2367
      %v2369 = vrot.slane %v2355, %v2368
      %v2370 = vcombine.low %v2335, %v2343
      %v2371 = vcombine.high %v2335, %v2343
      %v2373 = vunpack.c.l.s4 1983009808
      %v2374 = vunpack.c.0.s8 %v2373
      %v2375 = vlaneseq
      %v2376 = vshrl.u32 %v2375, 7
      %v2377 = vsub.s32 %v2374, %v2376
      %v2378 = vrot.slane %v2370, %v2377
      %v2380 = vunpack.c.l.s4 1983009808
      %v2381 = vunpack.c.0.s8 %v2380
      %v2382 = vlaneseq
      %v2383 = vshrl.u32 %v2382, 7
      %v2384 = vsub.s32 %v2381, %v2383
      %v2385 = vrot.slane %v2371, %v2384
      %v2386 = vcombine.low %v2362, %v2378
      %v2387 = vcombine.high %v2362, %v2378
      %v2389 = vunpack.c.l.s4 1934713408
      %v2390 = vunpack.c.0.s8 %v2389
      %v2391 = vlaneseq
      %v2392 = vshrl.u32 %v2391, 7
      %v2393 = vsub.s32 %v2390, %v2392
      %v2394 = vrot.slane %v2386, %v2393
      %v2396 = vunpack.c.l.s4 1934713408
      %v2397 = vunpack.c.0.s8 %v2396
      %v2398 = vlaneseq
      %v2399 = vshrl.u32 %v2398, 7
      %v2400 = vsub.s32 %v2397, %v2399
      %v2401 = vrot.slane %v2387, %v2400
      %v2402 = vcombine.low %v2369, %v2385
      %v2403 = vcombine.high %v2369, %v2385
      %v2405 = vunpack.c.l.s4 1934713408
      %v2406 = vunpack.c.0.s8 %v2405
      %v2407 = vlaneseq
      %v2408 = vshrl.u32 %v2407, 7
      %v2409 = vsub.s32 %v2406, %v2408
      %v2410 = vrot.slane %v2402, %v2409
      %v2412 = vunpack.c.l.s4 1934713408
      %v2413 = vunpack.c.0.s8 %v2412
      %v2414 = vlaneseq
      %v2415 = vshrl.u32 %v2414, 7
      %v2416 = vsub.s32 %v2413, %v2415
      %v2417 = vrot.slane %v2403, %v2416
      %v2418 = vcombine.high %v2394, 0.0
      %v2419 = vcombine.high %v2401, 0.0
      %v2420 = vcombine.high %v2410, 0.0
      %v2421 = vcombine.high %v2417, 0.0
      %v2422 = vcombine.low %v2333, %v2341
      %v2423 = vcombine.high %v2333, %v2341
      %v2425 = vunpack.c.l.s4 1983009808
      %v2426 = vunpack.c.0.s8 %v2425
      %v2427 = vlaneseq
      %v2428 = vshrl.u32 %v2427, 7
      %v2429 = vsub.s32 %v2426, %v2428
      %v2430 = vrot.slane %v2422, %v2429
      %v2432 = vunpack.c.l.s4 1983009808
      %v2433 = vunpack.c.0.s8 %v2432
      %v2434 = vlaneseq
      %v2435 = vshrl.u32 %v2434, 7
      %v2436 = vsub.s32 %v2433, %v2435
      %v2437 = vrot.slane %v2423, %v2436
      %v2438 = vcombine.low %v2337, %v2345
      %v2439 = vcombine.high %v2337, %v2345
      %v2441 = vunpack.c.l.s4 1983009808
      %v2442 = vunpack.c.0.s8 %v2441
      %v2443 = vlaneseq
      %v2444 = vshrl.u32 %v2443, 7
      %v2445 = vsub.s32 %v2442, %v2444
      %v2446 = vrot.slane %v2438, %v2445
      %v2448 = vunpack.c.l.s4 1983009808
      %v2449 = vunpack.c.0.s8 %v2448
      %v2450 = vlaneseq
      %v2451 = vshrl.u32 %v2450, 7
      %v2452 = vsub.s32 %v2449, %v2451
      %v2453 = vrot.slane %v2439, %v2452
      %v2454 = vcombine.low %v2430, %v2446
      %v2455 = vcombine.high %v2430, %v2446
      %v2457 = vunpack.c.l.s4 1934713408
      %v2458 = vunpack.c.0.s8 %v2457
      %v2459 = vlaneseq
      %v2460 = vshrl.u32 %v2459, 7
      %v2461 = vsub.s32 %v2458, %v2460
      %v2462 = vrot.slane %v2454, %v2461
      %v2464 = vunpack.c.l.s4 1934713408
      %v2465 = vunpack.c.0.s8 %v2464
      %v2466 = vlaneseq
      %v2467 = vshrl.u32 %v2466, 7
      %v2468 = vsub.s32 %v2465, %v2467
      %v2469 = vrot.slane %v2455, %v2468
      %v2470 = vcombine.low %v2437, %v2453
      %v2471 = vcombine.high %v2437, %v2453
      %v2473 = vunpack.c.l.s4 1934713408
      %v2474 = vunpack.c.0.s8 %v2473
      %v2475 = vlaneseq
      %v2476 = vshrl.u32 %v2475, 7
      %v2477 = vsub.s32 %v2474, %v2476
      %v2478 = vrot.slane %v2470, %v2477
      %v2480 = vunpack.c.l.s4 1934713408
      %v2481 = vunpack.c.0.s8 %v2480
      %v2482 = vlaneseq
      %v2483 = vshrl.u32 %v2482, 7
      %v2484 = vsub.s32 %v2481, %v2483
      %v2485 = vrot.slane %v2471, %v2484
      %v2486 = vcombine.high %v2462, 0.0
      %v2487 = vcombine.high %v2469, 0.0
      %v2488 = vcombine.high %v2478, 0.0
      %v2489 = vcombine.high %v2485, 0.0
      %2491 = vrot.lane.b32.xlu0 %v2418, 16
      %v2492 = vpop.permute.xlu0 %2491
      %2495 = vrot.lane.b32.xlu0 %v2401, 32
      %v2496 = vpop.permute.xlu0 %2495
      %2499 = vrot.lane.b32.xlu0 %v2419, 48
      %v2500 = vpop.permute.xlu0 %2499
      %2503 = vrot.lane.b32.xlu0 %v2410, 64
      %v2504 = vpop.permute.xlu0 %2503
      %2507 = vrot.lane.b32.xlu0 %v2420, 80
      %v2508 = vpop.permute.xlu0 %2507
      %2511 = vrot.lane.b32.xlu0 %v2417, 96
      %v2512 = vpop.permute.xlu0 %2511
      %2515 = vrot.lane.b32.xlu0 %v2421, 112
      %v2516 = vpop.permute.xlu0 %2515
      %2519 = vrot.lane.b32.xlu0 %v2486, 16
      %v2520 = vpop.permute.xlu0 %2519
      %2523 = vrot.lane.b32.xlu0 %v2469, 32
      %v2524 = vpop.permute.xlu0 %2523
      %2527 = vrot.lane.b32.xlu0 %v2487, 48
      %v2528 = vpop.permute.xlu0 %2527
      %2531 = vrot.lane.b32.xlu0 %v2478, 64
      %v2532 = vpop.permute.xlu0 %2531
      %2535 = vrot.lane.b32.xlu0 %v2488, 80
      %v2536 = vpop.permute.xlu0 %2535
      %2539 = vrot.lane.b32.xlu0 %v2485, 96
      %v2540 = vpop.permute.xlu0 %2539
      %2543 = vrot.lane.b32.xlu0 %v2489, 112
      %v2544 = vpop.permute.xlu0 %2543
      %v2546 = vsel %vm630, %v2394, %v2492
      %v2547 = vsel %vm632, %v2546, %v2496
      %v2548 = vsel %vm634, %v2547, %v2500
      %v2549 = vsel %vm636, %v2548, %v2504
      %v2550 = vsel %vm638, %v2549, %v2508
      %v2551 = vsel %vm640, %v2550, %v2512
      %v2552 = vsel %vm642, %v2551, %v2516
      %v2553 = vsel %vm630, %v2462, %v2520
      %v2554 = vsel %vm632, %v2553, %v2524
      %v2555 = vsel %vm634, %v2554, %v2528
      %v2556 = vsel %vm636, %v2555, %v2532
      %v2557 = vsel %vm638, %v2556, %v2536
      %v2558 = vsel %vm640, %v2557, %v2540
      %v2559 = vsel %vm642, %v2558, %v2544
      %v2562 = vcombine.low %v2552, %v2559
      %s2564 = scalar_lea.vmem [#allocation3], 64
      %2565 = vst [vmem:[%s2564] sm:$0xff] %v2562
      %v2566 = vld [vmem:[#allocation3] sm:$0xff]
      %v2567 = vld [vmem:[#allocation3 + $0x8] sm:$0xff]
      %v2568 = vld [vmem:[#allocation3 + $0x10] sm:$0xff]
      %v2569 = vld [vmem:[#allocation3 + $0x18] sm:$0xff]
      %v2570 = vld [vmem:[#allocation3 + $0x20] sm:$0xff]
      %v2571 = vld [vmem:[#allocation3 + $0x28] sm:$0xff]
      %v2572 = vld [vmem:[#allocation3 + $0x30] sm:$0xff]
      %v2573 = vld [vmem:[#allocation3 + $0x38] sm:$0xff]
      %v2574 = vld [vmem:[#allocation3 + $0x40] sm:$0xff]
      %v2575 = vld [vmem:[%s1] sm:$0xf]
      %v2585 = vcombine.low %v2566, %v2567
      %v2586 = vcombine.high %v2566, %v2567
      %v2587 = vcombine.low %v2568, %v2569
      %v2588 = vcombine.high %v2568, %v2569
      %v2589 = vcombine.low %v2570, %v2571
      %v2590 = vcombine.high %v2570, %v2571
      %v2591 = vcombine.low %v2572, %v2573
      %v2592 = vcombine.high %v2572, %v2573
      %v2593 = vcombine.high %v2574, %v2574
      %vm2602 = vcmask 293888
      %v2604 = vsel %vm2602, %v2575, 0
      %vm2606 = vcmask 1043456
      %v2607 = vsel %vm2606, %v2574, 0
      %v2609 = vsel %vm2606, %v2593, 0
      %2611 = vmatprep.subr.mxu0 0.0
      %2612 = vmatpush1.msra.mxu0 0.0
      %2613 = vmatprep.subr.mxu0 0.0
      %2614 = vmatpush1.msra.mxu0 0.0
      %2615 = vmatprep.subr.mxu0 0.0
      %2616 = vmatpush1.msra.mxu0 0.0
      %2617 = vmatprep.subr.mxu0 0.0
      %2618 = vmatpush1.msra.mxu0 0.0
      %2619 = vmatprep.subr.mxu0 0.0
      %2620 = vmatpush1.msra.mxu0 0.0
      %2621 = vmatprep.subr.mxu0 0.0
      %2622 = vmatpush1.msra.mxu0 0.0
      %2623 = vmatprep.subr.mxu0 0.0
      %2624 = vmatpush1.msra.mxu0 0.0
      %2625 = vmatprep.subr.mxu0 0.0
      %2626 = vmatpush1.msra.mxu0 0.0
      %2627 = vmatprep.subr.mxu0 0.0
      %2628 = vmatpush1.msra.mxu0 0.0
      %2629 = vmatprep.subr.mxu0 0.0
      %2630 = vmatpush1.msra.mxu0 0.0
      %2631 = vmatprep.subr.mxu0 0.0
      %2632 = vmatpush1.msra.mxu0 0.0
      %v2633 = vand.u32 %v2609, 4294901760
      %2634 = vmatprep.subr.mxu0 %v2633
      %v2635 = vand.u32 %v2607, 4294901760
      %2636 = vmatpush1.msra.mxu0 %v2635
      %v2637 = vand.u32 %v2592, 4294901760
      %2638 = vmatprep.subr.mxu0 %v2637
      %v2639 = vand.u32 %v2591, 4294901760
      %2640 = vmatpush1.msra.mxu0 %v2639
      %v2641 = vand.u32 %v2590, 4294901760
      %2642 = vmatprep.subr.mxu0 %v2641
      %v2643 = vand.u32 %v2589, 4294901760
      %2644 = vmatpush1.msra.mxu0 %v2643
      %v2645 = vand.u32 %v2588, 4294901760
      %2646 = vmatprep.subr.mxu0 %v2645
      %v2647 = vand.u32 %v2587, 4294901760
      %2648 = vmatpush1.msra.mxu0 %v2647
      %v2649 = vand.u32 %v2586, 4294901760
      %2650 = vmatprep.subr.mxu0 %v2649
      %v2651 = vand.u32 %v2585, 4294901760
      %2652 = vmatpush1.msra.mxu0 %v2651
      %2653 = vmatprep.subr.mxu0 0.0
      %2654 = vmatpush2.msra.mxu0 0.0
      %2655 = vmatprep.subr.mxu0 0.0
      %2656 = vmatpush2.msra.mxu0 0.0
      %2657 = vmatprep.subr.mxu0 0.0
      %2658 = vmatpush2.msra.mxu0 0.0
      %2659 = vmatprep.subr.mxu0 0.0
      %2660 = vmatpush2.msra.mxu0 0.0
      %2661 = vmatprep.subr.mxu0 0.0
      %2662 = vmatpush2.msra.mxu0 0.0
      %2663 = vmatprep.subr.mxu0 0.0
      %2664 = vmatpush2.msra.mxu0 0.0
      %2665 = vmatprep.subr.mxu0 0.0
      %2666 = vmatpush2.msra.mxu0 0.0
      %2667 = vmatprep.subr.mxu0 0.0
      %2668 = vmatpush2.msra.mxu0 0.0
      %2669 = vmatprep.subr.mxu0 0.0
      %2670 = vmatpush2.msra.mxu0 0.0
      %2671 = vmatprep.subr.mxu0 0.0
      %2672 = vmatpush2.msra.mxu0 0.0
      %2673 = vmatprep.subr.mxu0 0.0
      %2674 = vmatpush2.msra.mxu0 0.0
      %2675 = vmatprep.subr.mxu0 0.0
      %2676 = vmatpush2.msra.mxu0 0.0
      %2677 = vmatprep.subr.mxu0 0.0
      %2678 = vmatpush2.msra.mxu0 0.0
      %2679 = vmatprep.subr.mxu0 0.0
      %2680 = vmatpush2.msra.mxu0 0.0
      %2681 = vmatprep.subr.mxu0 0.0
      %2682 = vmatpush2.msra.mxu0 0.0
      %2683 = vmatprep.subr.mxu0 0.0
      %2684 = vmatpush2.msra.mxu0 0.0
      %2685 = vmatprep.mubr.f32.mxu0 0.0
      %v2686 = vand.u32 %v2604, 4294901760
      %v2687 = vsub.f32 %v2604, %v2686
      %v2688 = vand.u32 %v2687, 4294901760
      %v2689 = vsub.f32 %v2687, %v2688
      %v2690 = vand.u32 %v2689, 4294901760
      %2691 = vmatmul.mubr.f32.gmra.mxu0 %v2690
      %v2692 = vpop.f32.mrf.mxu0
      %v2693 = vadd.f32 0.0, %v2692
      %v2694 = vpop.f32.mrf.mxu0
      %v2695 = vadd.f32 0.0, %v2694
      %2696 = vdwg.mxu0
      %2697 = vmatprep.subr.mxu0 0.0
      %2698 = vmatpush1.msra.mxu0 0.0
      %2699 = vmatprep.subr.mxu0 0.0
      %2700 = vmatpush1.msra.mxu0 0.0
      %2701 = vmatprep.subr.mxu0 0.0
      %2702 = vmatpush1.msra.mxu0 0.0
      %2703 = vmatprep.subr.mxu0 0.0
      %2704 = vmatpush1.msra.mxu0 0.0
      %2705 = vmatprep.subr.mxu0 0.0
      %2706 = vmatpush1.msra.mxu0 0.0
      %2707 = vmatprep.subr.mxu0 0.0
      %2708 = vmatpush1.msra.mxu0 0.0
      %2709 = vmatprep.subr.mxu0 0.0
      %2710 = vmatpush1.msra.mxu0 0.0
      %2711 = vmatprep.subr.mxu0 0.0
      %2712 = vmatpush1.msra.mxu0 0.0
      %2713 = vmatprep.subr.mxu0 0.0
      %2714 = vmatpush1.msra.mxu0 0.0
      %2715 = vmatprep.subr.mxu0 0.0
      %2716 = vmatpush1.msra.mxu0 0.0
      %2717 = vmatprep.subr.mxu0 0.0
      %2718 = vmatpush1.msra.mxu0 0.0
      %v2719 = vand.u32 %v2609, 4294901760
      %v2720 = vsub.f32 %v2609, %v2719
      %v2721 = vand.u32 %v2720, 4294901760
      %v2722 = vsub.f32 %v2720, %v2721
      %v2723 = vand.u32 %v2722, 4294901760
      %2724 = vmatprep.subr.mxu0 %v2723
      %v2725 = vand.u32 %v2607, 4294901760
      %v2726 = vsub.f32 %v2607, %v2725
      %v2727 = vand.u32 %v2726, 4294901760
      %v2728 = vsub.f32 %v2726, %v2727
      %v2729 = vand.u32 %v2728, 4294901760
      %2730 = vmatpush1.msra.mxu0 %v2729
      %v2731 = vand.u32 %v2592, 4294901760
      %v2732 = vsub.f32 %v2592, %v2731
      %v2733 = vand.u32 %v2732, 4294901760
      %v2734 = vsub.f32 %v2732, %v2733
      %v2735 = vand.u32 %v2734, 4294901760
      %2736 = vmatprep.subr.mxu0 %v2735
      %v2737 = vand.u32 %v2591, 4294901760
      %v2738 = vsub.f32 %v2591, %v2737
      %v2739 = vand.u32 %v2738, 4294901760
      %v2740 = vsub.f32 %v2738, %v2739
      %v2741 = vand.u32 %v2740, 4294901760
      %2742 = vmatpush1.msra.mxu0 %v2741
      %v2743 = vand.u32 %v2590, 4294901760
      %v2744 = vsub.f32 %v2590, %v2743
      %v2745 = vand.u32 %v2744, 4294901760
      %v2746 = vsub.f32 %v2744, %v2745
      %v2747 = vand.u32 %v2746, 4294901760
      %2748 = vmatprep.subr.mxu0 %v2747
      %v2749 = vand.u32 %v2589, 4294901760
      %v2750 = vsub.f32 %v2589, %v2749
      %v2751 = vand.u32 %v2750, 4294901760
      %v2752 = vsub.f32 %v2750, %v2751
      %v2753 = vand.u32 %v2752, 4294901760
      %2754 = vmatpush1.msra.mxu0 %v2753
      %v2755 = vand.u32 %v2588, 4294901760
      %v2756 = vsub.f32 %v2588, %v2755
      %v2757 = vand.u32 %v2756, 4294901760
      %v2758 = vsub.f32 %v2756, %v2757
      %v2759 = vand.u32 %v2758, 4294901760
      %2760 = vmatprep.subr.mxu0 %v2759
      %v2761 = vand.u32 %v2587, 4294901760
      %v2762 = vsub.f32 %v2587, %v2761
      %v2763 = vand.u32 %v2762, 4294901760
      %v2764 = vsub.f32 %v2762, %v2763
      %v2765 = vand.u32 %v2764, 4294901760
      %2766 = vmatpush1.msra.mxu0 %v2765
      %v2767 = vand.u32 %v2586, 4294901760
      %v2768 = vsub.f32 %v2586, %v2767
      %v2769 = vand.u32 %v2768, 4294901760
      %v2770 = vsub.f32 %v2768, %v2769
      %v2771 = vand.u32 %v2770, 4294901760
      %2772 = vmatprep.subr.mxu0 %v2771
      %v2773 = vand.u32 %v2585, 4294901760
      %v2774 = vsub.f32 %v2585, %v2773
      %v2775 = vand.u32 %v2774, 4294901760
      %v2776 = vsub.f32 %v2774, %v2775
      %v2777 = vand.u32 %v2776, 4294901760
      %2778 = vmatpush1.msra.mxu0 %v2777
      %2779 = vmatprep.subr.mxu0 0.0
      %2780 = vmatpush2.msra.mxu0 0.0
      %2781 = vmatprep.subr.mxu0 0.0
      %2782 = vmatpush2.msra.mxu0 0.0
      %2783 = vmatprep.subr.mxu0 0.0
      %2784 = vmatpush2.msra.mxu0 0.0
      %2785 = vmatprep.subr.mxu0 0.0
      %2786 = vmatpush2.msra.mxu0 0.0
      %2787 = vmatprep.subr.mxu0 0.0
      %2788 = vmatpush2.msra.mxu0 0.0
      %2789 = vmatprep.subr.mxu0 0.0
      %2790 = vmatpush2.msra.mxu0 0.0
      %2791 = vmatprep.subr.mxu0 0.0
      %2792 = vmatpush2.msra.mxu0 0.0
      %2793 = vmatprep.subr.mxu0 0.0
      %2794 = vmatpush2.msra.mxu0 0.0
      %2795 = vmatprep.subr.mxu0 0.0
      %2796 = vmatpush2.msra.mxu0 0.0
      %2797 = vmatprep.subr.mxu0 0.0
      %2798 = vmatpush2.msra.mxu0 0.0
      %2799 = vmatprep.subr.mxu0 0.0
      %2800 = vmatpush2.msra.mxu0 0.0
      %2801 = vmatprep.subr.mxu0 0.0
      %2802 = vmatpush2.msra.mxu0 0.0
      %2803 = vmatprep.subr.mxu0 0.0
      %2804 = vmatpush2.msra.mxu0 0.0
      %2805 = vmatprep.subr.mxu0 0.0
      %2806 = vmatpush2.msra.mxu0 0.0
      %2807 = vmatprep.subr.mxu0 0.0
      %2808 = vmatpush2.msra.mxu0 0.0
      %2809 = vmatprep.subr.mxu0 0.0
      %2810 = vmatpush2.msra.mxu0 0.0
      %2811 = vmatprep.mubr.f32.mxu0 0.0
      %v2812 = vand.u32 %v2604, 4294901760
      %2813 = vmatmul.mubr.f32.gmra.mxu0 %v2812
      %v2814 = vpop.f32.mrf.mxu0
      %v2815 = vadd.f32 %v2693, %v2814
      %v2816 = vpop.f32.mrf.mxu0
      %v2817 = vadd.f32 %v2695, %v2816
      %2818 = vdwg.mxu0
      %2819 = vmatprep.subr.mxu0 0.0
      %2820 = vmatpush1.msra.mxu0 0.0
      %2821 = vmatprep.subr.mxu0 0.0
      %2822 = vmatpush1.msra.mxu0 0.0
      %2823 = vmatprep.subr.mxu0 0.0
      %2824 = vmatpush1.msra.mxu0 0.0
      %2825 = vmatprep.subr.mxu0 0.0
      %2826 = vmatpush1.msra.mxu0 0.0
      %2827 = vmatprep.subr.mxu0 0.0
      %2828 = vmatpush1.msra.mxu0 0.0
      %2829 = vmatprep.subr.mxu0 0.0
      %2830 = vmatpush1.msra.mxu0 0.0
      %2831 = vmatprep.subr.mxu0 0.0
      %2832 = vmatpush1.msra.mxu0 0.0
      %2833 = vmatprep.subr.mxu0 0.0
      %2834 = vmatpush1.msra.mxu0 0.0
      %2835 = vmatprep.subr.mxu0 0.0
      %2836 = vmatpush1.msra.mxu0 0.0
      %2837 = vmatprep.subr.mxu0 0.0
      %2838 = vmatpush1.msra.mxu0 0.0
      %2839 = vmatprep.subr.mxu0 0.0
      %2840 = vmatpush1.msra.mxu0 0.0
      %v2841 = vand.u32 %v2609, 4294901760
      %v2842 = vsub.f32 %v2609, %v2841
      %2843 = vmatprep.subr.mxu0 %v2842
      %v2844 = vand.u32 %v2607, 4294901760
      %v2845 = vsub.f32 %v2607, %v2844
      %2846 = vmatpush1.msra.mxu0 %v2845
      %v2847 = vand.u32 %v2592, 4294901760
      %v2848 = vsub.f32 %v2592, %v2847
      %2849 = vmatprep.subr.mxu0 %v2848
      %v2850 = vand.u32 %v2591, 4294901760
      %v2851 = vsub.f32 %v2591, %v2850
      %2852 = vmatpush1.msra.mxu0 %v2851
      %v2853 = vand.u32 %v2590, 4294901760
      %v2854 = vsub.f32 %v2590, %v2853
      %2855 = vmatprep.subr.mxu0 %v2854
      %v2856 = vand.u32 %v2589, 4294901760
      %v2857 = vsub.f32 %v2589, %v2856
      %2858 = vmatpush1.msra.mxu0 %v2857
      %v2859 = vand.u32 %v2588, 4294901760
      %v2860 = vsub.f32 %v2588, %v2859
      %2861 = vmatprep.subr.mxu0 %v2860
      %v2862 = vand.u32 %v2587, 4294901760
      %v2863 = vsub.f32 %v2587, %v2862
      %2864 = vmatpush1.msra.mxu0 %v2863
      %v2865 = vand.u32 %v2586, 4294901760
      %v2866 = vsub.f32 %v2586, %v2865
      %2867 = vmatprep.subr.mxu0 %v2866
      %v2868 = vand.u32 %v2585, 4294901760
      %v2869 = vsub.f32 %v2585, %v2868
      %2870 = vmatpush1.msra.mxu0 %v2869
      %2871 = vmatprep.subr.mxu0 0.0
      %2872 = vmatpush2.msra.mxu0 0.0
      %2873 = vmatprep.subr.mxu0 0.0
      %2874 = vmatpush2.msra.mxu0 0.0
      %2875 = vmatprep.subr.mxu0 0.0
      %2876 = vmatpush2.msra.mxu0 0.0
      %2877 = vmatprep.subr.mxu0 0.0
      %2878 = vmatpush2.msra.mxu0 0.0
      %2879 = vmatprep.subr.mxu0 0.0
      %2880 = vmatpush2.msra.mxu0 0.0
      %2881 = vmatprep.subr.mxu0 0.0
      %2882 = vmatpush2.msra.mxu0 0.0
      %2883 = vmatprep.subr.mxu0 0.0
      %2884 = vmatpush2.msra.mxu0 0.0
      %2885 = vmatprep.subr.mxu0 0.0
      %2886 = vmatpush2.msra.mxu0 0.0
      %2887 = vmatprep.subr.mxu0 0.0
      %2888 = vmatpush2.msra.mxu0 0.0
      %2889 = vmatprep.subr.mxu0 0.0
      %2890 = vmatpush2.msra.mxu0 0.0
      %2891 = vmatprep.subr.mxu0 0.0
      %2892 = vmatpush2.msra.mxu0 0.0
      %2893 = vmatprep.subr.mxu0 0.0
      %2894 = vmatpush2.msra.mxu0 0.0
      %2895 = vmatprep.subr.mxu0 0.0
      %2896 = vmatpush2.msra.mxu0 0.0
      %2897 = vmatprep.subr.mxu0 0.0
      %2898 = vmatpush2.msra.mxu0 0.0
      %2899 = vmatprep.subr.mxu0 0.0
      %2900 = vmatpush2.msra.mxu0 0.0
      %2901 = vmatprep.subr.mxu0 0.0
      %2902 = vmatpush2.msra.mxu0 0.0
      %2903 = vmatprep.mubr.f32.mxu0 0.0
      %v2904 = vand.u32 %v2604, 4294901760
      %v2905 = vsub.f32 %v2604, %v2904
      %2906 = vmatmul.mubr.f32.gmra.mxu0 %v2905
      %v2907 = vpop.f32.mrf.mxu0
      %v2908 = vadd.f32 %v2815, %v2907
      %v2909 = vpop.f32.mrf.mxu0
      %v2910 = vadd.f32 %v2817, %v2909
      %2911 = vdwg.mxu0
      %2912 = vmatprep.subr.mxu0 0.0
      %2913 = vmatpush1.msra.mxu0 0.0
      %2914 = vmatprep.subr.mxu0 0.0
      %2915 = vmatpush1.msra.mxu0 0.0
      %2916 = vmatprep.subr.mxu0 0.0
      %2917 = vmatpush1.msra.mxu0 0.0
      %2918 = vmatprep.subr.mxu0 0.0
      %2919 = vmatpush1.msra.mxu0 0.0
      %2920 = vmatprep.subr.mxu0 0.0
      %2921 = vmatpush1.msra.mxu0 0.0
      %2922 = vmatprep.subr.mxu0 0.0
      %2923 = vmatpush1.msra.mxu0 0.0
      %2924 = vmatprep.subr.mxu0 0.0
      %2925 = vmatpush1.msra.mxu0 0.0
      %2926 = vmatprep.subr.mxu0 0.0
      %2927 = vmatpush1.msra.mxu0 0.0
      %2928 = vmatprep.subr.mxu0 0.0
      %2929 = vmatpush1.msra.mxu0 0.0
      %2930 = vmatprep.subr.mxu0 0.0
      %2931 = vmatpush1.msra.mxu0 0.0
      %2932 = vmatprep.subr.mxu0 0.0
      %2933 = vmatpush1.msra.mxu0 0.0
      %v2934 = vand.u32 %v2609, 4294901760
      %2935 = vmatprep.subr.mxu0 %v2934
      %v2936 = vand.u32 %v2607, 4294901760
      %2937 = vmatpush1.msra.mxu0 %v2936
      %v2938 = vand.u32 %v2592, 4294901760
      %2939 = vmatprep.subr.mxu0 %v2938
      %v2940 = vand.u32 %v2591, 4294901760
      %2941 = vmatpush1.msra.mxu0 %v2940
      %v2942 = vand.u32 %v2590, 4294901760
      %2943 = vmatprep.subr.mxu0 %v2942
      %v2944 = vand.u32 %v2589, 4294901760
      %2945 = vmatpush1.msra.mxu0 %v2944
      %v2946 = vand.u32 %v2588, 4294901760
      %2947 = vmatprep.subr.mxu0 %v2946
      %v2948 = vand.u32 %v2587, 4294901760
      %2949 = vmatpush1.msra.mxu0 %v2948
      %v2950 = vand.u32 %v2586, 4294901760
      %2951 = vmatprep.subr.mxu0 %v2950
      %v2952 = vand.u32 %v2585, 4294901760
      %2953 = vmatpush1.msra.mxu0 %v2952
      %2954 = vmatprep.subr.mxu0 0.0
      %2955 = vmatpush2.msra.mxu0 0.0
      %2956 = vmatprep.subr.mxu0 0.0
      %2957 = vmatpush2.msra.mxu0 0.0
      %2958 = vmatprep.subr.mxu0 0.0
      %2959 = vmatpush2.msra.mxu0 0.0
      %2960 = vmatprep.subr.mxu0 0.0
      %2961 = vmatpush2.msra.mxu0 0.0
      %2962 = vmatprep.subr.mxu0 0.0
      %2963 = vmatpush2.msra.mxu0 0.0
      %2964 = vmatprep.subr.mxu0 0.0
      %2965 = vmatpush2.msra.mxu0 0.0
      %2966 = vmatprep.subr.mxu0 0.0
      %2967 = vmatpush2.msra.mxu0 0.0
      %2968 = vmatprep.subr.mxu0 0.0
      %2969 = vmatpush2.msra.mxu0 0.0
      %2970 = vmatprep.subr.mxu0 0.0
      %2971 = vmatpush2.msra.mxu0 0.0
      %2972 = vmatprep.subr.mxu0 0.0
      %2973 = vmatpush2.msra.mxu0 0.0
      %2974 = vmatprep.subr.mxu0 0.0
      %2975 = vmatpush2.msra.mxu0 0.0
      %2976 = vmatprep.subr.mxu0 0.0
      %2977 = vmatpush2.msra.mxu0 0.0
      %2978 = vmatprep.subr.mxu0 0.0
      %2979 = vmatpush2.msra.mxu0 0.0
      %2980 = vmatprep.subr.mxu0 0.0
      %2981 = vmatpush2.msra.mxu0 0.0
      %2982 = vmatprep.subr.mxu0 0.0
      %2983 = vmatpush2.msra.mxu0 0.0
      %2984 = vmatprep.subr.mxu0 0.0
      %2985 = vmatpush2.msra.mxu0 0.0
      %2986 = vmatprep.mubr.f32.mxu0 0.0
      %v2987 = vand.u32 %v2604, 4294901760
      %v2988 = vsub.f32 %v2604, %v2987
      %v2989 = vand.u32 %v2988, 4294901760
      %2990 = vmatmul.mubr.f32.gmra.mxu0 %v2989
      %v2991 = vpop.f32.mrf.mxu0
      %v2992 = vadd.f32 %v2908, %v2991
      %v2993 = vpop.f32.mrf.mxu0
      %v2994 = vadd.f32 %v2910, %v2993
      %2995 = vdwg.mxu0
      %2996 = vmatprep.subr.mxu0 0.0
      %2997 = vmatpush1.msra.mxu0 0.0
      %2998 = vmatprep.subr.mxu0 0.0
      %2999 = vmatpush1.msra.mxu0 0.0
      %3000 = vmatprep.subr.mxu0 0.0
      %3001 = vmatpush1.msra.mxu0 0.0
      %3002 = vmatprep.subr.mxu0 0.0
      %3003 = vmatpush1.msra.mxu0 0.0
      %3004 = vmatprep.subr.mxu0 0.0
      %3005 = vmatpush1.msra.mxu0 0.0
      %3006 = vmatprep.subr.mxu0 0.0
      %3007 = vmatpush1.msra.mxu0 0.0
      %3008 = vmatprep.subr.mxu0 0.0
      %3009 = vmatpush1.msra.mxu0 0.0
      %3010 = vmatprep.subr.mxu0 0.0
      %3011 = vmatpush1.msra.mxu0 0.0
      %3012 = vmatprep.subr.mxu0 0.0
      %3013 = vmatpush1.msra.mxu0 0.0
      %3014 = vmatprep.subr.mxu0 0.0
      %3015 = vmatpush1.msra.mxu0 0.0
      %3016 = vmatprep.subr.mxu0 0.0
      %3017 = vmatpush1.msra.mxu0 0.0
      %v3018 = vand.u32 %v2609, 4294901760
      %v3019 = vsub.f32 %v2609, %v3018
      %v3020 = vand.u32 %v3019, 4294901760
      %3021 = vmatprep.subr.mxu0 %v3020
      %v3022 = vand.u32 %v2607, 4294901760
      %v3023 = vsub.f32 %v2607, %v3022
      %v3024 = vand.u32 %v3023, 4294901760
      %3025 = vmatpush1.msra.mxu0 %v3024
      %v3026 = vand.u32 %v2592, 4294901760
      %v3027 = vsub.f32 %v2592, %v3026
      %v3028 = vand.u32 %v3027, 4294901760
      %3029 = vmatprep.subr.mxu0 %v3028
      %v3030 = vand.u32 %v2591, 4294901760
      %v3031 = vsub.f32 %v2591, %v3030
      %v3032 = vand.u32 %v3031, 4294901760
      %3033 = vmatpush1.msra.mxu0 %v3032
      %v3034 = vand.u32 %v2590, 4294901760
      %v3035 = vsub.f32 %v2590, %v3034
      %v3036 = vand.u32 %v3035, 4294901760
      %3037 = vmatprep.subr.mxu0 %v3036
      %v3038 = vand.u32 %v2589, 4294901760
      %v3039 = vsub.f32 %v2589, %v3038
      %v3040 = vand.u32 %v3039, 4294901760
      %3041 = vmatpush1.msra.mxu0 %v3040
      %v3042 = vand.u32 %v2588, 4294901760
      %v3043 = vsub.f32 %v2588, %v3042
      %v3044 = vand.u32 %v3043, 4294901760
      %3045 = vmatprep.subr.mxu0 %v3044
      %v3046 = vand.u32 %v2587, 4294901760
      %v3047 = vsub.f32 %v2587, %v3046
      %v3048 = vand.u32 %v3047, 4294901760
      %3049 = vmatpush1.msra.mxu0 %v3048
      %v3050 = vand.u32 %v2586, 4294901760
      %v3051 = vsub.f32 %v2586, %v3050
      %v3052 = vand.u32 %v3051, 4294901760
      %3053 = vmatprep.subr.mxu0 %v3052
      %v3054 = vand.u32 %v2585, 4294901760
      %v3055 = vsub.f32 %v2585, %v3054
      %v3056 = vand.u32 %v3055, 4294901760
      %3057 = vmatpush1.msra.mxu0 %v3056
      %3058 = vmatprep.subr.mxu0 0.0
      %3059 = vmatpush2.msra.mxu0 0.0
      %3060 = vmatprep.subr.mxu0 0.0
      %3061 = vmatpush2.msra.mxu0 0.0
      %3062 = vmatprep.subr.mxu0 0.0
      %3063 = vmatpush2.msra.mxu0 0.0
      %3064 = vmatprep.subr.mxu0 0.0
      %3065 = vmatpush2.msra.mxu0 0.0
      %3066 = vmatprep.subr.mxu0 0.0
      %3067 = vmatpush2.msra.mxu0 0.0
      %3068 = vmatprep.subr.mxu0 0.0
      %3069 = vmatpush2.msra.mxu0 0.0
      %3070 = vmatprep.subr.mxu0 0.0
      %3071 = vmatpush2.msra.mxu0 0.0
      %3072 = vmatprep.subr.mxu0 0.0
      %3073 = vmatpush2.msra.mxu0 0.0
      %3074 = vmatprep.subr.mxu0 0.0
      %3075 = vmatpush2.msra.mxu0 0.0
      %3076 = vmatprep.subr.mxu0 0.0
      %3077 = vmatpush2.msra.mxu0 0.0
      %3078 = vmatprep.subr.mxu0 0.0
      %3079 = vmatpush2.msra.mxu0 0.0
      %3080 = vmatprep.subr.mxu0 0.0
      %3081 = vmatpush2.msra.mxu0 0.0
      %3082 = vmatprep.subr.mxu0 0.0
      %3083 = vmatpush2.msra.mxu0 0.0
      %3084 = vmatprep.subr.mxu0 0.0
      %3085 = vmatpush2.msra.mxu0 0.0
      %3086 = vmatprep.subr.mxu0 0.0
      %3087 = vmatpush2.msra.mxu0 0.0
      %3088 = vmatprep.subr.mxu0 0.0
      %3089 = vmatpush2.msra.mxu0 0.0
      %3090 = vmatprep.mubr.f32.mxu0 0.0
      %v3091 = vand.u32 %v2604, 4294901760
      %3092 = vmatmul.mubr.f32.gmra.mxu0 %v3091
      %v3093 = vpop.f32.mrf.mxu0
      %v3094 = vadd.f32 %v2992, %v3093
      %v3095 = vpop.f32.mrf.mxu0
      %v3096 = vadd.f32 %v2994, %v3095
      %3097 = vdwg.mxu0
      %3098 = vmatprep.subr.mxu0 0.0
      %3099 = vmatpush1.msra.mxu0 0.0
      %3100 = vmatprep.subr.mxu0 0.0
      %3101 = vmatpush1.msra.mxu0 0.0
      %3102 = vmatprep.subr.mxu0 0.0
      %3103 = vmatpush1.msra.mxu0 0.0
      %3104 = vmatprep.subr.mxu0 0.0
      %3105 = vmatpush1.msra.mxu0 0.0
      %3106 = vmatprep.subr.mxu0 0.0
      %3107 = vmatpush1.msra.mxu0 0.0
      %3108 = vmatprep.subr.mxu0 0.0
      %3109 = vmatpush1.msra.mxu0 0.0
      %3110 = vmatprep.subr.mxu0 0.0
      %3111 = vmatpush1.msra.mxu0 0.0
      %3112 = vmatprep.subr.mxu0 0.0
      %3113 = vmatpush1.msra.mxu0 0.0
      %3114 = vmatprep.subr.mxu0 0.0
      %3115 = vmatpush1.msra.mxu0 0.0
      %3116 = vmatprep.subr.mxu0 0.0
      %3117 = vmatpush1.msra.mxu0 0.0
      %3118 = vmatprep.subr.mxu0 0.0
      %3119 = vmatpush1.msra.mxu0 0.0
      %v3120 = vand.u32 %v2609, 4294901760
      %3121 = vmatprep.subr.mxu0 %v3120
      %v3122 = vand.u32 %v2607, 4294901760
      %3123 = vmatpush1.msra.mxu0 %v3122
      %v3124 = vand.u32 %v2592, 4294901760
      %3125 = vmatprep.subr.mxu0 %v3124
      %v3126 = vand.u32 %v2591, 4294901760
      %3127 = vmatpush1.msra.mxu0 %v3126
      %v3128 = vand.u32 %v2590, 4294901760
      %3129 = vmatprep.subr.mxu0 %v3128
      %v3130 = vand.u32 %v2589, 4294901760
      %3131 = vmatpush1.msra.mxu0 %v3130
      %v3132 = vand.u32 %v2588, 4294901760
      %3133 = vmatprep.subr.mxu0 %v3132
      %v3134 = vand.u32 %v2587, 4294901760
      %3135 = vmatpush1.msra.mxu0 %v3134
      %v3136 = vand.u32 %v2586, 4294901760
      %3137 = vmatprep.subr.mxu0 %v3136
      %v3138 = vand.u32 %v2585, 4294901760
      %3139 = vmatpush1.msra.mxu0 %v3138
      %3140 = vmatprep.subr.mxu0 0.0
      %3141 = vmatpush2.msra.mxu0 0.0
      %3142 = vmatprep.subr.mxu0 0.0
      %3143 = vmatpush2.msra.mxu0 0.0
      %3144 = vmatprep.subr.mxu0 0.0
      %3145 = vmatpush2.msra.mxu0 0.0
      %3146 = vmatprep.subr.mxu0 0.0
      %3147 = vmatpush2.msra.mxu0 0.0
      %3148 = vmatprep.subr.mxu0 0.0
      %3149 = vmatpush2.msra.mxu0 0.0
      %3150 = vmatprep.subr.mxu0 0.0
      %3151 = vmatpush2.msra.mxu0 0.0
      %3152 = vmatprep.subr.mxu0 0.0
      %3153 = vmatpush2.msra.mxu0 0.0
      %3154 = vmatprep.subr.mxu0 0.0
      %3155 = vmatpush2.msra.mxu0 0.0
      %3156 = vmatprep.subr.mxu0 0.0
      %3157 = vmatpush2.msra.mxu0 0.0
      %3158 = vmatprep.subr.mxu0 0.0
      %3159 = vmatpush2.msra.mxu0 0.0
      %3160 = vmatprep.subr.mxu0 0.0
      %3161 = vmatpush2.msra.mxu0 0.0
      %3162 = vmatprep.subr.mxu0 0.0
      %3163 = vmatpush2.msra.mxu0 0.0
      %3164 = vmatprep.subr.mxu0 0.0
      %3165 = vmatpush2.msra.mxu0 0.0
      %3166 = vmatprep.subr.mxu0 0.0
      %3167 = vmatpush2.msra.mxu0 0.0
      %3168 = vmatprep.subr.mxu0 0.0
      %3169 = vmatpush2.msra.mxu0 0.0
      %3170 = vmatprep.subr.mxu0 0.0
      %3171 = vmatpush2.msra.mxu0 0.0
      %3172 = vmatprep.mubr.f32.mxu0 0.0
      %v3173 = vand.u32 %v2604, 4294901760
      %3174 = vmatmul.mubr.f32.gmra.mxu0 %v3173
      %v3175 = vpop.f32.mrf.mxu0
      %v3176 = vadd.f32 %v3094, %v3175
      %v3177 = vpop.f32.mrf.mxu0
      %v3178 = vadd.f32 %v3096, %v3177
      %3179 = vdwg.mxu0
      %v3180 = vld [vmem:[%s2] sm:$0xf]
      %3182 = vset.pattern.permute.xlu0 0
      %3183 = vperm.xlu0 %3182, %v3180
      %v3184 = vpop.permute.xlu0 %3183
      %v3186 = vmul.f32 %v3176, %v3184
      %v3187 = vmul.f32 %v3178, %v3184
      %v3188 = vld [vmem:[%s3] sm:$0xf]
      %3190 = vset.pattern.permute.xlu0 0
      %3191 = vperm.xlu0 %3190, %v3188
      %v3192 = vpop.permute.xlu0 %3191
      %v3194 = vadd.f32 %v3186, %v3192
      %v3195 = vadd.f32 %v3187, %v3192
      %v3196 = vmax.f32 %v3194, 0.0
      %v3197 = vmax.f32 %v3195, 0.0
      %3199 = vrot.lane.b32.xlu0 %v3196, 112
      %v3200 = vpop.permute.xlu0 %3199
      %3202 = vrot.lane.b32.xlu0 %v3196, 96
      %v3203 = vpop.permute.xlu0 %3202
      %3205 = vrot.lane.b32.xlu0 %v3196, 80
      %v3206 = vpop.permute.xlu0 %3205
      %3208 = vrot.lane.b32.xlu0 %v3196, 64
      %v3209 = vpop.permute.xlu0 %3208
      %3211 = vrot.lane.b32.xlu0 %v3196, 48
      %v3212 = vpop.permute.xlu0 %3211
      %3214 = vrot.lane.b32.xlu0 %v3196, 32
      %v3215 = vpop.permute.xlu0 %3214
      %3217 = vrot.lane.b32.xlu0 %v3196, 16
      %v3218 = vpop.permute.xlu0 %3217
      %3221 = vrot.lane.b32.xlu0 %v3197, 112
      %v3222 = vpop.permute.xlu0 %3221
      %3224 = vrot.lane.b32.xlu0 %v3197, 96
      %v3225 = vpop.permute.xlu0 %3224
      %3227 = vrot.lane.b32.xlu0 %v3197, 80
      %v3228 = vpop.permute.xlu0 %3227
      %3230 = vrot.lane.b32.xlu0 %v3197, 64
      %v3231 = vpop.permute.xlu0 %3230
      %3233 = vrot.lane.b32.xlu0 %v3197, 48
      %v3234 = vpop.permute.xlu0 %3233
      %3236 = vrot.lane.b32.xlu0 %v3197, 32
      %v3237 = vpop.permute.xlu0 %3236
      %3239 = vrot.lane.b32.xlu0 %v3197, 16
      %v3240 = vpop.permute.xlu0 %3239
      %v3242 = vcombine.low %v3196, %v3203
      %v3244 = vunpack.c.l.s4 1983009808
      %v3245 = vunpack.c.0.s8 %v3244
      %v3246 = vlaneseq
      %v3247 = vshrl.u32 %v3246, 7
      %v3248 = vsub.s32 %v3245, %v3247
      %v3249 = vrot.slane %v3242, %v3248
      %v3250 = vcombine.low %v3200, %v3206
      %v3252 = vunpack.c.l.s4 1983009808
      %v3253 = vunpack.c.0.s8 %v3252
      %v3254 = vlaneseq
      %v3255 = vshrl.u32 %v3254, 7
      %v3256 = vsub.s32 %v3253, %v3255
      %v3257 = vrot.slane %v3250, %v3256
      %v3258 = vcombine.low %v3209, %v3215
      %v3260 = vunpack.c.l.s4 1983009808
      %v3261 = vunpack.c.0.s8 %v3260
      %v3262 = vlaneseq
      %v3263 = vshrl.u32 %v3262, 7
      %v3264 = vsub.s32 %v3261, %v3263
      %v3265 = vrot.slane %v3258, %v3264
      %v3266 = vcombine.low %v3212, %v3218
      %v3268 = vunpack.c.l.s4 1983009808
      %v3269 = vunpack.c.0.s8 %v3268
      %v3270 = vlaneseq
      %v3271 = vshrl.u32 %v3270, 7
      %v3272 = vsub.s32 %v3269, %v3271
      %v3273 = vrot.slane %v3266, %v3272
      %v3274 = vcombine.low %v3249, %v3257
      %v3275 = vcombine.high %v3249, %v3257
      %v3277 = vunpack.c.l.s4 1934713408
      %v3278 = vunpack.c.0.s8 %v3277
      %v3279 = vlaneseq
      %v3280 = vshrl.u32 %v3279, 7
      %v3281 = vsub.s32 %v3278, %v3280
      %v3282 = vrot.slane %v3274, %v3281
      %v3284 = vunpack.c.l.s4 1934713408
      %v3285 = vunpack.c.0.s8 %v3284
      %v3286 = vlaneseq
      %v3287 = vshrl.u32 %v3286, 7
      %v3288 = vsub.s32 %v3285, %v3287
      %v3289 = vrot.slane %v3275, %v3288
      %v3290 = vcombine.low %v3265, %v3273
      %v3291 = vcombine.high %v3265, %v3273
      %v3293 = vunpack.c.l.s4 1934713408
      %v3294 = vunpack.c.0.s8 %v3293
      %v3295 = vlaneseq
      %v3296 = vshrl.u32 %v3295, 7
      %v3297 = vsub.s32 %v3294, %v3296
      %v3298 = vrot.slane %v3290, %v3297
      %v3300 = vunpack.c.l.s4 1934713408
      %v3301 = vunpack.c.0.s8 %v3300
      %v3302 = vlaneseq
      %v3303 = vshrl.u32 %v3302, 7
      %v3304 = vsub.s32 %v3301, %v3303
      %v3305 = vrot.slane %v3291, %v3304
      %v3306 = vcombine.low %v3282, %v3298
      %v3307 = vcombine.high %v3282, %v3298
      %v3308 = vcombine.low %v3289, %v3305
      %v3309 = vcombine.high %v3289, %v3305
      %v3310 = vcombine.low %v3197, %v3225
      %v3312 = vunpack.c.l.s4 1983009808
      %v3313 = vunpack.c.0.s8 %v3312
      %v3314 = vlaneseq
      %v3315 = vshrl.u32 %v3314, 7
      %v3316 = vsub.s32 %v3313, %v3315
      %v3317 = vrot.slane %v3310, %v3316
      %v3318 = vcombine.low %v3222, %v3228
      %v3320 = vunpack.c.l.s4 1983009808
      %v3321 = vunpack.c.0.s8 %v3320
      %v3322 = vlaneseq
      %v3323 = vshrl.u32 %v3322, 7
      %v3324 = vsub.s32 %v3321, %v3323
      %v3325 = vrot.slane %v3318, %v3324
      %v3326 = vcombine.low %v3231, %v3237
      %v3328 = vunpack.c.l.s4 1983009808
      %v3329 = vunpack.c.0.s8 %v3328
      %v3330 = vlaneseq
      %v3331 = vshrl.u32 %v3330, 7
      %v3332 = vsub.s32 %v3329, %v3331
      %v3333 = vrot.slane %v3326, %v3332
      %v3334 = vcombine.low %v3234, %v3240
      %v3336 = vunpack.c.l.s4 1983009808
      %v3337 = vunpack.c.0.s8 %v3336
      %v3338 = vlaneseq
      %v3339 = vshrl.u32 %v3338, 7
      %v3340 = vsub.s32 %v3337, %v3339
      %v3341 = vrot.slane %v3334, %v3340
      %v3342 = vcombine.low %v3317, %v3325
      %v3343 = vcombine.high %v3317, %v3325
      %v3345 = vunpack.c.l.s4 1934713408
      %v3346 = vunpack.c.0.s8 %v3345
      %v3347 = vlaneseq
      %v3348 = vshrl.u32 %v3347, 7
      %v3349 = vsub.s32 %v3346, %v3348
      %v3350 = vrot.slane %v3342, %v3349
      %v3352 = vunpack.c.l.s4 1934713408
      %v3353 = vunpack.c.0.s8 %v3352
      %v3354 = vlaneseq
      %v3355 = vshrl.u32 %v3354, 7
      %v3356 = vsub.s32 %v3353, %v3355
      %v3357 = vrot.slane %v3343, %v3356
      %v3358 = vcombine.low %v3333, %v3341
      %v3359 = vcombine.high %v3333, %v3341
      %v3361 = vunpack.c.l.s4 1934713408
      %v3362 = vunpack.c.0.s8 %v3361
      %v3363 = vlaneseq
      %v3364 = vshrl.u32 %v3363, 7
      %v3365 = vsub.s32 %v3362, %v3364
      %v3366 = vrot.slane %v3358, %v3365
      %v3368 = vunpack.c.l.s4 1934713408
      %v3369 = vunpack.c.0.s8 %v3368
      %v3370 = vlaneseq
      %v3371 = vshrl.u32 %v3370, 7
      %v3372 = vsub.s32 %v3369, %v3371
      %v3373 = vrot.slane %v3359, %v3372
      %v3374 = vcombine.low %v3350, %v3366
      %v3375 = vcombine.high %v3350, %v3366
      %v3376 = vcombine.low %v3357, %v3373
      %v3377 = vcombine.high %v3357, %v3373
      %3386 = vrot.lane.b32.xlu0 %v3306, 1
      %v3387 = vpop.permute.xlu0 %3386
      %3388 = vrot.lane.b32.xlu0 %v3374, 1
      %v3389 = vpop.permute.xlu0 %3388
      %3390 = vrot.lane.b32.xlu0 %v3307, 1
      %v3391 = vpop.permute.xlu0 %3390
      %3392 = vrot.lane.b32.xlu0 %v3375, 1
      %v3393 = vpop.permute.xlu0 %3392
      %3394 = vrot.lane.b32.xlu0 %v3308, 1
      %v3395 = vpop.permute.xlu0 %3394
      %3396 = vrot.lane.b32.xlu0 %v3376, 1
      %v3397 = vpop.permute.xlu0 %3396
      %3398 = vrot.lane.b32.xlu0 %v3309, 1
      %v3399 = vpop.permute.xlu0 %3398
      %3400 = vrot.lane.b32.xlu0 %v3377, 1
      %v3401 = vpop.permute.xlu0 %3400
      %3410 = vst.msk [vmem:[#allocation2 + $0x1] sm:$0xff] %vm419, %v3387
      %3411 = vst.msk [vmem:[#allocation2 + $0x9] sm:$0xff] %vm419, %v3389
      %3412 = vst.msk [vmem:[#allocation2 + $0x19] sm:$0xff] %vm419, %v3391
      %3413 = vst.msk [vmem:[#allocation2 + $0x21] sm:$0xff] %vm419, %v3393
      %3414 = vst.msk [vmem:[#allocation2 + $0x31] sm:$0xff] %vm419, %v3395
      %3415 = vst.msk [vmem:[#allocation2 + $0x39] sm:$0xff] %vm419, %v3397
      %3416 = vst.msk [vmem:[#allocation2 + $0x49] sm:$0xff] %vm419, %v3399
      %3417 = vst.msk [vmem:[#allocation2 + $0x51] sm:$0xff] %vm419, %v3401
      %v3418 = vld [vmem:[#allocation2] sm:$0xff]
      %v3419 = vld [vmem:[#allocation2 + $0x8] sm:$0xff]
      %v3420 = vld [vmem:[#allocation2 + $0x10] sm:$0x3]
      %v3421 = vld [vmem:[#allocation2 + $0x18] sm:$0xff]
      %v3422 = vld [vmem:[#allocation2 + $0x20] sm:$0xff]
      %v3423 = vld [vmem:[#allocation2 + $0x28] sm:$0x3]
      %v3424 = vld [vmem:[#allocation2 + $0x30] sm:$0xff]
      %v3425 = vld [vmem:[#allocation2 + $0x38] sm:$0xff]
      %v3426 = vld [vmem:[#allocation2 + $0x40] sm:$0x3]
      %v3427 = vld [vmem:[#allocation2 + $0x48] sm:$0xff]
      %v3428 = vld [vmem:[#allocation2 + $0x50] sm:$0xff]
      %v3429 = vld [vmem:[#allocation2 + $0x58] sm:$0x3]
      %v3430 = vcombine.low %v3418, %v3424
      %v3431 = vcombine.high %v3418, %v3424
      %v3433 = vunpack.c.l.s4 1983009808
      %v3434 = vunpack.c.0.s8 %v3433
      %v3435 = vlaneseq
      %v3436 = vshrl.u32 %v3435, 7
      %v3437 = vsub.s32 %v3434, %v3436
      %v3438 = vrot.slane %v3430, %v3437
      %v3440 = vunpack.c.l.s4 1983009808
      %v3441 = vunpack.c.0.s8 %v3440
      %v3442 = vlaneseq
      %v3443 = vshrl.u32 %v3442, 7
      %v3444 = vsub.s32 %v3441, %v3443
      %v3445 = vrot.slane %v3431, %v3444
      %v3446 = vcombine.low %v3421, %v3427
      %v3447 = vcombine.high %v3421, %v3427
      %v3449 = vunpack.c.l.s4 1983009808
      %v3450 = vunpack.c.0.s8 %v3449
      %v3451 = vlaneseq
      %v3452 = vshrl.u32 %v3451, 7
      %v3453 = vsub.s32 %v3450, %v3452
      %v3454 = vrot.slane %v3446, %v3453
      %v3456 = vunpack.c.l.s4 1983009808
      %v3457 = vunpack.c.0.s8 %v3456
      %v3458 = vlaneseq
      %v3459 = vshrl.u32 %v3458, 7
      %v3460 = vsub.s32 %v3457, %v3459
      %v3461 = vrot.slane %v3447, %v3460
      %v3462 = vcombine.low %v3438, %v3454
      %v3463 = vcombine.high %v3438, %v3454
      %v3465 = vunpack.c.l.s4 1934713408
      %v3466 = vunpack.c.0.s8 %v3465
      %v3467 = vlaneseq
      %v3468 = vshrl.u32 %v3467, 7
      %v3469 = vsub.s32 %v3466, %v3468
      %v3470 = vrot.slane %v3462, %v3469
      %v3472 = vunpack.c.l.s4 1934713408
      %v3473 = vunpack.c.0.s8 %v3472
      %v3474 = vlaneseq
      %v3475 = vshrl.u32 %v3474, 7
      %v3476 = vsub.s32 %v3473, %v3475
      %v3477 = vrot.slane %v3463, %v3476
      %v3478 = vcombine.low %v3445, %v3461
      %v3479 = vcombine.high %v3445, %v3461
      %v3481 = vunpack.c.l.s4 1934713408
      %v3482 = vunpack.c.0.s8 %v3481
      %v3483 = vlaneseq
      %v3484 = vshrl.u32 %v3483, 7
      %v3485 = vsub.s32 %v3482, %v3484
      %v3486 = vrot.slane %v3478, %v3485
      %v3488 = vunpack.c.l.s4 1934713408
      %v3489 = vunpack.c.0.s8 %v3488
      %v3490 = vlaneseq
      %v3491 = vshrl.u32 %v3490, 7
      %v3492 = vsub.s32 %v3489, %v3491
      %v3493 = vrot.slane %v3479, %v3492
      %v3494 = vcombine.high %v3470, 0.0
      %v3495 = vcombine.high %v3477, 0.0
      %v3496 = vcombine.high %v3486, 0.0
      %v3497 = vcombine.high %v3493, 0.0
      %v3498 = vcombine.low %v3419, %v3425
      %v3499 = vcombine.high %v3419, %v3425
      %v3501 = vunpack.c.l.s4 1983009808
      %v3502 = vunpack.c.0.s8 %v3501
      %v3503 = vlaneseq
      %v3504 = vshrl.u32 %v3503, 7
      %v3505 = vsub.s32 %v3502, %v3504
      %v3506 = vrot.slane %v3498, %v3505
      %v3508 = vunpack.c.l.s4 1983009808
      %v3509 = vunpack.c.0.s8 %v3508
      %v3510 = vlaneseq
      %v3511 = vshrl.u32 %v3510, 7
      %v3512 = vsub.s32 %v3509, %v3511
      %v3513 = vrot.slane %v3499, %v3512
      %v3514 = vcombine.low %v3422, %v3428
      %v3515 = vcombine.high %v3422, %v3428
      %v3517 = vunpack.c.l.s4 1983009808
      %v3518 = vunpack.c.0.s8 %v3517
      %v3519 = vlaneseq
      %v3520 = vshrl.u32 %v3519, 7
      %v3521 = vsub.s32 %v3518, %v3520
      %v3522 = vrot.slane %v3514, %v3521
      %v3524 = vunpack.c.l.s4 1983009808
      %v3525 = vunpack.c.0.s8 %v3524
      %v3526 = vlaneseq
      %v3527 = vshrl.u32 %v3526, 7
      %v3528 = vsub.s32 %v3525, %v3527
      %v3529 = vrot.slane %v3515, %v3528
      %v3530 = vcombine.low %v3506, %v3522
      %v3531 = vcombine.high %v3506, %v3522
      %v3533 = vunpack.c.l.s4 1934713408
      %v3534 = vunpack.c.0.s8 %v3533
      %v3535 = vlaneseq
      %v3536 = vshrl.u32 %v3535, 7
      %v3537 = vsub.s32 %v3534, %v3536
      %v3538 = vrot.slane %v3530, %v3537
      %v3540 = vunpack.c.l.s4 1934713408
      %v3541 = vunpack.c.0.s8 %v3540
      %v3542 = vlaneseq
      %v3543 = vshrl.u32 %v3542, 7
      %v3544 = vsub.s32 %v3541, %v3543
      %v3545 = vrot.slane %v3531, %v3544
      %v3546 = vcombine.low %v3513, %v3529
      %v3547 = vcombine.high %v3513, %v3529
      %v3549 = vunpack.c.l.s4 1934713408
      %v3550 = vunpack.c.0.s8 %v3549
      %v3551 = vlaneseq
      %v3552 = vshrl.u32 %v3551, 7
      %v3553 = vsub.s32 %v3550, %v3552
      %v3554 = vrot.slane %v3546, %v3553
      %v3556 = vunpack.c.l.s4 1934713408
      %v3557 = vunpack.c.0.s8 %v3556
      %v3558 = vlaneseq
      %v3559 = vshrl.u32 %v3558, 7
      %v3560 = vsub.s32 %v3557, %v3559
      %v3561 = vrot.slane %v3547, %v3560
      %v3562 = vcombine.high %v3538, 0.0
      %v3563 = vcombine.high %v3545, 0.0
      %v3564 = vcombine.high %v3554, 0.0
      %v3565 = vcombine.high %v3561, 0.0
      %3567 = vrot.lane.b32.xlu0 %v3494, 16
      %v3568 = vpop.permute.xlu0 %3567
      %3571 = vrot.lane.b32.xlu0 %v3477, 32
      %v3572 = vpop.permute.xlu0 %3571
      %3575 = vrot.lane.b32.xlu0 %v3495, 48
      %v3576 = vpop.permute.xlu0 %3575
      %3579 = vrot.lane.b32.xlu0 %v3486, 64
      %v3580 = vpop.permute.xlu0 %3579
      %3583 = vrot.lane.b32.xlu0 %v3496, 80
      %v3584 = vpop.permute.xlu0 %3583
      %3587 = vrot.lane.b32.xlu0 %v3493, 96
      %v3588 = vpop.permute.xlu0 %3587
      %3591 = vrot.lane.b32.xlu0 %v3497, 112
      %v3592 = vpop.permute.xlu0 %3591
      %3595 = vrot.lane.b32.xlu0 %v3562, 16
      %v3596 = vpop.permute.xlu0 %3595
      %3599 = vrot.lane.b32.xlu0 %v3545, 32
      %v3600 = vpop.permute.xlu0 %3599
      %3603 = vrot.lane.b32.xlu0 %v3563, 48
      %v3604 = vpop.permute.xlu0 %3603
      %3607 = vrot.lane.b32.xlu0 %v3554, 64
      %v3608 = vpop.permute.xlu0 %3607
      %3611 = vrot.lane.b32.xlu0 %v3564, 80
      %v3612 = vpop.permute.xlu0 %3611
      %3615 = vrot.lane.b32.xlu0 %v3561, 96
      %v3616 = vpop.permute.xlu0 %3615
      %3619 = vrot.lane.b32.xlu0 %v3565, 112
      %v3620 = vpop.permute.xlu0 %3619
      %v3622 = vsel %vm630, %v3470, %v3568
      %v3623 = vsel %vm632, %v3622, %v3572
      %v3624 = vsel %vm634, %v3623, %v3576
      %v3625 = vsel %vm636, %v3624, %v3580
      %v3626 = vsel %vm638, %v3625, %v3584
      %v3627 = vsel %vm640, %v3626, %v3588
      %v3628 = vsel %vm642, %v3627, %v3592
      %v3629 = vsel %vm630, %v3538, %v3596
      %v3630 = vsel %vm632, %v3629, %v3600
      %v3631 = vsel %vm634, %v3630, %v3604
      %v3632 = vsel %vm636, %v3631, %v3608
      %v3633 = vsel %vm638, %v3632, %v3612
      %v3634 = vsel %vm640, %v3633, %v3616
      %v3635 = vsel %vm642, %v3634, %v3620
      %v3638 = vcombine.low %v3628, %v3635
      %3640 = vst [vmem:[#allocation3] sm:$0xff] %v3638
      %3649 = vrot.lane.b32.xlu0 %v3418, 127
      %v3650 = vpop.permute.xlu0 %3649
      %3651 = vrot.lane.b32.xlu0 %v3419, 127
      %v3652 = vpop.permute.xlu0 %3651
      %3653 = vrot.lane.b32.xlu0 %v3421, 127
      %v3654 = vpop.permute.xlu0 %3653
      %3655 = vrot.lane.b32.xlu0 %v3422, 127
      %v3656 = vpop.permute.xlu0 %3655
      %3657 = vrot.lane.b32.xlu0 %v3424, 127
      %v3658 = vpop.permute.xlu0 %3657
      %3659 = vrot.lane.b32.xlu0 %v3425, 127
      %v3660 = vpop.permute.xlu0 %3659
      %3661 = vrot.lane.b32.xlu0 %v3427, 127
      %v3662 = vpop.permute.xlu0 %3661
      %3663 = vrot.lane.b32.xlu0 %v3428, 127
      %v3664 = vpop.permute.xlu0 %3663
      %v3673 = vcombine.low %v3650, %v3658
      %v3674 = vcombine.high %v3650, %v3658
      %v3676 = vunpack.c.l.s4 1983009808
      %v3677 = vunpack.c.0.s8 %v3676
      %v3678 = vlaneseq
      %v3679 = vshrl.u32 %v3678, 7
      %v3680 = vsub.s32 %v3677, %v3679
      %v3681 = vrot.slane %v3673, %v3680
      %v3683 = vunpack.c.l.s4 1983009808
      %v3684 = vunpack.c.0.s8 %v3683
      %v3685 = vlaneseq
      %v3686 = vshrl.u32 %v3685, 7
      %v3687 = vsub.s32 %v3684, %v3686
      %v3688 = vrot.slane %v3674, %v3687
      %v3689 = vcombine.low %v3654, %v3662
      %v3690 = vcombine.high %v3654, %v3662
      %v3692 = vunpack.c.l.s4 1983009808
      %v3693 = vunpack.c.0.s8 %v3692
      %v3694 = vlaneseq
      %v3695 = vshrl.u32 %v3694, 7
      %v3696 = vsub.s32 %v3693, %v3695
      %v3697 = vrot.slane %v3689, %v3696
      %v3699 = vunpack.c.l.s4 1983009808
      %v3700 = vunpack.c.0.s8 %v3699
      %v3701 = vlaneseq
      %v3702 = vshrl.u32 %v3701, 7
      %v3703 = vsub.s32 %v3700, %v3702
      %v3704 = vrot.slane %v3690, %v3703
      %v3705 = vcombine.low %v3681, %v3697
      %v3706 = vcombine.high %v3681, %v3697
      %v3708 = vunpack.c.l.s4 1934713408
      %v3709 = vunpack.c.0.s8 %v3708
      %v3710 = vlaneseq
      %v3711 = vshrl.u32 %v3710, 7
      %v3712 = vsub.s32 %v3709, %v3711
      %v3713 = vrot.slane %v3705, %v3712
      %v3715 = vunpack.c.l.s4 1934713408
      %v3716 = vunpack.c.0.s8 %v3715
      %v3717 = vlaneseq
      %v3718 = vshrl.u32 %v3717, 7
      %v3719 = vsub.s32 %v3716, %v3718
      %v3720 = vrot.slane %v3706, %v3719
      %v3721 = vcombine.low %v3688, %v3704
      %v3722 = vcombine.high %v3688, %v3704
      %v3724 = vunpack.c.l.s4 1934713408
      %v3725 = vunpack.c.0.s8 %v3724
      %v3726 = vlaneseq
      %v3727 = vshrl.u32 %v3726, 7
      %v3728 = vsub.s32 %v3725, %v3727
      %v3729 = vrot.slane %v3721, %v3728
      %v3731 = vunpack.c.l.s4 1934713408
      %v3732 = vunpack.c.0.s8 %v3731
      %v3733 = vlaneseq
      %v3734 = vshrl.u32 %v3733, 7
      %v3735 = vsub.s32 %v3732, %v3734
      %v3736 = vrot.slane %v3722, %v3735
      %v3737 = vcombine.high %v3713, 0.0
      %v3738 = vcombine.high %v3720, 0.0
      %v3739 = vcombine.high %v3729, 0.0
      %v3740 = vcombine.high %v3736, 0.0
      %v3741 = vcombine.low %v3652, %v3660
      %v3742 = vcombine.high %v3652, %v3660
      %v3744 = vunpack.c.l.s4 1983009808
      %v3745 = vunpack.c.0.s8 %v3744
      %v3746 = vlaneseq
      %v3747 = vshrl.u32 %v3746, 7
      %v3748 = vsub.s32 %v3745, %v3747
      %v3749 = vrot.slane %v3741, %v3748
      %v3751 = vunpack.c.l.s4 1983009808
      %v3752 = vunpack.c.0.s8 %v3751
      %v3753 = vlaneseq
      %v3754 = vshrl.u32 %v3753, 7
      %v3755 = vsub.s32 %v3752, %v3754
      %v3756 = vrot.slane %v3742, %v3755
      %v3757 = vcombine.low %v3656, %v3664
      %v3758 = vcombine.high %v3656, %v3664
      %v3760 = vunpack.c.l.s4 1983009808
      %v3761 = vunpack.c.0.s8 %v3760
      %v3762 = vlaneseq
      %v3763 = vshrl.u32 %v3762, 7
      %v3764 = vsub.s32 %v3761, %v3763
      %v3765 = vrot.slane %v3757, %v3764
      %v3767 = vunpack.c.l.s4 1983009808
      %v3768 = vunpack.c.0.s8 %v3767
      %v3769 = vlaneseq
      %v3770 = vshrl.u32 %v3769, 7
      %v3771 = vsub.s32 %v3768, %v3770
      %v3772 = vrot.slane %v3758, %v3771
      %v3773 = vcombine.low %v3749, %v3765
      %v3774 = vcombine.high %v3749, %v3765
      %v3776 = vunpack.c.l.s4 1934713408
      %v3777 = vunpack.c.0.s8 %v3776
      %v3778 = vlaneseq
      %v3779 = vshrl.u32 %v3778, 7
      %v3780 = vsub.s32 %v3777, %v3779
      %v3781 = vrot.slane %v3773, %v3780
      %v3783 = vunpack.c.l.s4 1934713408
      %v3784 = vunpack.c.0.s8 %v3783
      %v3785 = vlaneseq
      %v3786 = vshrl.u32 %v3785, 7
      %v3787 = vsub.s32 %v3784, %v3786
      %v3788 = vrot.slane %v3774, %v3787
      %v3789 = vcombine.low %v3756, %v3772
      %v3790 = vcombine.high %v3756, %v3772
      %v3792 = vunpack.c.l.s4 1934713408
      %v3793 = vunpack.c.0.s8 %v3792
      %v3794 = vlaneseq
      %v3795 = vshrl.u32 %v3794, 7
      %v3796 = vsub.s32 %v3793, %v3795
      %v3797 = vrot.slane %v3789, %v3796
      %v3799 = vunpack.c.l.s4 1934713408
      %v3800 = vunpack.c.0.s8 %v3799
      %v3801 = vlaneseq
      %v3802 = vshrl.u32 %v3801, 7
      %v3803 = vsub.s32 %v3800, %v3802
      %v3804 = vrot.slane %v3790, %v3803
      %v3805 = vcombine.high %v3781, 0.0
      %v3806 = vcombine.high %v3788, 0.0
      %v3807 = vcombine.high %v3797, 0.0
      %v3808 = vcombine.high %v3804, 0.0
      %3810 = vrot.lane.b32.xlu0 %v3737, 16
      %v3811 = vpop.permute.xlu0 %3810
      %3814 = vrot.lane.b32.xlu0 %v3720, 32
      %v3815 = vpop.permute.xlu0 %3814
      %3818 = vrot.lane.b32.xlu0 %v3738, 48
      %v3819 = vpop.permute.xlu0 %3818
      %3822 = vrot.lane.b32.xlu0 %v3729, 64
      %v3823 = vpop.permute.xlu0 %3822
      %3826 = vrot.lane.b32.xlu0 %v3739, 80
      %v3827 = vpop.permute.xlu0 %3826
      %3830 = vrot.lane.b32.xlu0 %v3736, 96
      %v3831 = vpop.permute.xlu0 %3830
      %3834 = vrot.lane.b32.xlu0 %v3740, 112
      %v3835 = vpop.permute.xlu0 %3834
      %3838 = vrot.lane.b32.xlu0 %v3805, 16
      %v3839 = vpop.permute.xlu0 %3838
      %3842 = vrot.lane.b32.xlu0 %v3788, 32
      %v3843 = vpop.permute.xlu0 %3842
      %3846 = vrot.lane.b32.xlu0 %v3806, 48
      %v3847 = vpop.permute.xlu0 %3846
      %3850 = vrot.lane.b32.xlu0 %v3797, 64
      %v3851 = vpop.permute.xlu0 %3850
      %3854 = vrot.lane.b32.xlu0 %v3807, 80
      %v3855 = vpop.permute.xlu0 %3854
      %3858 = vrot.lane.b32.xlu0 %v3804, 96
      %v3859 = vpop.permute.xlu0 %3858
      %3862 = vrot.lane.b32.xlu0 %v3808, 112
      %v3863 = vpop.permute.xlu0 %3862
      %v3865 = vsel %vm630, %v3713, %v3811
      %v3866 = vsel %vm632, %v3865, %v3815
      %v3867 = vsel %vm634, %v3866, %v3819
      %v3868 = vsel %vm636, %v3867, %v3823
      %v3869 = vsel %vm638, %v3868, %v3827
      %v3870 = vsel %vm640, %v3869, %v3831
      %v3871 = vsel %vm642, %v3870, %v3835
      %v3872 = vsel %vm630, %v3781, %v3839
      %v3873 = vsel %vm632, %v3872, %v3843
      %v3874 = vsel %vm634, %v3873, %v3847
      %v3875 = vsel %vm636, %v3874, %v3851
      %v3876 = vsel %vm638, %v3875, %v3855
      %v3877 = vsel %vm640, %v3876, %v3859
      %v3878 = vsel %vm642, %v3877, %v3863
      %v3881 = vcombine.low %v3871, %v3878
      %3883 = vst [vmem:[%s898] sm:$0xff] %v3881
      %3884 = vrot.lane.b32.xlu0 %v3418, 126
      %v3885 = vpop.permute.xlu0 %3884
      %3886 = vrot.lane.b32.xlu0 %v3419, 126
      %v3887 = vpop.permute.xlu0 %3886
      %3888 = vrot.lane.b32.xlu0 %v3421, 126
      %v3889 = vpop.permute.xlu0 %3888
      %3890 = vrot.lane.b32.xlu0 %v3422, 126
      %v3891 = vpop.permute.xlu0 %3890
      %3892 = vrot.lane.b32.xlu0 %v3424, 126
      %v3893 = vpop.permute.xlu0 %3892
      %3894 = vrot.lane.b32.xlu0 %v3425, 126
      %v3895 = vpop.permute.xlu0 %3894
      %3896 = vrot.lane.b32.xlu0 %v3427, 126
      %v3897 = vpop.permute.xlu0 %3896
      %3898 = vrot.lane.b32.xlu0 %v3428, 126
      %v3899 = vpop.permute.xlu0 %3898
      %v3908 = vcombine.low %v3885, %v3893
      %v3909 = vcombine.high %v3885, %v3893
      %v3911 = vunpack.c.l.s4 1983009808
      %v3912 = vunpack.c.0.s8 %v3911
      %v3913 = vlaneseq
      %v3914 = vshrl.u32 %v3913, 7
      %v3915 = vsub.s32 %v3912, %v3914
      %v3916 = vrot.slane %v3908, %v3915
      %v3918 = vunpack.c.l.s4 1983009808
      %v3919 = vunpack.c.0.s8 %v3918
      %v3920 = vlaneseq
      %v3921 = vshrl.u32 %v3920, 7
      %v3922 = vsub.s32 %v3919, %v3921
      %v3923 = vrot.slane %v3909, %v3922
      %v3924 = vcombine.low %v3889, %v3897
      %v3925 = vcombine.high %v3889, %v3897
      %v3927 = vunpack.c.l.s4 1983009808
      %v3928 = vunpack.c.0.s8 %v3927
      %v3929 = vlaneseq
      %v3930 = vshrl.u32 %v3929, 7
      %v3931 = vsub.s32 %v3928, %v3930
      %v3932 = vrot.slane %v3924, %v3931
      %v3934 = vunpack.c.l.s4 1983009808
      %v3935 = vunpack.c.0.s8 %v3934
      %v3936 = vlaneseq
      %v3937 = vshrl.u32 %v3936, 7
      %v3938 = vsub.s32 %v3935, %v3937
      %v3939 = vrot.slane %v3925, %v3938
      %v3940 = vcombine.low %v3916, %v3932
      %v3941 = vcombine.high %v3916, %v3932
      %v3943 = vunpack.c.l.s4 1934713408
      %v3944 = vunpack.c.0.s8 %v3943
      %v3945 = vlaneseq
      %v3946 = vshrl.u32 %v3945, 7
      %v3947 = vsub.s32 %v3944, %v3946
      %v3948 = vrot.slane %v3940, %v3947
      %v3950 = vunpack.c.l.s4 1934713408
      %v3951 = vunpack.c.0.s8 %v3950
      %v3952 = vlaneseq
      %v3953 = vshrl.u32 %v3952, 7
      %v3954 = vsub.s32 %v3951, %v3953
      %v3955 = vrot.slane %v3941, %v3954
      %v3956 = vcombine.low %v3923, %v3939
      %v3957 = vcombine.high %v3923, %v3939
      %v3959 = vunpack.c.l.s4 1934713408
      %v3960 = vunpack.c.0.s8 %v3959
      %v3961 = vlaneseq
      %v3962 = vshrl.u32 %v3961, 7
      %v3963 = vsub.s32 %v3960, %v3962
      %v3964 = vrot.slane %v3956, %v3963
      %v3966 = vunpack.c.l.s4 1934713408
      %v3967 = vunpack.c.0.s8 %v3966
      %v3968 = vlaneseq
      %v3969 = vshrl.u32 %v3968, 7
      %v3970 = vsub.s32 %v3967, %v3969
      %v3971 = vrot.slane %v3957, %v3970
      %v3972 = vcombine.high %v3948, 0.0
      %v3973 = vcombine.high %v3955, 0.0
      %v3974 = vcombine.high %v3964, 0.0
      %v3975 = vcombine.high %v3971, 0.0
      %v3976 = vcombine.low %v3887, %v3895
      %v3977 = vcombine.high %v3887, %v3895
      %v3979 = vunpack.c.l.s4 1983009808
      %v3980 = vunpack.c.0.s8 %v3979
      %v3981 = vlaneseq
      %v3982 = vshrl.u32 %v3981, 7
      %v3983 = vsub.s32 %v3980, %v3982
      %v3984 = vrot.slane %v3976, %v3983
      %v3986 = vunpack.c.l.s4 1983009808
      %v3987 = vunpack.c.0.s8 %v3986
      %v3988 = vlaneseq
      %v3989 = vshrl.u32 %v3988, 7
      %v3990 = vsub.s32 %v3987, %v3989
      %v3991 = vrot.slane %v3977, %v3990
      %v3992 = vcombine.low %v3891, %v3899
      %v3993 = vcombine.high %v3891, %v3899
      %v3995 = vunpack.c.l.s4 1983009808
      %v3996 = vunpack.c.0.s8 %v3995
      %v3997 = vlaneseq
      %v3998 = vshrl.u32 %v3997, 7
      %v3999 = vsub.s32 %v3996, %v3998
      %v4000 = vrot.slane %v3992, %v3999
      %v4002 = vunpack.c.l.s4 1983009808
      %v4003 = vunpack.c.0.s8 %v4002
      %v4004 = vlaneseq
      %v4005 = vshrl.u32 %v4004, 7
      %v4006 = vsub.s32 %v4003, %v4005
      %v4007 = vrot.slane %v3993, %v4006
      %v4008 = vcombine.low %v3984, %v4000
      %v4009 = vcombine.high %v3984, %v4000
      %v4011 = vunpack.c.l.s4 1934713408
      %v4012 = vunpack.c.0.s8 %v4011
      %v4013 = vlaneseq
      %v4014 = vshrl.u32 %v4013, 7
      %v4015 = vsub.s32 %v4012, %v4014
      %v4016 = vrot.slane %v4008, %v4015
      %v4018 = vunpack.c.l.s4 1934713408
      %v4019 = vunpack.c.0.s8 %v4018
      %v4020 = vlaneseq
      %v4021 = vshrl.u32 %v4020, 7
      %v4022 = vsub.s32 %v4019, %v4021
      %v4023 = vrot.slane %v4009, %v4022
      %v4024 = vcombine.low %v3991, %v4007
      %v4025 = vcombine.high %v3991, %v4007
      %v4027 = vunpack.c.l.s4 1934713408
      %v4028 = vunpack.c.0.s8 %v4027
      %v4029 = vlaneseq
      %v4030 = vshrl.u32 %v4029, 7
      %v4031 = vsub.s32 %v4028, %v4030
      %v4032 = vrot.slane %v4024, %v4031
      %v4034 = vunpack.c.l.s4 1934713408
      %v4035 = vunpack.c.0.s8 %v4034
      %v4036 = vlaneseq
      %v4037 = vshrl.u32 %v4036, 7
      %v4038 = vsub.s32 %v4035, %v4037
      %v4039 = vrot.slane %v4025, %v4038
      %v4040 = vcombine.high %v4016, 0.0
      %v4041 = vcombine.high %v4023, 0.0
      %v4042 = vcombine.high %v4032, 0.0
      %v4043 = vcombine.high %v4039, 0.0
      %4045 = vrot.lane.b32.xlu0 %v3972, 16
      %v4046 = vpop.permute.xlu0 %4045
      %4049 = vrot.lane.b32.xlu0 %v3955, 32
      %v4050 = vpop.permute.xlu0 %4049
      %4053 = vrot.lane.b32.xlu0 %v3973, 48
      %v4054 = vpop.permute.xlu0 %4053
      %4057 = vrot.lane.b32.xlu0 %v3964, 64
      %v4058 = vpop.permute.xlu0 %4057
      %4061 = vrot.lane.b32.xlu0 %v3974, 80
      %v4062 = vpop.permute.xlu0 %4061
      %4065 = vrot.lane.b32.xlu0 %v3971, 96
      %v4066 = vpop.permute.xlu0 %4065
      %4069 = vrot.lane.b32.xlu0 %v3975, 112
      %v4070 = vpop.permute.xlu0 %4069
      %4073 = vrot.lane.b32.xlu0 %v4040, 16
      %v4074 = vpop.permute.xlu0 %4073
      %4077 = vrot.lane.b32.xlu0 %v4023, 32
      %v4078 = vpop.permute.xlu0 %4077
      %4081 = vrot.lane.b32.xlu0 %v4041, 48
      %v4082 = vpop.permute.xlu0 %4081
      %4085 = vrot.lane.b32.xlu0 %v4032, 64
      %v4086 = vpop.permute.xlu0 %4085
      %4089 = vrot.lane.b32.xlu0 %v4042, 80
      %v4090 = vpop.permute.xlu0 %4089
      %4093 = vrot.lane.b32.xlu0 %v4039, 96
      %v4094 = vpop.permute.xlu0 %4093
      %4097 = vrot.lane.b32.xlu0 %v4043, 112
      %v4098 = vpop.permute.xlu0 %4097
      %v4100 = vsel %vm630, %v3948, %v4046
      %v4101 = vsel %vm632, %v4100, %v4050
      %v4102 = vsel %vm634, %v4101, %v4054
      %v4103 = vsel %vm636, %v4102, %v4058
      %v4104 = vsel %vm638, %v4103, %v4062
      %v4105 = vsel %vm640, %v4104, %v4066
      %v4106 = vsel %vm642, %v4105, %v4070
      %v4107 = vsel %vm630, %v4016, %v4074
      %v4108 = vsel %vm632, %v4107, %v4078
      %v4109 = vsel %vm634, %v4108, %v4082
      %v4110 = vsel %vm636, %v4109, %v4086
      %v4111 = vsel %vm638, %v4110, %v4090
      %v4112 = vsel %vm640, %v4111, %v4094
      %v4113 = vsel %vm642, %v4112, %v4098
      %v4116 = vcombine.low %v4106, %v4113
      %4118 = vst [vmem:[%s1134] sm:$0xff] %v4116
      %v4123 = vrot.slane %v3418, 1
      %v4124 = vrot.slane %v3419, 1
      %v4125 = vsel %vm1140, %v4123, %v4124
      %v4126 = vrot.slane %v3420, 1
      %v4127 = vsel %vm1140, %v4124, %v4126
      %v4128 = vrot.slane %v3421, 1
      %v4129 = vrot.slane %v3422, 1
      %v4130 = vsel %vm1140, %v4128, %v4129
      %v4131 = vrot.slane %v3423, 1
      %v4132 = vsel %vm1140, %v4129, %v4131
      %v4133 = vrot.slane %v3424, 1
      %v4134 = vrot.slane %v3425, 1
      %v4135 = vsel %vm1140, %v4133, %v4134
      %v4136 = vrot.slane %v3426, 1
      %v4137 = vsel %vm1140, %v4134, %v4136
      %v4138 = vrot.slane %v3427, 1
      %v4139 = vrot.slane %v3428, 1
      %v4140 = vsel %vm1140, %v4138, %v4139
      %v4141 = vrot.slane %v3429, 1
      %v4142 = vsel %vm1140, %v4139, %v4141
      %v4151 = vcombine.low %v4125, %v4135
      %v4152 = vcombine.high %v4125, %v4135
      %v4154 = vunpack.c.l.s4 1983009808
      %v4155 = vunpack.c.0.s8 %v4154
      %v4156 = vlaneseq
      %v4157 = vshrl.u32 %v4156, 7
      %v4158 = vsub.s32 %v4155, %v4157
      %v4159 = vrot.slane %v4151, %v4158
      %v4161 = vunpack.c.l.s4 1983009808
      %v4162 = vunpack.c.0.s8 %v4161
      %v4163 = vlaneseq
      %v4164 = vshrl.u32 %v4163, 7
      %v4165 = vsub.s32 %v4162, %v4164
      %v4166 = vrot.slane %v4152, %v4165
      %v4167 = vcombine.low %v4130, %v4140
      %v4168 = vcombine.high %v4130, %v4140
      %v4170 = vunpack.c.l.s4 1983009808
      %v4171 = vunpack.c.0.s8 %v4170
      %v4172 = vlaneseq
      %v4173 = vshrl.u32 %v4172, 7
      %v4174 = vsub.s32 %v4171, %v4173
      %v4175 = vrot.slane %v4167, %v4174
      %v4177 = vunpack.c.l.s4 1983009808
      %v4178 = vunpack.c.0.s8 %v4177
      %v4179 = vlaneseq
      %v4180 = vshrl.u32 %v4179, 7
      %v4181 = vsub.s32 %v4178, %v4180
      %v4182 = vrot.slane %v4168, %v4181
      %v4183 = vcombine.low %v4159, %v4175
      %v4184 = vcombine.high %v4159, %v4175
      %v4186 = vunpack.c.l.s4 1934713408
      %v4187 = vunpack.c.0.s8 %v4186
      %v4188 = vlaneseq
      %v4189 = vshrl.u32 %v4188, 7
      %v4190 = vsub.s32 %v4187, %v4189
      %v4191 = vrot.slane %v4183, %v4190
      %v4193 = vunpack.c.l.s4 1934713408
      %v4194 = vunpack.c.0.s8 %v4193
      %v4195 = vlaneseq
      %v4196 = vshrl.u32 %v4195, 7
      %v4197 = vsub.s32 %v4194, %v4196
      %v4198 = vrot.slane %v4184, %v4197
      %v4199 = vcombine.low %v4166, %v4182
      %v4200 = vcombine.high %v4166, %v4182
      %v4202 = vunpack.c.l.s4 1934713408
      %v4203 = vunpack.c.0.s8 %v4202
      %v4204 = vlaneseq
      %v4205 = vshrl.u32 %v4204, 7
      %v4206 = vsub.s32 %v4203, %v4205
      %v4207 = vrot.slane %v4199, %v4206
      %v4209 = vunpack.c.l.s4 1934713408
      %v4210 = vunpack.c.0.s8 %v4209
      %v4211 = vlaneseq
      %v4212 = vshrl.u32 %v4211, 7
      %v4213 = vsub.s32 %v4210, %v4212
      %v4214 = vrot.slane %v4200, %v4213
      %v4215 = vcombine.high %v4191, 0.0
      %v4216 = vcombine.high %v4198, 0.0
      %v4217 = vcombine.high %v4207, 0.0
      %v4218 = vcombine.high %v4214, 0.0
      %v4219 = vcombine.low %v4127, %v4137
      %v4220 = vcombine.high %v4127, %v4137
      %v4222 = vunpack.c.l.s4 1983009808
      %v4223 = vunpack.c.0.s8 %v4222
      %v4224 = vlaneseq
      %v4225 = vshrl.u32 %v4224, 7
      %v4226 = vsub.s32 %v4223, %v4225
      %v4227 = vrot.slane %v4219, %v4226
      %v4229 = vunpack.c.l.s4 1983009808
      %v4230 = vunpack.c.0.s8 %v4229
      %v4231 = vlaneseq
      %v4232 = vshrl.u32 %v4231, 7
      %v4233 = vsub.s32 %v4230, %v4232
      %v4234 = vrot.slane %v4220, %v4233
      %v4235 = vcombine.low %v4132, %v4142
      %v4236 = vcombine.high %v4132, %v4142
      %v4238 = vunpack.c.l.s4 1983009808
      %v4239 = vunpack.c.0.s8 %v4238
      %v4240 = vlaneseq
      %v4241 = vshrl.u32 %v4240, 7
      %v4242 = vsub.s32 %v4239, %v4241
      %v4243 = vrot.slane %v4235, %v4242
      %v4245 = vunpack.c.l.s4 1983009808
      %v4246 = vunpack.c.0.s8 %v4245
      %v4247 = vlaneseq
      %v4248 = vshrl.u32 %v4247, 7
      %v4249 = vsub.s32 %v4246, %v4248
      %v4250 = vrot.slane %v4236, %v4249
      %v4251 = vcombine.low %v4227, %v4243
      %v4252 = vcombine.high %v4227, %v4243
      %v4254 = vunpack.c.l.s4 1934713408
      %v4255 = vunpack.c.0.s8 %v4254
      %v4256 = vlaneseq
      %v4257 = vshrl.u32 %v4256, 7
      %v4258 = vsub.s32 %v4255, %v4257
      %v4259 = vrot.slane %v4251, %v4258
      %v4261 = vunpack.c.l.s4 1934713408
      %v4262 = vunpack.c.0.s8 %v4261
      %v4263 = vlaneseq
      %v4264 = vshrl.u32 %v4263, 7
      %v4265 = vsub.s32 %v4262, %v4264
      %v4266 = vrot.slane %v4252, %v4265
      %v4267 = vcombine.low %v4234, %v4250
      %v4268 = vcombine.high %v4234, %v4250
      %v4270 = vunpack.c.l.s4 1934713408
      %v4271 = vunpack.c.0.s8 %v4270
      %v4272 = vlaneseq
      %v4273 = vshrl.u32 %v4272, 7
      %v4274 = vsub.s32 %v4271, %v4273
      %v4275 = vrot.slane %v4267, %v4274
      %v4277 = vunpack.c.l.s4 1934713408
      %v4278 = vunpack.c.0.s8 %v4277
      %v4279 = vlaneseq
      %v4280 = vshrl.u32 %v4279, 7
      %v4281 = vsub.s32 %v4278, %v4280
      %v4282 = vrot.slane %v4268, %v4281
      %v4283 = vcombine.high %v4259, 0.0
      %v4284 = vcombine.high %v4266, 0.0
      %v4285 = vcombine.high %v4275, 0.0
      %v4286 = vcombine.high %v4282, 0.0
      %4288 = vrot.lane.b32.xlu0 %v4215, 16
      %v4289 = vpop.permute.xlu0 %4288
      %4292 = vrot.lane.b32.xlu0 %v4198, 32
      %v4293 = vpop.permute.xlu0 %4292
      %4296 = vrot.lane.b32.xlu0 %v4216, 48
      %v4297 = vpop.permute.xlu0 %4296
      %4300 = vrot.lane.b32.xlu0 %v4207, 64
      %v4301 = vpop.permute.xlu0 %4300
      %4304 = vrot.lane.b32.xlu0 %v4217, 80
      %v4305 = vpop.permute.xlu0 %4304
      %4308 = vrot.lane.b32.xlu0 %v4214, 96
      %v4309 = vpop.permute.xlu0 %4308
      %4312 = vrot.lane.b32.xlu0 %v4218, 112
      %v4313 = vpop.permute.xlu0 %4312
      %4316 = vrot.lane.b32.xlu0 %v4283, 16
      %v4317 = vpop.permute.xlu0 %4316
      %4320 = vrot.lane.b32.xlu0 %v4266, 32
      %v4321 = vpop.permute.xlu0 %4320
      %4324 = vrot.lane.b32.xlu0 %v4284, 48
      %v4325 = vpop.permute.xlu0 %4324
      %4328 = vrot.lane.b32.xlu0 %v4275, 64
      %v4329 = vpop.permute.xlu0 %4328
      %4332 = vrot.lane.b32.xlu0 %v4285, 80
      %v4333 = vpop.permute.xlu0 %4332
      %4336 = vrot.lane.b32.xlu0 %v4282, 96
      %v4337 = vpop.permute.xlu0 %4336
      %4340 = vrot.lane.b32.xlu0 %v4286, 112
      %v4341 = vpop.permute.xlu0 %4340
      %v4343 = vsel %vm630, %v4191, %v4289
      %v4344 = vsel %vm632, %v4343, %v4293
      %v4345 = vsel %vm634, %v4344, %v4297
      %v4346 = vsel %vm636, %v4345, %v4301
      %v4347 = vsel %vm638, %v4346, %v4305
      %v4348 = vsel %vm640, %v4347, %v4309
      %v4349 = vsel %vm642, %v4348, %v4313
      %v4350 = vsel %vm630, %v4259, %v4317
      %v4351 = vsel %vm632, %v4350, %v4321
      %v4352 = vsel %vm634, %v4351, %v4325
      %v4353 = vsel %vm636, %v4352, %v4329
      %v4354 = vsel %vm638, %v4353, %v4333
      %v4355 = vsel %vm640, %v4354, %v4337
      %v4356 = vsel %vm642, %v4355, %v4341
      %v4359 = vcombine.low %v4349, %v4356
      %4361 = vst [vmem:[%s1379] sm:$0xff] %v4359
      %4362 = vrot.lane.b32.xlu0 %v4125, 127
      %v4363 = vpop.permute.xlu0 %4362
      %4364 = vrot.lane.b32.xlu0 %v4127, 127
      %v4365 = vpop.permute.xlu0 %4364
      %4366 = vrot.lane.b32.xlu0 %v4130, 127
      %v4367 = vpop.permute.xlu0 %4366
      %4368 = vrot.lane.b32.xlu0 %v4132, 127
      %v4369 = vpop.permute.xlu0 %4368
      %4370 = vrot.lane.b32.xlu0 %v4135, 127
      %v4371 = vpop.permute.xlu0 %4370
      %4372 = vrot.lane.b32.xlu0 %v4137, 127
      %v4373 = vpop.permute.xlu0 %4372
      %4374 = vrot.lane.b32.xlu0 %v4140, 127
      %v4375 = vpop.permute.xlu0 %4374
      %4376 = vrot.lane.b32.xlu0 %v4142, 127
      %v4377 = vpop.permute.xlu0 %4376
      %v4386 = vcombine.low %v4363, %v4371
      %v4387 = vcombine.high %v4363, %v4371
      %v4389 = vunpack.c.l.s4 1983009808
      %v4390 = vunpack.c.0.s8 %v4389
      %v4391 = vlaneseq
      %v4392 = vshrl.u32 %v4391, 7
      %v4393 = vsub.s32 %v4390, %v4392
      %v4394 = vrot.slane %v4386, %v4393
      %v4396 = vunpack.c.l.s4 1983009808
      %v4397 = vunpack.c.0.s8 %v4396
      %v4398 = vlaneseq
      %v4399 = vshrl.u32 %v4398, 7
      %v4400 = vsub.s32 %v4397, %v4399
      %v4401 = vrot.slane %v4387, %v4400
      %v4402 = vcombine.low %v4367, %v4375
      %v4403 = vcombine.high %v4367, %v4375
      %v4405 = vunpack.c.l.s4 1983009808
      %v4406 = vunpack.c.0.s8 %v4405
      %v4407 = vlaneseq
      %v4408 = vshrl.u32 %v4407, 7
      %v4409 = vsub.s32 %v4406, %v4408
      %v4410 = vrot.slane %v4402, %v4409
      %v4412 = vunpack.c.l.s4 1983009808
      %v4413 = vunpack.c.0.s8 %v4412
      %v4414 = vlaneseq
      %v4415 = vshrl.u32 %v4414, 7
      %v4416 = vsub.s32 %v4413, %v4415
      %v4417 = vrot.slane %v4403, %v4416
      %v4418 = vcombine.low %v4394, %v4410
      %v4419 = vcombine.high %v4394, %v4410
      %v4421 = vunpack.c.l.s4 1934713408
      %v4422 = vunpack.c.0.s8 %v4421
      %v4423 = vlaneseq
      %v4424 = vshrl.u32 %v4423, 7
      %v4425 = vsub.s32 %v4422, %v4424
      %v4426 = vrot.slane %v4418, %v4425
      %v4428 = vunpack.c.l.s4 1934713408
      %v4429 = vunpack.c.0.s8 %v4428
      %v4430 = vlaneseq
      %v4431 = vshrl.u32 %v4430, 7
      %v4432 = vsub.s32 %v4429, %v4431
      %v4433 = vrot.slane %v4419, %v4432
      %v4434 = vcombine.low %v4401, %v4417
      %v4435 = vcombine.high %v4401, %v4417
      %v4437 = vunpack.c.l.s4 1934713408
      %v4438 = vunpack.c.0.s8 %v4437
      %v4439 = vlaneseq
      %v4440 = vshrl.u32 %v4439, 7
      %v4441 = vsub.s32 %v4438, %v4440
      %v4442 = vrot.slane %v4434, %v4441
      %v4444 = vunpack.c.l.s4 1934713408
      %v4445 = vunpack.c.0.s8 %v4444
      %v4446 = vlaneseq
      %v4447 = vshrl.u32 %v4446, 7
      %v4448 = vsub.s32 %v4445, %v4447
      %v4449 = vrot.slane %v4435, %v4448
      %v4450 = vcombine.high %v4426, 0.0
      %v4451 = vcombine.high %v4433, 0.0
      %v4452 = vcombine.high %v4442, 0.0
      %v4453 = vcombine.high %v4449, 0.0
      %v4454 = vcombine.low %v4365, %v4373
      %v4455 = vcombine.high %v4365, %v4373
      %v4457 = vunpack.c.l.s4 1983009808
      %v4458 = vunpack.c.0.s8 %v4457
      %v4459 = vlaneseq
      %v4460 = vshrl.u32 %v4459, 7
      %v4461 = vsub.s32 %v4458, %v4460
      %v4462 = vrot.slane %v4454, %v4461
      %v4464 = vunpack.c.l.s4 1983009808
      %v4465 = vunpack.c.0.s8 %v4464
      %v4466 = vlaneseq
      %v4467 = vshrl.u32 %v4466, 7
      %v4468 = vsub.s32 %v4465, %v4467
      %v4469 = vrot.slane %v4455, %v4468
      %v4470 = vcombine.low %v4369, %v4377
      %v4471 = vcombine.high %v4369, %v4377
      %v4473 = vunpack.c.l.s4 1983009808
      %v4474 = vunpack.c.0.s8 %v4473
      %v4475 = vlaneseq
      %v4476 = vshrl.u32 %v4475, 7
      %v4477 = vsub.s32 %v4474, %v4476
      %v4478 = vrot.slane %v4470, %v4477
      %v4480 = vunpack.c.l.s4 1983009808
      %v4481 = vunpack.c.0.s8 %v4480
      %v4482 = vlaneseq
      %v4483 = vshrl.u32 %v4482, 7
      %v4484 = vsub.s32 %v4481, %v4483
      %v4485 = vrot.slane %v4471, %v4484
      %v4486 = vcombine.low %v4462, %v4478
      %v4487 = vcombine.high %v4462, %v4478
      %v4489 = vunpack.c.l.s4 1934713408
      %v4490 = vunpack.c.0.s8 %v4489
      %v4491 = vlaneseq
      %v4492 = vshrl.u32 %v4491, 7
      %v4493 = vsub.s32 %v4490, %v4492
      %v4494 = vrot.slane %v4486, %v4493
      %v4496 = vunpack.c.l.s4 1934713408
      %v4497 = vunpack.c.0.s8 %v4496
      %v4498 = vlaneseq
      %v4499 = vshrl.u32 %v4498, 7
      %v4500 = vsub.s32 %v4497, %v4499
      %v4501 = vrot.slane %v4487, %v4500
      %v4502 = vcombine.low %v4469, %v4485
      %v4503 = vcombine.high %v4469, %v4485
      %v4505 = vunpack.c.l.s4 1934713408
      %v4506 = vunpack.c.0.s8 %v4505
      %v4507 = vlaneseq
      %v4508 = vshrl.u32 %v4507, 7
      %v4509 = vsub.s32 %v4506, %v4508
      %v4510 = vrot.slane %v4502, %v4509
      %v4512 = vunpack.c.l.s4 1934713408
      %v4513 = vunpack.c.0.s8 %v4512
      %v4514 = vlaneseq
      %v4515 = vshrl.u32 %v4514, 7
      %v4516 = vsub.s32 %v4513, %v4515
      %v4517 = vrot.slane %v4503, %v4516
      %v4518 = vcombine.high %v4494, 0.0
      %v4519 = vcombine.high %v4501, 0.0
      %v4520 = vcombine.high %v4510, 0.0
      %v4521 = vcombine.high %v4517, 0.0
      %4523 = vrot.lane.b32.xlu0 %v4450, 16
      %v4524 = vpop.permute.xlu0 %4523
      %4527 = vrot.lane.b32.xlu0 %v4433, 32
      %v4528 = vpop.permute.xlu0 %4527
      %4531 = vrot.lane.b32.xlu0 %v4451, 48
      %v4532 = vpop.permute.xlu0 %4531
      %4535 = vrot.lane.b32.xlu0 %v4442, 64
      %v4536 = vpop.permute.xlu0 %4535
      %4539 = vrot.lane.b32.xlu0 %v4452, 80
      %v4540 = vpop.permute.xlu0 %4539
      %4543 = vrot.lane.b32.xlu0 %v4449, 96
      %v4544 = vpop.permute.xlu0 %4543
      %4547 = vrot.lane.b32.xlu0 %v4453, 112
      %v4548 = vpop.permute.xlu0 %4547
      %4551 = vrot.lane.b32.xlu0 %v4518, 16
      %v4552 = vpop.permute.xlu0 %4551
      %4555 = vrot.lane.b32.xlu0 %v4501, 32
      %v4556 = vpop.permute.xlu0 %4555
      %4559 = vrot.lane.b32.xlu0 %v4519, 48
      %v4560 = vpop.permute.xlu0 %4559
      %4563 = vrot.lane.b32.xlu0 %v4510, 64
      %v4564 = vpop.permute.xlu0 %4563
      %4567 = vrot.lane.b32.xlu0 %v4520, 80
      %v4568 = vpop.permute.xlu0 %4567
      %4571 = vrot.lane.b32.xlu0 %v4517, 96
      %v4572 = vpop.permute.xlu0 %4571
      %4575 = vrot.lane.b32.xlu0 %v4521, 112
      %v4576 = vpop.permute.xlu0 %4575
      %v4578 = vsel %vm630, %v4426, %v4524
      %v4579 = vsel %vm632, %v4578, %v4528
      %v4580 = vsel %vm634, %v4579, %v4532
      %v4581 = vsel %vm636, %v4580, %v4536
      %v4582 = vsel %vm638, %v4581, %v4540
      %v4583 = vsel %vm640, %v4582, %v4544
      %v4584 = vsel %vm642, %v4583, %v4548
      %v4585 = vsel %vm630, %v4494, %v4552
      %v4586 = vsel %vm632, %v4585, %v4556
      %v4587 = vsel %vm634, %v4586, %v4560
      %v4588 = vsel %vm636, %v4587, %v4564
      %v4589 = vsel %vm638, %v4588, %v4568
      %v4590 = vsel %vm640, %v4589, %v4572
      %v4591 = vsel %vm642, %v4590, %v4576
      %v4594 = vcombine.low %v4584, %v4591
      %4596 = vst [vmem:[%s1615] sm:$0xff] %v4594
      %4597 = vrot.lane.b32.xlu0 %v4125, 126
      %v4598 = vpop.permute.xlu0 %4597
      %4599 = vrot.lane.b32.xlu0 %v4127, 126
      %v4600 = vpop.permute.xlu0 %4599
      %4601 = vrot.lane.b32.xlu0 %v4130, 126
      %v4602 = vpop.permute.xlu0 %4601
      %4603 = vrot.lane.b32.xlu0 %v4132, 126
      %v4604 = vpop.permute.xlu0 %4603
      %4605 = vrot.lane.b32.xlu0 %v4135, 126
      %v4606 = vpop.permute.xlu0 %4605
      %4607 = vrot.lane.b32.xlu0 %v4137, 126
      %v4608 = vpop.permute.xlu0 %4607
      %4609 = vrot.lane.b32.xlu0 %v4140, 126
      %v4610 = vpop.permute.xlu0 %4609
      %4611 = vrot.lane.b32.xlu0 %v4142, 126
      %v4612 = vpop.permute.xlu0 %4611
      %v4621 = vcombine.low %v4598, %v4606
      %v4622 = vcombine.high %v4598, %v4606
      %v4624 = vunpack.c.l.s4 1983009808
      %v4625 = vunpack.c.0.s8 %v4624
      %v4626 = vlaneseq
      %v4627 = vshrl.u32 %v4626, 7
      %v4628 = vsub.s32 %v4625, %v4627
      %v4629 = vrot.slane %v4621, %v4628
      %v4631 = vunpack.c.l.s4 1983009808
      %v4632 = vunpack.c.0.s8 %v4631
      %v4633 = vlaneseq
      %v4634 = vshrl.u32 %v4633, 7
      %v4635 = vsub.s32 %v4632, %v4634
      %v4636 = vrot.slane %v4622, %v4635
      %v4637 = vcombine.low %v4602, %v4610
      %v4638 = vcombine.high %v4602, %v4610
      %v4640 = vunpack.c.l.s4 1983009808
      %v4641 = vunpack.c.0.s8 %v4640
      %v4642 = vlaneseq
      %v4643 = vshrl.u32 %v4642, 7
      %v4644 = vsub.s32 %v4641, %v4643
      %v4645 = vrot.slane %v4637, %v4644
      %v4647 = vunpack.c.l.s4 1983009808
      %v4648 = vunpack.c.0.s8 %v4647
      %v4649 = vlaneseq
      %v4650 = vshrl.u32 %v4649, 7
      %v4651 = vsub.s32 %v4648, %v4650
      %v4652 = vrot.slane %v4638, %v4651
      %v4653 = vcombine.low %v4629, %v4645
      %v4654 = vcombine.high %v4629, %v4645
      %v4656 = vunpack.c.l.s4 1934713408
      %v4657 = vunpack.c.0.s8 %v4656
      %v4658 = vlaneseq
      %v4659 = vshrl.u32 %v4658, 7
      %v4660 = vsub.s32 %v4657, %v4659
      %v4661 = vrot.slane %v4653, %v4660
      %v4663 = vunpack.c.l.s4 1934713408
      %v4664 = vunpack.c.0.s8 %v4663
      %v4665 = vlaneseq
      %v4666 = vshrl.u32 %v4665, 7
      %v4667 = vsub.s32 %v4664, %v4666
      %v4668 = vrot.slane %v4654, %v4667
      %v4669 = vcombine.low %v4636, %v4652
      %v4670 = vcombine.high %v4636, %v4652
      %v4672 = vunpack.c.l.s4 1934713408
      %v4673 = vunpack.c.0.s8 %v4672
      %v4674 = vlaneseq
      %v4675 = vshrl.u32 %v4674, 7
      %v4676 = vsub.s32 %v4673, %v4675
      %v4677 = vrot.slane %v4669, %v4676
      %v4679 = vunpack.c.l.s4 1934713408
      %v4680 = vunpack.c.0.s8 %v4679
      %v4681 = vlaneseq
      %v4682 = vshrl.u32 %v4681, 7
      %v4683 = vsub.s32 %v4680, %v4682
      %v4684 = vrot.slane %v4670, %v4683
      %v4685 = vcombine.high %v4661, 0.0
      %v4686 = vcombine.high %v4668, 0.0
      %v4687 = vcombine.high %v4677, 0.0
      %v4688 = vcombine.high %v4684, 0.0
      %v4689 = vcombine.low %v4600, %v4608
      %v4690 = vcombine.high %v4600, %v4608
      %v4692 = vunpack.c.l.s4 1983009808
      %v4693 = vunpack.c.0.s8 %v4692
      %v4694 = vlaneseq
      %v4695 = vshrl.u32 %v4694, 7
      %v4696 = vsub.s32 %v4693, %v4695
      %v4697 = vrot.slane %v4689, %v4696
      %v4699 = vunpack.c.l.s4 1983009808
      %v4700 = vunpack.c.0.s8 %v4699
      %v4701 = vlaneseq
      %v4702 = vshrl.u32 %v4701, 7
      %v4703 = vsub.s32 %v4700, %v4702
      %v4704 = vrot.slane %v4690, %v4703
      %v4705 = vcombine.low %v4604, %v4612
      %v4706 = vcombine.high %v4604, %v4612
      %v4708 = vunpack.c.l.s4 1983009808
      %v4709 = vunpack.c.0.s8 %v4708
      %v4710 = vlaneseq
      %v4711 = vshrl.u32 %v4710, 7
      %v4712 = vsub.s32 %v4709, %v4711
      %v4713 = vrot.slane %v4705, %v4712
      %v4715 = vunpack.c.l.s4 1983009808
      %v4716 = vunpack.c.0.s8 %v4715
      %v4717 = vlaneseq
      %v4718 = vshrl.u32 %v4717, 7
      %v4719 = vsub.s32 %v4716, %v4718
      %v4720 = vrot.slane %v4706, %v4719
      %v4721 = vcombine.low %v4697, %v4713
      %v4722 = vcombine.high %v4697, %v4713
      %v4724 = vunpack.c.l.s4 1934713408
      %v4725 = vunpack.c.0.s8 %v4724
      %v4726 = vlaneseq
      %v4727 = vshrl.u32 %v4726, 7
      %v4728 = vsub.s32 %v4725, %v4727
      %v4729 = vrot.slane %v4721, %v4728
      %v4731 = vunpack.c.l.s4 1934713408
      %v4732 = vunpack.c.0.s8 %v4731
      %v4733 = vlaneseq
      %v4734 = vshrl.u32 %v4733, 7
      %v4735 = vsub.s32 %v4732, %v4734
      %v4736 = vrot.slane %v4722, %v4735
      %v4737 = vcombine.low %v4704, %v4720
      %v4738 = vcombine.high %v4704, %v4720
      %v4740 = vunpack.c.l.s4 1934713408
      %v4741 = vunpack.c.0.s8 %v4740
      %v4742 = vlaneseq
      %v4743 = vshrl.u32 %v4742, 7
      %v4744 = vsub.s32 %v4741, %v4743
      %v4745 = vrot.slane %v4737, %v4744
      %v4747 = vunpack.c.l.s4 1934713408
      %v4748 = vunpack.c.0.s8 %v4747
      %v4749 = vlaneseq
      %v4750 = vshrl.u32 %v4749, 7
      %v4751 = vsub.s32 %v4748, %v4750
      %v4752 = vrot.slane %v4738, %v4751
      %v4753 = vcombine.high %v4729, 0.0
      %v4754 = vcombine.high %v4736, 0.0
      %v4755 = vcombine.high %v4745, 0.0
      %v4756 = vcombine.high %v4752, 0.0
      %4758 = vrot.lane.b32.xlu0 %v4685, 16
      %v4759 = vpop.permute.xlu0 %4758
      %4762 = vrot.lane.b32.xlu0 %v4668, 32
      %v4763 = vpop.permute.xlu0 %4762
      %4766 = vrot.lane.b32.xlu0 %v4686, 48
      %v4767 = vpop.permute.xlu0 %4766
      %4770 = vrot.lane.b32.xlu0 %v4677, 64
      %v4771 = vpop.permute.xlu0 %4770
      %4774 = vrot.lane.b32.xlu0 %v4687, 80
      %v4775 = vpop.permute.xlu0 %4774
      %4778 = vrot.lane.b32.xlu0 %v4684, 96
      %v4779 = vpop.permute.xlu0 %4778
      %4782 = vrot.lane.b32.xlu0 %v4688, 112
      %v4783 = vpop.permute.xlu0 %4782
      %4786 = vrot.lane.b32.xlu0 %v4753, 16
      %v4787 = vpop.permute.xlu0 %4786
      %4790 = vrot.lane.b32.xlu0 %v4736, 32
      %v4791 = vpop.permute.xlu0 %4790
      %4794 = vrot.lane.b32.xlu0 %v4754, 48
      %v4795 = vpop.permute.xlu0 %4794
      %4798 = vrot.lane.b32.xlu0 %v4745, 64
      %v4799 = vpop.permute.xlu0 %4798
      %4802 = vrot.lane.b32.xlu0 %v4755, 80
      %v4803 = vpop.permute.xlu0 %4802
      %4806 = vrot.lane.b32.xlu0 %v4752, 96
      %v4807 = vpop.permute.xlu0 %4806
      %4810 = vrot.lane.b32.xlu0 %v4756, 112
      %v4811 = vpop.permute.xlu0 %4810
      %v4813 = vsel %vm630, %v4661, %v4759
      %v4814 = vsel %vm632, %v4813, %v4763
      %v4815 = vsel %vm634, %v4814, %v4767
      %v4816 = vsel %vm636, %v4815, %v4771
      %v4817 = vsel %vm638, %v4816, %v4775
      %v4818 = vsel %vm640, %v4817, %v4779
      %v4819 = vsel %vm642, %v4818, %v4783
      %v4820 = vsel %vm630, %v4729, %v4787
      %v4821 = vsel %vm632, %v4820, %v4791
      %v4822 = vsel %vm634, %v4821, %v4795
      %v4823 = vsel %vm636, %v4822, %v4799
      %v4824 = vsel %vm638, %v4823, %v4803
      %v4825 = vsel %vm640, %v4824, %v4807
      %v4826 = vsel %vm642, %v4825, %v4811
      %v4829 = vcombine.low %v4819, %v4826
      %4831 = vst [vmem:[%s1851] sm:$0xff] %v4829
      %v4832 = vrot.slane %v3418, 2
      %v4833 = vrot.slane %v3419, 2
      %v4834 = vsel %vm1853, %v4832, %v4833
      %v4835 = vrot.slane %v3420, 2
      %v4836 = vsel %vm1853, %v4833, %v4835
      %v4837 = vrot.slane %v3421, 2
      %v4838 = vrot.slane %v3422, 2
      %v4839 = vsel %vm1853, %v4837, %v4838
      %v4840 = vrot.slane %v3423, 2
      %v4841 = vsel %vm1853, %v4838, %v4840
      %v4842 = vrot.slane %v3424, 2
      %v4843 = vrot.slane %v3425, 2
      %v4844 = vsel %vm1853, %v4842, %v4843
      %v4845 = vrot.slane %v3426, 2
      %v4846 = vsel %vm1853, %v4843, %v4845
      %v4847 = vrot.slane %v3427, 2
      %v4848 = vrot.slane %v3428, 2
      %v4849 = vsel %vm1853, %v4847, %v4848
      %v4850 = vrot.slane %v3429, 2
      %v4851 = vsel %vm1853, %v4848, %v4850
      %v4860 = vcombine.low %v4834, %v4844
      %v4861 = vcombine.high %v4834, %v4844
      %v4863 = vunpack.c.l.s4 1983009808
      %v4864 = vunpack.c.0.s8 %v4863
      %v4865 = vlaneseq
      %v4866 = vshrl.u32 %v4865, 7
      %v4867 = vsub.s32 %v4864, %v4866
      %v4868 = vrot.slane %v4860, %v4867
      %v4870 = vunpack.c.l.s4 1983009808
      %v4871 = vunpack.c.0.s8 %v4870
      %v4872 = vlaneseq
      %v4873 = vshrl.u32 %v4872, 7
      %v4874 = vsub.s32 %v4871, %v4873
      %v4875 = vrot.slane %v4861, %v4874
      %v4876 = vcombine.low %v4839, %v4849
      %v4877 = vcombine.high %v4839, %v4849
      %v4879 = vunpack.c.l.s4 1983009808
      %v4880 = vunpack.c.0.s8 %v4879
      %v4881 = vlaneseq
      %v4882 = vshrl.u32 %v4881, 7
      %v4883 = vsub.s32 %v4880, %v4882
      %v4884 = vrot.slane %v4876, %v4883
      %v4886 = vunpack.c.l.s4 1983009808
      %v4887 = vunpack.c.0.s8 %v4886
      %v4888 = vlaneseq
      %v4889 = vshrl.u32 %v4888, 7
      %v4890 = vsub.s32 %v4887, %v4889
      %v4891 = vrot.slane %v4877, %v4890
      %v4892 = vcombine.low %v4868, %v4884
      %v4893 = vcombine.high %v4868, %v4884
      %v4895 = vunpack.c.l.s4 1934713408
      %v4896 = vunpack.c.0.s8 %v4895
      %v4897 = vlaneseq
      %v4898 = vshrl.u32 %v4897, 7
      %v4899 = vsub.s32 %v4896, %v4898
      %v4900 = vrot.slane %v4892, %v4899
      %v4902 = vunpack.c.l.s4 1934713408
      %v4903 = vunpack.c.0.s8 %v4902
      %v4904 = vlaneseq
      %v4905 = vshrl.u32 %v4904, 7
      %v4906 = vsub.s32 %v4903, %v4905
      %v4907 = vrot.slane %v4893, %v4906
      %v4908 = vcombine.low %v4875, %v4891
      %v4909 = vcombine.high %v4875, %v4891
      %v4911 = vunpack.c.l.s4 1934713408
      %v4912 = vunpack.c.0.s8 %v4911
      %v4913 = vlaneseq
      %v4914 = vshrl.u32 %v4913, 7
      %v4915 = vsub.s32 %v4912, %v4914
      %v4916 = vrot.slane %v4908, %v4915
      %v4918 = vunpack.c.l.s4 1934713408
      %v4919 = vunpack.c.0.s8 %v4918
      %v4920 = vlaneseq
      %v4921 = vshrl.u32 %v4920, 7
      %v4922 = vsub.s32 %v4919, %v4921
      %v4923 = vrot.slane %v4909, %v4922
      %v4924 = vcombine.high %v4900, 0.0
      %v4925 = vcombine.high %v4907, 0.0
      %v4926 = vcombine.high %v4916, 0.0
      %v4927 = vcombine.high %v4923, 0.0
      %v4928 = vcombine.low %v4836, %v4846
      %v4929 = vcombine.high %v4836, %v4846
      %v4931 = vunpack.c.l.s4 1983009808
      %v4932 = vunpack.c.0.s8 %v4931
      %v4933 = vlaneseq
      %v4934 = vshrl.u32 %v4933, 7
      %v4935 = vsub.s32 %v4932, %v4934
      %v4936 = vrot.slane %v4928, %v4935
      %v4938 = vunpack.c.l.s4 1983009808
      %v4939 = vunpack.c.0.s8 %v4938
      %v4940 = vlaneseq
      %v4941 = vshrl.u32 %v4940, 7
      %v4942 = vsub.s32 %v4939, %v4941
      %v4943 = vrot.slane %v4929, %v4942
      %v4944 = vcombine.low %v4841, %v4851
      %v4945 = vcombine.high %v4841, %v4851
      %v4947 = vunpack.c.l.s4 1983009808
      %v4948 = vunpack.c.0.s8 %v4947
      %v4949 = vlaneseq
      %v4950 = vshrl.u32 %v4949, 7
      %v4951 = vsub.s32 %v4948, %v4950
      %v4952 = vrot.slane %v4944, %v4951
      %v4954 = vunpack.c.l.s4 1983009808
      %v4955 = vunpack.c.0.s8 %v4954
      %v4956 = vlaneseq
      %v4957 = vshrl.u32 %v4956, 7
      %v4958 = vsub.s32 %v4955, %v4957
      %v4959 = vrot.slane %v4945, %v4958
      %v4960 = vcombine.low %v4936, %v4952
      %v4961 = vcombine.high %v4936, %v4952
      %v4963 = vunpack.c.l.s4 1934713408
      %v4964 = vunpack.c.0.s8 %v4963
      %v4965 = vlaneseq
      %v4966 = vshrl.u32 %v4965, 7
      %v4967 = vsub.s32 %v4964, %v4966
      %v4968 = vrot.slane %v4960, %v4967
      %v4970 = vunpack.c.l.s4 1934713408
      %v4971 = vunpack.c.0.s8 %v4970
      %v4972 = vlaneseq
      %v4973 = vshrl.u32 %v4972, 7
      %v4974 = vsub.s32 %v4971, %v4973
      %v4975 = vrot.slane %v4961, %v4974
      %v4976 = vcombine.low %v4943, %v4959
      %v4977 = vcombine.high %v4943, %v4959
      %v4979 = vunpack.c.l.s4 1934713408
      %v4980 = vunpack.c.0.s8 %v4979
      %v4981 = vlaneseq
      %v4982 = vshrl.u32 %v4981, 7
      %v4983 = vsub.s32 %v4980, %v4982
      %v4984 = vrot.slane %v4976, %v4983
      %v4986 = vunpack.c.l.s4 1934713408
      %v4987 = vunpack.c.0.s8 %v4986
      %v4988 = vlaneseq
      %v4989 = vshrl.u32 %v4988, 7
      %v4990 = vsub.s32 %v4987, %v4989
      %v4991 = vrot.slane %v4977, %v4990
      %v4992 = vcombine.high %v4968, 0.0
      %v4993 = vcombine.high %v4975, 0.0
      %v4994 = vcombine.high %v4984, 0.0
      %v4995 = vcombine.high %v4991, 0.0
      %4997 = vrot.lane.b32.xlu0 %v4924, 16
      %v4998 = vpop.permute.xlu0 %4997
      %5001 = vrot.lane.b32.xlu0 %v4907, 32
      %v5002 = vpop.permute.xlu0 %5001
      %5005 = vrot.lane.b32.xlu0 %v4925, 48
      %v5006 = vpop.permute.xlu0 %5005
      %5009 = vrot.lane.b32.xlu0 %v4916, 64
      %v5010 = vpop.permute.xlu0 %5009
      %5013 = vrot.lane.b32.xlu0 %v4926, 80
      %v5014 = vpop.permute.xlu0 %5013
      %5017 = vrot.lane.b32.xlu0 %v4923, 96
      %v5018 = vpop.permute.xlu0 %5017
      %5021 = vrot.lane.b32.xlu0 %v4927, 112
      %v5022 = vpop.permute.xlu0 %5021
      %5025 = vrot.lane.b32.xlu0 %v4992, 16
      %v5026 = vpop.permute.xlu0 %5025
      %5029 = vrot.lane.b32.xlu0 %v4975, 32
      %v5030 = vpop.permute.xlu0 %5029
      %5033 = vrot.lane.b32.xlu0 %v4993, 48
      %v5034 = vpop.permute.xlu0 %5033
      %5037 = vrot.lane.b32.xlu0 %v4984, 64
      %v5038 = vpop.permute.xlu0 %5037
      %5041 = vrot.lane.b32.xlu0 %v4994, 80
      %v5042 = vpop.permute.xlu0 %5041
      %5045 = vrot.lane.b32.xlu0 %v4991, 96
      %v5046 = vpop.permute.xlu0 %5045
      %5049 = vrot.lane.b32.xlu0 %v4995, 112
      %v5050 = vpop.permute.xlu0 %5049
      %v5052 = vsel %vm630, %v4900, %v4998
      %v5053 = vsel %vm632, %v5052, %v5002
      %v5054 = vsel %vm634, %v5053, %v5006
      %v5055 = vsel %vm636, %v5054, %v5010
      %v5056 = vsel %vm638, %v5055, %v5014
      %v5057 = vsel %vm640, %v5056, %v5018
      %v5058 = vsel %vm642, %v5057, %v5022
      %v5059 = vsel %vm630, %v4968, %v5026
      %v5060 = vsel %vm632, %v5059, %v5030
      %v5061 = vsel %vm634, %v5060, %v5034
      %v5062 = vsel %vm636, %v5061, %v5038
      %v5063 = vsel %vm638, %v5062, %v5042
      %v5064 = vsel %vm640, %v5063, %v5046
      %v5065 = vsel %vm642, %v5064, %v5050
      %v5068 = vcombine.low %v5058, %v5065
      %5070 = vst [vmem:[%s2092] sm:$0xff] %v5068
      %5071 = vrot.lane.b32.xlu0 %v4834, 127
      %v5072 = vpop.permute.xlu0 %5071
      %5073 = vrot.lane.b32.xlu0 %v4836, 127
      %v5074 = vpop.permute.xlu0 %5073
      %5075 = vrot.lane.b32.xlu0 %v4839, 127
      %v5076 = vpop.permute.xlu0 %5075
      %5077 = vrot.lane.b32.xlu0 %v4841, 127
      %v5078 = vpop.permute.xlu0 %5077
      %5079 = vrot.lane.b32.xlu0 %v4844, 127
      %v5080 = vpop.permute.xlu0 %5079
      %5081 = vrot.lane.b32.xlu0 %v4846, 127
      %v5082 = vpop.permute.xlu0 %5081
      %5083 = vrot.lane.b32.xlu0 %v4849, 127
      %v5084 = vpop.permute.xlu0 %5083
      %5085 = vrot.lane.b32.xlu0 %v4851, 127
      %v5086 = vpop.permute.xlu0 %5085
      %v5095 = vcombine.low %v5072, %v5080
      %v5096 = vcombine.high %v5072, %v5080
      %v5098 = vunpack.c.l.s4 1983009808
      %v5099 = vunpack.c.0.s8 %v5098
      %v5100 = vlaneseq
      %v5101 = vshrl.u32 %v5100, 7
      %v5102 = vsub.s32 %v5099, %v5101
      %v5103 = vrot.slane %v5095, %v5102
      %v5105 = vunpack.c.l.s4 1983009808
      %v5106 = vunpack.c.0.s8 %v5105
      %v5107 = vlaneseq
      %v5108 = vshrl.u32 %v5107, 7
      %v5109 = vsub.s32 %v5106, %v5108
      %v5110 = vrot.slane %v5096, %v5109
      %v5111 = vcombine.low %v5076, %v5084
      %v5112 = vcombine.high %v5076, %v5084
      %v5114 = vunpack.c.l.s4 1983009808
      %v5115 = vunpack.c.0.s8 %v5114
      %v5116 = vlaneseq
      %v5117 = vshrl.u32 %v5116, 7
      %v5118 = vsub.s32 %v5115, %v5117
      %v5119 = vrot.slane %v5111, %v5118
      %v5121 = vunpack.c.l.s4 1983009808
      %v5122 = vunpack.c.0.s8 %v5121
      %v5123 = vlaneseq
      %v5124 = vshrl.u32 %v5123, 7
      %v5125 = vsub.s32 %v5122, %v5124
      %v5126 = vrot.slane %v5112, %v5125
      %v5127 = vcombine.low %v5103, %v5119
      %v5128 = vcombine.high %v5103, %v5119
      %v5130 = vunpack.c.l.s4 1934713408
      %v5131 = vunpack.c.0.s8 %v5130
      %v5132 = vlaneseq
      %v5133 = vshrl.u32 %v5132, 7
      %v5134 = vsub.s32 %v5131, %v5133
      %v5135 = vrot.slane %v5127, %v5134
      %v5137 = vunpack.c.l.s4 1934713408
      %v5138 = vunpack.c.0.s8 %v5137
      %v5139 = vlaneseq
      %v5140 = vshrl.u32 %v5139, 7
      %v5141 = vsub.s32 %v5138, %v5140
      %v5142 = vrot.slane %v5128, %v5141
      %v5143 = vcombine.low %v5110, %v5126
      %v5144 = vcombine.high %v5110, %v5126
      %v5146 = vunpack.c.l.s4 1934713408
      %v5147 = vunpack.c.0.s8 %v5146
      %v5148 = vlaneseq
      %v5149 = vshrl.u32 %v5148, 7
      %v5150 = vsub.s32 %v5147, %v5149
      %v5151 = vrot.slane %v5143, %v5150
      %v5153 = vunpack.c.l.s4 1934713408
      %v5154 = vunpack.c.0.s8 %v5153
      %v5155 = vlaneseq
      %v5156 = vshrl.u32 %v5155, 7
      %v5157 = vsub.s32 %v5154, %v5156
      %v5158 = vrot.slane %v5144, %v5157
      %v5159 = vcombine.high %v5135, 0.0
      %v5160 = vcombine.high %v5142, 0.0
      %v5161 = vcombine.high %v5151, 0.0
      %v5162 = vcombine.high %v5158, 0.0
      %v5163 = vcombine.low %v5074, %v5082
      %v5164 = vcombine.high %v5074, %v5082
      %v5166 = vunpack.c.l.s4 1983009808
      %v5167 = vunpack.c.0.s8 %v5166
      %v5168 = vlaneseq
      %v5169 = vshrl.u32 %v5168, 7
      %v5170 = vsub.s32 %v5167, %v5169
      %v5171 = vrot.slane %v5163, %v5170
      %v5173 = vunpack.c.l.s4 1983009808
      %v5174 = vunpack.c.0.s8 %v5173
      %v5175 = vlaneseq
      %v5176 = vshrl.u32 %v5175, 7
      %v5177 = vsub.s32 %v5174, %v5176
      %v5178 = vrot.slane %v5164, %v5177
      %v5179 = vcombine.low %v5078, %v5086
      %v5180 = vcombine.high %v5078, %v5086
      %v5182 = vunpack.c.l.s4 1983009808
      %v5183 = vunpack.c.0.s8 %v5182
      %v5184 = vlaneseq
      %v5185 = vshrl.u32 %v5184, 7
      %v5186 = vsub.s32 %v5183, %v5185
      %v5187 = vrot.slane %v5179, %v5186
      %v5189 = vunpack.c.l.s4 1983009808
      %v5190 = vunpack.c.0.s8 %v5189
      %v5191 = vlaneseq
      %v5192 = vshrl.u32 %v5191, 7
      %v5193 = vsub.s32 %v5190, %v5192
      %v5194 = vrot.slane %v5180, %v5193
      %v5195 = vcombine.low %v5171, %v5187
      %v5196 = vcombine.high %v5171, %v5187
      %v5198 = vunpack.c.l.s4 1934713408
      %v5199 = vunpack.c.0.s8 %v5198
      %v5200 = vlaneseq
      %v5201 = vshrl.u32 %v5200, 7
      %v5202 = vsub.s32 %v5199, %v5201
      %v5203 = vrot.slane %v5195, %v5202
      %v5205 = vunpack.c.l.s4 1934713408
      %v5206 = vunpack.c.0.s8 %v5205
      %v5207 = vlaneseq
      %v5208 = vshrl.u32 %v5207, 7
      %v5209 = vsub.s32 %v5206, %v5208
      %v5210 = vrot.slane %v5196, %v5209
      %v5211 = vcombine.low %v5178, %v5194
      %v5212 = vcombine.high %v5178, %v5194
      %v5214 = vunpack.c.l.s4 1934713408
      %v5215 = vunpack.c.0.s8 %v5214
      %v5216 = vlaneseq
      %v5217 = vshrl.u32 %v5216, 7
      %v5218 = vsub.s32 %v5215, %v5217
      %v5219 = vrot.slane %v5211, %v5218
      %v5221 = vunpack.c.l.s4 1934713408
      %v5222 = vunpack.c.0.s8 %v5221
      %v5223 = vlaneseq
      %v5224 = vshrl.u32 %v5223, 7
      %v5225 = vsub.s32 %v5222, %v5224
      %v5226 = vrot.slane %v5212, %v5225
      %v5227 = vcombine.high %v5203, 0.0
      %v5228 = vcombine.high %v5210, 0.0
      %v5229 = vcombine.high %v5219, 0.0
      %v5230 = vcombine.high %v5226, 0.0
      %5232 = vrot.lane.b32.xlu0 %v5159, 16
      %v5233 = vpop.permute.xlu0 %5232
      %5236 = vrot.lane.b32.xlu0 %v5142, 32
      %v5237 = vpop.permute.xlu0 %5236
      %5240 = vrot.lane.b32.xlu0 %v5160, 48
      %v5241 = vpop.permute.xlu0 %5240
      %5244 = vrot.lane.b32.xlu0 %v5151, 64
      %v5245 = vpop.permute.xlu0 %5244
      %5248 = vrot.lane.b32.xlu0 %v5161, 80
      %v5249 = vpop.permute.xlu0 %5248
      %5252 = vrot.lane.b32.xlu0 %v5158, 96
      %v5253 = vpop.permute.xlu0 %5252
      %5256 = vrot.lane.b32.xlu0 %v5162, 112
      %v5257 = vpop.permute.xlu0 %5256
      %5260 = vrot.lane.b32.xlu0 %v5227, 16
      %v5261 = vpop.permute.xlu0 %5260
      %5264 = vrot.lane.b32.xlu0 %v5210, 32
      %v5265 = vpop.permute.xlu0 %5264
      %5268 = vrot.lane.b32.xlu0 %v5228, 48
      %v5269 = vpop.permute.xlu0 %5268
      %5272 = vrot.lane.b32.xlu0 %v5219, 64
      %v5273 = vpop.permute.xlu0 %5272
      %5276 = vrot.lane.b32.xlu0 %v5229, 80
      %v5277 = vpop.permute.xlu0 %5276
      %5280 = vrot.lane.b32.xlu0 %v5226, 96
      %v5281 = vpop.permute.xlu0 %5280
      %5284 = vrot.lane.b32.xlu0 %v5230, 112
      %v5285 = vpop.permute.xlu0 %5284
      %v5287 = vsel %vm630, %v5135, %v5233
      %v5288 = vsel %vm632, %v5287, %v5237
      %v5289 = vsel %vm634, %v5288, %v5241
      %v5290 = vsel %vm636, %v5289, %v5245
      %v5291 = vsel %vm638, %v5290, %v5249
      %v5292 = vsel %vm640, %v5291, %v5253
      %v5293 = vsel %vm642, %v5292, %v5257
      %v5294 = vsel %vm630, %v5203, %v5261
      %v5295 = vsel %vm632, %v5294, %v5265
      %v5296 = vsel %vm634, %v5295, %v5269
      %v5297 = vsel %vm636, %v5296, %v5273
      %v5298 = vsel %vm638, %v5297, %v5277
      %v5299 = vsel %vm640, %v5298, %v5281
      %v5300 = vsel %vm642, %v5299, %v5285
      %v5303 = vcombine.low %v5293, %v5300
      %5305 = vst [vmem:[%s2328] sm:$0xff] %v5303
      %5306 = vrot.lane.b32.xlu0 %v4834, 126
      %v5307 = vpop.permute.xlu0 %5306
      %5308 = vrot.lane.b32.xlu0 %v4836, 126
      %v5309 = vpop.permute.xlu0 %5308
      %5310 = vrot.lane.b32.xlu0 %v4839, 126
      %v5311 = vpop.permute.xlu0 %5310
      %5312 = vrot.lane.b32.xlu0 %v4841, 126
      %v5313 = vpop.permute.xlu0 %5312
      %5314 = vrot.lane.b32.xlu0 %v4844, 126
      %v5315 = vpop.permute.xlu0 %5314
      %5316 = vrot.lane.b32.xlu0 %v4846, 126
      %v5317 = vpop.permute.xlu0 %5316
      %5318 = vrot.lane.b32.xlu0 %v4849, 126
      %v5319 = vpop.permute.xlu0 %5318
      %5320 = vrot.lane.b32.xlu0 %v4851, 126
      %v5321 = vpop.permute.xlu0 %5320
      %v5330 = vcombine.low %v5307, %v5315
      %v5331 = vcombine.high %v5307, %v5315
      %v5333 = vunpack.c.l.s4 1983009808
      %v5334 = vunpack.c.0.s8 %v5333
      %v5335 = vlaneseq
      %v5336 = vshrl.u32 %v5335, 7
      %v5337 = vsub.s32 %v5334, %v5336
      %v5338 = vrot.slane %v5330, %v5337
      %v5340 = vunpack.c.l.s4 1983009808
      %v5341 = vunpack.c.0.s8 %v5340
      %v5342 = vlaneseq
      %v5343 = vshrl.u32 %v5342, 7
      %v5344 = vsub.s32 %v5341, %v5343
      %v5345 = vrot.slane %v5331, %v5344
      %v5346 = vcombine.low %v5311, %v5319
      %v5347 = vcombine.high %v5311, %v5319
      %v5349 = vunpack.c.l.s4 1983009808
      %v5350 = vunpack.c.0.s8 %v5349
      %v5351 = vlaneseq
      %v5352 = vshrl.u32 %v5351, 7
      %v5353 = vsub.s32 %v5350, %v5352
      %v5354 = vrot.slane %v5346, %v5353
      %v5356 = vunpack.c.l.s4 1983009808
      %v5357 = vunpack.c.0.s8 %v5356
      %v5358 = vlaneseq
      %v5359 = vshrl.u32 %v5358, 7
      %v5360 = vsub.s32 %v5357, %v5359
      %v5361 = vrot.slane %v5347, %v5360
      %v5362 = vcombine.low %v5338, %v5354
      %v5363 = vcombine.high %v5338, %v5354
      %v5365 = vunpack.c.l.s4 1934713408
      %v5366 = vunpack.c.0.s8 %v5365
      %v5367 = vlaneseq
      %v5368 = vshrl.u32 %v5367, 7
      %v5369 = vsub.s32 %v5366, %v5368
      %v5370 = vrot.slane %v5362, %v5369
      %v5372 = vunpack.c.l.s4 1934713408
      %v5373 = vunpack.c.0.s8 %v5372
      %v5374 = vlaneseq
      %v5375 = vshrl.u32 %v5374, 7
      %v5376 = vsub.s32 %v5373, %v5375
      %v5377 = vrot.slane %v5363, %v5376
      %v5378 = vcombine.low %v5345, %v5361
      %v5379 = vcombine.high %v5345, %v5361
      %v5381 = vunpack.c.l.s4 1934713408
      %v5382 = vunpack.c.0.s8 %v5381
      %v5383 = vlaneseq
      %v5384 = vshrl.u32 %v5383, 7
      %v5385 = vsub.s32 %v5382, %v5384
      %v5386 = vrot.slane %v5378, %v5385
      %v5388 = vunpack.c.l.s4 1934713408
      %v5389 = vunpack.c.0.s8 %v5388
      %v5390 = vlaneseq
      %v5391 = vshrl.u32 %v5390, 7
      %v5392 = vsub.s32 %v5389, %v5391
      %v5393 = vrot.slane %v5379, %v5392
      %v5394 = vcombine.high %v5370, 0.0
      %v5395 = vcombine.high %v5377, 0.0
      %v5396 = vcombine.high %v5386, 0.0
      %v5397 = vcombine.high %v5393, 0.0
      %v5398 = vcombine.low %v5309, %v5317
      %v5399 = vcombine.high %v5309, %v5317
      %v5401 = vunpack.c.l.s4 1983009808
      %v5402 = vunpack.c.0.s8 %v5401
      %v5403 = vlaneseq
      %v5404 = vshrl.u32 %v5403, 7
      %v5405 = vsub.s32 %v5402, %v5404
      %v5406 = vrot.slane %v5398, %v5405
      %v5408 = vunpack.c.l.s4 1983009808
      %v5409 = vunpack.c.0.s8 %v5408
      %v5410 = vlaneseq
      %v5411 = vshrl.u32 %v5410, 7
      %v5412 = vsub.s32 %v5409, %v5411
      %v5413 = vrot.slane %v5399, %v5412
      %v5414 = vcombine.low %v5313, %v5321
      %v5415 = vcombine.high %v5313, %v5321
      %v5417 = vunpack.c.l.s4 1983009808
      %v5418 = vunpack.c.0.s8 %v5417
      %v5419 = vlaneseq
      %v5420 = vshrl.u32 %v5419, 7
      %v5421 = vsub.s32 %v5418, %v5420
      %v5422 = vrot.slane %v5414, %v5421
      %v5424 = vunpack.c.l.s4 1983009808
      %v5425 = vunpack.c.0.s8 %v5424
      %v5426 = vlaneseq
      %v5427 = vshrl.u32 %v5426, 7
      %v5428 = vsub.s32 %v5425, %v5427
      %v5429 = vrot.slane %v5415, %v5428
      %v5430 = vcombine.low %v5406, %v5422
      %v5431 = vcombine.high %v5406, %v5422
      %v5433 = vunpack.c.l.s4 1934713408
      %v5434 = vunpack.c.0.s8 %v5433
      %v5435 = vlaneseq
      %v5436 = vshrl.u32 %v5435, 7
      %v5437 = vsub.s32 %v5434, %v5436
      %v5438 = vrot.slane %v5430, %v5437
      %v5440 = vunpack.c.l.s4 1934713408
      %v5441 = vunpack.c.0.s8 %v5440
      %v5442 = vlaneseq
      %v5443 = vshrl.u32 %v5442, 7
      %v5444 = vsub.s32 %v5441, %v5443
      %v5445 = vrot.slane %v5431, %v5444
      %v5446 = vcombine.low %v5413, %v5429
      %v5447 = vcombine.high %v5413, %v5429
      %v5449 = vunpack.c.l.s4 1934713408
      %v5450 = vunpack.c.0.s8 %v5449
      %v5451 = vlaneseq
      %v5452 = vshrl.u32 %v5451, 7
      %v5453 = vsub.s32 %v5450, %v5452
      %v5454 = vrot.slane %v5446, %v5453
      %v5456 = vunpack.c.l.s4 1934713408
      %v5457 = vunpack.c.0.s8 %v5456
      %v5458 = vlaneseq
      %v5459 = vshrl.u32 %v5458, 7
      %v5460 = vsub.s32 %v5457, %v5459
      %v5461 = vrot.slane %v5447, %v5460
      %v5462 = vcombine.high %v5438, 0.0
      %v5463 = vcombine.high %v5445, 0.0
      %v5464 = vcombine.high %v5454, 0.0
      %v5465 = vcombine.high %v5461, 0.0
      %5467 = vrot.lane.b32.xlu0 %v5394, 16
      %v5468 = vpop.permute.xlu0 %5467
      %5471 = vrot.lane.b32.xlu0 %v5377, 32
      %v5472 = vpop.permute.xlu0 %5471
      %5475 = vrot.lane.b32.xlu0 %v5395, 48
      %v5476 = vpop.permute.xlu0 %5475
      %5479 = vrot.lane.b32.xlu0 %v5386, 64
      %v5480 = vpop.permute.xlu0 %5479
      %5483 = vrot.lane.b32.xlu0 %v5396, 80
      %v5484 = vpop.permute.xlu0 %5483
      %5487 = vrot.lane.b32.xlu0 %v5393, 96
      %v5488 = vpop.permute.xlu0 %5487
      %5491 = vrot.lane.b32.xlu0 %v5397, 112
      %v5492 = vpop.permute.xlu0 %5491
      %5495 = vrot.lane.b32.xlu0 %v5462, 16
      %v5496 = vpop.permute.xlu0 %5495
      %5499 = vrot.lane.b32.xlu0 %v5445, 32
      %v5500 = vpop.permute.xlu0 %5499
      %5503 = vrot.lane.b32.xlu0 %v5463, 48
      %v5504 = vpop.permute.xlu0 %5503
      %5507 = vrot.lane.b32.xlu0 %v5454, 64
      %v5508 = vpop.permute.xlu0 %5507
      %5511 = vrot.lane.b32.xlu0 %v5464, 80
      %v5512 = vpop.permute.xlu0 %5511
      %5515 = vrot.lane.b32.xlu0 %v5461, 96
      %v5516 = vpop.permute.xlu0 %5515
      %5519 = vrot.lane.b32.xlu0 %v5465, 112
      %v5520 = vpop.permute.xlu0 %5519
      %v5522 = vsel %vm630, %v5370, %v5468
      %v5523 = vsel %vm632, %v5522, %v5472
      %v5524 = vsel %vm634, %v5523, %v5476
      %v5525 = vsel %vm636, %v5524, %v5480
      %v5526 = vsel %vm638, %v5525, %v5484
      %v5527 = vsel %vm640, %v5526, %v5488
      %v5528 = vsel %vm642, %v5527, %v5492
      %v5529 = vsel %vm630, %v5438, %v5496
      %v5530 = vsel %vm632, %v5529, %v5500
      %v5531 = vsel %vm634, %v5530, %v5504
      %v5532 = vsel %vm636, %v5531, %v5508
      %v5533 = vsel %vm638, %v5532, %v5512
      %v5534 = vsel %vm640, %v5533, %v5516
      %v5535 = vsel %vm642, %v5534, %v5520
      %v5538 = vcombine.low %v5528, %v5535
      %5540 = vst [vmem:[%s2564] sm:$0xff] %v5538
      %v5541 = vld [vmem:[#allocation3] sm:$0xff]
      %v5542 = vld [vmem:[#allocation3 + $0x8] sm:$0xff]
      %v5543 = vld [vmem:[#allocation3 + $0x10] sm:$0xff]
      %v5544 = vld [vmem:[#allocation3 + $0x18] sm:$0xff]
      %v5545 = vld [vmem:[#allocation3 + $0x20] sm:$0xff]
      %v5546 = vld [vmem:[#allocation3 + $0x28] sm:$0xff]
      %v5547 = vld [vmem:[#allocation3 + $0x30] sm:$0xff]
      %v5548 = vld [vmem:[#allocation3 + $0x38] sm:$0xff]
      %v5549 = vld [vmem:[#allocation3 + $0x40] sm:$0xff]
      %s5550 = scalar_lea.vmem %s1, 4
      %v5551 = vld [vmem:[%s5550] sm:$0xf]
      %v5561 = vcombine.low %v5541, %v5542
      %v5562 = vcombine.high %v5541, %v5542
      %v5563 = vcombine.low %v5543, %v5544
      %v5564 = vcombine.high %v5543, %v5544
      %v5565 = vcombine.low %v5545, %v5546
      %v5566 = vcombine.high %v5545, %v5546
      %v5567 = vcombine.low %v5547, %v5548
      %v5568 = vcombine.high %v5547, %v5548
      %v5569 = vcombine.high %v5549, %v5549
      %v5579 = vsel %vm2602, %v5551, 0
      %v5581 = vsel %vm2606, %v5549, 0
      %v5583 = vsel %vm2606, %v5569, 0
      %5585 = vmatprep.subr.mxu0 0.0
      %5586 = vmatpush1.msra.mxu0 0.0
      %5587 = vmatprep.subr.mxu0 0.0
      %5588 = vmatpush1.msra.mxu0 0.0
      %5589 = vmatprep.subr.mxu0 0.0
      %5590 = vmatpush1.msra.mxu0 0.0
      %5591 = vmatprep.subr.mxu0 0.0
      %5592 = vmatpush1.msra.mxu0 0.0
      %5593 = vmatprep.subr.mxu0 0.0
      %5594 = vmatpush1.msra.mxu0 0.0
      %5595 = vmatprep.subr.mxu0 0.0
      %5596 = vmatpush1.msra.mxu0 0.0
      %5597 = vmatprep.subr.mxu0 0.0
      %5598 = vmatpush1.msra.mxu0 0.0
      %5599 = vmatprep.subr.mxu0 0.0
      %5600 = vmatpush1.msra.mxu0 0.0
      %5601 = vmatprep.subr.mxu0 0.0
      %5602 = vmatpush1.msra.mxu0 0.0
      %5603 = vmatprep.subr.mxu0 0.0
      %5604 = vmatpush1.msra.mxu0 0.0
      %5605 = vmatprep.subr.mxu0 0.0
      %5606 = vmatpush1.msra.mxu0 0.0
      %v5607 = vand.u32 %v5583, 4294901760
      %5608 = vmatprep.subr.mxu0 %v5607
      %v5609 = vand.u32 %v5581, 4294901760
      %5610 = vmatpush1.msra.mxu0 %v5609
      %v5611 = vand.u32 %v5568, 4294901760
      %5612 = vmatprep.subr.mxu0 %v5611
      %v5613 = vand.u32 %v5567, 4294901760
      %5614 = vmatpush1.msra.mxu0 %v5613
      %v5615 = vand.u32 %v5566, 4294901760
      %5616 = vmatprep.subr.mxu0 %v5615
      %v5617 = vand.u32 %v5565, 4294901760
      %5618 = vmatpush1.msra.mxu0 %v5617
      %v5619 = vand.u32 %v5564, 4294901760
      %5620 = vmatprep.subr.mxu0 %v5619
      %v5621 = vand.u32 %v5563, 4294901760
      %5622 = vmatpush1.msra.mxu0 %v5621
      %v5623 = vand.u32 %v5562, 4294901760
      %5624 = vmatprep.subr.mxu0 %v5623
      %v5625 = vand.u32 %v5561, 4294901760
      %5626 = vmatpush1.msra.mxu0 %v5625
      %5627 = vmatprep.subr.mxu0 0.0
      %5628 = vmatpush2.msra.mxu0 0.0
      %5629 = vmatprep.subr.mxu0 0.0
      %5630 = vmatpush2.msra.mxu0 0.0
      %5631 = vmatprep.subr.mxu0 0.0
      %5632 = vmatpush2.msra.mxu0 0.0
      %5633 = vmatprep.subr.mxu0 0.0
      %5634 = vmatpush2.msra.mxu0 0.0
      %5635 = vmatprep.subr.mxu0 0.0
      %5636 = vmatpush2.msra.mxu0 0.0
      %5637 = vmatprep.subr.mxu0 0.0
      %5638 = vmatpush2.msra.mxu0 0.0
      %5639 = vmatprep.subr.mxu0 0.0
      %5640 = vmatpush2.msra.mxu0 0.0
      %5641 = vmatprep.subr.mxu0 0.0
      %5642 = vmatpush2.msra.mxu0 0.0
      %5643 = vmatprep.subr.mxu0 0.0
      %5644 = vmatpush2.msra.mxu0 0.0
      %5645 = vmatprep.subr.mxu0 0.0
      %5646 = vmatpush2.msra.mxu0 0.0
      %5647 = vmatprep.subr.mxu0 0.0
      %5648 = vmatpush2.msra.mxu0 0.0
      %5649 = vmatprep.subr.mxu0 0.0
      %5650 = vmatpush2.msra.mxu0 0.0
      %5651 = vmatprep.subr.mxu0 0.0
      %5652 = vmatpush2.msra.mxu0 0.0
      %5653 = vmatprep.subr.mxu0 0.0
      %5654 = vmatpush2.msra.mxu0 0.0
      %5655 = vmatprep.subr.mxu0 0.0
      %5656 = vmatpush2.msra.mxu0 0.0
      %5657 = vmatprep.subr.mxu0 0.0
      %5658 = vmatpush2.msra.mxu0 0.0
      %5659 = vmatprep.mubr.f32.mxu0 0.0
      %v5660 = vand.u32 %v5579, 4294901760
      %v5661 = vsub.f32 %v5579, %v5660
      %v5662 = vand.u32 %v5661, 4294901760
      %v5663 = vsub.f32 %v5661, %v5662
      %v5664 = vand.u32 %v5663, 4294901760
      %5665 = vmatmul.mubr.f32.gmra.mxu0 %v5664
      %v5666 = vpop.f32.mrf.mxu0
      %v5667 = vadd.f32 0.0, %v5666
      %v5668 = vpop.f32.mrf.mxu0
      %v5669 = vadd.f32 0.0, %v5668
      %5670 = vdwg.mxu0
      %5671 = vmatprep.subr.mxu0 0.0
      %5672 = vmatpush1.msra.mxu0 0.0
      %5673 = vmatprep.subr.mxu0 0.0
      %5674 = vmatpush1.msra.mxu0 0.0
      %5675 = vmatprep.subr.mxu0 0.0
      %5676 = vmatpush1.msra.mxu0 0.0
      %5677 = vmatprep.subr.mxu0 0.0
      %5678 = vmatpush1.msra.mxu0 0.0
      %5679 = vmatprep.subr.mxu0 0.0
      %5680 = vmatpush1.msra.mxu0 0.0
      %5681 = vmatprep.subr.mxu0 0.0
      %5682 = vmatpush1.msra.mxu0 0.0
      %5683 = vmatprep.subr.mxu0 0.0
      %5684 = vmatpush1.msra.mxu0 0.0
      %5685 = vmatprep.subr.mxu0 0.0
      %5686 = vmatpush1.msra.mxu0 0.0
      %5687 = vmatprep.subr.mxu0 0.0
      %5688 = vmatpush1.msra.mxu0 0.0
      %5689 = vmatprep.subr.mxu0 0.0
      %5690 = vmatpush1.msra.mxu0 0.0
      %5691 = vmatprep.subr.mxu0 0.0
      %5692 = vmatpush1.msra.mxu0 0.0
      %v5693 = vand.u32 %v5583, 4294901760
      %v5694 = vsub.f32 %v5583, %v5693
      %v5695 = vand.u32 %v5694, 4294901760
      %v5696 = vsub.f32 %v5694, %v5695
      %v5697 = vand.u32 %v5696, 4294901760
      %5698 = vmatprep.subr.mxu0 %v5697
      %v5699 = vand.u32 %v5581, 4294901760
      %v5700 = vsub.f32 %v5581, %v5699
      %v5701 = vand.u32 %v5700, 4294901760
      %v5702 = vsub.f32 %v5700, %v5701
      %v5703 = vand.u32 %v5702, 4294901760
      %5704 = vmatpush1.msra.mxu0 %v5703
      %v5705 = vand.u32 %v5568, 4294901760
      %v5706 = vsub.f32 %v5568, %v5705
      %v5707 = vand.u32 %v5706, 4294901760
      %v5708 = vsub.f32 %v5706, %v5707
      %v5709 = vand.u32 %v5708, 4294901760
      %5710 = vmatprep.subr.mxu0 %v5709
      %v5711 = vand.u32 %v5567, 4294901760
      %v5712 = vsub.f32 %v5567, %v5711
      %v5713 = vand.u32 %v5712, 4294901760
      %v5714 = vsub.f32 %v5712, %v5713
      %v5715 = vand.u32 %v5714, 4294901760
      %5716 = vmatpush1.msra.mxu0 %v5715
      %v5717 = vand.u32 %v5566, 4294901760
      %v5718 = vsub.f32 %v5566, %v5717
      %v5719 = vand.u32 %v5718, 4294901760
      %v5720 = vsub.f32 %v5718, %v5719
      %v5721 = vand.u32 %v5720, 4294901760
      %5722 = vmatprep.subr.mxu0 %v5721
      %v5723 = vand.u32 %v5565, 4294901760
      %v5724 = vsub.f32 %v5565, %v5723
      %v5725 = vand.u32 %v5724, 4294901760
      %v5726 = vsub.f32 %v5724, %v5725
      %v5727 = vand.u32 %v5726, 4294901760
      %5728 = vmatpush1.msra.mxu0 %v5727
      %v5729 = vand.u32 %v5564, 4294901760
      %v5730 = vsub.f32 %v5564, %v5729
      %v5731 = vand.u32 %v5730, 4294901760
      %v5732 = vsub.f32 %v5730, %v5731
      %v5733 = vand.u32 %v5732, 4294901760
      %5734 = vmatprep.subr.mxu0 %v5733
      %v5735 = vand.u32 %v5563, 4294901760
      %v5736 = vsub.f32 %v5563, %v5735
      %v5737 = vand.u32 %v5736, 4294901760
      %v5738 = vsub.f32 %v5736, %v5737
      %v5739 = vand.u32 %v5738, 4294901760
      %5740 = vmatpush1.msra.mxu0 %v5739
      %v5741 = vand.u32 %v5562, 4294901760
      %v5742 = vsub.f32 %v5562, %v5741
      %v5743 = vand.u32 %v5742, 4294901760
      %v5744 = vsub.f32 %v5742, %v5743
      %v5745 = vand.u32 %v5744, 4294901760
      %5746 = vmatprep.subr.mxu0 %v5745
      %v5747 = vand.u32 %v5561, 4294901760
      %v5748 = vsub.f32 %v5561, %v5747
      %v5749 = vand.u32 %v5748, 4294901760
      %v5750 = vsub.f32 %v5748, %v5749
      %v5751 = vand.u32 %v5750, 4294901760
      %5752 = vmatpush1.msra.mxu0 %v5751
      %5753 = vmatprep.subr.mxu0 0.0
      %5754 = vmatpush2.msra.mxu0 0.0
      %5755 = vmatprep.subr.mxu0 0.0
      %5756 = vmatpush2.msra.mxu0 0.0
      %5757 = vmatprep.subr.mxu0 0.0
      %5758 = vmatpush2.msra.mxu0 0.0
      %5759 = vmatprep.subr.mxu0 0.0
      %5760 = vmatpush2.msra.mxu0 0.0
      %5761 = vmatprep.subr.mxu0 0.0
      %5762 = vmatpush2.msra.mxu0 0.0
      %5763 = vmatprep.subr.mxu0 0.0
      %5764 = vmatpush2.msra.mxu0 0.0
      %5765 = vmatprep.subr.mxu0 0.0
      %5766 = vmatpush2.msra.mxu0 0.0
      %5767 = vmatprep.subr.mxu0 0.0
      %5768 = vmatpush2.msra.mxu0 0.0
      %5769 = vmatprep.subr.mxu0 0.0
      %5770 = vmatpush2.msra.mxu0 0.0
      %5771 = vmatprep.subr.mxu0 0.0
      %5772 = vmatpush2.msra.mxu0 0.0
      %5773 = vmatprep.subr.mxu0 0.0
      %5774 = vmatpush2.msra.mxu0 0.0
      %5775 = vmatprep.subr.mxu0 0.0
      %5776 = vmatpush2.msra.mxu0 0.0
      %5777 = vmatprep.subr.mxu0 0.0
      %5778 = vmatpush2.msra.mxu0 0.0
      %5779 = vmatprep.subr.mxu0 0.0
      %5780 = vmatpush2.msra.mxu0 0.0
      %5781 = vmatprep.subr.mxu0 0.0
      %5782 = vmatpush2.msra.mxu0 0.0
      %5783 = vmatprep.subr.mxu0 0.0
      %5784 = vmatpush2.msra.mxu0 0.0
      %5785 = vmatprep.mubr.f32.mxu0 0.0
      %v5786 = vand.u32 %v5579, 4294901760
      %5787 = vmatmul.mubr.f32.gmra.mxu0 %v5786
      %v5788 = vpop.f32.mrf.mxu0
      %v5789 = vadd.f32 %v5667, %v5788
      %v5790 = vpop.f32.mrf.mxu0
      %v5791 = vadd.f32 %v5669, %v5790
      %5792 = vdwg.mxu0
      %5793 = vmatprep.subr.mxu0 0.0
      %5794 = vmatpush1.msra.mxu0 0.0
      %5795 = vmatprep.subr.mxu0 0.0
      %5796 = vmatpush1.msra.mxu0 0.0
      %5797 = vmatprep.subr.mxu0 0.0
      %5798 = vmatpush1.msra.mxu0 0.0
      %5799 = vmatprep.subr.mxu0 0.0
      %5800 = vmatpush1.msra.mxu0 0.0
      %5801 = vmatprep.subr.mxu0 0.0
      %5802 = vmatpush1.msra.mxu0 0.0
      %5803 = vmatprep.subr.mxu0 0.0
      %5804 = vmatpush1.msra.mxu0 0.0
      %5805 = vmatprep.subr.mxu0 0.0
      %5806 = vmatpush1.msra.mxu0 0.0
      %5807 = vmatprep.subr.mxu0 0.0
      %5808 = vmatpush1.msra.mxu0 0.0
      %5809 = vmatprep.subr.mxu0 0.0
      %5810 = vmatpush1.msra.mxu0 0.0
      %5811 = vmatprep.subr.mxu0 0.0
      %5812 = vmatpush1.msra.mxu0 0.0
      %5813 = vmatprep.subr.mxu0 0.0
      %5814 = vmatpush1.msra.mxu0 0.0
      %v5815 = vand.u32 %v5583, 4294901760
      %v5816 = vsub.f32 %v5583, %v5815
      %5817 = vmatprep.subr.mxu0 %v5816
      %v5818 = vand.u32 %v5581, 4294901760
      %v5819 = vsub.f32 %v5581, %v5818
      %5820 = vmatpush1.msra.mxu0 %v5819
      %v5821 = vand.u32 %v5568, 4294901760
      %v5822 = vsub.f32 %v5568, %v5821
      %5823 = vmatprep.subr.mxu0 %v5822
      %v5824 = vand.u32 %v5567, 4294901760
      %v5825 = vsub.f32 %v5567, %v5824
      %5826 = vmatpush1.msra.mxu0 %v5825
      %v5827 = vand.u32 %v5566, 4294901760
      %v5828 = vsub.f32 %v5566, %v5827
      %5829 = vmatprep.subr.mxu0 %v5828
      %v5830 = vand.u32 %v5565, 4294901760
      %v5831 = vsub.f32 %v5565, %v5830
      %5832 = vmatpush1.msra.mxu0 %v5831
      %v5833 = vand.u32 %v5564, 4294901760
      %v5834 = vsub.f32 %v5564, %v5833
      %5835 = vmatprep.subr.mxu0 %v5834
      %v5836 = vand.u32 %v5563, 4294901760
      %v5837 = vsub.f32 %v5563, %v5836
      %5838 = vmatpush1.msra.mxu0 %v5837
      %v5839 = vand.u32 %v5562, 4294901760
      %v5840 = vsub.f32 %v5562, %v5839
      %5841 = vmatprep.subr.mxu0 %v5840
      %v5842 = vand.u32 %v5561, 4294901760
      %v5843 = vsub.f32 %v5561, %v5842
      %5844 = vmatpush1.msra.mxu0 %v5843
      %5845 = vmatprep.subr.mxu0 0.0
      %5846 = vmatpush2.msra.mxu0 0.0
      %5847 = vmatprep.subr.mxu0 0.0
      %5848 = vmatpush2.msra.mxu0 0.0
      %5849 = vmatprep.subr.mxu0 0.0
      %5850 = vmatpush2.msra.mxu0 0.0
      %5851 = vmatprep.subr.mxu0 0.0
      %5852 = vmatpush2.msra.mxu0 0.0
      %5853 = vmatprep.subr.mxu0 0.0
      %5854 = vmatpush2.msra.mxu0 0.0
      %5855 = vmatprep.subr.mxu0 0.0
      %5856 = vmatpush2.msra.mxu0 0.0
      %5857 = vmatprep.subr.mxu0 0.0
      %5858 = vmatpush2.msra.mxu0 0.0
      %5859 = vmatprep.subr.mxu0 0.0
      %5860 = vmatpush2.msra.mxu0 0.0
      %5861 = vmatprep.subr.mxu0 0.0
      %5862 = vmatpush2.msra.mxu0 0.0
      %5863 = vmatprep.subr.mxu0 0.0
      %5864 = vmatpush2.msra.mxu0 0.0
      %5865 = vmatprep.subr.mxu0 0.0
      %5866 = vmatpush2.msra.mxu0 0.0
      %5867 = vmatprep.subr.mxu0 0.0
      %5868 = vmatpush2.msra.mxu0 0.0
      %5869 = vmatprep.subr.mxu0 0.0
      %5870 = vmatpush2.msra.mxu0 0.0
      %5871 = vmatprep.subr.mxu0 0.0
      %5872 = vmatpush2.msra.mxu0 0.0
      %5873 = vmatprep.subr.mxu0 0.0
      %5874 = vmatpush2.msra.mxu0 0.0
      %5875 = vmatprep.subr.mxu0 0.0
      %5876 = vmatpush2.msra.mxu0 0.0
      %5877 = vmatprep.mubr.f32.mxu0 0.0
      %v5878 = vand.u32 %v5579, 4294901760
      %v5879 = vsub.f32 %v5579, %v5878
      %5880 = vmatmul.mubr.f32.gmra.mxu0 %v5879
      %v5881 = vpop.f32.mrf.mxu0
      %v5882 = vadd.f32 %v5789, %v5881
      %v5883 = vpop.f32.mrf.mxu0
      %v5884 = vadd.f32 %v5791, %v5883
      %5885 = vdwg.mxu0
      %5886 = vmatprep.subr.mxu0 0.0
      %5887 = vmatpush1.msra.mxu0 0.0
      %5888 = vmatprep.subr.mxu0 0.0
      %5889 = vmatpush1.msra.mxu0 0.0
      %5890 = vmatprep.subr.mxu0 0.0
      %5891 = vmatpush1.msra.mxu0 0.0
      %5892 = vmatprep.subr.mxu0 0.0
      %5893 = vmatpush1.msra.mxu0 0.0
      %5894 = vmatprep.subr.mxu0 0.0
      %5895 = vmatpush1.msra.mxu0 0.0
      %5896 = vmatprep.subr.mxu0 0.0
      %5897 = vmatpush1.msra.mxu0 0.0
      %5898 = vmatprep.subr.mxu0 0.0
      %5899 = vmatpush1.msra.mxu0 0.0
      %5900 = vmatprep.subr.mxu0 0.0
      %5901 = vmatpush1.msra.mxu0 0.0
      %5902 = vmatprep.subr.mxu0 0.0
      %5903 = vmatpush1.msra.mxu0 0.0
      %5904 = vmatprep.subr.mxu0 0.0
      %5905 = vmatpush1.msra.mxu0 0.0
      %5906 = vmatprep.subr.mxu0 0.0
      %5907 = vmatpush1.msra.mxu0 0.0
      %v5908 = vand.u32 %v5583, 4294901760
      %5909 = vmatprep.subr.mxu0 %v5908
      %v5910 = vand.u32 %v5581, 4294901760
      %5911 = vmatpush1.msra.mxu0 %v5910
      %v5912 = vand.u32 %v5568, 4294901760
      %5913 = vmatprep.subr.mxu0 %v5912
      %v5914 = vand.u32 %v5567, 4294901760
      %5915 = vmatpush1.msra.mxu0 %v5914
      %v5916 = vand.u32 %v5566, 4294901760
      %5917 = vmatprep.subr.mxu0 %v5916
      %v5918 = vand.u32 %v5565, 4294901760
      %5919 = vmatpush1.msra.mxu0 %v5918
      %v5920 = vand.u32 %v5564, 4294901760
      %5921 = vmatprep.subr.mxu0 %v5920
      %v5922 = vand.u32 %v5563, 4294901760
      %5923 = vmatpush1.msra.mxu0 %v5922
      %v5924 = vand.u32 %v5562, 4294901760
      %5925 = vmatprep.subr.mxu0 %v5924
      %v5926 = vand.u32 %v5561, 4294901760
      %5927 = vmatpush1.msra.mxu0 %v5926
      %5928 = vmatprep.subr.mxu0 0.0
      %5929 = vmatpush2.msra.mxu0 0.0
      %5930 = vmatprep.subr.mxu0 0.0
      %5931 = vmatpush2.msra.mxu0 0.0
      %5932 = vmatprep.subr.mxu0 0.0
      %5933 = vmatpush2.msra.mxu0 0.0
      %5934 = vmatprep.subr.mxu0 0.0
      %5935 = vmatpush2.msra.mxu0 0.0
      %5936 = vmatprep.subr.mxu0 0.0
      %5937 = vmatpush2.msra.mxu0 0.0
      %5938 = vmatprep.subr.mxu0 0.0
      %5939 = vmatpush2.msra.mxu0 0.0
      %5940 = vmatprep.subr.mxu0 0.0
      %5941 = vmatpush2.msra.mxu0 0.0
      %5942 = vmatprep.subr.mxu0 0.0
      %5943 = vmatpush2.msra.mxu0 0.0
      %5944 = vmatprep.subr.mxu0 0.0
      %5945 = vmatpush2.msra.mxu0 0.0
      %5946 = vmatprep.subr.mxu0 0.0
      %5947 = vmatpush2.msra.mxu0 0.0
      %5948 = vmatprep.subr.mxu0 0.0
      %5949 = vmatpush2.msra.mxu0 0.0
      %5950 = vmatprep.subr.mxu0 0.0
      %5951 = vmatpush2.msra.mxu0 0.0
      %5952 = vmatprep.subr.mxu0 0.0
      %5953 = vmatpush2.msra.mxu0 0.0
      %5954 = vmatprep.subr.mxu0 0.0
      %5955 = vmatpush2.msra.mxu0 0.0
      %5956 = vmatprep.subr.mxu0 0.0
      %5957 = vmatpush2.msra.mxu0 0.0
      %5958 = vmatprep.subr.mxu0 0.0
      %5959 = vmatpush2.msra.mxu0 0.0
      %5960 = vmatprep.mubr.f32.mxu0 0.0
      %v5961 = vand.u32 %v5579, 4294901760
      %v5962 = vsub.f32 %v5579, %v5961
      %v5963 = vand.u32 %v5962, 4294901760
      %5964 = vmatmul.mubr.f32.gmra.mxu0 %v5963
      %v5965 = vpop.f32.mrf.mxu0
      %v5966 = vadd.f32 %v5882, %v5965
      %v5967 = vpop.f32.mrf.mxu0
      %v5968 = vadd.f32 %v5884, %v5967
      %5969 = vdwg.mxu0
      %5970 = vmatprep.subr.mxu0 0.0
      %5971 = vmatpush1.msra.mxu0 0.0
      %5972 = vmatprep.subr.mxu0 0.0
      %5973 = vmatpush1.msra.mxu0 0.0
      %5974 = vmatprep.subr.mxu0 0.0
      %5975 = vmatpush1.msra.mxu0 0.0
      %5976 = vmatprep.subr.mxu0 0.0
      %5977 = vmatpush1.msra.mxu0 0.0
      %5978 = vmatprep.subr.mxu0 0.0
      %5979 = vmatpush1.msra.mxu0 0.0
      %5980 = vmatprep.subr.mxu0 0.0
      %5981 = vmatpush1.msra.mxu0 0.0
      %5982 = vmatprep.subr.mxu0 0.0
      %5983 = vmatpush1.msra.mxu0 0.0
      %5984 = vmatprep.subr.mxu0 0.0
      %5985 = vmatpush1.msra.mxu0 0.0
      %5986 = vmatprep.subr.mxu0 0.0
      %5987 = vmatpush1.msra.mxu0 0.0
      %5988 = vmatprep.subr.mxu0 0.0
      %5989 = vmatpush1.msra.mxu0 0.0
      %5990 = vmatprep.subr.mxu0 0.0
      %5991 = vmatpush1.msra.mxu0 0.0
      %v5992 = vand.u32 %v5583, 4294901760
      %v5993 = vsub.f32 %v5583, %v5992
      %v5994 = vand.u32 %v5993, 4294901760
      %5995 = vmatprep.subr.mxu0 %v5994
      %v5996 = vand.u32 %v5581, 4294901760
      %v5997 = vsub.f32 %v5581, %v5996
      %v5998 = vand.u32 %v5997, 4294901760
      %5999 = vmatpush1.msra.mxu0 %v5998
      %v6000 = vand.u32 %v5568, 4294901760
      %v6001 = vsub.f32 %v5568, %v6000
      %v6002 = vand.u32 %v6001, 4294901760
      %6003 = vmatprep.subr.mxu0 %v6002
      %v6004 = vand.u32 %v5567, 4294901760
      %v6005 = vsub.f32 %v5567, %v6004
      %v6006 = vand.u32 %v6005, 4294901760
      %6007 = vmatpush1.msra.mxu0 %v6006
      %v6008 = vand.u32 %v5566, 4294901760
      %v6009 = vsub.f32 %v5566, %v6008
      %v6010 = vand.u32 %v6009, 4294901760
      %6011 = vmatprep.subr.mxu0 %v6010
      %v6012 = vand.u32 %v5565, 4294901760
      %v6013 = vsub.f32 %v5565, %v6012
      %v6014 = vand.u32 %v6013, 4294901760
      %6015 = vmatpush1.msra.mxu0 %v6014
      %v6016 = vand.u32 %v5564, 4294901760
      %v6017 = vsub.f32 %v5564, %v6016
      %v6018 = vand.u32 %v6017, 4294901760
      %6019 = vmatprep.subr.mxu0 %v6018
      %v6020 = vand.u32 %v5563, 4294901760
      %v6021 = vsub.f32 %v5563, %v6020
      %v6022 = vand.u32 %v6021, 4294901760
      %6023 = vmatpush1.msra.mxu0 %v6022
      %v6024 = vand.u32 %v5562, 4294901760
      %v6025 = vsub.f32 %v5562, %v6024
      %v6026 = vand.u32 %v6025, 4294901760
      %6027 = vmatprep.subr.mxu0 %v6026
      %v6028 = vand.u32 %v5561, 4294901760
      %v6029 = vsub.f32 %v5561, %v6028
      %v6030 = vand.u32 %v6029, 4294901760
      %6031 = vmatpush1.msra.mxu0 %v6030
      %6032 = vmatprep.subr.mxu0 0.0
      %6033 = vmatpush2.msra.mxu0 0.0
      %6034 = vmatprep.subr.mxu0 0.0
      %6035 = vmatpush2.msra.mxu0 0.0
      %6036 = vmatprep.subr.mxu0 0.0
      %6037 = vmatpush2.msra.mxu0 0.0
      %6038 = vmatprep.subr.mxu0 0.0
      %6039 = vmatpush2.msra.mxu0 0.0
      %6040 = vmatprep.subr.mxu0 0.0
      %6041 = vmatpush2.msra.mxu0 0.0
      %6042 = vmatprep.subr.mxu0 0.0
      %6043 = vmatpush2.msra.mxu0 0.0
      %6044 = vmatprep.subr.mxu0 0.0
      %6045 = vmatpush2.msra.mxu0 0.0
      %6046 = vmatprep.subr.mxu0 0.0
      %6047 = vmatpush2.msra.mxu0 0.0
      %6048 = vmatprep.subr.mxu0 0.0
      %6049 = vmatpush2.msra.mxu0 0.0
      %6050 = vmatprep.subr.mxu0 0.0
      %6051 = vmatpush2.msra.mxu0 0.0
      %6052 = vmatprep.subr.mxu0 0.0
      %6053 = vmatpush2.msra.mxu0 0.0
      %6054 = vmatprep.subr.mxu0 0.0
      %6055 = vmatpush2.msra.mxu0 0.0
      %6056 = vmatprep.subr.mxu0 0.0
      %6057 = vmatpush2.msra.mxu0 0.0
      %6058 = vmatprep.subr.mxu0 0.0
      %6059 = vmatpush2.msra.mxu0 0.0
      %6060 = vmatprep.subr.mxu0 0.0
      %6061 = vmatpush2.msra.mxu0 0.0
      %6062 = vmatprep.subr.mxu0 0.0
      %6063 = vmatpush2.msra.mxu0 0.0
      %6064 = vmatprep.mubr.f32.mxu0 0.0
      %v6065 = vand.u32 %v5579, 4294901760
      %6066 = vmatmul.mubr.f32.gmra.mxu0 %v6065
      %v6067 = vpop.f32.mrf.mxu0
      %v6068 = vadd.f32 %v5966, %v6067
      %v6069 = vpop.f32.mrf.mxu0
      %v6070 = vadd.f32 %v5968, %v6069
      %6071 = vdwg.mxu0
      %6072 = vmatprep.subr.mxu0 0.0
      %6073 = vmatpush1.msra.mxu0 0.0
      %6074 = vmatprep.subr.mxu0 0.0
      %6075 = vmatpush1.msra.mxu0 0.0
      %6076 = vmatprep.subr.mxu0 0.0
      %6077 = vmatpush1.msra.mxu0 0.0
      %6078 = vmatprep.subr.mxu0 0.0
      %6079 = vmatpush1.msra.mxu0 0.0
      %6080 = vmatprep.subr.mxu0 0.0
      %6081 = vmatpush1.msra.mxu0 0.0
      %6082 = vmatprep.subr.mxu0 0.0
      %6083 = vmatpush1.msra.mxu0 0.0
      %6084 = vmatprep.subr.mxu0 0.0
      %6085 = vmatpush1.msra.mxu0 0.0
      %6086 = vmatprep.subr.mxu0 0.0
      %6087 = vmatpush1.msra.mxu0 0.0
      %6088 = vmatprep.subr.mxu0 0.0
      %6089 = vmatpush1.msra.mxu0 0.0
      %6090 = vmatprep.subr.mxu0 0.0
      %6091 = vmatpush1.msra.mxu0 0.0
      %6092 = vmatprep.subr.mxu0 0.0
      %6093 = vmatpush1.msra.mxu0 0.0
      %v6094 = vand.u32 %v5583, 4294901760
      %6095 = vmatprep.subr.mxu0 %v6094
      %v6096 = vand.u32 %v5581, 4294901760
      %6097 = vmatpush1.msra.mxu0 %v6096
      %v6098 = vand.u32 %v5568, 4294901760
      %6099 = vmatprep.subr.mxu0 %v6098
      %v6100 = vand.u32 %v5567, 4294901760
      %6101 = vmatpush1.msra.mxu0 %v6100
      %v6102 = vand.u32 %v5566, 4294901760
      %6103 = vmatprep.subr.mxu0 %v6102
      %v6104 = vand.u32 %v5565, 4294901760
      %6105 = vmatpush1.msra.mxu0 %v6104
      %v6106 = vand.u32 %v5564, 4294901760
      %6107 = vmatprep.subr.mxu0 %v6106
      %v6108 = vand.u32 %v5563, 4294901760
      %6109 = vmatpush1.msra.mxu0 %v6108
      %v6110 = vand.u32 %v5562, 4294901760
      %6111 = vmatprep.subr.mxu0 %v6110
      %v6112 = vand.u32 %v5561, 4294901760
      %6113 = vmatpush1.msra.mxu0 %v6112
      %6114 = vmatprep.subr.mxu0 0.0
      %6115 = vmatpush2.msra.mxu0 0.0
      %6116 = vmatprep.subr.mxu0 0.0
      %6117 = vmatpush2.msra.mxu0 0.0
      %6118 = vmatprep.subr.mxu0 0.0
      %6119 = vmatpush2.msra.mxu0 0.0
      %6120 = vmatprep.subr.mxu0 0.0
      %6121 = vmatpush2.msra.mxu0 0.0
      %6122 = vmatprep.subr.mxu0 0.0
      %6123 = vmatpush2.msra.mxu0 0.0
      %6124 = vmatprep.subr.mxu0 0.0
      %6125 = vmatpush2.msra.mxu0 0.0
      %6126 = vmatprep.subr.mxu0 0.0
      %6127 = vmatpush2.msra.mxu0 0.0
      %6128 = vmatprep.subr.mxu0 0.0
      %6129 = vmatpush2.msra.mxu0 0.0
      %6130 = vmatprep.subr.mxu0 0.0
      %6131 = vmatpush2.msra.mxu0 0.0
      %6132 = vmatprep.subr.mxu0 0.0
      %6133 = vmatpush2.msra.mxu0 0.0
      %6134 = vmatprep.subr.mxu0 0.0
      %6135 = vmatpush2.msra.mxu0 0.0
      %6136 = vmatprep.subr.mxu0 0.0
      %6137 = vmatpush2.msra.mxu0 0.0
      %6138 = vmatprep.subr.mxu0 0.0
      %6139 = vmatpush2.msra.mxu0 0.0
      %6140 = vmatprep.subr.mxu0 0.0
      %6141 = vmatpush2.msra.mxu0 0.0
      %6142 = vmatprep.subr.mxu0 0.0
      %6143 = vmatpush2.msra.mxu0 0.0
      %6144 = vmatprep.subr.mxu0 0.0
      %6145 = vmatpush2.msra.mxu0 0.0
      %6146 = vmatprep.mubr.f32.mxu0 0.0
      %v6147 = vand.u32 %v5579, 4294901760
      %6148 = vmatmul.mubr.f32.gmra.mxu0 %v6147
      %v6149 = vpop.f32.mrf.mxu0
      %v6150 = vadd.f32 %v6068, %v6149
      %v6151 = vpop.f32.mrf.mxu0
      %v6152 = vadd.f32 %v6070, %v6151
      %6153 = vdwg.mxu0
      %s6154 = scalar_lea.vmem %s2, 4
      %v6155 = vld [vmem:[%s6154] sm:$0xf]
      %6157 = vset.pattern.permute.xlu0 0
      %6158 = vperm.xlu0 %6157, %v6155
      %v6159 = vpop.permute.xlu0 %6158
      %v6161 = vmul.f32 %v6150, %v6159
      %v6162 = vmul.f32 %v6152, %v6159
      %s6163 = scalar_lea.vmem %s3, 4
      %v6164 = vld [vmem:[%s6163] sm:$0xf]
      %6166 = vset.pattern.permute.xlu0 0
      %6167 = vperm.xlu0 %6166, %v6164
      %v6168 = vpop.permute.xlu0 %6167
      %v6170 = vadd.f32 %v6161, %v6168
      %v6171 = vadd.f32 %v6162, %v6168
      %v6172 = vmax.f32 %v6170, 0.0
      %v6173 = vmax.f32 %v6171, 0.0
      %6175 = vrot.lane.b32.xlu0 %v6172, 112
      %v6176 = vpop.permute.xlu0 %6175
      %6178 = vrot.lane.b32.xlu0 %v6172, 96
      %v6179 = vpop.permute.xlu0 %6178
      %6181 = vrot.lane.b32.xlu0 %v6172, 80
      %v6182 = vpop.permute.xlu0 %6181
      %6184 = vrot.lane.b32.xlu0 %v6172, 64
      %v6185 = vpop.permute.xlu0 %6184
      %6187 = vrot.lane.b32.xlu0 %v6172, 48
      %v6188 = vpop.permute.xlu0 %6187
      %6190 = vrot.lane.b32.xlu0 %v6172, 32
      %v6191 = vpop.permute.xlu0 %6190
      %6193 = vrot.lane.b32.xlu0 %v6172, 16
      %v6194 = vpop.permute.xlu0 %6193
      %6197 = vrot.lane.b32.xlu0 %v6173, 112
      %v6198 = vpop.permute.xlu0 %6197
      %6200 = vrot.lane.b32.xlu0 %v6173, 96
      %v6201 = vpop.permute.xlu0 %6200
      %6203 = vrot.lane.b32.xlu0 %v6173, 80
      %v6204 = vpop.permute.xlu0 %6203
      %6206 = vrot.lane.b32.xlu0 %v6173, 64
      %v6207 = vpop.permute.xlu0 %6206
      %6209 = vrot.lane.b32.xlu0 %v6173, 48
      %v6210 = vpop.permute.xlu0 %6209
      %6212 = vrot.lane.b32.xlu0 %v6173, 32
      %v6213 = vpop.permute.xlu0 %6212
      %6215 = vrot.lane.b32.xlu0 %v6173, 16
      %v6216 = vpop.permute.xlu0 %6215
      %v6218 = vcombine.low %v6172, %v6179
      %v6220 = vunpack.c.l.s4 1983009808
      %v6221 = vunpack.c.0.s8 %v6220
      %v6222 = vlaneseq
      %v6223 = vshrl.u32 %v6222, 7
      %v6224 = vsub.s32 %v6221, %v6223
      %v6225 = vrot.slane %v6218, %v6224
      %v6226 = vcombine.low %v6176, %v6182
      %v6228 = vunpack.c.l.s4 1983009808
      %v6229 = vunpack.c.0.s8 %v6228
      %v6230 = vlaneseq
      %v6231 = vshrl.u32 %v6230, 7
      %v6232 = vsub.s32 %v6229, %v6231
      %v6233 = vrot.slane %v6226, %v6232
      %v6234 = vcombine.low %v6185, %v6191
      %v6236 = vunpack.c.l.s4 1983009808
      %v6237 = vunpack.c.0.s8 %v6236
      %v6238 = vlaneseq
      %v6239 = vshrl.u32 %v6238, 7
      %v6240 = vsub.s32 %v6237, %v6239
      %v6241 = vrot.slane %v6234, %v6240
      %v6242 = vcombine.low %v6188, %v6194
      %v6244 = vunpack.c.l.s4 1983009808
      %v6245 = vunpack.c.0.s8 %v6244
      %v6246 = vlaneseq
      %v6247 = vshrl.u32 %v6246, 7
      %v6248 = vsub.s32 %v6245, %v6247
      %v6249 = vrot.slane %v6242, %v6248
      %v6250 = vcombine.low %v6225, %v6233
      %v6251 = vcombine.high %v6225, %v6233
      %v6253 = vunpack.c.l.s4 1934713408
      %v6254 = vunpack.c.0.s8 %v6253
      %v6255 = vlaneseq
      %v6256 = vshrl.u32 %v6255, 7
      %v6257 = vsub.s32 %v6254, %v6256
      %v6258 = vrot.slane %v6250, %v6257
      %v6260 = vunpack.c.l.s4 1934713408
      %v6261 = vunpack.c.0.s8 %v6260
      %v6262 = vlaneseq
      %v6263 = vshrl.u32 %v6262, 7
      %v6264 = vsub.s32 %v6261, %v6263
      %v6265 = vrot.slane %v6251, %v6264
      %v6266 = vcombine.low %v6241, %v6249
      %v6267 = vcombine.high %v6241, %v6249
      %v6269 = vunpack.c.l.s4 1934713408
      %v6270 = vunpack.c.0.s8 %v6269
      %v6271 = vlaneseq
      %v6272 = vshrl.u32 %v6271, 7
      %v6273 = vsub.s32 %v6270, %v6272
      %v6274 = vrot.slane %v6266, %v6273
      %v6276 = vunpack.c.l.s4 1934713408
      %v6277 = vunpack.c.0.s8 %v6276
      %v6278 = vlaneseq
      %v6279 = vshrl.u32 %v6278, 7
      %v6280 = vsub.s32 %v6277, %v6279
      %v6281 = vrot.slane %v6267, %v6280
      %v6282 = vcombine.low %v6258, %v6274
      %v6283 = vcombine.high %v6258, %v6274
      %v6284 = vcombine.low %v6265, %v6281
      %v6285 = vcombine.high %v6265, %v6281
      %v6286 = vcombine.low %v6173, %v6201
      %v6288 = vunpack.c.l.s4 1983009808
      %v6289 = vunpack.c.0.s8 %v6288
      %v6290 = vlaneseq
      %v6291 = vshrl.u32 %v6290, 7
      %v6292 = vsub.s32 %v6289, %v6291
      %v6293 = vrot.slane %v6286, %v6292
      %v6294 = vcombine.low %v6198, %v6204
      %v6296 = vunpack.c.l.s4 1983009808
      %v6297 = vunpack.c.0.s8 %v6296
      %v6298 = vlaneseq
      %v6299 = vshrl.u32 %v6298, 7
      %v6300 = vsub.s32 %v6297, %v6299
      %v6301 = vrot.slane %v6294, %v6300
      %v6302 = vcombine.low %v6207, %v6213
      %v6304 = vunpack.c.l.s4 1983009808
      %v6305 = vunpack.c.0.s8 %v6304
      %v6306 = vlaneseq
      %v6307 = vshrl.u32 %v6306, 7
      %v6308 = vsub.s32 %v6305, %v6307
      %v6309 = vrot.slane %v6302, %v6308
      %v6310 = vcombine.low %v6210, %v6216
      %v6312 = vunpack.c.l.s4 1983009808
      %v6313 = vunpack.c.0.s8 %v6312
      %v6314 = vlaneseq
      %v6315 = vshrl.u32 %v6314, 7
      %v6316 = vsub.s32 %v6313, %v6315
      %v6317 = vrot.slane %v6310, %v6316
      %v6318 = vcombine.low %v6293, %v6301
      %v6319 = vcombine.high %v6293, %v6301
      %v6321 = vunpack.c.l.s4 1934713408
      %v6322 = vunpack.c.0.s8 %v6321
      %v6323 = vlaneseq
      %v6324 = vshrl.u32 %v6323, 7
      %v6325 = vsub.s32 %v6322, %v6324
      %v6326 = vrot.slane %v6318, %v6325
      %v6328 = vunpack.c.l.s4 1934713408
      %v6329 = vunpack.c.0.s8 %v6328
      %v6330 = vlaneseq
      %v6331 = vshrl.u32 %v6330, 7
      %v6332 = vsub.s32 %v6329, %v6331
      %v6333 = vrot.slane %v6319, %v6332
      %v6334 = vcombine.low %v6309, %v6317
      %v6335 = vcombine.high %v6309, %v6317
      %v6337 = vunpack.c.l.s4 1934713408
      %v6338 = vunpack.c.0.s8 %v6337
      %v6339 = vlaneseq
      %v6340 = vshrl.u32 %v6339, 7
      %v6341 = vsub.s32 %v6338, %v6340
      %v6342 = vrot.slane %v6334, %v6341
      %v6344 = vunpack.c.l.s4 1934713408
      %v6345 = vunpack.c.0.s8 %v6344
      %v6346 = vlaneseq
      %v6347 = vshrl.u32 %v6346, 7
      %v6348 = vsub.s32 %v6345, %v6347
      %v6349 = vrot.slane %v6335, %v6348
      %v6350 = vcombine.low %v6326, %v6342
      %v6351 = vcombine.high %v6326, %v6342
      %v6352 = vcombine.low %v6333, %v6349
      %v6353 = vcombine.high %v6333, %v6349
      %6362 = vrot.lane.b32.xlu0 %v6282, 1
      %v6363 = vpop.permute.xlu0 %6362
      %6364 = vrot.lane.b32.xlu0 %v6350, 1
      %v6365 = vpop.permute.xlu0 %6364
      %6366 = vrot.lane.b32.xlu0 %v6283, 1
      %v6367 = vpop.permute.xlu0 %6366
      %6368 = vrot.lane.b32.xlu0 %v6351, 1
      %v6369 = vpop.permute.xlu0 %6368
      %6370 = vrot.lane.b32.xlu0 %v6284, 1
      %v6371 = vpop.permute.xlu0 %6370
      %6372 = vrot.lane.b32.xlu0 %v6352, 1
      %v6373 = vpop.permute.xlu0 %6372
      %6374 = vrot.lane.b32.xlu0 %v6285, 1
      %v6375 = vpop.permute.xlu0 %6374
      %6376 = vrot.lane.b32.xlu0 %v6353, 1
      %v6377 = vpop.permute.xlu0 %6376
      %6386 = vst.msk [vmem:[#allocation2 + $0x1] sm:$0xff] %vm419, %v6363
      %6387 = vst.msk [vmem:[#allocation2 + $0x9] sm:$0xff] %vm419, %v6365
      %6388 = vst.msk [vmem:[#allocation2 + $0x19] sm:$0xff] %vm419, %v6367
      %6389 = vst.msk [vmem:[#allocation2 + $0x21] sm:$0xff] %vm419, %v6369
      %6390 = vst.msk [vmem:[#allocation2 + $0x31] sm:$0xff] %vm419, %v6371
      %6391 = vst.msk [vmem:[#allocation2 + $0x39] sm:$0xff] %vm419, %v6373
      %6392 = vst.msk [vmem:[#allocation2 + $0x49] sm:$0xff] %vm419, %v6375
      %6393 = vst.msk [vmem:[#allocation2 + $0x51] sm:$0xff] %vm419, %v6377
      %v6394 = vld [vmem:[#allocation2] sm:$0xff]
      %v6395 = vld [vmem:[#allocation2 + $0x8] sm:$0xff]
      %v6396 = vld [vmem:[#allocation2 + $0x10] sm:$0x3]
      %v6397 = vld [vmem:[#allocation2 + $0x18] sm:$0xff]
      %v6398 = vld [vmem:[#allocation2 + $0x20] sm:$0xff]
      %v6399 = vld [vmem:[#allocation2 + $0x28] sm:$0x3]
      %v6400 = vld [vmem:[#allocation2 + $0x30] sm:$0xff]
      %v6401 = vld [vmem:[#allocation2 + $0x38] sm:$0xff]
      %v6402 = vld [vmem:[#allocation2 + $0x40] sm:$0x3]
      %v6403 = vld [vmem:[#allocation2 + $0x48] sm:$0xff]
      %v6404 = vld [vmem:[#allocation2 + $0x50] sm:$0xff]
      %v6405 = vld [vmem:[#allocation2 + $0x58] sm:$0x3]
      %v6406 = vcombine.low %v6394, %v6400
      %v6407 = vcombine.high %v6394, %v6400
      %v6409 = vunpack.c.l.s4 1983009808
      %v6410 = vunpack.c.0.s8 %v6409
      %v6411 = vlaneseq
      %v6412 = vshrl.u32 %v6411, 7
      %v6413 = vsub.s32 %v6410, %v6412
      %v6414 = vrot.slane %v6406, %v6413
      %v6416 = vunpack.c.l.s4 1983009808
      %v6417 = vunpack.c.0.s8 %v6416
      %v6418 = vlaneseq
      %v6419 = vshrl.u32 %v6418, 7
      %v6420 = vsub.s32 %v6417, %v6419
      %v6421 = vrot.slane %v6407, %v6420
      %v6422 = vcombine.low %v6397, %v6403
      %v6423 = vcombine.high %v6397, %v6403
      %v6425 = vunpack.c.l.s4 1983009808
      %v6426 = vunpack.c.0.s8 %v6425
      %v6427 = vlaneseq
      %v6428 = vshrl.u32 %v6427, 7
      %v6429 = vsub.s32 %v6426, %v6428
      %v6430 = vrot.slane %v6422, %v6429
      %v6432 = vunpack.c.l.s4 1983009808
      %v6433 = vunpack.c.0.s8 %v6432
      %v6434 = vlaneseq
      %v6435 = vshrl.u32 %v6434, 7
      %v6436 = vsub.s32 %v6433, %v6435
      %v6437 = vrot.slane %v6423, %v6436
      %v6438 = vcombine.low %v6414, %v6430
      %v6439 = vcombine.high %v6414, %v6430
      %v6441 = vunpack.c.l.s4 1934713408
      %v6442 = vunpack.c.0.s8 %v6441
      %v6443 = vlaneseq
      %v6444 = vshrl.u32 %v6443, 7
      %v6445 = vsub.s32 %v6442, %v6444
      %v6446 = vrot.slane %v6438, %v6445
      %v6448 = vunpack.c.l.s4 1934713408
      %v6449 = vunpack.c.0.s8 %v6448
      %v6450 = vlaneseq
      %v6451 = vshrl.u32 %v6450, 7
      %v6452 = vsub.s32 %v6449, %v6451
      %v6453 = vrot.slane %v6439, %v6452
      %v6454 = vcombine.low %v6421, %v6437
      %v6455 = vcombine.high %v6421, %v6437
      %v6457 = vunpack.c.l.s4 1934713408
      %v6458 = vunpack.c.0.s8 %v6457
      %v6459 = vlaneseq
      %v6460 = vshrl.u32 %v6459, 7
      %v6461 = vsub.s32 %v6458, %v6460
      %v6462 = vrot.slane %v6454, %v6461
      %v6464 = vunpack.c.l.s4 1934713408
      %v6465 = vunpack.c.0.s8 %v6464
      %v6466 = vlaneseq
      %v6467 = vshrl.u32 %v6466, 7
      %v6468 = vsub.s32 %v6465, %v6467
      %v6469 = vrot.slane %v6455, %v6468
      %v6470 = vcombine.high %v6446, 0.0
      %v6471 = vcombine.high %v6453, 0.0
      %v6472 = vcombine.high %v6462, 0.0
      %v6473 = vcombine.high %v6469, 0.0
      %v6474 = vcombine.low %v6395, %v6401
      %v6475 = vcombine.high %v6395, %v6401
      %v6477 = vunpack.c.l.s4 1983009808
      %v6478 = vunpack.c.0.s8 %v6477
      %v6479 = vlaneseq
      %v6480 = vshrl.u32 %v6479, 7
      %v6481 = vsub.s32 %v6478, %v6480
      %v6482 = vrot.slane %v6474, %v6481
      %v6484 = vunpack.c.l.s4 1983009808
      %v6485 = vunpack.c.0.s8 %v6484
      %v6486 = vlaneseq
      %v6487 = vshrl.u32 %v6486, 7
      %v6488 = vsub.s32 %v6485, %v6487
      %v6489 = vrot.slane %v6475, %v6488
      %v6490 = vcombine.low %v6398, %v6404
      %v6491 = vcombine.high %v6398, %v6404
      %v6493 = vunpack.c.l.s4 1983009808
      %v6494 = vunpack.c.0.s8 %v6493
      %v6495 = vlaneseq
      %v6496 = vshrl.u32 %v6495, 7
      %v6497 = vsub.s32 %v6494, %v6496
      %v6498 = vrot.slane %v6490, %v6497
      %v6500 = vunpack.c.l.s4 1983009808
      %v6501 = vunpack.c.0.s8 %v6500
      %v6502 = vlaneseq
      %v6503 = vshrl.u32 %v6502, 7
      %v6504 = vsub.s32 %v6501, %v6503
      %v6505 = vrot.slane %v6491, %v6504
      %v6506 = vcombine.low %v6482, %v6498
      %v6507 = vcombine.high %v6482, %v6498
      %v6509 = vunpack.c.l.s4 1934713408
      %v6510 = vunpack.c.0.s8 %v6509
      %v6511 = vlaneseq
      %v6512 = vshrl.u32 %v6511, 7
      %v6513 = vsub.s32 %v6510, %v6512
      %v6514 = vrot.slane %v6506, %v6513
      %v6516 = vunpack.c.l.s4 1934713408
      %v6517 = vunpack.c.0.s8 %v6516
      %v6518 = vlaneseq
      %v6519 = vshrl.u32 %v6518, 7
      %v6520 = vsub.s32 %v6517, %v6519
      %v6521 = vrot.slane %v6507, %v6520
      %v6522 = vcombine.low %v6489, %v6505
      %v6523 = vcombine.high %v6489, %v6505
      %v6525 = vunpack.c.l.s4 1934713408
      %v6526 = vunpack.c.0.s8 %v6525
      %v6527 = vlaneseq
      %v6528 = vshrl.u32 %v6527, 7
      %v6529 = vsub.s32 %v6526, %v6528
      %v6530 = vrot.slane %v6522, %v6529
      %v6532 = vunpack.c.l.s4 1934713408
      %v6533 = vunpack.c.0.s8 %v6532
      %v6534 = vlaneseq
      %v6535 = vshrl.u32 %v6534, 7
      %v6536 = vsub.s32 %v6533, %v6535
      %v6537 = vrot.slane %v6523, %v6536
      %v6538 = vcombine.high %v6514, 0.0
      %v6539 = vcombine.high %v6521, 0.0
      %v6540 = vcombine.high %v6530, 0.0
      %v6541 = vcombine.high %v6537, 0.0
      %6543 = vrot.lane.b32.xlu0 %v6470, 16
      %v6544 = vpop.permute.xlu0 %6543
      %6547 = vrot.lane.b32.xlu0 %v6453, 32
      %v6548 = vpop.permute.xlu0 %6547
      %6551 = vrot.lane.b32.xlu0 %v6471, 48
      %v6552 = vpop.permute.xlu0 %6551
      %6555 = vrot.lane.b32.xlu0 %v6462, 64
      %v6556 = vpop.permute.xlu0 %6555
      %6559 = vrot.lane.b32.xlu0 %v6472, 80
      %v6560 = vpop.permute.xlu0 %6559
      %6563 = vrot.lane.b32.xlu0 %v6469, 96
      %v6564 = vpop.permute.xlu0 %6563
      %6567 = vrot.lane.b32.xlu0 %v6473, 112
      %v6568 = vpop.permute.xlu0 %6567
      %6571 = vrot.lane.b32.xlu0 %v6538, 16
      %v6572 = vpop.permute.xlu0 %6571
      %6575 = vrot.lane.b32.xlu0 %v6521, 32
      %v6576 = vpop.permute.xlu0 %6575
      %6579 = vrot.lane.b32.xlu0 %v6539, 48
      %v6580 = vpop.permute.xlu0 %6579
      %6583 = vrot.lane.b32.xlu0 %v6530, 64
      %v6584 = vpop.permute.xlu0 %6583
      %6587 = vrot.lane.b32.xlu0 %v6540, 80
      %v6588 = vpop.permute.xlu0 %6587
      %6591 = vrot.lane.b32.xlu0 %v6537, 96
      %v6592 = vpop.permute.xlu0 %6591
      %6595 = vrot.lane.b32.xlu0 %v6541, 112
      %v6596 = vpop.permute.xlu0 %6595
      %v6598 = vsel %vm630, %v6446, %v6544
      %v6599 = vsel %vm632, %v6598, %v6548
      %v6600 = vsel %vm634, %v6599, %v6552
      %v6601 = vsel %vm636, %v6600, %v6556
      %v6602 = vsel %vm638, %v6601, %v6560
      %v6603 = vsel %vm640, %v6602, %v6564
      %v6604 = vsel %vm642, %v6603, %v6568
      %v6605 = vsel %vm630, %v6514, %v6572
      %v6606 = vsel %vm632, %v6605, %v6576
      %v6607 = vsel %vm634, %v6606, %v6580
      %v6608 = vsel %vm636, %v6607, %v6584
      %v6609 = vsel %vm638, %v6608, %v6588
      %v6610 = vsel %vm640, %v6609, %v6592
      %v6611 = vsel %vm642, %v6610, %v6596
      %v6614 = vcombine.low %v6604, %v6611
      %6616 = vst [vmem:[#allocation3] sm:$0xff] %v6614
      %6625 = vrot.lane.b32.xlu0 %v6394, 127
      %v6626 = vpop.permute.xlu0 %6625
      %6627 = vrot.lane.b32.xlu0 %v6395, 127
      %v6628 = vpop.permute.xlu0 %6627
      %6629 = vrot.lane.b32.xlu0 %v6397, 127
      %v6630 = vpop.permute.xlu0 %6629
      %6631 = vrot.lane.b32.xlu0 %v6398, 127
      %v6632 = vpop.permute.xlu0 %6631
      %6633 = vrot.lane.b32.xlu0 %v6400, 127
      %v6634 = vpop.permute.xlu0 %6633
      %6635 = vrot.lane.b32.xlu0 %v6401, 127
      %v6636 = vpop.permute.xlu0 %6635
      %6637 = vrot.lane.b32.xlu0 %v6403, 127
      %v6638 = vpop.permute.xlu0 %6637
      %6639 = vrot.lane.b32.xlu0 %v6404, 127
      %v6640 = vpop.permute.xlu0 %6639
      %v6649 = vcombine.low %v6626, %v6634
      %v6650 = vcombine.high %v6626, %v6634
      %v6652 = vunpack.c.l.s4 1983009808
      %v6653 = vunpack.c.0.s8 %v6652
      %v6654 = vlaneseq
      %v6655 = vshrl.u32 %v6654, 7
      %v6656 = vsub.s32 %v6653, %v6655
      %v6657 = vrot.slane %v6649, %v6656
      %v6659 = vunpack.c.l.s4 1983009808
      %v6660 = vunpack.c.0.s8 %v6659
      %v6661 = vlaneseq
      %v6662 = vshrl.u32 %v6661, 7
      %v6663 = vsub.s32 %v6660, %v6662
      %v6664 = vrot.slane %v6650, %v6663
      %v6665 = vcombine.low %v6630, %v6638
      %v6666 = vcombine.high %v6630, %v6638
      %v6668 = vunpack.c.l.s4 1983009808
      %v6669 = vunpack.c.0.s8 %v6668
      %v6670 = vlaneseq
      %v6671 = vshrl.u32 %v6670, 7
      %v6672 = vsub.s32 %v6669, %v6671
      %v6673 = vrot.slane %v6665, %v6672
      %v6675 = vunpack.c.l.s4 1983009808
      %v6676 = vunpack.c.0.s8 %v6675
      %v6677 = vlaneseq
      %v6678 = vshrl.u32 %v6677, 7
      %v6679 = vsub.s32 %v6676, %v6678
      %v6680 = vrot.slane %v6666, %v6679
      %v6681 = vcombine.low %v6657, %v6673
      %v6682 = vcombine.high %v6657, %v6673
      %v6684 = vunpack.c.l.s4 1934713408
      %v6685 = vunpack.c.0.s8 %v6684
      %v6686 = vlaneseq
      %v6687 = vshrl.u32 %v6686, 7
      %v6688 = vsub.s32 %v6685, %v6687
      %v6689 = vrot.slane %v6681, %v6688
      %v6691 = vunpack.c.l.s4 1934713408
      %v6692 = vunpack.c.0.s8 %v6691
      %v6693 = vlaneseq
      %v6694 = vshrl.u32 %v6693, 7
      %v6695 = vsub.s32 %v6692, %v6694
      %v6696 = vrot.slane %v6682, %v6695
      %v6697 = vcombine.low %v6664, %v6680
      %v6698 = vcombine.high %v6664, %v6680
      %v6700 = vunpack.c.l.s4 1934713408
      %v6701 = vunpack.c.0.s8 %v6700
      %v6702 = vlaneseq
      %v6703 = vshrl.u32 %v6702, 7
      %v6704 = vsub.s32 %v6701, %v6703
      %v6705 = vrot.slane %v6697, %v6704
      %v6707 = vunpack.c.l.s4 1934713408
      %v6708 = vunpack.c.0.s8 %v6707
      %v6709 = vlaneseq
      %v6710 = vshrl.u32 %v6709, 7
      %v6711 = vsub.s32 %v6708, %v6710
      %v6712 = vrot.slane %v6698, %v6711
      %v6713 = vcombine.high %v6689, 0.0
      %v6714 = vcombine.high %v6696, 0.0
      %v6715 = vcombine.high %v6705, 0.0
      %v6716 = vcombine.high %v6712, 0.0
      %v6717 = vcombine.low %v6628, %v6636
      %v6718 = vcombine.high %v6628, %v6636
      %v6720 = vunpack.c.l.s4 1983009808
      %v6721 = vunpack.c.0.s8 %v6720
      %v6722 = vlaneseq
      %v6723 = vshrl.u32 %v6722, 7
      %v6724 = vsub.s32 %v6721, %v6723
      %v6725 = vrot.slane %v6717, %v6724
      %v6727 = vunpack.c.l.s4 1983009808
      %v6728 = vunpack.c.0.s8 %v6727
      %v6729 = vlaneseq
      %v6730 = vshrl.u32 %v6729, 7
      %v6731 = vsub.s32 %v6728, %v6730
      %v6732 = vrot.slane %v6718, %v6731
      %v6733 = vcombine.low %v6632, %v6640
      %v6734 = vcombine.high %v6632, %v6640
      %v6736 = vunpack.c.l.s4 1983009808
      %v6737 = vunpack.c.0.s8 %v6736
      %v6738 = vlaneseq
      %v6739 = vshrl.u32 %v6738, 7
      %v6740 = vsub.s32 %v6737, %v6739
      %v6741 = vrot.slane %v6733, %v6740
      %v6743 = vunpack.c.l.s4 1983009808
      %v6744 = vunpack.c.0.s8 %v6743
      %v6745 = vlaneseq
      %v6746 = vshrl.u32 %v6745, 7
      %v6747 = vsub.s32 %v6744, %v6746
      %v6748 = vrot.slane %v6734, %v6747
      %v6749 = vcombine.low %v6725, %v6741
      %v6750 = vcombine.high %v6725, %v6741
      %v6752 = vunpack.c.l.s4 1934713408
      %v6753 = vunpack.c.0.s8 %v6752
      %v6754 = vlaneseq
      %v6755 = vshrl.u32 %v6754, 7
      %v6756 = vsub.s32 %v6753, %v6755
      %v6757 = vrot.slane %v6749, %v6756
      %v6759 = vunpack.c.l.s4 1934713408
      %v6760 = vunpack.c.0.s8 %v6759
      %v6761 = vlaneseq
      %v6762 = vshrl.u32 %v6761, 7
      %v6763 = vsub.s32 %v6760, %v6762
      %v6764 = vrot.slane %v6750, %v6763
      %v6765 = vcombine.low %v6732, %v6748
      %v6766 = vcombine.high %v6732, %v6748
      %v6768 = vunpack.c.l.s4 1934713408
      %v6769 = vunpack.c.0.s8 %v6768
      %v6770 = vlaneseq
      %v6771 = vshrl.u32 %v6770, 7
      %v6772 = vsub.s32 %v6769, %v6771
      %v6773 = vrot.slane %v6765, %v6772
      %v6775 = vunpack.c.l.s4 1934713408
      %v6776 = vunpack.c.0.s8 %v6775
      %v6777 = vlaneseq
      %v6778 = vshrl.u32 %v6777, 7
      %v6779 = vsub.s32 %v6776, %v6778
      %v6780 = vrot.slane %v6766, %v6779
      %v6781 = vcombine.high %v6757, 0.0
      %v6782 = vcombine.high %v6764, 0.0
      %v6783 = vcombine.high %v6773, 0.0
      %v6784 = vcombine.high %v6780, 0.0
      %6786 = vrot.lane.b32.xlu0 %v6713, 16
      %v6787 = vpop.permute.xlu0 %6786
      %6790 = vrot.lane.b32.xlu0 %v6696, 32
      %v6791 = vpop.permute.xlu0 %6790
      %6794 = vrot.lane.b32.xlu0 %v6714, 48
      %v6795 = vpop.permute.xlu0 %6794
      %6798 = vrot.lane.b32.xlu0 %v6705, 64
      %v6799 = vpop.permute.xlu0 %6798
      %6802 = vrot.lane.b32.xlu0 %v6715, 80
      %v6803 = vpop.permute.xlu0 %6802
      %6806 = vrot.lane.b32.xlu0 %v6712, 96
      %v6807 = vpop.permute.xlu0 %6806
      %6810 = vrot.lane.b32.xlu0 %v6716, 112
      %v6811 = vpop.permute.xlu0 %6810
      %6814 = vrot.lane.b32.xlu0 %v6781, 16
      %v6815 = vpop.permute.xlu0 %6814
      %6818 = vrot.lane.b32.xlu0 %v6764, 32
      %v6819 = vpop.permute.xlu0 %6818
      %6822 = vrot.lane.b32.xlu0 %v6782, 48
      %v6823 = vpop.permute.xlu0 %6822
      %6826 = vrot.lane.b32.xlu0 %v6773, 64
      %v6827 = vpop.permute.xlu0 %6826
      %6830 = vrot.lane.b32.xlu0 %v6783, 80
      %v6831 = vpop.permute.xlu0 %6830
      %6834 = vrot.lane.b32.xlu0 %v6780, 96
      %v6835 = vpop.permute.xlu0 %6834
      %6838 = vrot.lane.b32.xlu0 %v6784, 112
      %v6839 = vpop.permute.xlu0 %6838
      %v6841 = vsel %vm630, %v6689, %v6787
      %v6842 = vsel %vm632, %v6841, %v6791
      %v6843 = vsel %vm634, %v6842, %v6795
      %v6844 = vsel %vm636, %v6843, %v6799
      %v6845 = vsel %vm638, %v6844, %v6803
      %v6846 = vsel %vm640, %v6845, %v6807
      %v6847 = vsel %vm642, %v6846, %v6811
      %v6848 = vsel %vm630, %v6757, %v6815
      %v6849 = vsel %vm632, %v6848, %v6819
      %v6850 = vsel %vm634, %v6849, %v6823
      %v6851 = vsel %vm636, %v6850, %v6827
      %v6852 = vsel %vm638, %v6851, %v6831
      %v6853 = vsel %vm640, %v6852, %v6835
      %v6854 = vsel %vm642, %v6853, %v6839
      %v6857 = vcombine.low %v6847, %v6854
      %6859 = vst [vmem:[%s898] sm:$0xff] %v6857
      %6860 = vrot.lane.b32.xlu0 %v6394, 126
      %v6861 = vpop.permute.xlu0 %6860
      %6862 = vrot.lane.b32.xlu0 %v6395, 126
      %v6863 = vpop.permute.xlu0 %6862
      %6864 = vrot.lane.b32.xlu0 %v6397, 126
      %v6865 = vpop.permute.xlu0 %6864
      %6866 = vrot.lane.b32.xlu0 %v6398, 126
      %v6867 = vpop.permute.xlu0 %6866
      %6868 = vrot.lane.b32.xlu0 %v6400, 126
      %v6869 = vpop.permute.xlu0 %6868
      %6870 = vrot.lane.b32.xlu0 %v6401, 126
      %v6871 = vpop.permute.xlu0 %6870
      %6872 = vrot.lane.b32.xlu0 %v6403, 126
      %v6873 = vpop.permute.xlu0 %6872
      %6874 = vrot.lane.b32.xlu0 %v6404, 126
      %v6875 = vpop.permute.xlu0 %6874
      %v6884 = vcombine.low %v6861, %v6869
      %v6885 = vcombine.high %v6861, %v6869
      %v6887 = vunpack.c.l.s4 1983009808
      %v6888 = vunpack.c.0.s8 %v6887
      %v6889 = vlaneseq
      %v6890 = vshrl.u32 %v6889, 7
      %v6891 = vsub.s32 %v6888, %v6890
      %v6892 = vrot.slane %v6884, %v6891
      %v6894 = vunpack.c.l.s4 1983009808
      %v6895 = vunpack.c.0.s8 %v6894
      %v6896 = vlaneseq
      %v6897 = vshrl.u32 %v6896, 7
      %v6898 = vsub.s32 %v6895, %v6897
      %v6899 = vrot.slane %v6885, %v6898
      %v6900 = vcombine.low %v6865, %v6873
      %v6901 = vcombine.high %v6865, %v6873
      %v6903 = vunpack.c.l.s4 1983009808
      %v6904 = vunpack.c.0.s8 %v6903
      %v6905 = vlaneseq
      %v6906 = vshrl.u32 %v6905, 7
      %v6907 = vsub.s32 %v6904, %v6906
      %v6908 = vrot.slane %v6900, %v6907
      %v6910 = vunpack.c.l.s4 1983009808
      %v6911 = vunpack.c.0.s8 %v6910
      %v6912 = vlaneseq
      %v6913 = vshrl.u32 %v6912, 7
      %v6914 = vsub.s32 %v6911, %v6913
      %v6915 = vrot.slane %v6901, %v6914
      %v6916 = vcombine.low %v6892, %v6908
      %v6917 = vcombine.high %v6892, %v6908
      %v6919 = vunpack.c.l.s4 1934713408
      %v6920 = vunpack.c.0.s8 %v6919
      %v6921 = vlaneseq
      %v6922 = vshrl.u32 %v6921, 7
      %v6923 = vsub.s32 %v6920, %v6922
      %v6924 = vrot.slane %v6916, %v6923
      %v6926 = vunpack.c.l.s4 1934713408
      %v6927 = vunpack.c.0.s8 %v6926
      %v6928 = vlaneseq
      %v6929 = vshrl.u32 %v6928, 7
      %v6930 = vsub.s32 %v6927, %v6929
      %v6931 = vrot.slane %v6917, %v6930
      %v6932 = vcombine.low %v6899, %v6915
      %v6933 = vcombine.high %v6899, %v6915
      %v6935 = vunpack.c.l.s4 1934713408
      %v6936 = vunpack.c.0.s8 %v6935
      %v6937 = vlaneseq
      %v6938 = vshrl.u32 %v6937, 7
      %v6939 = vsub.s32 %v6936, %v6938
      %v6940 = vrot.slane %v6932, %v6939
      %v6942 = vunpack.c.l.s4 1934713408
      %v6943 = vunpack.c.0.s8 %v6942
      %v6944 = vlaneseq
      %v6945 = vshrl.u32 %v6944, 7
      %v6946 = vsub.s32 %v6943, %v6945
      %v6947 = vrot.slane %v6933, %v6946
      %v6948 = vcombine.high %v6924, 0.0
      %v6949 = vcombine.high %v6931, 0.0
      %v6950 = vcombine.high %v6940, 0.0
      %v6951 = vcombine.high %v6947, 0.0
      %v6952 = vcombine.low %v6863, %v6871
      %v6953 = vcombine.high %v6863, %v6871
      %v6955 = vunpack.c.l.s4 1983009808
      %v6956 = vunpack.c.0.s8 %v6955
      %v6957 = vlaneseq
      %v6958 = vshrl.u32 %v6957, 7
      %v6959 = vsub.s32 %v6956, %v6958
      %v6960 = vrot.slane %v6952, %v6959
      %v6962 = vunpack.c.l.s4 1983009808
      %v6963 = vunpack.c.0.s8 %v6962
      %v6964 = vlaneseq
      %v6965 = vshrl.u32 %v6964, 7
      %v6966 = vsub.s32 %v6963, %v6965
      %v6967 = vrot.slane %v6953, %v6966
      %v6968 = vcombine.low %v6867, %v6875
      %v6969 = vcombine.high %v6867, %v6875
      %v6971 = vunpack.c.l.s4 1983009808
      %v6972 = vunpack.c.0.s8 %v6971
      %v6973 = vlaneseq
      %v6974 = vshrl.u32 %v6973, 7
      %v6975 = vsub.s32 %v6972, %v6974
      %v6976 = vrot.slane %v6968, %v6975
      %v6978 = vunpack.c.l.s4 1983009808
      %v6979 = vunpack.c.0.s8 %v6978
      %v6980 = vlaneseq
      %v6981 = vshrl.u32 %v6980, 7
      %v6982 = vsub.s32 %v6979, %v6981
      %v6983 = vrot.slane %v6969, %v6982
      %v6984 = vcombine.low %v6960, %v6976
      %v6985 = vcombine.high %v6960, %v6976
      %v6987 = vunpack.c.l.s4 1934713408
      %v6988 = vunpack.c.0.s8 %v6987
      %v6989 = vlaneseq
      %v6990 = vshrl.u32 %v6989, 7
      %v6991 = vsub.s32 %v6988, %v6990
      %v6992 = vrot.slane %v6984, %v6991
      %v6994 = vunpack.c.l.s4 1934713408
      %v6995 = vunpack.c.0.s8 %v6994
      %v6996 = vlaneseq
      %v6997 = vshrl.u32 %v6996, 7
      %v6998 = vsub.s32 %v6995, %v6997
      %v6999 = vrot.slane %v6985, %v6998
      %v7000 = vcombine.low %v6967, %v6983
      %v7001 = vcombine.high %v6967, %v6983
      %v7003 = vunpack.c.l.s4 1934713408
      %v7004 = vunpack.c.0.s8 %v7003
      %v7005 = vlaneseq
      %v7006 = vshrl.u32 %v7005, 7
      %v7007 = vsub.s32 %v7004, %v7006
      %v7008 = vrot.slane %v7000, %v7007
      %v7010 = vunpack.c.l.s4 1934713408
      %v7011 = vunpack.c.0.s8 %v7010
      %v7012 = vlaneseq
      %v7013 = vshrl.u32 %v7012, 7
      %v7014 = vsub.s32 %v7011, %v7013
      %v7015 = vrot.slane %v7001, %v7014
      %v7016 = vcombine.high %v6992, 0.0
      %v7017 = vcombine.high %v6999, 0.0
      %v7018 = vcombine.high %v7008, 0.0
      %v7019 = vcombine.high %v7015, 0.0
      %7021 = vrot.lane.b32.xlu0 %v6948, 16
      %v7022 = vpop.permute.xlu0 %7021
      %7025 = vrot.lane.b32.xlu0 %v6931, 32
      %v7026 = vpop.permute.xlu0 %7025
      %7029 = vrot.lane.b32.xlu0 %v6949, 48
      %v7030 = vpop.permute.xlu0 %7029
      %7033 = vrot.lane.b32.xlu0 %v6940, 64
      %v7034 = vpop.permute.xlu0 %7033
      %7037 = vrot.lane.b32.xlu0 %v6950, 80
      %v7038 = vpop.permute.xlu0 %7037
      %7041 = vrot.lane.b32.xlu0 %v6947, 96
      %v7042 = vpop.permute.xlu0 %7041
      %7045 = vrot.lane.b32.xlu0 %v6951, 112
      %v7046 = vpop.permute.xlu0 %7045
      %7049 = vrot.lane.b32.xlu0 %v7016, 16
      %v7050 = vpop.permute.xlu0 %7049
      %7053 = vrot.lane.b32.xlu0 %v6999, 32
      %v7054 = vpop.permute.xlu0 %7053
      %7057 = vrot.lane.b32.xlu0 %v7017, 48
      %v7058 = vpop.permute.xlu0 %7057
      %7061 = vrot.lane.b32.xlu0 %v7008, 64
      %v7062 = vpop.permute.xlu0 %7061
      %7065 = vrot.lane.b32.xlu0 %v7018, 80
      %v7066 = vpop.permute.xlu0 %7065
      %7069 = vrot.lane.b32.xlu0 %v7015, 96
      %v7070 = vpop.permute.xlu0 %7069
      %7073 = vrot.lane.b32.xlu0 %v7019, 112
      %v7074 = vpop.permute.xlu0 %7073
      %v7076 = vsel %vm630, %v6924, %v7022
      %v7077 = vsel %vm632, %v7076, %v7026
      %v7078 = vsel %vm634, %v7077, %v7030
      %v7079 = vsel %vm636, %v7078, %v7034
      %v7080 = vsel %vm638, %v7079, %v7038
      %v7081 = vsel %vm640, %v7080, %v7042
      %v7082 = vsel %vm642, %v7081, %v7046
      %v7083 = vsel %vm630, %v6992, %v7050
      %v7084 = vsel %vm632, %v7083, %v7054
      %v7085 = vsel %vm634, %v7084, %v7058
      %v7086 = vsel %vm636, %v7085, %v7062
      %v7087 = vsel %vm638, %v7086, %v7066
      %v7088 = vsel %vm640, %v7087, %v7070
      %v7089 = vsel %vm642, %v7088, %v7074
      %v7092 = vcombine.low %v7082, %v7089
      %7094 = vst [vmem:[%s1134] sm:$0xff] %v7092
      %v7099 = vrot.slane %v6394, 1
      %v7100 = vrot.slane %v6395, 1
      %v7101 = vsel %vm1140, %v7099, %v7100
      %v7102 = vrot.slane %v6396, 1
      %v7103 = vsel %vm1140, %v7100, %v7102
      %v7104 = vrot.slane %v6397, 1
      %v7105 = vrot.slane %v6398, 1
      %v7106 = vsel %vm1140, %v7104, %v7105
      %v7107 = vrot.slane %v6399, 1
      %v7108 = vsel %vm1140, %v7105, %v7107
      %v7109 = vrot.slane %v6400, 1
      %v7110 = vrot.slane %v6401, 1
      %v7111 = vsel %vm1140, %v7109, %v7110
      %v7112 = vrot.slane %v6402, 1
      %v7113 = vsel %vm1140, %v7110, %v7112
      %v7114 = vrot.slane %v6403, 1
      %v7115 = vrot.slane %v6404, 1
      %v7116 = vsel %vm1140, %v7114, %v7115
      %v7117 = vrot.slane %v6405, 1
      %v7118 = vsel %vm1140, %v7115, %v7117
      %v7127 = vcombine.low %v7101, %v7111
      %v7128 = vcombine.high %v7101, %v7111
      %v7130 = vunpack.c.l.s4 1983009808
      %v7131 = vunpack.c.0.s8 %v7130
      %v7132 = vlaneseq
      %v7133 = vshrl.u32 %v7132, 7
      %v7134 = vsub.s32 %v7131, %v7133
      %v7135 = vrot.slane %v7127, %v7134
      %v7137 = vunpack.c.l.s4 1983009808
      %v7138 = vunpack.c.0.s8 %v7137
      %v7139 = vlaneseq
      %v7140 = vshrl.u32 %v7139, 7
      %v7141 = vsub.s32 %v7138, %v7140
      %v7142 = vrot.slane %v7128, %v7141
      %v7143 = vcombine.low %v7106, %v7116
      %v7144 = vcombine.high %v7106, %v7116
      %v7146 = vunpack.c.l.s4 1983009808
      %v7147 = vunpack.c.0.s8 %v7146
      %v7148 = vlaneseq
      %v7149 = vshrl.u32 %v7148, 7
      %v7150 = vsub.s32 %v7147, %v7149
      %v7151 = vrot.slane %v7143, %v7150
      %v7153 = vunpack.c.l.s4 1983009808
      %v7154 = vunpack.c.0.s8 %v7153
      %v7155 = vlaneseq
      %v7156 = vshrl.u32 %v7155, 7
      %v7157 = vsub.s32 %v7154, %v7156
      %v7158 = vrot.slane %v7144, %v7157
      %v7159 = vcombine.low %v7135, %v7151
      %v7160 = vcombine.high %v7135, %v7151
      %v7162 = vunpack.c.l.s4 1934713408
      %v7163 = vunpack.c.0.s8 %v7162
      %v7164 = vlaneseq
      %v7165 = vshrl.u32 %v7164, 7
      %v7166 = vsub.s32 %v7163, %v7165
      %v7167 = vrot.slane %v7159, %v7166
      %v7169 = vunpack.c.l.s4 1934713408
      %v7170 = vunpack.c.0.s8 %v7169
      %v7171 = vlaneseq
      %v7172 = vshrl.u32 %v7171, 7
      %v7173 = vsub.s32 %v7170, %v7172
      %v7174 = vrot.slane %v7160, %v7173
      %v7175 = vcombine.low %v7142, %v7158
      %v7176 = vcombine.high %v7142, %v7158
      %v7178 = vunpack.c.l.s4 1934713408
      %v7179 = vunpack.c.0.s8 %v7178
      %v7180 = vlaneseq
      %v7181 = vshrl.u32 %v7180, 7
      %v7182 = vsub.s32 %v7179, %v7181
      %v7183 = vrot.slane %v7175, %v7182
      %v7185 = vunpack.c.l.s4 1934713408
      %v7186 = vunpack.c.0.s8 %v7185
      %v7187 = vlaneseq
      %v7188 = vshrl.u32 %v7187, 7
      %v7189 = vsub.s32 %v7186, %v7188
      %v7190 = vrot.slane %v7176, %v7189
      %v7191 = vcombine.high %v7167, 0.0
      %v7192 = vcombine.high %v7174, 0.0
      %v7193 = vcombine.high %v7183, 0.0
      %v7194 = vcombine.high %v7190, 0.0
      %v7195 = vcombine.low %v7103, %v7113
      %v7196 = vcombine.high %v7103, %v7113
      %v7198 = vunpack.c.l.s4 1983009808
      %v7199 = vunpack.c.0.s8 %v7198
      %v7200 = vlaneseq
      %v7201 = vshrl.u32 %v7200, 7
      %v7202 = vsub.s32 %v7199, %v7201
      %v7203 = vrot.slane %v7195, %v7202
      %v7205 = vunpack.c.l.s4 1983009808
      %v7206 = vunpack.c.0.s8 %v7205
      %v7207 = vlaneseq
      %v7208 = vshrl.u32 %v7207, 7
      %v7209 = vsub.s32 %v7206, %v7208
      %v7210 = vrot.slane %v7196, %v7209
      %v7211 = vcombine.low %v7108, %v7118
      %v7212 = vcombine.high %v7108, %v7118
      %v7214 = vunpack.c.l.s4 1983009808
      %v7215 = vunpack.c.0.s8 %v7214
      %v7216 = vlaneseq
      %v7217 = vshrl.u32 %v7216, 7
      %v7218 = vsub.s32 %v7215, %v7217
      %v7219 = vrot.slane %v7211, %v7218
      %v7221 = vunpack.c.l.s4 1983009808
      %v7222 = vunpack.c.0.s8 %v7221
      %v7223 = vlaneseq
      %v7224 = vshrl.u32 %v7223, 7
      %v7225 = vsub.s32 %v7222, %v7224
      %v7226 = vrot.slane %v7212, %v7225
      %v7227 = vcombine.low %v7203, %v7219
      %v7228 = vcombine.high %v7203, %v7219
      %v7230 = vunpack.c.l.s4 1934713408
      %v7231 = vunpack.c.0.s8 %v7230
      %v7232 = vlaneseq
      %v7233 = vshrl.u32 %v7232, 7
      %v7234 = vsub.s32 %v7231, %v7233
      %v7235 = vrot.slane %v7227, %v7234
      %v7237 = vunpack.c.l.s4 1934713408
      %v7238 = vunpack.c.0.s8 %v7237
      %v7239 = vlaneseq
      %v7240 = vshrl.u32 %v7239, 7
      %v7241 = vsub.s32 %v7238, %v7240
      %v7242 = vrot.slane %v7228, %v7241
      %v7243 = vcombine.low %v7210, %v7226
      %v7244 = vcombine.high %v7210, %v7226
      %v7246 = vunpack.c.l.s4 1934713408
      %v7247 = vunpack.c.0.s8 %v7246
      %v7248 = vlaneseq
      %v7249 = vshrl.u32 %v7248, 7
      %v7250 = vsub.s32 %v7247, %v7249
      %v7251 = vrot.slane %v7243, %v7250
      %v7253 = vunpack.c.l.s4 1934713408
      %v7254 = vunpack.c.0.s8 %v7253
      %v7255 = vlaneseq
      %v7256 = vshrl.u32 %v7255, 7
      %v7257 = vsub.s32 %v7254, %v7256
      %v7258 = vrot.slane %v7244, %v7257
      %v7259 = vcombine.high %v7235, 0.0
      %v7260 = vcombine.high %v7242, 0.0
      %v7261 = vcombine.high %v7251, 0.0
      %v7262 = vcombine.high %v7258, 0.0
      %7264 = vrot.lane.b32.xlu0 %v7191, 16
      %v7265 = vpop.permute.xlu0 %7264
      %7268 = vrot.lane.b32.xlu0 %v7174, 32
      %v7269 = vpop.permute.xlu0 %7268
      %7272 = vrot.lane.b32.xlu0 %v7192, 48
      %v7273 = vpop.permute.xlu0 %7272
      %7276 = vrot.lane.b32.xlu0 %v7183, 64
      %v7277 = vpop.permute.xlu0 %7276
      %7280 = vrot.lane.b32.xlu0 %v7193, 80
      %v7281 = vpop.permute.xlu0 %7280
      %7284 = vrot.lane.b32.xlu0 %v7190, 96
      %v7285 = vpop.permute.xlu0 %7284
      %7288 = vrot.lane.b32.xlu0 %v7194, 112
      %v7289 = vpop.permute.xlu0 %7288
      %7292 = vrot.lane.b32.xlu0 %v7259, 16
      %v7293 = vpop.permute.xlu0 %7292
      %7296 = vrot.lane.b32.xlu0 %v7242, 32
      %v7297 = vpop.permute.xlu0 %7296
      %7300 = vrot.lane.b32.xlu0 %v7260, 48
      %v7301 = vpop.permute.xlu0 %7300
      %7304 = vrot.lane.b32.xlu0 %v7251, 64
      %v7305 = vpop.permute.xlu0 %7304
      %7308 = vrot.lane.b32.xlu0 %v7261, 80
      %v7309 = vpop.permute.xlu0 %7308
      %7312 = vrot.lane.b32.xlu0 %v7258, 96
      %v7313 = vpop.permute.xlu0 %7312
      %7316 = vrot.lane.b32.xlu0 %v7262, 112
      %v7317 = vpop.permute.xlu0 %7316
      %v7319 = vsel %vm630, %v7167, %v7265
      %v7320 = vsel %vm632, %v7319, %v7269
      %v7321 = vsel %vm634, %v7320, %v7273
      %v7322 = vsel %vm636, %v7321, %v7277
      %v7323 = vsel %vm638, %v7322, %v7281
      %v7324 = vsel %vm640, %v7323, %v7285
      %v7325 = vsel %vm642, %v7324, %v7289
      %v7326 = vsel %vm630, %v7235, %v7293
      %v7327 = vsel %vm632, %v7326, %v7297
      %v7328 = vsel %vm634, %v7327, %v7301
      %v7329 = vsel %vm636, %v7328, %v7305
      %v7330 = vsel %vm638, %v7329, %v7309
      %v7331 = vsel %vm640, %v7330, %v7313
      %v7332 = vsel %vm642, %v7331, %v7317
      %v7335 = vcombine.low %v7325, %v7332
      %7337 = vst [vmem:[%s1379] sm:$0xff] %v7335
      %7338 = vrot.lane.b32.xlu0 %v7101, 127
      %v7339 = vpop.permute.xlu0 %7338
      %7340 = vrot.lane.b32.xlu0 %v7103, 127
      %v7341 = vpop.permute.xlu0 %7340
      %7342 = vrot.lane.b32.xlu0 %v7106, 127
      %v7343 = vpop.permute.xlu0 %7342
      %7344 = vrot.lane.b32.xlu0 %v7108, 127
      %v7345 = vpop.permute.xlu0 %7344
      %7346 = vrot.lane.b32.xlu0 %v7111, 127
      %v7347 = vpop.permute.xlu0 %7346
      %7348 = vrot.lane.b32.xlu0 %v7113, 127
      %v7349 = vpop.permute.xlu0 %7348
      %7350 = vrot.lane.b32.xlu0 %v7116, 127
      %v7351 = vpop.permute.xlu0 %7350
      %7352 = vrot.lane.b32.xlu0 %v7118, 127
      %v7353 = vpop.permute.xlu0 %7352
      %v7362 = vcombine.low %v7339, %v7347
      %v7363 = vcombine.high %v7339, %v7347
      %v7365 = vunpack.c.l.s4 1983009808
      %v7366 = vunpack.c.0.s8 %v7365
      %v7367 = vlaneseq
      %v7368 = vshrl.u32 %v7367, 7
      %v7369 = vsub.s32 %v7366, %v7368
      %v7370 = vrot.slane %v7362, %v7369
      %v7372 = vunpack.c.l.s4 1983009808
      %v7373 = vunpack.c.0.s8 %v7372
      %v7374 = vlaneseq
      %v7375 = vshrl.u32 %v7374, 7
      %v7376 = vsub.s32 %v7373, %v7375
      %v7377 = vrot.slane %v7363, %v7376
      %v7378 = vcombine.low %v7343, %v7351
      %v7379 = vcombine.high %v7343, %v7351
      %v7381 = vunpack.c.l.s4 1983009808
      %v7382 = vunpack.c.0.s8 %v7381
      %v7383 = vlaneseq
      %v7384 = vshrl.u32 %v7383, 7
      %v7385 = vsub.s32 %v7382, %v7384
      %v7386 = vrot.slane %v7378, %v7385
      %v7388 = vunpack.c.l.s4 1983009808
      %v7389 = vunpack.c.0.s8 %v7388
      %v7390 = vlaneseq
      %v7391 = vshrl.u32 %v7390, 7
      %v7392 = vsub.s32 %v7389, %v7391
      %v7393 = vrot.slane %v7379, %v7392
      %v7394 = vcombine.low %v7370, %v7386
      %v7395 = vcombine.high %v7370, %v7386
      %v7397 = vunpack.c.l.s4 1934713408
      %v7398 = vunpack.c.0.s8 %v7397
      %v7399 = vlaneseq
      %v7400 = vshrl.u32 %v7399, 7
      %v7401 = vsub.s32 %v7398, %v7400
      %v7402 = vrot.slane %v7394, %v7401
      %v7404 = vunpack.c.l.s4 1934713408
      %v7405 = vunpack.c.0.s8 %v7404
      %v7406 = vlaneseq
      %v7407 = vshrl.u32 %v7406, 7
      %v7408 = vsub.s32 %v7405, %v7407
      %v7409 = vrot.slane %v7395, %v7408
      %v7410 = vcombine.low %v7377, %v7393
      %v7411 = vcombine.high %v7377, %v7393
      %v7413 = vunpack.c.l.s4 1934713408
      %v7414 = vunpack.c.0.s8 %v7413
      %v7415 = vlaneseq
      %v7416 = vshrl.u32 %v7415, 7
      %v7417 = vsub.s32 %v7414, %v7416
      %v7418 = vrot.slane %v7410, %v7417
      %v7420 = vunpack.c.l.s4 1934713408
      %v7421 = vunpack.c.0.s8 %v7420
      %v7422 = vlaneseq
      %v7423 = vshrl.u32 %v7422, 7
      %v7424 = vsub.s32 %v7421, %v7423
      %v7425 = vrot.slane %v7411, %v7424
      %v7426 = vcombine.high %v7402, 0.0
      %v7427 = vcombine.high %v7409, 0.0
      %v7428 = vcombine.high %v7418, 0.0
      %v7429 = vcombine.high %v7425, 0.0
      %v7430 = vcombine.low %v7341, %v7349
      %v7431 = vcombine.high %v7341, %v7349
      %v7433 = vunpack.c.l.s4 1983009808
      %v7434 = vunpack.c.0.s8 %v7433
      %v7435 = vlaneseq
      %v7436 = vshrl.u32 %v7435, 7
      %v7437 = vsub.s32 %v7434, %v7436
      %v7438 = vrot.slane %v7430, %v7437
      %v7440 = vunpack.c.l.s4 1983009808
      %v7441 = vunpack.c.0.s8 %v7440
      %v7442 = vlaneseq
      %v7443 = vshrl.u32 %v7442, 7
      %v7444 = vsub.s32 %v7441, %v7443
      %v7445 = vrot.slane %v7431, %v7444
      %v7446 = vcombine.low %v7345, %v7353
      %v7447 = vcombine.high %v7345, %v7353
      %v7449 = vunpack.c.l.s4 1983009808
      %v7450 = vunpack.c.0.s8 %v7449
      %v7451 = vlaneseq
      %v7452 = vshrl.u32 %v7451, 7
      %v7453 = vsub.s32 %v7450, %v7452
      %v7454 = vrot.slane %v7446, %v7453
      %v7456 = vunpack.c.l.s4 1983009808
      %v7457 = vunpack.c.0.s8 %v7456
      %v7458 = vlaneseq
      %v7459 = vshrl.u32 %v7458, 7
      %v7460 = vsub.s32 %v7457, %v7459
      %v7461 = vrot.slane %v7447, %v7460
      %v7462 = vcombine.low %v7438, %v7454
      %v7463 = vcombine.high %v7438, %v7454
      %v7465 = vunpack.c.l.s4 1934713408
      %v7466 = vunpack.c.0.s8 %v7465
      %v7467 = vlaneseq
      %v7468 = vshrl.u32 %v7467, 7
      %v7469 = vsub.s32 %v7466, %v7468
      %v7470 = vrot.slane %v7462, %v7469
      %v7472 = vunpack.c.l.s4 1934713408
      %v7473 = vunpack.c.0.s8 %v7472
      %v7474 = vlaneseq
      %v7475 = vshrl.u32 %v7474, 7
      %v7476 = vsub.s32 %v7473, %v7475
      %v7477 = vrot.slane %v7463, %v7476
      %v7478 = vcombine.low %v7445, %v7461
      %v7479 = vcombine.high %v7445, %v7461
      %v7481 = vunpack.c.l.s4 1934713408
      %v7482 = vunpack.c.0.s8 %v7481
      %v7483 = vlaneseq
      %v7484 = vshrl.u32 %v7483, 7
      %v7485 = vsub.s32 %v7482, %v7484
      %v7486 = vrot.slane %v7478, %v7485
      %v7488 = vunpack.c.l.s4 1934713408
      %v7489 = vunpack.c.0.s8 %v7488
      %v7490 = vlaneseq
      %v7491 = vshrl.u32 %v7490, 7
      %v7492 = vsub.s32 %v7489, %v7491
      %v7493 = vrot.slane %v7479, %v7492
      %v7494 = vcombine.high %v7470, 0.0
      %v7495 = vcombine.high %v7477, 0.0
      %v7496 = vcombine.high %v7486, 0.0
      %v7497 = vcombine.high %v7493, 0.0
      %7499 = vrot.lane.b32.xlu0 %v7426, 16
      %v7500 = vpop.permute.xlu0 %7499
      %7503 = vrot.lane.b32.xlu0 %v7409, 32
      %v7504 = vpop.permute.xlu0 %7503
      %7507 = vrot.lane.b32.xlu0 %v7427, 48
      %v7508 = vpop.permute.xlu0 %7507
      %7511 = vrot.lane.b32.xlu0 %v7418, 64
      %v7512 = vpop.permute.xlu0 %7511
      %7515 = vrot.lane.b32.xlu0 %v7428, 80
      %v7516 = vpop.permute.xlu0 %7515
      %7519 = vrot.lane.b32.xlu0 %v7425, 96
      %v7520 = vpop.permute.xlu0 %7519
      %7523 = vrot.lane.b32.xlu0 %v7429, 112
      %v7524 = vpop.permute.xlu0 %7523
      %7527 = vrot.lane.b32.xlu0 %v7494, 16
      %v7528 = vpop.permute.xlu0 %7527
      %7531 = vrot.lane.b32.xlu0 %v7477, 32
      %v7532 = vpop.permute.xlu0 %7531
      %7535 = vrot.lane.b32.xlu0 %v7495, 48
      %v7536 = vpop.permute.xlu0 %7535
      %7539 = vrot.lane.b32.xlu0 %v7486, 64
      %v7540 = vpop.permute.xlu0 %7539
      %7543 = vrot.lane.b32.xlu0 %v7496, 80
      %v7544 = vpop.permute.xlu0 %7543
      %7547 = vrot.lane.b32.xlu0 %v7493, 96
      %v7548 = vpop.permute.xlu0 %7547
      %7551 = vrot.lane.b32.xlu0 %v7497, 112
      %v7552 = vpop.permute.xlu0 %7551
      %v7554 = vsel %vm630, %v7402, %v7500
      %v7555 = vsel %vm632, %v7554, %v7504
      %v7556 = vsel %vm634, %v7555, %v7508
      %v7557 = vsel %vm636, %v7556, %v7512
      %v7558 = vsel %vm638, %v7557, %v7516
      %v7559 = vsel %vm640, %v7558, %v7520
      %v7560 = vsel %vm642, %v7559, %v7524
      %v7561 = vsel %vm630, %v7470, %v7528
      %v7562 = vsel %vm632, %v7561, %v7532
      %v7563 = vsel %vm634, %v7562, %v7536
      %v7564 = vsel %vm636, %v7563, %v7540
      %v7565 = vsel %vm638, %v7564, %v7544
      %v7566 = vsel %vm640, %v7565, %v7548
      %v7567 = vsel %vm642, %v7566, %v7552
      %v7570 = vcombine.low %v7560, %v7567
      %7572 = vst [vmem:[%s1615] sm:$0xff] %v7570
      %7573 = vrot.lane.b32.xlu0 %v7101, 126
      %v7574 = vpop.permute.xlu0 %7573
      %7575 = vrot.lane.b32.xlu0 %v7103, 126
      %v7576 = vpop.permute.xlu0 %7575
      %7577 = vrot.lane.b32.xlu0 %v7106, 126
      %v7578 = vpop.permute.xlu0 %7577
      %7579 = vrot.lane.b32.xlu0 %v7108, 126
      %v7580 = vpop.permute.xlu0 %7579
      %7581 = vrot.lane.b32.xlu0 %v7111, 126
      %v7582 = vpop.permute.xlu0 %7581
      %7583 = vrot.lane.b32.xlu0 %v7113, 126
      %v7584 = vpop.permute.xlu0 %7583
      %7585 = vrot.lane.b32.xlu0 %v7116, 126
      %v7586 = vpop.permute.xlu0 %7585
      %7587 = vrot.lane.b32.xlu0 %v7118, 126
      %v7588 = vpop.permute.xlu0 %7587
      %v7597 = vcombine.low %v7574, %v7582
      %v7598 = vcombine.high %v7574, %v7582
      %v7600 = vunpack.c.l.s4 1983009808
      %v7601 = vunpack.c.0.s8 %v7600
      %v7602 = vlaneseq
      %v7603 = vshrl.u32 %v7602, 7
      %v7604 = vsub.s32 %v7601, %v7603
      %v7605 = vrot.slane %v7597, %v7604
      %v7607 = vunpack.c.l.s4 1983009808
      %v7608 = vunpack.c.0.s8 %v7607
      %v7609 = vlaneseq
      %v7610 = vshrl.u32 %v7609, 7
      %v7611 = vsub.s32 %v7608, %v7610
      %v7612 = vrot.slane %v7598, %v7611
      %v7613 = vcombine.low %v7578, %v7586
      %v7614 = vcombine.high %v7578, %v7586
      %v7616 = vunpack.c.l.s4 1983009808
      %v7617 = vunpack.c.0.s8 %v7616
      %v7618 = vlaneseq
      %v7619 = vshrl.u32 %v7618, 7
      %v7620 = vsub.s32 %v7617, %v7619
      %v7621 = vrot.slane %v7613, %v7620
      %v7623 = vunpack.c.l.s4 1983009808
      %v7624 = vunpack.c.0.s8 %v7623
      %v7625 = vlaneseq
      %v7626 = vshrl.u32 %v7625, 7
      %v7627 = vsub.s32 %v7624, %v7626
      %v7628 = vrot.slane %v7614, %v7627
      %v7629 = vcombine.low %v7605, %v7621
      %v7630 = vcombine.high %v7605, %v7621
      %v7632 = vunpack.c.l.s4 1934713408
      %v7633 = vunpack.c.0.s8 %v7632
      %v7634 = vlaneseq
      %v7635 = vshrl.u32 %v7634, 7
      %v7636 = vsub.s32 %v7633, %v7635
      %v7637 = vrot.slane %v7629, %v7636
      %v7639 = vunpack.c.l.s4 1934713408
      %v7640 = vunpack.c.0.s8 %v7639
      %v7641 = vlaneseq
      %v7642 = vshrl.u32 %v7641, 7
      %v7643 = vsub.s32 %v7640, %v7642
      %v7644 = vrot.slane %v7630, %v7643
      %v7645 = vcombine.low %v7612, %v7628
      %v7646 = vcombine.high %v7612, %v7628
      %v7648 = vunpack.c.l.s4 1934713408
      %v7649 = vunpack.c.0.s8 %v7648
      %v7650 = vlaneseq
      %v7651 = vshrl.u32 %v7650, 7
      %v7652 = vsub.s32 %v7649, %v7651
      %v7653 = vrot.slane %v7645, %v7652
      %v7655 = vunpack.c.l.s4 1934713408
      %v7656 = vunpack.c.0.s8 %v7655
      %v7657 = vlaneseq
      %v7658 = vshrl.u32 %v7657, 7
      %v7659 = vsub.s32 %v7656, %v7658
      %v7660 = vrot.slane %v7646, %v7659
      %v7661 = vcombine.high %v7637, 0.0
      %v7662 = vcombine.high %v7644, 0.0
      %v7663 = vcombine.high %v7653, 0.0
      %v7664 = vcombine.high %v7660, 0.0
      %v7665 = vcombine.low %v7576, %v7584
      %v7666 = vcombine.high %v7576, %v7584
      %v7668 = vunpack.c.l.s4 1983009808
      %v7669 = vunpack.c.0.s8 %v7668
      %v7670 = vlaneseq
      %v7671 = vshrl.u32 %v7670, 7
      %v7672 = vsub.s32 %v7669, %v7671
      %v7673 = vrot.slane %v7665, %v7672
      %v7675 = vunpack.c.l.s4 1983009808
      %v7676 = vunpack.c.0.s8 %v7675
      %v7677 = vlaneseq
      %v7678 = vshrl.u32 %v7677, 7
      %v7679 = vsub.s32 %v7676, %v7678
      %v7680 = vrot.slane %v7666, %v7679
      %v7681 = vcombine.low %v7580, %v7588
      %v7682 = vcombine.high %v7580, %v7588
      %v7684 = vunpack.c.l.s4 1983009808
      %v7685 = vunpack.c.0.s8 %v7684
      %v7686 = vlaneseq
      %v7687 = vshrl.u32 %v7686, 7
      %v7688 = vsub.s32 %v7685, %v7687
      %v7689 = vrot.slane %v7681, %v7688
      %v7691 = vunpack.c.l.s4 1983009808
      %v7692 = vunpack.c.0.s8 %v7691
      %v7693 = vlaneseq
      %v7694 = vshrl.u32 %v7693, 7
      %v7695 = vsub.s32 %v7692, %v7694
      %v7696 = vrot.slane %v7682, %v7695
      %v7697 = vcombine.low %v7673, %v7689
      %v7698 = vcombine.high %v7673, %v7689
      %v7700 = vunpack.c.l.s4 1934713408
      %v7701 = vunpack.c.0.s8 %v7700
      %v7702 = vlaneseq
      %v7703 = vshrl.u32 %v7702, 7
      %v7704 = vsub.s32 %v7701, %v7703
      %v7705 = vrot.slane %v7697, %v7704
      %v7707 = vunpack.c.l.s4 1934713408
      %v7708 = vunpack.c.0.s8 %v7707
      %v7709 = vlaneseq
      %v7710 = vshrl.u32 %v7709, 7
      %v7711 = vsub.s32 %v7708, %v7710
      %v7712 = vrot.slane %v7698, %v7711
      %v7713 = vcombine.low %v7680, %v7696
      %v7714 = vcombine.high %v7680, %v7696
      %v7716 = vunpack.c.l.s4 1934713408
      %v7717 = vunpack.c.0.s8 %v7716
      %v7718 = vlaneseq
      %v7719 = vshrl.u32 %v7718, 7
      %v7720 = vsub.s32 %v7717, %v7719
      %v7721 = vrot.slane %v7713, %v7720
      %v7723 = vunpack.c.l.s4 1934713408
      %v7724 = vunpack.c.0.s8 %v7723
      %v7725 = vlaneseq
      %v7726 = vshrl.u32 %v7725, 7
      %v7727 = vsub.s32 %v7724, %v7726
      %v7728 = vrot.slane %v7714, %v7727
      %v7729 = vcombine.high %v7705, 0.0
      %v7730 = vcombine.high %v7712, 0.0
      %v7731 = vcombine.high %v7721, 0.0
      %v7732 = vcombine.high %v7728, 0.0
      %7734 = vrot.lane.b32.xlu0 %v7661, 16
      %v7735 = vpop.permute.xlu0 %7734
      %7738 = vrot.lane.b32.xlu0 %v7644, 32
      %v7739 = vpop.permute.xlu0 %7738
      %7742 = vrot.lane.b32.xlu0 %v7662, 48
      %v7743 = vpop.permute.xlu0 %7742
      %7746 = vrot.lane.b32.xlu0 %v7653, 64
      %v7747 = vpop.permute.xlu0 %7746
      %7750 = vrot.lane.b32.xlu0 %v7663, 80
      %v7751 = vpop.permute.xlu0 %7750
      %7754 = vrot.lane.b32.xlu0 %v7660, 96
      %v7755 = vpop.permute.xlu0 %7754
      %7758 = vrot.lane.b32.xlu0 %v7664, 112
      %v7759 = vpop.permute.xlu0 %7758
      %7762 = vrot.lane.b32.xlu0 %v7729, 16
      %v7763 = vpop.permute.xlu0 %7762
      %7766 = vrot.lane.b32.xlu0 %v7712, 32
      %v7767 = vpop.permute.xlu0 %7766
      %7770 = vrot.lane.b32.xlu0 %v7730, 48
      %v7771 = vpop.permute.xlu0 %7770
      %7774 = vrot.lane.b32.xlu0 %v7721, 64
      %v7775 = vpop.permute.xlu0 %7774
      %7778 = vrot.lane.b32.xlu0 %v7731, 80
      %v7779 = vpop.permute.xlu0 %7778
      %7782 = vrot.lane.b32.xlu0 %v7728, 96
      %v7783 = vpop.permute.xlu0 %7782
      %7786 = vrot.lane.b32.xlu0 %v7732, 112
      %v7787 = vpop.permute.xlu0 %7786
      %v7789 = vsel %vm630, %v7637, %v7735
      %v7790 = vsel %vm632, %v7789, %v7739
      %v7791 = vsel %vm634, %v7790, %v7743
      %v7792 = vsel %vm636, %v7791, %v7747
      %v7793 = vsel %vm638, %v7792, %v7751
      %v7794 = vsel %vm640, %v7793, %v7755
      %v7795 = vsel %vm642, %v7794, %v7759
      %v7796 = vsel %vm630, %v7705, %v7763
      %v7797 = vsel %vm632, %v7796, %v7767
      %v7798 = vsel %vm634, %v7797, %v7771
      %v7799 = vsel %vm636, %v7798, %v7775
      %v7800 = vsel %vm638, %v7799, %v7779
      %v7801 = vsel %vm640, %v7800, %v7783
      %v7802 = vsel %vm642, %v7801, %v7787
      %v7805 = vcombine.low %v7795, %v7802
      %7807 = vst [vmem:[%s1851] sm:$0xff] %v7805
      %v7808 = vrot.slane %v6394, 2
      %v7809 = vrot.slane %v6395, 2
      %v7810 = vsel %vm1853, %v7808, %v7809
      %v7811 = vrot.slane %v6396, 2
      %v7812 = vsel %vm1853, %v7809, %v7811
      %v7813 = vrot.slane %v6397, 2
      %v7814 = vrot.slane %v6398, 2
      %v7815 = vsel %vm1853, %v7813, %v7814
      %v7816 = vrot.slane %v6399, 2
      %v7817 = vsel %vm1853, %v7814, %v7816
      %v7818 = vrot.slane %v6400, 2
      %v7819 = vrot.slane %v6401, 2
      %v7820 = vsel %vm1853, %v7818, %v7819
      %v7821 = vrot.slane %v6402, 2
      %v7822 = vsel %vm1853, %v7819, %v7821
      %v7823 = vrot.slane %v6403, 2
      %v7824 = vrot.slane %v6404, 2
      %v7825 = vsel %vm1853, %v7823, %v7824
      %v7826 = vrot.slane %v6405, 2
      %v7827 = vsel %vm1853, %v7824, %v7826
      %v7836 = vcombine.low %v7810, %v7820
      %v7837 = vcombine.high %v7810, %v7820
      %v7839 = vunpack.c.l.s4 1983009808
      %v7840 = vunpack.c.0.s8 %v7839
      %v7841 = vlaneseq
      %v7842 = vshrl.u32 %v7841, 7
      %v7843 = vsub.s32 %v7840, %v7842
      %v7844 = vrot.slane %v7836, %v7843
      %v7846 = vunpack.c.l.s4 1983009808
      %v7847 = vunpack.c.0.s8 %v7846
      %v7848 = vlaneseq
      %v7849 = vshrl.u32 %v7848, 7
      %v7850 = vsub.s32 %v7847, %v7849
      %v7851 = vrot.slane %v7837, %v7850
      %v7852 = vcombine.low %v7815, %v7825
      %v7853 = vcombine.high %v7815, %v7825
      %v7855 = vunpack.c.l.s4 1983009808
      %v7856 = vunpack.c.0.s8 %v7855
      %v7857 = vlaneseq
      %v7858 = vshrl.u32 %v7857, 7
      %v7859 = vsub.s32 %v7856, %v7858
      %v7860 = vrot.slane %v7852, %v7859
      %v7862 = vunpack.c.l.s4 1983009808
      %v7863 = vunpack.c.0.s8 %v7862
      %v7864 = vlaneseq
      %v7865 = vshrl.u32 %v7864, 7
      %v7866 = vsub.s32 %v7863, %v7865
      %v7867 = vrot.slane %v7853, %v7866
      %v7868 = vcombine.low %v7844, %v7860
      %v7869 = vcombine.high %v7844, %v7860
      %v7871 = vunpack.c.l.s4 1934713408
      %v7872 = vunpack.c.0.s8 %v7871
      %v7873 = vlaneseq
      %v7874 = vshrl.u32 %v7873, 7
      %v7875 = vsub.s32 %v7872, %v7874
      %v7876 = vrot.slane %v7868, %v7875
      %v7878 = vunpack.c.l.s4 1934713408
      %v7879 = vunpack.c.0.s8 %v7878
      %v7880 = vlaneseq
      %v7881 = vshrl.u32 %v7880, 7
      %v7882 = vsub.s32 %v7879, %v7881
      %v7883 = vrot.slane %v7869, %v7882
      %v7884 = vcombine.low %v7851, %v7867
      %v7885 = vcombine.high %v7851, %v7867
      %v7887 = vunpack.c.l.s4 1934713408
      %v7888 = vunpack.c.0.s8 %v7887
      %v7889 = vlaneseq
      %v7890 = vshrl.u32 %v7889, 7
      %v7891 = vsub.s32 %v7888, %v7890
      %v7892 = vrot.slane %v7884, %v7891
      %v7894 = vunpack.c.l.s4 1934713408
      %v7895 = vunpack.c.0.s8 %v7894
      %v7896 = vlaneseq
      %v7897 = vshrl.u32 %v7896, 7
      %v7898 = vsub.s32 %v7895, %v7897
      %v7899 = vrot.slane %v7885, %v7898
      %v7900 = vcombine.high %v7876, 0.0
      %v7901 = vcombine.high %v7883, 0.0
      %v7902 = vcombine.high %v7892, 0.0
      %v7903 = vcombine.high %v7899, 0.0
      %v7904 = vcombine.low %v7812, %v7822
      %v7905 = vcombine.high %v7812, %v7822
      %v7907 = vunpack.c.l.s4 1983009808
      %v7908 = vunpack.c.0.s8 %v7907
      %v7909 = vlaneseq
      %v7910 = vshrl.u32 %v7909, 7
      %v7911 = vsub.s32 %v7908, %v7910
      %v7912 = vrot.slane %v7904, %v7911
      %v7914 = vunpack.c.l.s4 1983009808
      %v7915 = vunpack.c.0.s8 %v7914
      %v7916 = vlaneseq
      %v7917 = vshrl.u32 %v7916, 7
      %v7918 = vsub.s32 %v7915, %v7917
      %v7919 = vrot.slane %v7905, %v7918
      %v7920 = vcombine.low %v7817, %v7827
      %v7921 = vcombine.high %v7817, %v7827
      %v7923 = vunpack.c.l.s4 1983009808
      %v7924 = vunpack.c.0.s8 %v7923
      %v7925 = vlaneseq
      %v7926 = vshrl.u32 %v7925, 7
      %v7927 = vsub.s32 %v7924, %v7926
      %v7928 = vrot.slane %v7920, %v7927
      %v7930 = vunpack.c.l.s4 1983009808
      %v7931 = vunpack.c.0.s8 %v7930
      %v7932 = vlaneseq
      %v7933 = vshrl.u32 %v7932, 7
      %v7934 = vsub.s32 %v7931, %v7933
      %v7935 = vrot.slane %v7921, %v7934
      %v7936 = vcombine.low %v7912, %v7928
      %v7937 = vcombine.high %v7912, %v7928
      %v7939 = vunpack.c.l.s4 1934713408
      %v7940 = vunpack.c.0.s8 %v7939
      %v7941 = vlaneseq
      %v7942 = vshrl.u32 %v7941, 7
      %v7943 = vsub.s32 %v7940, %v7942
      %v7944 = vrot.slane %v7936, %v7943
      %v7946 = vunpack.c.l.s4 1934713408
      %v7947 = vunpack.c.0.s8 %v7946
      %v7948 = vlaneseq
      %v7949 = vshrl.u32 %v7948, 7
      %v7950 = vsub.s32 %v7947, %v7949
      %v7951 = vrot.slane %v7937, %v7950
      %v7952 = vcombine.low %v7919, %v7935
      %v7953 = vcombine.high %v7919, %v7935
      %v7955 = vunpack.c.l.s4 1934713408
      %v7956 = vunpack.c.0.s8 %v7955
      %v7957 = vlaneseq
      %v7958 = vshrl.u32 %v7957, 7
      %v7959 = vsub.s32 %v7956, %v7958
      %v7960 = vrot.slane %v7952, %v7959
      %v7962 = vunpack.c.l.s4 1934713408
      %v7963 = vunpack.c.0.s8 %v7962
      %v7964 = vlaneseq
      %v7965 = vshrl.u32 %v7964, 7
      %v7966 = vsub.s32 %v7963, %v7965
      %v7967 = vrot.slane %v7953, %v7966
      %v7968 = vcombine.high %v7944, 0.0
      %v7969 = vcombine.high %v7951, 0.0
      %v7970 = vcombine.high %v7960, 0.0
      %v7971 = vcombine.high %v7967, 0.0
      %7973 = vrot.lane.b32.xlu0 %v7900, 16
      %v7974 = vpop.permute.xlu0 %7973
      %7977 = vrot.lane.b32.xlu0 %v7883, 32
      %v7978 = vpop.permute.xlu0 %7977
      %7981 = vrot.lane.b32.xlu0 %v7901, 48
      %v7982 = vpop.permute.xlu0 %7981
      %7985 = vrot.lane.b32.xlu0 %v7892, 64
      %v7986 = vpop.permute.xlu0 %7985
      %7989 = vrot.lane.b32.xlu0 %v7902, 80
      %v7990 = vpop.permute.xlu0 %7989
      %7993 = vrot.lane.b32.xlu0 %v7899, 96
      %v7994 = vpop.permute.xlu0 %7993
      %7997 = vrot.lane.b32.xlu0 %v7903, 112
      %v7998 = vpop.permute.xlu0 %7997
      %8001 = vrot.lane.b32.xlu0 %v7968, 16
      %v8002 = vpop.permute.xlu0 %8001
      %8005 = vrot.lane.b32.xlu0 %v7951, 32
      %v8006 = vpop.permute.xlu0 %8005
      %8009 = vrot.lane.b32.xlu0 %v7969, 48
      %v8010 = vpop.permute.xlu0 %8009
      %8013 = vrot.lane.b32.xlu0 %v7960, 64
      %v8014 = vpop.permute.xlu0 %8013
      %8017 = vrot.lane.b32.xlu0 %v7970, 80
      %v8018 = vpop.permute.xlu0 %8017
      %8021 = vrot.lane.b32.xlu0 %v7967, 96
      %v8022 = vpop.permute.xlu0 %8021
      %8025 = vrot.lane.b32.xlu0 %v7971, 112
      %v8026 = vpop.permute.xlu0 %8025
      %v8028 = vsel %vm630, %v7876, %v7974
      %v8029 = vsel %vm632, %v8028, %v7978
      %v8030 = vsel %vm634, %v8029, %v7982
      %v8031 = vsel %vm636, %v8030, %v7986
      %v8032 = vsel %vm638, %v8031, %v7990
      %v8033 = vsel %vm640, %v8032, %v7994
      %v8034 = vsel %vm642, %v8033, %v7998
      %v8035 = vsel %vm630, %v7944, %v8002
      %v8036 = vsel %vm632, %v8035, %v8006
      %v8037 = vsel %vm634, %v8036, %v8010
      %v8038 = vsel %vm636, %v8037, %v8014
      %v8039 = vsel %vm638, %v8038, %v8018
      %v8040 = vsel %vm640, %v8039, %v8022
      %v8041 = vsel %vm642, %v8040, %v8026
      %v8044 = vcombine.low %v8034, %v8041
      %8046 = vst [vmem:[%s2092] sm:$0xff] %v8044
      %8047 = vrot.lane.b32.xlu0 %v7810, 127
      %v8048 = vpop.permute.xlu0 %8047
      %8049 = vrot.lane.b32.xlu0 %v7812, 127
      %v8050 = vpop.permute.xlu0 %8049
      %8051 = vrot.lane.b32.xlu0 %v7815, 127
      %v8052 = vpop.permute.xlu0 %8051
      %8053 = vrot.lane.b32.xlu0 %v7817, 127
      %v8054 = vpop.permute.xlu0 %8053
      %8055 = vrot.lane.b32.xlu0 %v7820, 127
      %v8056 = vpop.permute.xlu0 %8055
      %8057 = vrot.lane.b32.xlu0 %v7822, 127
      %v8058 = vpop.permute.xlu0 %8057
      %8059 = vrot.lane.b32.xlu0 %v7825, 127
      %v8060 = vpop.permute.xlu0 %8059
      %8061 = vrot.lane.b32.xlu0 %v7827, 127
      %v8062 = vpop.permute.xlu0 %8061
      %v8071 = vcombine.low %v8048, %v8056
      %v8072 = vcombine.high %v8048, %v8056
      %v8074 = vunpack.c.l.s4 1983009808
      %v8075 = vunpack.c.0.s8 %v8074
      %v8076 = vlaneseq
      %v8077 = vshrl.u32 %v8076, 7
      %v8078 = vsub.s32 %v8075, %v8077
      %v8079 = vrot.slane %v8071, %v8078
      %v8081 = vunpack.c.l.s4 1983009808
      %v8082 = vunpack.c.0.s8 %v8081
      %v8083 = vlaneseq
      %v8084 = vshrl.u32 %v8083, 7
      %v8085 = vsub.s32 %v8082, %v8084
      %v8086 = vrot.slane %v8072, %v8085
      %v8087 = vcombine.low %v8052, %v8060
      %v8088 = vcombine.high %v8052, %v8060
      %v8090 = vunpack.c.l.s4 1983009808
      %v8091 = vunpack.c.0.s8 %v8090
      %v8092 = vlaneseq
      %v8093 = vshrl.u32 %v8092, 7
      %v8094 = vsub.s32 %v8091, %v8093
      %v8095 = vrot.slane %v8087, %v8094
      %v8097 = vunpack.c.l.s4 1983009808
      %v8098 = vunpack.c.0.s8 %v8097
      %v8099 = vlaneseq
      %v8100 = vshrl.u32 %v8099, 7
      %v8101 = vsub.s32 %v8098, %v8100
      %v8102 = vrot.slane %v8088, %v8101
      %v8103 = vcombine.low %v8079, %v8095
      %v8104 = vcombine.high %v8079, %v8095
      %v8106 = vunpack.c.l.s4 1934713408
      %v8107 = vunpack.c.0.s8 %v8106
      %v8108 = vlaneseq
      %v8109 = vshrl.u32 %v8108, 7
      %v8110 = vsub.s32 %v8107, %v8109
      %v8111 = vrot.slane %v8103, %v8110
      %v8113 = vunpack.c.l.s4 1934713408
      %v8114 = vunpack.c.0.s8 %v8113
      %v8115 = vlaneseq
      %v8116 = vshrl.u32 %v8115, 7
      %v8117 = vsub.s32 %v8114, %v8116
      %v8118 = vrot.slane %v8104, %v8117
      %v8119 = vcombine.low %v8086, %v8102
      %v8120 = vcombine.high %v8086, %v8102
      %v8122 = vunpack.c.l.s4 1934713408
      %v8123 = vunpack.c.0.s8 %v8122
      %v8124 = vlaneseq
      %v8125 = vshrl.u32 %v8124, 7
      %v8126 = vsub.s32 %v8123, %v8125
      %v8127 = vrot.slane %v8119, %v8126
      %v8129 = vunpack.c.l.s4 1934713408
      %v8130 = vunpack.c.0.s8 %v8129
      %v8131 = vlaneseq
      %v8132 = vshrl.u32 %v8131, 7
      %v8133 = vsub.s32 %v8130, %v8132
      %v8134 = vrot.slane %v8120, %v8133
      %v8135 = vcombine.high %v8111, 0.0
      %v8136 = vcombine.high %v8118, 0.0
      %v8137 = vcombine.high %v8127, 0.0
      %v8138 = vcombine.high %v8134, 0.0
      %v8139 = vcombine.low %v8050, %v8058
      %v8140 = vcombine.high %v8050, %v8058
      %v8142 = vunpack.c.l.s4 1983009808
      %v8143 = vunpack.c.0.s8 %v8142
      %v8144 = vlaneseq
      %v8145 = vshrl.u32 %v8144, 7
      %v8146 = vsub.s32 %v8143, %v8145
      %v8147 = vrot.slane %v8139, %v8146
      %v8149 = vunpack.c.l.s4 1983009808
      %v8150 = vunpack.c.0.s8 %v8149
      %v8151 = vlaneseq
      %v8152 = vshrl.u32 %v8151, 7
      %v8153 = vsub.s32 %v8150, %v8152
      %v8154 = vrot.slane %v8140, %v8153
      %v8155 = vcombine.low %v8054, %v8062
      %v8156 = vcombine.high %v8054, %v8062
      %v8158 = vunpack.c.l.s4 1983009808
      %v8159 = vunpack.c.0.s8 %v8158
      %v8160 = vlaneseq
      %v8161 = vshrl.u32 %v8160, 7
      %v8162 = vsub.s32 %v8159, %v8161
      %v8163 = vrot.slane %v8155, %v8162
      %v8165 = vunpack.c.l.s4 1983009808
      %v8166 = vunpack.c.0.s8 %v8165
      %v8167 = vlaneseq
      %v8168 = vshrl.u32 %v8167, 7
      %v8169 = vsub.s32 %v8166, %v8168
      %v8170 = vrot.slane %v8156, %v8169
      %v8171 = vcombine.low %v8147, %v8163
      %v8172 = vcombine.high %v8147, %v8163
      %v8174 = vunpack.c.l.s4 1934713408
      %v8175 = vunpack.c.0.s8 %v8174
      %v8176 = vlaneseq
      %v8177 = vshrl.u32 %v8176, 7
      %v8178 = vsub.s32 %v8175, %v8177
      %v8179 = vrot.slane %v8171, %v8178
      %v8181 = vunpack.c.l.s4 1934713408
      %v8182 = vunpack.c.0.s8 %v8181
      %v8183 = vlaneseq
      %v8184 = vshrl.u32 %v8183, 7
      %v8185 = vsub.s32 %v8182, %v8184
      %v8186 = vrot.slane %v8172, %v8185
      %v8187 = vcombine.low %v8154, %v8170
      %v8188 = vcombine.high %v8154, %v8170
      %v8190 = vunpack.c.l.s4 1934713408
      %v8191 = vunpack.c.0.s8 %v8190
      %v8192 = vlaneseq
      %v8193 = vshrl.u32 %v8192, 7
      %v8194 = vsub.s32 %v8191, %v8193
      %v8195 = vrot.slane %v8187, %v8194
      %v8197 = vunpack.c.l.s4 1934713408
      %v8198 = vunpack.c.0.s8 %v8197
      %v8199 = vlaneseq
      %v8200 = vshrl.u32 %v8199, 7
      %v8201 = vsub.s32 %v8198, %v8200
      %v8202 = vrot.slane %v8188, %v8201
      %v8203 = vcombine.high %v8179, 0.0
      %v8204 = vcombine.high %v8186, 0.0
      %v8205 = vcombine.high %v8195, 0.0
      %v8206 = vcombine.high %v8202, 0.0
      %8208 = vrot.lane.b32.xlu0 %v8135, 16
      %v8209 = vpop.permute.xlu0 %8208
      %8212 = vrot.lane.b32.xlu0 %v8118, 32
      %v8213 = vpop.permute.xlu0 %8212
      %8216 = vrot.lane.b32.xlu0 %v8136, 48
      %v8217 = vpop.permute.xlu0 %8216
      %8220 = vrot.lane.b32.xlu0 %v8127, 64
      %v8221 = vpop.permute.xlu0 %8220
      %8224 = vrot.lane.b32.xlu0 %v8137, 80
      %v8225 = vpop.permute.xlu0 %8224
      %8228 = vrot.lane.b32.xlu0 %v8134, 96
      %v8229 = vpop.permute.xlu0 %8228
      %8232 = vrot.lane.b32.xlu0 %v8138, 112
      %v8233 = vpop.permute.xlu0 %8232
      %8236 = vrot.lane.b32.xlu0 %v8203, 16
      %v8237 = vpop.permute.xlu0 %8236
      %8240 = vrot.lane.b32.xlu0 %v8186, 32
      %v8241 = vpop.permute.xlu0 %8240
      %8244 = vrot.lane.b32.xlu0 %v8204, 48
      %v8245 = vpop.permute.xlu0 %8244
      %8248 = vrot.lane.b32.xlu0 %v8195, 64
      %v8249 = vpop.permute.xlu0 %8248
      %8252 = vrot.lane.b32.xlu0 %v8205, 80
      %v8253 = vpop.permute.xlu0 %8252
      %8256 = vrot.lane.b32.xlu0 %v8202, 96
      %v8257 = vpop.permute.xlu0 %8256
      %8260 = vrot.lane.b32.xlu0 %v8206, 112
      %v8261 = vpop.permute.xlu0 %8260
      %v8263 = vsel %vm630, %v8111, %v8209
      %v8264 = vsel %vm632, %v8263, %v8213
      %v8265 = vsel %vm634, %v8264, %v8217
      %v8266 = vsel %vm636, %v8265, %v8221
      %v8267 = vsel %vm638, %v8266, %v8225
      %v8268 = vsel %vm640, %v8267, %v8229
      %v8269 = vsel %vm642, %v8268, %v8233
      %v8270 = vsel %vm630, %v8179, %v8237
      %v8271 = vsel %vm632, %v8270, %v8241
      %v8272 = vsel %vm634, %v8271, %v8245
      %v8273 = vsel %vm636, %v8272, %v8249
      %v8274 = vsel %vm638, %v8273, %v8253
      %v8275 = vsel %vm640, %v8274, %v8257
      %v8276 = vsel %vm642, %v8275, %v8261
      %v8279 = vcombine.low %v8269, %v8276
      %8281 = vst [vmem:[%s2328] sm:$0xff] %v8279
      %8282 = vrot.lane.b32.xlu0 %v7810, 126
      %v8283 = vpop.permute.xlu0 %8282
      %8284 = vrot.lane.b32.xlu0 %v7812, 126
      %v8285 = vpop.permute.xlu0 %8284
      %8286 = vrot.lane.b32.xlu0 %v7815, 126
      %v8287 = vpop.permute.xlu0 %8286
      %8288 = vrot.lane.b32.xlu0 %v7817, 126
      %v8289 = vpop.permute.xlu0 %8288
      %8290 = vrot.lane.b32.xlu0 %v7820, 126
      %v8291 = vpop.permute.xlu0 %8290
      %8292 = vrot.lane.b32.xlu0 %v7822, 126
      %v8293 = vpop.permute.xlu0 %8292
      %8294 = vrot.lane.b32.xlu0 %v7825, 126
      %v8295 = vpop.permute.xlu0 %8294
      %8296 = vrot.lane.b32.xlu0 %v7827, 126
      %v8297 = vpop.permute.xlu0 %8296
      %v8306 = vcombine.low %v8283, %v8291
      %v8307 = vcombine.high %v8283, %v8291
      %v8309 = vunpack.c.l.s4 1983009808
      %v8310 = vunpack.c.0.s8 %v8309
      %v8311 = vlaneseq
      %v8312 = vshrl.u32 %v8311, 7
      %v8313 = vsub.s32 %v8310, %v8312
      %v8314 = vrot.slane %v8306, %v8313
      %v8316 = vunpack.c.l.s4 1983009808
      %v8317 = vunpack.c.0.s8 %v8316
      %v8318 = vlaneseq
      %v8319 = vshrl.u32 %v8318, 7
      %v8320 = vsub.s32 %v8317, %v8319
      %v8321 = vrot.slane %v8307, %v8320
      %v8322 = vcombine.low %v8287, %v8295
      %v8323 = vcombine.high %v8287, %v8295
      %v8325 = vunpack.c.l.s4 1983009808
      %v8326 = vunpack.c.0.s8 %v8325
      %v8327 = vlaneseq
      %v8328 = vshrl.u32 %v8327, 7
      %v8329 = vsub.s32 %v8326, %v8328
      %v8330 = vrot.slane %v8322, %v8329
      %v8332 = vunpack.c.l.s4 1983009808
      %v8333 = vunpack.c.0.s8 %v8332
      %v8334 = vlaneseq
      %v8335 = vshrl.u32 %v8334, 7
      %v8336 = vsub.s32 %v8333, %v8335
      %v8337 = vrot.slane %v8323, %v8336
      %v8338 = vcombine.low %v8314, %v8330
      %v8339 = vcombine.high %v8314, %v8330
      %v8341 = vunpack.c.l.s4 1934713408
      %v8342 = vunpack.c.0.s8 %v8341
      %v8343 = vlaneseq
      %v8344 = vshrl.u32 %v8343, 7
      %v8345 = vsub.s32 %v8342, %v8344
      %v8346 = vrot.slane %v8338, %v8345
      %v8348 = vunpack.c.l.s4 1934713408
      %v8349 = vunpack.c.0.s8 %v8348
      %v8350 = vlaneseq
      %v8351 = vshrl.u32 %v8350, 7
      %v8352 = vsub.s32 %v8349, %v8351
      %v8353 = vrot.slane %v8339, %v8352
      %v8354 = vcombine.low %v8321, %v8337
      %v8355 = vcombine.high %v8321, %v8337
      %v8357 = vunpack.c.l.s4 1934713408
      %v8358 = vunpack.c.0.s8 %v8357
      %v8359 = vlaneseq
      %v8360 = vshrl.u32 %v8359, 7
      %v8361 = vsub.s32 %v8358, %v8360
      %v8362 = vrot.slane %v8354, %v8361
      %v8364 = vunpack.c.l.s4 1934713408
      %v8365 = vunpack.c.0.s8 %v8364
      %v8366 = vlaneseq
      %v8367 = vshrl.u32 %v8366, 7
      %v8368 = vsub.s32 %v8365, %v8367
      %v8369 = vrot.slane %v8355, %v8368
      %v8370 = vcombine.high %v8346, 0.0
      %v8371 = vcombine.high %v8353, 0.0
      %v8372 = vcombine.high %v8362, 0.0
      %v8373 = vcombine.high %v8369, 0.0
      %v8374 = vcombine.low %v8285, %v8293
      %v8375 = vcombine.high %v8285, %v8293
      %v8377 = vunpack.c.l.s4 1983009808
      %v8378 = vunpack.c.0.s8 %v8377
      %v8379 = vlaneseq
      %v8380 = vshrl.u32 %v8379, 7
      %v8381 = vsub.s32 %v8378, %v8380
      %v8382 = vrot.slane %v8374, %v8381
      %v8384 = vunpack.c.l.s4 1983009808
      %v8385 = vunpack.c.0.s8 %v8384
      %v8386 = vlaneseq
      %v8387 = vshrl.u32 %v8386, 7
      %v8388 = vsub.s32 %v8385, %v8387
      %v8389 = vrot.slane %v8375, %v8388
      %v8390 = vcombine.low %v8289, %v8297
      %v8391 = vcombine.high %v8289, %v8297
      %v8393 = vunpack.c.l.s4 1983009808
      %v8394 = vunpack.c.0.s8 %v8393
      %v8395 = vlaneseq
      %v8396 = vshrl.u32 %v8395, 7
      %v8397 = vsub.s32 %v8394, %v8396
      %v8398 = vrot.slane %v8390, %v8397
      %v8400 = vunpack.c.l.s4 1983009808
      %v8401 = vunpack.c.0.s8 %v8400
      %v8402 = vlaneseq
      %v8403 = vshrl.u32 %v8402, 7
      %v8404 = vsub.s32 %v8401, %v8403
      %v8405 = vrot.slane %v8391, %v8404
      %v8406 = vcombine.low %v8382, %v8398
      %v8407 = vcombine.high %v8382, %v8398
      %v8409 = vunpack.c.l.s4 1934713408
      %v8410 = vunpack.c.0.s8 %v8409
      %v8411 = vlaneseq
      %v8412 = vshrl.u32 %v8411, 7
      %v8413 = vsub.s32 %v8410, %v8412
      %v8414 = vrot.slane %v8406, %v8413
      %v8416 = vunpack.c.l.s4 1934713408
      %v8417 = vunpack.c.0.s8 %v8416
      %v8418 = vlaneseq
      %v8419 = vshrl.u32 %v8418, 7
      %v8420 = vsub.s32 %v8417, %v8419
      %v8421 = vrot.slane %v8407, %v8420
      %v8422 = vcombine.low %v8389, %v8405
      %v8423 = vcombine.high %v8389, %v8405
      %v8425 = vunpack.c.l.s4 1934713408
      %v8426 = vunpack.c.0.s8 %v8425
      %v8427 = vlaneseq
      %v8428 = vshrl.u32 %v8427, 7
      %v8429 = vsub.s32 %v8426, %v8428
      %v8430 = vrot.slane %v8422, %v8429
      %v8432 = vunpack.c.l.s4 1934713408
      %v8433 = vunpack.c.0.s8 %v8432
      %v8434 = vlaneseq
      %v8435 = vshrl.u32 %v8434, 7
      %v8436 = vsub.s32 %v8433, %v8435
      %v8437 = vrot.slane %v8423, %v8436
      %v8438 = vcombine.high %v8414, 0.0
      %v8439 = vcombine.high %v8421, 0.0
      %v8440 = vcombine.high %v8430, 0.0
      %v8441 = vcombine.high %v8437, 0.0
      %8443 = vrot.lane.b32.xlu0 %v8370, 16
      %v8444 = vpop.permute.xlu0 %8443
      %8447 = vrot.lane.b32.xlu0 %v8353, 32
      %v8448 = vpop.permute.xlu0 %8447
      %8451 = vrot.lane.b32.xlu0 %v8371, 48
      %v8452 = vpop.permute.xlu0 %8451
      %8455 = vrot.lane.b32.xlu0 %v8362, 64
      %v8456 = vpop.permute.xlu0 %8455
      %8459 = vrot.lane.b32.xlu0 %v8372, 80
      %v8460 = vpop.permute.xlu0 %8459
      %8463 = vrot.lane.b32.xlu0 %v8369, 96
      %v8464 = vpop.permute.xlu0 %8463
      %8467 = vrot.lane.b32.xlu0 %v8373, 112
      %v8468 = vpop.permute.xlu0 %8467
      %8471 = vrot.lane.b32.xlu0 %v8438, 16
      %v8472 = vpop.permute.xlu0 %8471
      %8475 = vrot.lane.b32.xlu0 %v8421, 32
      %v8476 = vpop.permute.xlu0 %8475
      %8479 = vrot.lane.b32.xlu0 %v8439, 48
      %v8480 = vpop.permute.xlu0 %8479
      %8483 = vrot.lane.b32.xlu0 %v8430, 64
      %v8484 = vpop.permute.xlu0 %8483
      %8487 = vrot.lane.b32.xlu0 %v8440, 80
      %v8488 = vpop.permute.xlu0 %8487
      %8491 = vrot.lane.b32.xlu0 %v8437, 96
      %v8492 = vpop.permute.xlu0 %8491
      %8495 = vrot.lane.b32.xlu0 %v8441, 112
      %v8496 = vpop.permute.xlu0 %8495
      %v8498 = vsel %vm630, %v8346, %v8444
      %v8499 = vsel %vm632, %v8498, %v8448
      %v8500 = vsel %vm634, %v8499, %v8452
      %v8501 = vsel %vm636, %v8500, %v8456
      %v8502 = vsel %vm638, %v8501, %v8460
      %v8503 = vsel %vm640, %v8502, %v8464
      %v8504 = vsel %vm642, %v8503, %v8468
      %v8505 = vsel %vm630, %v8414, %v8472
      %v8506 = vsel %vm632, %v8505, %v8476
      %v8507 = vsel %vm634, %v8506, %v8480
      %v8508 = vsel %vm636, %v8507, %v8484
      %v8509 = vsel %vm638, %v8508, %v8488
      %v8510 = vsel %vm640, %v8509, %v8492
      %v8511 = vsel %vm642, %v8510, %v8496
      %v8514 = vcombine.low %v8504, %v8511
      %8516 = vst [vmem:[%s2564] sm:$0xff] %v8514
      %v8517 = vld [vmem:[#allocation3] sm:$0xff]
      %v8518 = vld [vmem:[#allocation3 + $0x8] sm:$0xff]
      %v8519 = vld [vmem:[#allocation3 + $0x10] sm:$0xff]
      %v8520 = vld [vmem:[#allocation3 + $0x18] sm:$0xff]
      %v8521 = vld [vmem:[#allocation3 + $0x20] sm:$0xff]
      %v8522 = vld [vmem:[#allocation3 + $0x28] sm:$0xff]
      %v8523 = vld [vmem:[#allocation3 + $0x30] sm:$0xff]
      %v8524 = vld [vmem:[#allocation3 + $0x38] sm:$0xff]
      %v8525 = vld [vmem:[#allocation3 + $0x40] sm:$0xff]
      %s8526 = scalar_lea.vmem %s1, 8
      %v8527 = vld [vmem:[%s8526] sm:$0xf]
      %v8537 = vcombine.low %v8517, %v8518
      %v8538 = vcombine.high %v8517, %v8518
      %v8539 = vcombine.low %v8519, %v8520
      %v8540 = vcombine.high %v8519, %v8520
      %v8541 = vcombine.low %v8521, %v8522
      %v8542 = vcombine.high %v8521, %v8522
      %v8543 = vcombine.low %v8523, %v8524
      %v8544 = vcombine.high %v8523, %v8524
      %v8545 = vcombine.high %v8525, %v8525
      %v8555 = vsel %vm2602, %v8527, 0
      %v8557 = vsel %vm2606, %v8525, 0
      %v8559 = vsel %vm2606, %v8545, 0
      %8561 = vmatprep.subr.mxu0 0.0
      %8562 = vmatpush1.msra.mxu0 0.0
      %8563 = vmatprep.subr.mxu0 0.0
      %8564 = vmatpush1.msra.mxu0 0.0
      %8565 = vmatprep.subr.mxu0 0.0
      %8566 = vmatpush1.msra.mxu0 0.0
      %8567 = vmatprep.subr.mxu0 0.0
      %8568 = vmatpush1.msra.mxu0 0.0
      %8569 = vmatprep.subr.mxu0 0.0
      %8570 = vmatpush1.msra.mxu0 0.0
      %8571 = vmatprep.subr.mxu0 0.0
      %8572 = vmatpush1.msra.mxu0 0.0
      %8573 = vmatprep.subr.mxu0 0.0
      %8574 = vmatpush1.msra.mxu0 0.0
      %8575 = vmatprep.subr.mxu0 0.0
      %8576 = vmatpush1.msra.mxu0 0.0
      %8577 = vmatprep.subr.mxu0 0.0
      %8578 = vmatpush1.msra.mxu0 0.0
      %8579 = vmatprep.subr.mxu0 0.0
      %8580 = vmatpush1.msra.mxu0 0.0
      %8581 = vmatprep.subr.mxu0 0.0
      %8582 = vmatpush1.msra.mxu0 0.0
      %v8583 = vand.u32 %v8559, 4294901760
      %8584 = vmatprep.subr.mxu0 %v8583
      %v8585 = vand.u32 %v8557, 4294901760
      %8586 = vmatpush1.msra.mxu0 %v8585
      %v8587 = vand.u32 %v8544, 4294901760
      %8588 = vmatprep.subr.mxu0 %v8587
      %v8589 = vand.u32 %v8543, 4294901760
      %8590 = vmatpush1.msra.mxu0 %v8589
      %v8591 = vand.u32 %v8542, 4294901760
      %8592 = vmatprep.subr.mxu0 %v8591
      %v8593 = vand.u32 %v8541, 4294901760
      %8594 = vmatpush1.msra.mxu0 %v8593
      %v8595 = vand.u32 %v8540, 4294901760
      %8596 = vmatprep.subr.mxu0 %v8595
      %v8597 = vand.u32 %v8539, 4294901760
      %8598 = vmatpush1.msra.mxu0 %v8597
      %v8599 = vand.u32 %v8538, 4294901760
      %8600 = vmatprep.subr.mxu0 %v8599
      %v8601 = vand.u32 %v8537, 4294901760
      %8602 = vmatpush1.msra.mxu0 %v8601
      %8603 = vmatprep.subr.mxu0 0.0
      %8604 = vmatpush2.msra.mxu0 0.0
      %8605 = vmatprep.subr.mxu0 0.0
      %8606 = vmatpush2.msra.mxu0 0.0
      %8607 = vmatprep.subr.mxu0 0.0
      %8608 = vmatpush2.msra.mxu0 0.0
      %8609 = vmatprep.subr.mxu0 0.0
      %8610 = vmatpush2.msra.mxu0 0.0
      %8611 = vmatprep.subr.mxu0 0.0
      %8612 = vmatpush2.msra.mxu0 0.0
      %8613 = vmatprep.subr.mxu0 0.0
      %8614 = vmatpush2.msra.mxu0 0.0
      %8615 = vmatprep.subr.mxu0 0.0
      %8616 = vmatpush2.msra.mxu0 0.0
      %8617 = vmatprep.subr.mxu0 0.0
      %8618 = vmatpush2.msra.mxu0 0.0
      %8619 = vmatprep.subr.mxu0 0.0
      %8620 = vmatpush2.msra.mxu0 0.0
      %8621 = vmatprep.subr.mxu0 0.0
      %8622 = vmatpush2.msra.mxu0 0.0
      %8623 = vmatprep.subr.mxu0 0.0
      %8624 = vmatpush2.msra.mxu0 0.0
      %8625 = vmatprep.subr.mxu0 0.0
      %8626 = vmatpush2.msra.mxu0 0.0
      %8627 = vmatprep.subr.mxu0 0.0
      %8628 = vmatpush2.msra.mxu0 0.0
      %8629 = vmatprep.subr.mxu0 0.0
      %8630 = vmatpush2.msra.mxu0 0.0
      %8631 = vmatprep.subr.mxu0 0.0
      %8632 = vmatpush2.msra.mxu0 0.0
      %8633 = vmatprep.subr.mxu0 0.0
      %8634 = vmatpush2.msra.mxu0 0.0
      %8635 = vmatprep.mubr.f32.mxu0 0.0
      %v8636 = vand.u32 %v8555, 4294901760
      %v8637 = vsub.f32 %v8555, %v8636
      %v8638 = vand.u32 %v8637, 4294901760
      %v8639 = vsub.f32 %v8637, %v8638
      %v8640 = vand.u32 %v8639, 4294901760
      %8641 = vmatmul.mubr.f32.gmra.mxu0 %v8640
      %v8642 = vpop.f32.mrf.mxu0
      %v8643 = vadd.f32 0.0, %v8642
      %v8644 = vpop.f32.mrf.mxu0
      %v8645 = vadd.f32 0.0, %v8644
      %8646 = vdwg.mxu0
      %8647 = vmatprep.subr.mxu0 0.0
      %8648 = vmatpush1.msra.mxu0 0.0
      %8649 = vmatprep.subr.mxu0 0.0
      %8650 = vmatpush1.msra.mxu0 0.0
      %8651 = vmatprep.subr.mxu0 0.0
      %8652 = vmatpush1.msra.mxu0 0.0
      %8653 = vmatprep.subr.mxu0 0.0
      %8654 = vmatpush1.msra.mxu0 0.0
      %8655 = vmatprep.subr.mxu0 0.0
      %8656 = vmatpush1.msra.mxu0 0.0
      %8657 = vmatprep.subr.mxu0 0.0
      %8658 = vmatpush1.msra.mxu0 0.0
      %8659 = vmatprep.subr.mxu0 0.0
      %8660 = vmatpush1.msra.mxu0 0.0
      %8661 = vmatprep.subr.mxu0 0.0
      %8662 = vmatpush1.msra.mxu0 0.0
      %8663 = vmatprep.subr.mxu0 0.0
      %8664 = vmatpush1.msra.mxu0 0.0
      %8665 = vmatprep.subr.mxu0 0.0
      %8666 = vmatpush1.msra.mxu0 0.0
      %8667 = vmatprep.subr.mxu0 0.0
      %8668 = vmatpush1.msra.mxu0 0.0
      %v8669 = vand.u32 %v8559, 4294901760
      %v8670 = vsub.f32 %v8559, %v8669
      %v8671 = vand.u32 %v8670, 4294901760
      %v8672 = vsub.f32 %v8670, %v8671
      %v8673 = vand.u32 %v8672, 4294901760
      %8674 = vmatprep.subr.mxu0 %v8673
      %v8675 = vand.u32 %v8557, 4294901760
      %v8676 = vsub.f32 %v8557, %v8675
      %v8677 = vand.u32 %v8676, 4294901760
      %v8678 = vsub.f32 %v8676, %v8677
      %v8679 = vand.u32 %v8678, 4294901760
      %8680 = vmatpush1.msra.mxu0 %v8679
      %v8681 = vand.u32 %v8544, 4294901760
      %v8682 = vsub.f32 %v8544, %v8681
      %v8683 = vand.u32 %v8682, 4294901760
      %v8684 = vsub.f32 %v8682, %v8683
      %v8685 = vand.u32 %v8684, 4294901760
      %8686 = vmatprep.subr.mxu0 %v8685
      %v8687 = vand.u32 %v8543, 4294901760
      %v8688 = vsub.f32 %v8543, %v8687
      %v8689 = vand.u32 %v8688, 4294901760
      %v8690 = vsub.f32 %v8688, %v8689
      %v8691 = vand.u32 %v8690, 4294901760
      %8692 = vmatpush1.msra.mxu0 %v8691
      %v8693 = vand.u32 %v8542, 4294901760
      %v8694 = vsub.f32 %v8542, %v8693
      %v8695 = vand.u32 %v8694, 4294901760
      %v8696 = vsub.f32 %v8694, %v8695
      %v8697 = vand.u32 %v8696, 4294901760
      %8698 = vmatprep.subr.mxu0 %v8697
      %v8699 = vand.u32 %v8541, 4294901760
      %v8700 = vsub.f32 %v8541, %v8699
      %v8701 = vand.u32 %v8700, 4294901760
      %v8702 = vsub.f32 %v8700, %v8701
      %v8703 = vand.u32 %v8702, 4294901760
      %8704 = vmatpush1.msra.mxu0 %v8703
      %v8705 = vand.u32 %v8540, 4294901760
      %v8706 = vsub.f32 %v8540, %v8705
      %v8707 = vand.u32 %v8706, 4294901760
      %v8708 = vsub.f32 %v8706, %v8707
      %v8709 = vand.u32 %v8708, 4294901760
      %8710 = vmatprep.subr.mxu0 %v8709
      %v8711 = vand.u32 %v8539, 4294901760
      %v8712 = vsub.f32 %v8539, %v8711
      %v8713 = vand.u32 %v8712, 4294901760
      %v8714 = vsub.f32 %v8712, %v8713
      %v8715 = vand.u32 %v8714, 4294901760
      %8716 = vmatpush1.msra.mxu0 %v8715
      %v8717 = vand.u32 %v8538, 4294901760
      %v8718 = vsub.f32 %v8538, %v8717
      %v8719 = vand.u32 %v8718, 4294901760
      %v8720 = vsub.f32 %v8718, %v8719
      %v8721 = vand.u32 %v8720, 4294901760
      %8722 = vmatprep.subr.mxu0 %v8721
      %v8723 = vand.u32 %v8537, 4294901760
      %v8724 = vsub.f32 %v8537, %v8723
      %v8725 = vand.u32 %v8724, 4294901760
      %v8726 = vsub.f32 %v8724, %v8725
      %v8727 = vand.u32 %v8726, 4294901760
      %8728 = vmatpush1.msra.mxu0 %v8727
      %8729 = vmatprep.subr.mxu0 0.0
      %8730 = vmatpush2.msra.mxu0 0.0
      %8731 = vmatprep.subr.mxu0 0.0
      %8732 = vmatpush2.msra.mxu0 0.0
      %8733 = vmatprep.subr.mxu0 0.0
      %8734 = vmatpush2.msra.mxu0 0.0
      %8735 = vmatprep.subr.mxu0 0.0
      %8736 = vmatpush2.msra.mxu0 0.0
      %8737 = vmatprep.subr.mxu0 0.0
      %8738 = vmatpush2.msra.mxu0 0.0
      %8739 = vmatprep.subr.mxu0 0.0
      %8740 = vmatpush2.msra.mxu0 0.0
      %8741 = vmatprep.subr.mxu0 0.0
      %8742 = vmatpush2.msra.mxu0 0.0
      %8743 = vmatprep.subr.mxu0 0.0
      %8744 = vmatpush2.msra.mxu0 0.0
      %8745 = vmatprep.subr.mxu0 0.0
      %8746 = vmatpush2.msra.mxu0 0.0
      %8747 = vmatprep.subr.mxu0 0.0
      %8748 = vmatpush2.msra.mxu0 0.0
      %8749 = vmatprep.subr.mxu0 0.0
      %8750 = vmatpush2.msra.mxu0 0.0
      %8751 = vmatprep.subr.mxu0 0.0
      %8752 = vmatpush2.msra.mxu0 0.0
      %8753 = vmatprep.subr.mxu0 0.0
      %8754 = vmatpush2.msra.mxu0 0.0
      %8755 = vmatprep.subr.mxu0 0.0
      %8756 = vmatpush2.msra.mxu0 0.0
      %8757 = vmatprep.subr.mxu0 0.0
      %8758 = vmatpush2.msra.mxu0 0.0
      %8759 = vmatprep.subr.mxu0 0.0
      %8760 = vmatpush2.msra.mxu0 0.0
      %8761 = vmatprep.mubr.f32.mxu0 0.0
      %v8762 = vand.u32 %v8555, 4294901760
      %8763 = vmatmul.mubr.f32.gmra.mxu0 %v8762
      %v8764 = vpop.f32.mrf.mxu0
      %v8765 = vadd.f32 %v8643, %v8764
      %v8766 = vpop.f32.mrf.mxu0
      %v8767 = vadd.f32 %v8645, %v8766
      %8768 = vdwg.mxu0
      %8769 = vmatprep.subr.mxu0 0.0
      %8770 = vmatpush1.msra.mxu0 0.0
      %8771 = vmatprep.subr.mxu0 0.0
      %8772 = vmatpush1.msra.mxu0 0.0
      %8773 = vmatprep.subr.mxu0 0.0
      %8774 = vmatpush1.msra.mxu0 0.0
      %8775 = vmatprep.subr.mxu0 0.0
      %8776 = vmatpush1.msra.mxu0 0.0
      %8777 = vmatprep.subr.mxu0 0.0
      %8778 = vmatpush1.msra.mxu0 0.0
      %8779 = vmatprep.subr.mxu0 0.0
      %8780 = vmatpush1.msra.mxu0 0.0
      %8781 = vmatprep.subr.mxu0 0.0
      %8782 = vmatpush1.msra.mxu0 0.0
      %8783 = vmatprep.subr.mxu0 0.0
      %8784 = vmatpush1.msra.mxu0 0.0
      %8785 = vmatprep.subr.mxu0 0.0
      %8786 = vmatpush1.msra.mxu0 0.0
      %8787 = vmatprep.subr.mxu0 0.0
      %8788 = vmatpush1.msra.mxu0 0.0
      %8789 = vmatprep.subr.mxu0 0.0
      %8790 = vmatpush1.msra.mxu0 0.0
      %v8791 = vand.u32 %v8559, 4294901760
      %v8792 = vsub.f32 %v8559, %v8791
      %8793 = vmatprep.subr.mxu0 %v8792
      %v8794 = vand.u32 %v8557, 4294901760
      %v8795 = vsub.f32 %v8557, %v8794
      %8796 = vmatpush1.msra.mxu0 %v8795
      %v8797 = vand.u32 %v8544, 4294901760
      %v8798 = vsub.f32 %v8544, %v8797
      %8799 = vmatprep.subr.mxu0 %v8798
      %v8800 = vand.u32 %v8543, 4294901760
      %v8801 = vsub.f32 %v8543, %v8800
      %8802 = vmatpush1.msra.mxu0 %v8801
      %v8803 = vand.u32 %v8542, 4294901760
      %v8804 = vsub.f32 %v8542, %v8803
      %8805 = vmatprep.subr.mxu0 %v8804
      %v8806 = vand.u32 %v8541, 4294901760
      %v8807 = vsub.f32 %v8541, %v8806
      %8808 = vmatpush1.msra.mxu0 %v8807
      %v8809 = vand.u32 %v8540, 4294901760
      %v8810 = vsub.f32 %v8540, %v8809
      %8811 = vmatprep.subr.mxu0 %v8810
      %v8812 = vand.u32 %v8539, 4294901760
      %v8813 = vsub.f32 %v8539, %v8812
      %8814 = vmatpush1.msra.mxu0 %v8813
      %v8815 = vand.u32 %v8538, 4294901760
      %v8816 = vsub.f32 %v8538, %v8815
      %8817 = vmatprep.subr.mxu0 %v8816
      %v8818 = vand.u32 %v8537, 4294901760
      %v8819 = vsub.f32 %v8537, %v8818
      %8820 = vmatpush1.msra.mxu0 %v8819
      %8821 = vmatprep.subr.mxu0 0.0
      %8822 = vmatpush2.msra.mxu0 0.0
      %8823 = vmatprep.subr.mxu0 0.0
      %8824 = vmatpush2.msra.mxu0 0.0
      %8825 = vmatprep.subr.mxu0 0.0
      %8826 = vmatpush2.msra.mxu0 0.0
      %8827 = vmatprep.subr.mxu0 0.0
      %8828 = vmatpush2.msra.mxu0 0.0
      %8829 = vmatprep.subr.mxu0 0.0
      %8830 = vmatpush2.msra.mxu0 0.0
      %8831 = vmatprep.subr.mxu0 0.0
      %8832 = vmatpush2.msra.mxu0 0.0
      %8833 = vmatprep.subr.mxu0 0.0
      %8834 = vmatpush2.msra.mxu0 0.0
      %8835 = vmatprep.subr.mxu0 0.0
      %8836 = vmatpush2.msra.mxu0 0.0
      %8837 = vmatprep.subr.mxu0 0.0
      %8838 = vmatpush2.msra.mxu0 0.0
      %8839 = vmatprep.subr.mxu0 0.0
      %8840 = vmatpush2.msra.mxu0 0.0
      %8841 = vmatprep.subr.mxu0 0.0
      %8842 = vmatpush2.msra.mxu0 0.0
      %8843 = vmatprep.subr.mxu0 0.0
      %8844 = vmatpush2.msra.mxu0 0.0
      %8845 = vmatprep.subr.mxu0 0.0
      %8846 = vmatpush2.msra.mxu0 0.0
      %8847 = vmatprep.subr.mxu0 0.0
      %8848 = vmatpush2.msra.mxu0 0.0
      %8849 = vmatprep.subr.mxu0 0.0
      %8850 = vmatpush2.msra.mxu0 0.0
      %8851 = vmatprep.subr.mxu0 0.0
      %8852 = vmatpush2.msra.mxu0 0.0
      %8853 = vmatprep.mubr.f32.mxu0 0.0
      %v8854 = vand.u32 %v8555, 4294901760
      %v8855 = vsub.f32 %v8555, %v8854
      %8856 = vmatmul.mubr.f32.gmra.mxu0 %v8855
      %v8857 = vpop.f32.mrf.mxu0
      %v8858 = vadd.f32 %v8765, %v8857
      %v8859 = vpop.f32.mrf.mxu0
      %v8860 = vadd.f32 %v8767, %v8859
      %8861 = vdwg.mxu0
      %8862 = vmatprep.subr.mxu0 0.0
      %8863 = vmatpush1.msra.mxu0 0.0
      %8864 = vmatprep.subr.mxu0 0.0
      %8865 = vmatpush1.msra.mxu0 0.0
      %8866 = vmatprep.subr.mxu0 0.0
      %8867 = vmatpush1.msra.mxu0 0.0
      %8868 = vmatprep.subr.mxu0 0.0
      %8869 = vmatpush1.msra.mxu0 0.0
      %8870 = vmatprep.subr.mxu0 0.0
      %8871 = vmatpush1.msra.mxu0 0.0
      %8872 = vmatprep.subr.mxu0 0.0
      %8873 = vmatpush1.msra.mxu0 0.0
      %8874 = vmatprep.subr.mxu0 0.0
      %8875 = vmatpush1.msra.mxu0 0.0
      %8876 = vmatprep.subr.mxu0 0.0
      %8877 = vmatpush1.msra.mxu0 0.0
      %8878 = vmatprep.subr.mxu0 0.0
      %8879 = vmatpush1.msra.mxu0 0.0
      %8880 = vmatprep.subr.mxu0 0.0
      %8881 = vmatpush1.msra.mxu0 0.0
      %8882 = vmatprep.subr.mxu0 0.0
      %8883 = vmatpush1.msra.mxu0 0.0
      %v8884 = vand.u32 %v8559, 4294901760
      %8885 = vmatprep.subr.mxu0 %v8884
      %v8886 = vand.u32 %v8557, 4294901760
      %8887 = vmatpush1.msra.mxu0 %v8886
      %v8888 = vand.u32 %v8544, 4294901760
      %8889 = vmatprep.subr.mxu0 %v8888
      %v8890 = vand.u32 %v8543, 4294901760
      %8891 = vmatpush1.msra.mxu0 %v8890
      %v8892 = vand.u32 %v8542, 4294901760
      %8893 = vmatprep.subr.mxu0 %v8892
      %v8894 = vand.u32 %v8541, 4294901760
      %8895 = vmatpush1.msra.mxu0 %v8894
      %v8896 = vand.u32 %v8540, 4294901760
      %8897 = vmatprep.subr.mxu0 %v8896
      %v8898 = vand.u32 %v8539, 4294901760
      %8899 = vmatpush1.msra.mxu0 %v8898
      %v8900 = vand.u32 %v8538, 4294901760
      %8901 = vmatprep.subr.mxu0 %v8900
      %v8902 = vand.u32 %v8537, 4294901760
      %8903 = vmatpush1.msra.mxu0 %v8902
      %8904 = vmatprep.subr.mxu0 0.0
      %8905 = vmatpush2.msra.mxu0 0.0
      %8906 = vmatprep.subr.mxu0 0.0
      %8907 = vmatpush2.msra.mxu0 0.0
      %8908 = vmatprep.subr.mxu0 0.0
      %8909 = vmatpush2.msra.mxu0 0.0
      %8910 = vmatprep.subr.mxu0 0.0
      %8911 = vmatpush2.msra.mxu0 0.0
      %8912 = vmatprep.subr.mxu0 0.0
      %8913 = vmatpush2.msra.mxu0 0.0
      %8914 = vmatprep.subr.mxu0 0.0
      %8915 = vmatpush2.msra.mxu0 0.0
      %8916 = vmatprep.subr.mxu0 0.0
      %8917 = vmatpush2.msra.mxu0 0.0
      %8918 = vmatprep.subr.mxu0 0.0
      %8919 = vmatpush2.msra.mxu0 0.0
      %8920 = vmatprep.subr.mxu0 0.0
      %8921 = vmatpush2.msra.mxu0 0.0
      %8922 = vmatprep.subr.mxu0 0.0
      %8923 = vmatpush2.msra.mxu0 0.0
      %8924 = vmatprep.subr.mxu0 0.0
      %8925 = vmatpush2.msra.mxu0 0.0
      %8926 = vmatprep.subr.mxu0 0.0
      %8927 = vmatpush2.msra.mxu0 0.0
      %8928 = vmatprep.subr.mxu0 0.0
      %8929 = vmatpush2.msra.mxu0 0.0
      %8930 = vmatprep.subr.mxu0 0.0
      %8931 = vmatpush2.msra.mxu0 0.0
      %8932 = vmatprep.subr.mxu0 0.0
      %8933 = vmatpush2.msra.mxu0 0.0
      %8934 = vmatprep.subr.mxu0 0.0
      %8935 = vmatpush2.msra.mxu0 0.0
      %8936 = vmatprep.mubr.f32.mxu0 0.0
      %v8937 = vand.u32 %v8555, 4294901760
      %v8938 = vsub.f32 %v8555, %v8937
      %v8939 = vand.u32 %v8938, 4294901760
      %8940 = vmatmul.mubr.f32.gmra.mxu0 %v8939
      %v8941 = vpop.f32.mrf.mxu0
      %v8942 = vadd.f32 %v8858, %v8941
      %v8943 = vpop.f32.mrf.mxu0
      %v8944 = vadd.f32 %v8860, %v8943
      %8945 = vdwg.mxu0
      %8946 = vmatprep.subr.mxu0 0.0
      %8947 = vmatpush1.msra.mxu0 0.0
      %8948 = vmatprep.subr.mxu0 0.0
      %8949 = vmatpush1.msra.mxu0 0.0
      %8950 = vmatprep.subr.mxu0 0.0
      %8951 = vmatpush1.msra.mxu0 0.0
      %8952 = vmatprep.subr.mxu0 0.0
      %8953 = vmatpush1.msra.mxu0 0.0
      %8954 = vmatprep.subr.mxu0 0.0
      %8955 = vmatpush1.msra.mxu0 0.0
      %8956 = vmatprep.subr.mxu0 0.0
      %8957 = vmatpush1.msra.mxu0 0.0
      %8958 = vmatprep.subr.mxu0 0.0
      %8959 = vmatpush1.msra.mxu0 0.0
      %8960 = vmatprep.subr.mxu0 0.0
      %8961 = vmatpush1.msra.mxu0 0.0
      %8962 = vmatprep.subr.mxu0 0.0
      %8963 = vmatpush1.msra.mxu0 0.0
      %8964 = vmatprep.subr.mxu0 0.0
      %8965 = vmatpush1.msra.mxu0 0.0
      %8966 = vmatprep.subr.mxu0 0.0
      %8967 = vmatpush1.msra.mxu0 0.0
      %v8968 = vand.u32 %v8559, 4294901760
      %v8969 = vsub.f32 %v8559, %v8968
      %v8970 = vand.u32 %v8969, 4294901760
      %8971 = vmatprep.subr.mxu0 %v8970
      %v8972 = vand.u32 %v8557, 4294901760
      %v8973 = vsub.f32 %v8557, %v8972
      %v8974 = vand.u32 %v8973, 4294901760
      %8975 = vmatpush1.msra.mxu0 %v8974
      %v8976 = vand.u32 %v8544, 4294901760
      %v8977 = vsub.f32 %v8544, %v8976
      %v8978 = vand.u32 %v8977, 4294901760
      %8979 = vmatprep.subr.mxu0 %v8978
      %v8980 = vand.u32 %v8543, 4294901760
      %v8981 = vsub.f32 %v8543, %v8980
      %v8982 = vand.u32 %v8981, 4294901760
      %8983 = vmatpush1.msra.mxu0 %v8982
      %v8984 = vand.u32 %v8542, 4294901760
      %v8985 = vsub.f32 %v8542, %v8984
      %v8986 = vand.u32 %v8985, 4294901760
      %8987 = vmatprep.subr.mxu0 %v8986
      %v8988 = vand.u32 %v8541, 4294901760
      %v8989 = vsub.f32 %v8541, %v8988
      %v8990 = vand.u32 %v8989, 4294901760
      %8991 = vmatpush1.msra.mxu0 %v8990
      %v8992 = vand.u32 %v8540, 4294901760
      %v8993 = vsub.f32 %v8540, %v8992
      %v8994 = vand.u32 %v8993, 4294901760
      %8995 = vmatprep.subr.mxu0 %v8994
      %v8996 = vand.u32 %v8539, 4294901760
      %v8997 = vsub.f32 %v8539, %v8996
      %v8998 = vand.u32 %v8997, 4294901760
      %8999 = vmatpush1.msra.mxu0 %v8998
      %v9000 = vand.u32 %v8538, 4294901760
      %v9001 = vsub.f32 %v8538, %v9000
      %v9002 = vand.u32 %v9001, 4294901760
      %9003 = vmatprep.subr.mxu0 %v9002
      %v9004 = vand.u32 %v8537, 4294901760
      %v9005 = vsub.f32 %v8537, %v9004
      %v9006 = vand.u32 %v9005, 4294901760
      %9007 = vmatpush1.msra.mxu0 %v9006
      %9008 = vmatprep.subr.mxu0 0.0
      %9009 = vmatpush2.msra.mxu0 0.0
      %9010 = vmatprep.subr.mxu0 0.0
      %9011 = vmatpush2.msra.mxu0 0.0
      %9012 = vmatprep.subr.mxu0 0.0
      %9013 = vmatpush2.msra.mxu0 0.0
      %9014 = vmatprep.subr.mxu0 0.0
      %9015 = vmatpush2.msra.mxu0 0.0
      %9016 = vmatprep.subr.mxu0 0.0
      %9017 = vmatpush2.msra.mxu0 0.0
      %9018 = vmatprep.subr.mxu0 0.0
      %9019 = vmatpush2.msra.mxu0 0.0
      %9020 = vmatprep.subr.mxu0 0.0
      %9021 = vmatpush2.msra.mxu0 0.0
      %9022 = vmatprep.subr.mxu0 0.0
      %9023 = vmatpush2.msra.mxu0 0.0
      %9024 = vmatprep.subr.mxu0 0.0
      %9025 = vmatpush2.msra.mxu0 0.0
      %9026 = vmatprep.subr.mxu0 0.0
      %9027 = vmatpush2.msra.mxu0 0.0
      %9028 = vmatprep.subr.mxu0 0.0
      %9029 = vmatpush2.msra.mxu0 0.0
      %9030 = vmatprep.subr.mxu0 0.0
      %9031 = vmatpush2.msra.mxu0 0.0
      %9032 = vmatprep.subr.mxu0 0.0
      %9033 = vmatpush2.msra.mxu0 0.0
      %9034 = vmatprep.subr.mxu0 0.0
      %9035 = vmatpush2.msra.mxu0 0.0
      %9036 = vmatprep.subr.mxu0 0.0
      %9037 = vmatpush2.msra.mxu0 0.0
      %9038 = vmatprep.subr.mxu0 0.0
      %9039 = vmatpush2.msra.mxu0 0.0
      %9040 = vmatprep.mubr.f32.mxu0 0.0
      %v9041 = vand.u32 %v8555, 4294901760
      %9042 = vmatmul.mubr.f32.gmra.mxu0 %v9041
      %v9043 = vpop.f32.mrf.mxu0
      %v9044 = vadd.f32 %v8942, %v9043
      %v9045 = vpop.f32.mrf.mxu0
      %v9046 = vadd.f32 %v8944, %v9045
      %9047 = vdwg.mxu0
      %9048 = vmatprep.subr.mxu0 0.0
      %9049 = vmatpush1.msra.mxu0 0.0
      %9050 = vmatprep.subr.mxu0 0.0
      %9051 = vmatpush1.msra.mxu0 0.0
      %9052 = vmatprep.subr.mxu0 0.0
      %9053 = vmatpush1.msra.mxu0 0.0
      %9054 = vmatprep.subr.mxu0 0.0
      %9055 = vmatpush1.msra.mxu0 0.0
      %9056 = vmatprep.subr.mxu0 0.0
      %9057 = vmatpush1.msra.mxu0 0.0
      %9058 = vmatprep.subr.mxu0 0.0
      %9059 = vmatpush1.msra.mxu0 0.0
      %9060 = vmatprep.subr.mxu0 0.0
      %9061 = vmatpush1.msra.mxu0 0.0
      %9062 = vmatprep.subr.mxu0 0.0
      %9063 = vmatpush1.msra.mxu0 0.0
      %9064 = vmatprep.subr.mxu0 0.0
      %9065 = vmatpush1.msra.mxu0 0.0
      %9066 = vmatprep.subr.mxu0 0.0
      %9067 = vmatpush1.msra.mxu0 0.0
      %9068 = vmatprep.subr.mxu0 0.0
      %9069 = vmatpush1.msra.mxu0 0.0
      %v9070 = vand.u32 %v8559, 4294901760
      %9071 = vmatprep.subr.mxu0 %v9070
      %v9072 = vand.u32 %v8557, 4294901760
      %9073 = vmatpush1.msra.mxu0 %v9072
      %v9074 = vand.u32 %v8544, 4294901760
      %9075 = vmatprep.subr.mxu0 %v9074
      %v9076 = vand.u32 %v8543, 4294901760
      %9077 = vmatpush1.msra.mxu0 %v9076
      %v9078 = vand.u32 %v8542, 4294901760
      %9079 = vmatprep.subr.mxu0 %v9078
      %v9080 = vand.u32 %v8541, 4294901760
      %9081 = vmatpush1.msra.mxu0 %v9080
      %v9082 = vand.u32 %v8540, 4294901760
      %9083 = vmatprep.subr.mxu0 %v9082
      %v9084 = vand.u32 %v8539, 4294901760
      %9085 = vmatpush1.msra.mxu0 %v9084
      %v9086 = vand.u32 %v8538, 4294901760
      %9087 = vmatprep.subr.mxu0 %v9086
      %v9088 = vand.u32 %v8537, 4294901760
      %9089 = vmatpush1.msra.mxu0 %v9088
      %9090 = vmatprep.subr.mxu0 0.0
      %9091 = vmatpush2.msra.mxu0 0.0
      %9092 = vmatprep.subr.mxu0 0.0
      %9093 = vmatpush2.msra.mxu0 0.0
      %9094 = vmatprep.subr.mxu0 0.0
      %9095 = vmatpush2.msra.mxu0 0.0
      %9096 = vmatprep.subr.mxu0 0.0
      %9097 = vmatpush2.msra.mxu0 0.0
      %9098 = vmatprep.subr.mxu0 0.0
      %9099 = vmatpush2.msra.mxu0 0.0
      %9100 = vmatprep.subr.mxu0 0.0
      %9101 = vmatpush2.msra.mxu0 0.0
      %9102 = vmatprep.subr.mxu0 0.0
      %9103 = vmatpush2.msra.mxu0 0.0
      %9104 = vmatprep.subr.mxu0 0.0
      %9105 = vmatpush2.msra.mxu0 0.0
      %9106 = vmatprep.subr.mxu0 0.0
      %9107 = vmatpush2.msra.mxu0 0.0
      %9108 = vmatprep.subr.mxu0 0.0
      %9109 = vmatpush2.msra.mxu0 0.0
      %9110 = vmatprep.subr.mxu0 0.0
      %9111 = vmatpush2.msra.mxu0 0.0
      %9112 = vmatprep.subr.mxu0 0.0
      %9113 = vmatpush2.msra.mxu0 0.0
      %9114 = vmatprep.subr.mxu0 0.0
      %9115 = vmatpush2.msra.mxu0 0.0
      %9116 = vmatprep.subr.mxu0 0.0
      %9117 = vmatpush2.msra.mxu0 0.0
      %9118 = vmatprep.subr.mxu0 0.0
      %9119 = vmatpush2.msra.mxu0 0.0
      %9120 = vmatprep.subr.mxu0 0.0
      %9121 = vmatpush2.msra.mxu0 0.0
      %9122 = vmatprep.mubr.f32.mxu0 0.0
      %v9123 = vand.u32 %v8555, 4294901760
      %9124 = vmatmul.mubr.f32.gmra.mxu0 %v9123
      %v9125 = vpop.f32.mrf.mxu0
      %v9126 = vadd.f32 %v9044, %v9125
      %v9127 = vpop.f32.mrf.mxu0
      %v9128 = vadd.f32 %v9046, %v9127
      %9129 = vdwg.mxu0
      %s9130 = scalar_lea.vmem %s2, 8
      %v9131 = vld [vmem:[%s9130] sm:$0xf]
      %9133 = vset.pattern.permute.xlu0 0
      %9134 = vperm.xlu0 %9133, %v9131
      %v9135 = vpop.permute.xlu0 %9134
      %v9137 = vmul.f32 %v9126, %v9135
      %v9138 = vmul.f32 %v9128, %v9135
      %s9139 = scalar_lea.vmem %s3, 8
      %v9140 = vld [vmem:[%s9139] sm:$0xf]
      %9142 = vset.pattern.permute.xlu0 0
      %9143 = vperm.xlu0 %9142, %v9140
      %v9144 = vpop.permute.xlu0 %9143
      %v9146 = vadd.f32 %v9137, %v9144
      %v9147 = vadd.f32 %v9138, %v9144
      %v9148 = vmax.f32 %v9146, 0.0
      %v9149 = vmax.f32 %v9147, 0.0
      %9151 = vrot.lane.b32.xlu0 %v9148, 112
      %v9152 = vpop.permute.xlu0 %9151
      %9154 = vrot.lane.b32.xlu0 %v9148, 96
      %v9155 = vpop.permute.xlu0 %9154
      %9157 = vrot.lane.b32.xlu0 %v9148, 80
      %v9158 = vpop.permute.xlu0 %9157
      %9160 = vrot.lane.b32.xlu0 %v9148, 64
      %v9161 = vpop.permute.xlu0 %9160
      %9163 = vrot.lane.b32.xlu0 %v9148, 48
      %v9164 = vpop.permute.xlu0 %9163
      %9166 = vrot.lane.b32.xlu0 %v9148, 32
      %v9167 = vpop.permute.xlu0 %9166
      %9169 = vrot.lane.b32.xlu0 %v9148, 16
      %v9170 = vpop.permute.xlu0 %9169
      %9173 = vrot.lane.b32.xlu0 %v9149, 112
      %v9174 = vpop.permute.xlu0 %9173
      %9176 = vrot.lane.b32.xlu0 %v9149, 96
      %v9177 = vpop.permute.xlu0 %9176
      %9179 = vrot.lane.b32.xlu0 %v9149, 80
      %v9180 = vpop.permute.xlu0 %9179
      %9182 = vrot.lane.b32.xlu0 %v9149, 64
      %v9183 = vpop.permute.xlu0 %9182
      %9185 = vrot.lane.b32.xlu0 %v9149, 48
      %v9186 = vpop.permute.xlu0 %9185
      %9188 = vrot.lane.b32.xlu0 %v9149, 32
      %v9189 = vpop.permute.xlu0 %9188
      %9191 = vrot.lane.b32.xlu0 %v9149, 16
      %v9192 = vpop.permute.xlu0 %9191
      %v9194 = vcombine.low %v9148, %v9155
      %v9196 = vunpack.c.l.s4 1983009808
      %v9197 = vunpack.c.0.s8 %v9196
      %v9198 = vlaneseq
      %v9199 = vshrl.u32 %v9198, 7
      %v9200 = vsub.s32 %v9197, %v9199
      %v9201 = vrot.slane %v9194, %v9200
      %v9202 = vcombine.low %v9152, %v9158
      %v9204 = vunpack.c.l.s4 1983009808
      %v9205 = vunpack.c.0.s8 %v9204
      %v9206 = vlaneseq
      %v9207 = vshrl.u32 %v9206, 7
      %v9208 = vsub.s32 %v9205, %v9207
      %v9209 = vrot.slane %v9202, %v9208
      %v9210 = vcombine.low %v9161, %v9167
      %v9212 = vunpack.c.l.s4 1983009808
      %v9213 = vunpack.c.0.s8 %v9212
      %v9214 = vlaneseq
      %v9215 = vshrl.u32 %v9214, 7
      %v9216 = vsub.s32 %v9213, %v9215
      %v9217 = vrot.slane %v9210, %v9216
      %v9218 = vcombine.low %v9164, %v9170
      %v9220 = vunpack.c.l.s4 1983009808
      %v9221 = vunpack.c.0.s8 %v9220
      %v9222 = vlaneseq
      %v9223 = vshrl.u32 %v9222, 7
      %v9224 = vsub.s32 %v9221, %v9223
      %v9225 = vrot.slane %v9218, %v9224
      %v9226 = vcombine.low %v9201, %v9209
      %v9227 = vcombine.high %v9201, %v9209
      %v9229 = vunpack.c.l.s4 1934713408
      %v9230 = vunpack.c.0.s8 %v9229
      %v9231 = vlaneseq
      %v9232 = vshrl.u32 %v9231, 7
      %v9233 = vsub.s32 %v9230, %v9232
      %v9234 = vrot.slane %v9226, %v9233
      %v9236 = vunpack.c.l.s4 1934713408
      %v9237 = vunpack.c.0.s8 %v9236
      %v9238 = vlaneseq
      %v9239 = vshrl.u32 %v9238, 7
      %v9240 = vsub.s32 %v9237, %v9239
      %v9241 = vrot.slane %v9227, %v9240
      %v9242 = vcombine.low %v9217, %v9225
      %v9243 = vcombine.high %v9217, %v9225
      %v9245 = vunpack.c.l.s4 1934713408
      %v9246 = vunpack.c.0.s8 %v9245
      %v9247 = vlaneseq
      %v9248 = vshrl.u32 %v9247, 7
      %v9249 = vsub.s32 %v9246, %v9248
      %v9250 = vrot.slane %v9242, %v9249
      %v9252 = vunpack.c.l.s4 1934713408
      %v9253 = vunpack.c.0.s8 %v9252
      %v9254 = vlaneseq
      %v9255 = vshrl.u32 %v9254, 7
      %v9256 = vsub.s32 %v9253, %v9255
      %v9257 = vrot.slane %v9243, %v9256
      %v9258 = vcombine.low %v9234, %v9250
      %v9259 = vcombine.high %v9234, %v9250
      %v9260 = vcombine.low %v9241, %v9257
      %v9261 = vcombine.high %v9241, %v9257
      %v9262 = vcombine.low %v9149, %v9177
      %v9264 = vunpack.c.l.s4 1983009808
      %v9265 = vunpack.c.0.s8 %v9264
      %v9266 = vlaneseq
      %v9267 = vshrl.u32 %v9266, 7
      %v9268 = vsub.s32 %v9265, %v9267
      %v9269 = vrot.slane %v9262, %v9268
      %v9270 = vcombine.low %v9174, %v9180
      %v9272 = vunpack.c.l.s4 1983009808
      %v9273 = vunpack.c.0.s8 %v9272
      %v9274 = vlaneseq
      %v9275 = vshrl.u32 %v9274, 7
      %v9276 = vsub.s32 %v9273, %v9275
      %v9277 = vrot.slane %v9270, %v9276
      %v9278 = vcombine.low %v9183, %v9189
      %v9280 = vunpack.c.l.s4 1983009808
      %v9281 = vunpack.c.0.s8 %v9280
      %v9282 = vlaneseq
      %v9283 = vshrl.u32 %v9282, 7
      %v9284 = vsub.s32 %v9281, %v9283
      %v9285 = vrot.slane %v9278, %v9284
      %v9286 = vcombine.low %v9186, %v9192
      %v9288 = vunpack.c.l.s4 1983009808
      %v9289 = vunpack.c.0.s8 %v9288
      %v9290 = vlaneseq
      %v9291 = vshrl.u32 %v9290, 7
      %v9292 = vsub.s32 %v9289, %v9291
      %v9293 = vrot.slane %v9286, %v9292
      %v9294 = vcombine.low %v9269, %v9277
      %v9295 = vcombine.high %v9269, %v9277
      %v9297 = vunpack.c.l.s4 1934713408
      %v9298 = vunpack.c.0.s8 %v9297
      %v9299 = vlaneseq
      %v9300 = vshrl.u32 %v9299, 7
      %v9301 = vsub.s32 %v9298, %v9300
      %v9302 = vrot.slane %v9294, %v9301
      %v9304 = vunpack.c.l.s4 1934713408
      %v9305 = vunpack.c.0.s8 %v9304
      %v9306 = vlaneseq
      %v9307 = vshrl.u32 %v9306, 7
      %v9308 = vsub.s32 %v9305, %v9307
      %v9309 = vrot.slane %v9295, %v9308
      %v9310 = vcombine.low %v9285, %v9293
      %v9311 = vcombine.high %v9285, %v9293
      %v9313 = vunpack.c.l.s4 1934713408
      %v9314 = vunpack.c.0.s8 %v9313
      %v9315 = vlaneseq
      %v9316 = vshrl.u32 %v9315, 7
      %v9317 = vsub.s32 %v9314, %v9316
      %v9318 = vrot.slane %v9310, %v9317
      %v9320 = vunpack.c.l.s4 1934713408
      %v9321 = vunpack.c.0.s8 %v9320
      %v9322 = vlaneseq
      %v9323 = vshrl.u32 %v9322, 7
      %v9324 = vsub.s32 %v9321, %v9323
      %v9325 = vrot.slane %v9311, %v9324
      %v9326 = vcombine.low %v9302, %v9318
      %v9327 = vcombine.high %v9302, %v9318
      %v9328 = vcombine.low %v9309, %v9325
      %v9329 = vcombine.high %v9309, %v9325
      %9338 = vrot.lane.b32.xlu0 %v9258, 1
      %v9339 = vpop.permute.xlu0 %9338
      %9340 = vrot.lane.b32.xlu0 %v9326, 1
      %v9341 = vpop.permute.xlu0 %9340
      %9342 = vrot.lane.b32.xlu0 %v9259, 1
      %v9343 = vpop.permute.xlu0 %9342
      %9344 = vrot.lane.b32.xlu0 %v9327, 1
      %v9345 = vpop.permute.xlu0 %9344
      %9346 = vrot.lane.b32.xlu0 %v9260, 1
      %v9347 = vpop.permute.xlu0 %9346
      %9348 = vrot.lane.b32.xlu0 %v9328, 1
      %v9349 = vpop.permute.xlu0 %9348
      %9350 = vrot.lane.b32.xlu0 %v9261, 1
      %v9351 = vpop.permute.xlu0 %9350
      %9352 = vrot.lane.b32.xlu0 %v9329, 1
      %v9353 = vpop.permute.xlu0 %9352
      %9362 = vst.msk [vmem:[#allocation2 + $0x1] sm:$0xff] %vm419, %v9339
      %9363 = vst.msk [vmem:[#allocation2 + $0x9] sm:$0xff] %vm419, %v9341
      %9364 = vst.msk [vmem:[#allocation2 + $0x19] sm:$0xff] %vm419, %v9343
      %9365 = vst.msk [vmem:[#allocation2 + $0x21] sm:$0xff] %vm419, %v9345
      %9366 = vst.msk [vmem:[#allocation2 + $0x31] sm:$0xff] %vm419, %v9347
      %9367 = vst.msk [vmem:[#allocation2 + $0x39] sm:$0xff] %vm419, %v9349
      %9368 = vst.msk [vmem:[#allocation2 + $0x49] sm:$0xff] %vm419, %v9351
      %9369 = vst.msk [vmem:[#allocation2 + $0x51] sm:$0xff] %vm419, %v9353
      %v9370 = vld [vmem:[#allocation2] sm:$0xff]
      %v9371 = vld [vmem:[#allocation2 + $0x8] sm:$0xff]
      %v9372 = vld [vmem:[#allocation2 + $0x10] sm:$0x3]
      %v9373 = vld [vmem:[#allocation2 + $0x18] sm:$0xff]
      %v9374 = vld [vmem:[#allocation2 + $0x20] sm:$0xff]
      %v9375 = vld [vmem:[#allocation2 + $0x28] sm:$0x3]
      %v9376 = vld [vmem:[#allocation2 + $0x30] sm:$0xff]
      %v9377 = vld [vmem:[#allocation2 + $0x38] sm:$0xff]
      %v9378 = vld [vmem:[#allocation2 + $0x40] sm:$0x3]
      %v9379 = vld [vmem:[#allocation2 + $0x48] sm:$0xff]
      %v9380 = vld [vmem:[#allocation2 + $0x50] sm:$0xff]
      %v9381 = vld [vmem:[#allocation2 + $0x58] sm:$0x3]
      %v9382 = vcombine.low %v9370, %v9376
      %v9383 = vcombine.high %v9370, %v9376
      %v9385 = vunpack.c.l.s4 1983009808
      %v9386 = vunpack.c.0.s8 %v9385
      %v9387 = vlaneseq
      %v9388 = vshrl.u32 %v9387, 7
      %v9389 = vsub.s32 %v9386, %v9388
      %v9390 = vrot.slane %v9382, %v9389
      %v9392 = vunpack.c.l.s4 1983009808
      %v9393 = vunpack.c.0.s8 %v9392
      %v9394 = vlaneseq
      %v9395 = vshrl.u32 %v9394, 7
      %v9396 = vsub.s32 %v9393, %v9395
      %v9397 = vrot.slane %v9383, %v9396
      %v9398 = vcombine.low %v9373, %v9379
      %v9399 = vcombine.high %v9373, %v9379
      %v9401 = vunpack.c.l.s4 1983009808
      %v9402 = vunpack.c.0.s8 %v9401
      %v9403 = vlaneseq
      %v9404 = vshrl.u32 %v9403, 7
      %v9405 = vsub.s32 %v9402, %v9404
      %v9406 = vrot.slane %v9398, %v9405
      %v9408 = vunpack.c.l.s4 1983009808
      %v9409 = vunpack.c.0.s8 %v9408
      %v9410 = vlaneseq
      %v9411 = vshrl.u32 %v9410, 7
      %v9412 = vsub.s32 %v9409, %v9411
      %v9413 = vrot.slane %v9399, %v9412
      %v9414 = vcombine.low %v9390, %v9406
      %v9415 = vcombine.high %v9390, %v9406
      %v9417 = vunpack.c.l.s4 1934713408
      %v9418 = vunpack.c.0.s8 %v9417
      %v9419 = vlaneseq
      %v9420 = vshrl.u32 %v9419, 7
      %v9421 = vsub.s32 %v9418, %v9420
      %v9422 = vrot.slane %v9414, %v9421
      %v9424 = vunpack.c.l.s4 1934713408
      %v9425 = vunpack.c.0.s8 %v9424
      %v9426 = vlaneseq
      %v9427 = vshrl.u32 %v9426, 7
      %v9428 = vsub.s32 %v9425, %v9427
      %v9429 = vrot.slane %v9415, %v9428
      %v9430 = vcombine.low %v9397, %v9413
      %v9431 = vcombine.high %v9397, %v9413
      %v9433 = vunpack.c.l.s4 1934713408
      %v9434 = vunpack.c.0.s8 %v9433
      %v9435 = vlaneseq
      %v9436 = vshrl.u32 %v9435, 7
      %v9437 = vsub.s32 %v9434, %v9436
      %v9438 = vrot.slane %v9430, %v9437
      %v9440 = vunpack.c.l.s4 1934713408
      %v9441 = vunpack.c.0.s8 %v9440
      %v9442 = vlaneseq
      %v9443 = vshrl.u32 %v9442, 7
      %v9444 = vsub.s32 %v9441, %v9443
      %v9445 = vrot.slane %v9431, %v9444
      %v9446 = vcombine.high %v9422, 0.0
      %v9447 = vcombine.high %v9429, 0.0
      %v9448 = vcombine.high %v9438, 0.0
      %v9449 = vcombine.high %v9445, 0.0
      %v9450 = vcombine.low %v9371, %v9377
      %v9451 = vcombine.high %v9371, %v9377
      %v9453 = vunpack.c.l.s4 1983009808
      %v9454 = vunpack.c.0.s8 %v9453
      %v9455 = vlaneseq
      %v9456 = vshrl.u32 %v9455, 7
      %v9457 = vsub.s32 %v9454, %v9456
      %v9458 = vrot.slane %v9450, %v9457
      %v9460 = vunpack.c.l.s4 1983009808
      %v9461 = vunpack.c.0.s8 %v9460
      %v9462 = vlaneseq
      %v9463 = vshrl.u32 %v9462, 7
      %v9464 = vsub.s32 %v9461, %v9463
      %v9465 = vrot.slane %v9451, %v9464
      %v9466 = vcombine.low %v9374, %v9380
      %v9467 = vcombine.high %v9374, %v9380
      %v9469 = vunpack.c.l.s4 1983009808
      %v9470 = vunpack.c.0.s8 %v9469
      %v9471 = vlaneseq
      %v9472 = vshrl.u32 %v9471, 7
      %v9473 = vsub.s32 %v9470, %v9472
      %v9474 = vrot.slane %v9466, %v9473
      %v9476 = vunpack.c.l.s4 1983009808
      %v9477 = vunpack.c.0.s8 %v9476
      %v9478 = vlaneseq
      %v9479 = vshrl.u32 %v9478, 7
      %v9480 = vsub.s32 %v9477, %v9479
      %v9481 = vrot.slane %v9467, %v9480
      %v9482 = vcombine.low %v9458, %v9474
      %v9483 = vcombine.high %v9458, %v9474
      %v9485 = vunpack.c.l.s4 1934713408
      %v9486 = vunpack.c.0.s8 %v9485
      %v9487 = vlaneseq
      %v9488 = vshrl.u32 %v9487, 7
      %v9489 = vsub.s32 %v9486, %v9488
      %v9490 = vrot.slane %v9482, %v9489
      %v9492 = vunpack.c.l.s4 1934713408
      %v9493 = vunpack.c.0.s8 %v9492
      %v9494 = vlaneseq
      %v9495 = vshrl.u32 %v9494, 7
      %v9496 = vsub.s32 %v9493, %v9495
      %v9497 = vrot.slane %v9483, %v9496
      %v9498 = vcombine.low %v9465, %v9481
      %v9499 = vcombine.high %v9465, %v9481
      %v9501 = vunpack.c.l.s4 1934713408
      %v9502 = vunpack.c.0.s8 %v9501
      %v9503 = vlaneseq
      %v9504 = vshrl.u32 %v9503, 7
      %v9505 = vsub.s32 %v9502, %v9504
      %v9506 = vrot.slane %v9498, %v9505
      %v9508 = vunpack.c.l.s4 1934713408
      %v9509 = vunpack.c.0.s8 %v9508
      %v9510 = vlaneseq
      %v9511 = vshrl.u32 %v9510, 7
      %v9512 = vsub.s32 %v9509, %v9511
      %v9513 = vrot.slane %v9499, %v9512
      %v9514 = vcombine.high %v9490, 0.0
      %v9515 = vcombine.high %v9497, 0.0
      %v9516 = vcombine.high %v9506, 0.0
      %v9517 = vcombine.high %v9513, 0.0
      %9519 = vrot.lane.b32.xlu0 %v9446, 16
      %v9520 = vpop.permute.xlu0 %9519
      %9523 = vrot.lane.b32.xlu0 %v9429, 32
      %v9524 = vpop.permute.xlu0 %9523
      %9527 = vrot.lane.b32.xlu0 %v9447, 48
      %v9528 = vpop.permute.xlu0 %9527
      %9531 = vrot.lane.b32.xlu0 %v9438, 64
      %v9532 = vpop.permute.xlu0 %9531
      %9535 = vrot.lane.b32.xlu0 %v9448, 80
      %v9536 = vpop.permute.xlu0 %9535
      %9539 = vrot.lane.b32.xlu0 %v9445, 96
      %v9540 = vpop.permute.xlu0 %9539
      %9543 = vrot.lane.b32.xlu0 %v9449, 112
      %v9544 = vpop.permute.xlu0 %9543
      %9547 = vrot.lane.b32.xlu0 %v9514, 16
      %v9548 = vpop.permute.xlu0 %9547
      %9551 = vrot.lane.b32.xlu0 %v9497, 32
      %v9552 = vpop.permute.xlu0 %9551
      %9555 = vrot.lane.b32.xlu0 %v9515, 48
      %v9556 = vpop.permute.xlu0 %9555
      %9559 = vrot.lane.b32.xlu0 %v9506, 64
      %v9560 = vpop.permute.xlu0 %9559
      %9563 = vrot.lane.b32.xlu0 %v9516, 80
      %v9564 = vpop.permute.xlu0 %9563
      %9567 = vrot.lane.b32.xlu0 %v9513, 96
      %v9568 = vpop.permute.xlu0 %9567
      %9571 = vrot.lane.b32.xlu0 %v9517, 112
      %v9572 = vpop.permute.xlu0 %9571
      %v9574 = vsel %vm630, %v9422, %v9520
      %v9575 = vsel %vm632, %v9574, %v9524
      %v9576 = vsel %vm634, %v9575, %v9528
      %v9577 = vsel %vm636, %v9576, %v9532
      %v9578 = vsel %vm638, %v9577, %v9536
      %v9579 = vsel %vm640, %v9578, %v9540
      %v9580 = vsel %vm642, %v9579, %v9544
      %v9581 = vsel %vm630, %v9490, %v9548
      %v9582 = vsel %vm632, %v9581, %v9552
      %v9583 = vsel %vm634, %v9582, %v9556
      %v9584 = vsel %vm636, %v9583, %v9560
      %v9585 = vsel %vm638, %v9584, %v9564
      %v9586 = vsel %vm640, %v9585, %v9568
      %v9587 = vsel %vm642, %v9586, %v9572
      %v9590 = vcombine.low %v9580, %v9587
      %9592 = vst [vmem:[#allocation3] sm:$0xff] %v9590
      %9601 = vrot.lane.b32.xlu0 %v9370, 127
      %v9602 = vpop.permute.xlu0 %9601
      %9603 = vrot.lane.b32.xlu0 %v9371, 127
      %v9604 = vpop.permute.xlu0 %9603
      %9605 = vrot.lane.b32.xlu0 %v9373, 127
      %v9606 = vpop.permute.xlu0 %9605
      %9607 = vrot.lane.b32.xlu0 %v9374, 127
      %v9608 = vpop.permute.xlu0 %9607
      %9609 = vrot.lane.b32.xlu0 %v9376, 127
      %v9610 = vpop.permute.xlu0 %9609
      %9611 = vrot.lane.b32.xlu0 %v9377, 127
      %v9612 = vpop.permute.xlu0 %9611
      %9613 = vrot.lane.b32.xlu0 %v9379, 127
      %v9614 = vpop.permute.xlu0 %9613
      %9615 = vrot.lane.b32.xlu0 %v9380, 127
      %v9616 = vpop.permute.xlu0 %9615
      %v9625 = vcombine.low %v9602, %v9610
      %v9626 = vcombine.high %v9602, %v9610
      %v9628 = vunpack.c.l.s4 1983009808
      %v9629 = vunpack.c.0.s8 %v9628
      %v9630 = vlaneseq
      %v9631 = vshrl.u32 %v9630, 7
      %v9632 = vsub.s32 %v9629, %v9631
      %v9633 = vrot.slane %v9625, %v9632
      %v9635 = vunpack.c.l.s4 1983009808
      %v9636 = vunpack.c.0.s8 %v9635
      %v9637 = vlaneseq
      %v9638 = vshrl.u32 %v9637, 7
      %v9639 = vsub.s32 %v9636, %v9638
      %v9640 = vrot.slane %v9626, %v9639
      %v9641 = vcombine.low %v9606, %v9614
      %v9642 = vcombine.high %v9606, %v9614
      %v9644 = vunpack.c.l.s4 1983009808
      %v9645 = vunpack.c.0.s8 %v9644
      %v9646 = vlaneseq
      %v9647 = vshrl.u32 %v9646, 7
      %v9648 = vsub.s32 %v9645, %v9647
      %v9649 = vrot.slane %v9641, %v9648
      %v9651 = vunpack.c.l.s4 1983009808
      %v9652 = vunpack.c.0.s8 %v9651
      %v9653 = vlaneseq
      %v9654 = vshrl.u32 %v9653, 7
      %v9655 = vsub.s32 %v9652, %v9654
      %v9656 = vrot.slane %v9642, %v9655
      %v9657 = vcombine.low %v9633, %v9649
      %v9658 = vcombine.high %v9633, %v9649
      %v9660 = vunpack.c.l.s4 1934713408
      %v9661 = vunpack.c.0.s8 %v9660
      %v9662 = vlaneseq
      %v9663 = vshrl.u32 %v9662, 7
      %v9664 = vsub.s32 %v9661, %v9663
      %v9665 = vrot.slane %v9657, %v9664
      %v9667 = vunpack.c.l.s4 1934713408
      %v9668 = vunpack.c.0.s8 %v9667
      %v9669 = vlaneseq
      %v9670 = vshrl.u32 %v9669, 7
      %v9671 = vsub.s32 %v9668, %v9670
      %v9672 = vrot.slane %v9658, %v9671
      %v9673 = vcombine.low %v9640, %v9656
      %v9674 = vcombine.high %v9640, %v9656
      %v9676 = vunpack.c.l.s4 1934713408
      %v9677 = vunpack.c.0.s8 %v9676
      %v9678 = vlaneseq
      %v9679 = vshrl.u32 %v9678, 7
      %v9680 = vsub.s32 %v9677, %v9679
      %v9681 = vrot.slane %v9673, %v9680
      %v9683 = vunpack.c.l.s4 1934713408
      %v9684 = vunpack.c.0.s8 %v9683
      %v9685 = vlaneseq
      %v9686 = vshrl.u32 %v9685, 7
      %v9687 = vsub.s32 %v9684, %v9686
      %v9688 = vrot.slane %v9674, %v9687
      %v9689 = vcombine.high %v9665, 0.0
      %v9690 = vcombine.high %v9672, 0.0
      %v9691 = vcombine.high %v9681, 0.0
      %v9692 = vcombine.high %v9688, 0.0
      %v9693 = vcombine.low %v9604, %v9612
      %v9694 = vcombine.high %v9604, %v9612
      %v9696 = vunpack.c.l.s4 1983009808
      %v9697 = vunpack.c.0.s8 %v9696
      %v9698 = vlaneseq
      %v9699 = vshrl.u32 %v9698, 7
      %v9700 = vsub.s32 %v9697, %v9699
      %v9701 = vrot.slane %v9693, %v9700
      %v9703 = vunpack.c.l.s4 1983009808
      %v9704 = vunpack.c.0.s8 %v9703
      %v9705 = vlaneseq
      %v9706 = vshrl.u32 %v9705, 7
      %v9707 = vsub.s32 %v9704, %v9706
      %v9708 = vrot.slane %v9694, %v9707
      %v9709 = vcombine.low %v9608, %v9616
      %v9710 = vcombine.high %v9608, %v9616
      %v9712 = vunpack.c.l.s4 1983009808
      %v9713 = vunpack.c.0.s8 %v9712
      %v9714 = vlaneseq
      %v9715 = vshrl.u32 %v9714, 7
      %v9716 = vsub.s32 %v9713, %v9715
      %v9717 = vrot.slane %v9709, %v9716
      %v9719 = vunpack.c.l.s4 1983009808
      %v9720 = vunpack.c.0.s8 %v9719
      %v9721 = vlaneseq
      %v9722 = vshrl.u32 %v9721, 7
      %v9723 = vsub.s32 %v9720, %v9722
      %v9724 = vrot.slane %v9710, %v9723
      %v9725 = vcombine.low %v9701, %v9717
      %v9726 = vcombine.high %v9701, %v9717
      %v9728 = vunpack.c.l.s4 1934713408
      %v9729 = vunpack.c.0.s8 %v9728
      %v9730 = vlaneseq
      %v9731 = vshrl.u32 %v9730, 7
      %v9732 = vsub.s32 %v9729, %v9731
      %v9733 = vrot.slane %v9725, %v9732
      %v9735 = vunpack.c.l.s4 1934713408
      %v9736 = vunpack.c.0.s8 %v9735
      %v9737 = vlaneseq
      %v9738 = vshrl.u32 %v9737, 7
      %v9739 = vsub.s32 %v9736, %v9738
      %v9740 = vrot.slane %v9726, %v9739
      %v9741 = vcombine.low %v9708, %v9724
      %v9742 = vcombine.high %v9708, %v9724
      %v9744 = vunpack.c.l.s4 1934713408
      %v9745 = vunpack.c.0.s8 %v9744
      %v9746 = vlaneseq
      %v9747 = vshrl.u32 %v9746, 7
      %v9748 = vsub.s32 %v9745, %v9747
      %v9749 = vrot.slane %v9741, %v9748
      %v9751 = vunpack.c.l.s4 1934713408
      %v9752 = vunpack.c.0.s8 %v9751
      %v9753 = vlaneseq
      %v9754 = vshrl.u32 %v9753, 7
      %v9755 = vsub.s32 %v9752, %v9754
      %v9756 = vrot.slane %v9742, %v9755
      %v9757 = vcombine.high %v9733, 0.0
      %v9758 = vcombine.high %v9740, 0.0
      %v9759 = vcombine.high %v9749, 0.0
      %v9760 = vcombine.high %v9756, 0.0
      %9762 = vrot.lane.b32.xlu0 %v9689, 16
      %v9763 = vpop.permute.xlu0 %9762
      %9766 = vrot.lane.b32.xlu0 %v9672, 32
      %v9767 = vpop.permute.xlu0 %9766
      %9770 = vrot.lane.b32.xlu0 %v9690, 48
      %v9771 = vpop.permute.xlu0 %9770
      %9774 = vrot.lane.b32.xlu0 %v9681, 64
      %v9775 = vpop.permute.xlu0 %9774
      %9778 = vrot.lane.b32.xlu0 %v9691, 80
      %v9779 = vpop.permute.xlu0 %9778
      %9782 = vrot.lane.b32.xlu0 %v9688, 96
      %v9783 = vpop.permute.xlu0 %9782
      %9786 = vrot.lane.b32.xlu0 %v9692, 112
      %v9787 = vpop.permute.xlu0 %9786
      %9790 = vrot.lane.b32.xlu0 %v9757, 16
      %v9791 = vpop.permute.xlu0 %9790
      %9794 = vrot.lane.b32.xlu0 %v9740, 32
      %v9795 = vpop.permute.xlu0 %9794
      %9798 = vrot.lane.b32.xlu0 %v9758, 48
      %v9799 = vpop.permute.xlu0 %9798
      %9802 = vrot.lane.b32.xlu0 %v9749, 64
      %v9803 = vpop.permute.xlu0 %9802
      %9806 = vrot.lane.b32.xlu0 %v9759, 80
      %v9807 = vpop.permute.xlu0 %9806
      %9810 = vrot.lane.b32.xlu0 %v9756, 96
      %v9811 = vpop.permute.xlu0 %9810
      %9814 = vrot.lane.b32.xlu0 %v9760, 112
      %v9815 = vpop.permute.xlu0 %9814
      %v9817 = vsel %vm630, %v9665, %v9763
      %v9818 = vsel %vm632, %v9817, %v9767
      %v9819 = vsel %vm634, %v9818, %v9771
      %v9820 = vsel %vm636, %v9819, %v9775
      %v9821 = vsel %vm638, %v9820, %v9779
      %v9822 = vsel %vm640, %v9821, %v9783
      %v9823 = vsel %vm642, %v9822, %v9787
      %v9824 = vsel %vm630, %v9733, %v9791
      %v9825 = vsel %vm632, %v9824, %v9795
      %v9826 = vsel %vm634, %v9825, %v9799
      %v9827 = vsel %vm636, %v9826, %v9803
      %v9828 = vsel %vm638, %v9827, %v9807
      %v9829 = vsel %vm640, %v9828, %v9811
      %v9830 = vsel %vm642, %v9829, %v9815
      %v9833 = vcombine.low %v9823, %v9830
      %9835 = vst [vmem:[%s898] sm:$0xff] %v9833
      %9836 = vrot.lane.b32.xlu0 %v9370, 126
      %v9837 = vpop.permute.xlu0 %9836
      %9838 = vrot.lane.b32.xlu0 %v9371, 126
      %v9839 = vpop.permute.xlu0 %9838
      %9840 = vrot.lane.b32.xlu0 %v9373, 126
      %v9841 = vpop.permute.xlu0 %9840
      %9842 = vrot.lane.b32.xlu0 %v9374, 126
      %v9843 = vpop.permute.xlu0 %9842
      %9844 = vrot.lane.b32.xlu0 %v9376, 126
      %v9845 = vpop.permute.xlu0 %9844
      %9846 = vrot.lane.b32.xlu0 %v9377, 126
      %v9847 = vpop.permute.xlu0 %9846
      %9848 = vrot.lane.b32.xlu0 %v9379, 126
      %v9849 = vpop.permute.xlu0 %9848
      %9850 = vrot.lane.b32.xlu0 %v9380, 126
      %v9851 = vpop.permute.xlu0 %9850
      %v9860 = vcombine.low %v9837, %v9845
      %v9861 = vcombine.high %v9837, %v9845
      %v9863 = vunpack.c.l.s4 1983009808
      %v9864 = vunpack.c.0.s8 %v9863
      %v9865 = vlaneseq
      %v9866 = vshrl.u32 %v9865, 7
      %v9867 = vsub.s32 %v9864, %v9866
      %v9868 = vrot.slane %v9860, %v9867
      %v9870 = vunpack.c.l.s4 1983009808
      %v9871 = vunpack.c.0.s8 %v9870
      %v9872 = vlaneseq
      %v9873 = vshrl.u32 %v9872, 7
      %v9874 = vsub.s32 %v9871, %v9873
      %v9875 = vrot.slane %v9861, %v9874
      %v9876 = vcombine.low %v9841, %v9849
      %v9877 = vcombine.high %v9841, %v9849
      %v9879 = vunpack.c.l.s4 1983009808
      %v9880 = vunpack.c.0.s8 %v9879
      %v9881 = vlaneseq
      %v9882 = vshrl.u32 %v9881, 7
      %v9883 = vsub.s32 %v9880, %v9882
      %v9884 = vrot.slane %v9876, %v9883
      %v9886 = vunpack.c.l.s4 1983009808
      %v9887 = vunpack.c.0.s8 %v9886
      %v9888 = vlaneseq
      %v9889 = vshrl.u32 %v9888, 7
      %v9890 = vsub.s32 %v9887, %v9889
      %v9891 = vrot.slane %v9877, %v9890
      %v9892 = vcombine.low %v9868, %v9884
      %v9893 = vcombine.high %v9868, %v9884
      %v9895 = vunpack.c.l.s4 1934713408
      %v9896 = vunpack.c.0.s8 %v9895
      %v9897 = vlaneseq
      %v9898 = vshrl.u32 %v9897, 7
      %v9899 = vsub.s32 %v9896, %v9898
      %v9900 = vrot.slane %v9892, %v9899
      %v9902 = vunpack.c.l.s4 1934713408
      %v9903 = vunpack.c.0.s8 %v9902
      %v9904 = vlaneseq
      %v9905 = vshrl.u32 %v9904, 7
      %v9906 = vsub.s32 %v9903, %v9905
      %v9907 = vrot.slane %v9893, %v9906
      %v9908 = vcombine.low %v9875, %v9891
      %v9909 = vcombine.high %v9875, %v9891
      %v9911 = vunpack.c.l.s4 1934713408
      %v9912 = vunpack.c.0.s8 %v9911
      %v9913 = vlaneseq
      %v9914 = vshrl.u32 %v9913, 7
      %v9915 = vsub.s32 %v9912, %v9914
      %v9916 = vrot.slane %v9908, %v9915
      %v9918 = vunpack.c.l.s4 1934713408
      %v9919 = vunpack.c.0.s8 %v9918
      %v9920 = vlaneseq
      %v9921 = vshrl.u32 %v9920, 7
      %v9922 = vsub.s32 %v9919, %v9921
      %v9923 = vrot.slane %v9909, %v9922
      %v9924 = vcombine.high %v9900, 0.0
      %v9925 = vcombine.high %v9907, 0.0
      %v9926 = vcombine.high %v9916, 0.0
      %v9927 = vcombine.high %v9923, 0.0
      %v9928 = vcombine.low %v9839, %v9847
      %v9929 = vcombine.high %v9839, %v9847
      %v9931 = vunpack.c.l.s4 1983009808
      %v9932 = vunpack.c.0.s8 %v9931
      %v9933 = vlaneseq
      %v9934 = vshrl.u32 %v9933, 7
      %v9935 = vsub.s32 %v9932, %v9934
      %v9936 = vrot.slane %v9928, %v9935
      %v9938 = vunpack.c.l.s4 1983009808
      %v9939 = vunpack.c.0.s8 %v9938
      %v9940 = vlaneseq
      %v9941 = vshrl.u32 %v9940, 7
      %v9942 = vsub.s32 %v9939, %v9941
      %v9943 = vrot.slane %v9929, %v9942
      %v9944 = vcombine.low %v9843, %v9851
      %v9945 = vcombine.high %v9843, %v9851
      %v9947 = vunpack.c.l.s4 1983009808
      %v9948 = vunpack.c.0.s8 %v9947
      %v9949 = vlaneseq
      %v9950 = vshrl.u32 %v9949, 7
      %v9951 = vsub.s32 %v9948, %v9950
      %v9952 = vrot.slane %v9944, %v9951
      %v9954 = vunpack.c.l.s4 1983009808
      %v9955 = vunpack.c.0.s8 %v9954
      %v9956 = vlaneseq
      %v9957 = vshrl.u32 %v9956, 7
      %v9958 = vsub.s32 %v9955, %v9957
      %v9959 = vrot.slane %v9945, %v9958
      %v9960 = vcombine.low %v9936, %v9952
      %v9961 = vcombine.high %v9936, %v9952
      %v9963 = vunpack.c.l.s4 1934713408
      %v9964 = vunpack.c.0.s8 %v9963
      %v9965 = vlaneseq
      %v9966 = vshrl.u32 %v9965, 7
      %v9967 = vsub.s32 %v9964, %v9966
      %v9968 = vrot.slane %v9960, %v9967
      %v9970 = vunpack.c.l.s4 1934713408
      %v9971 = vunpack.c.0.s8 %v9970
      %v9972 = vlaneseq
      %v9973 = vshrl.u32 %v9972, 7
      %v9974 = vsub.s32 %v9971, %v9973
      %v9975 = vrot.slane %v9961, %v9974
      %v9976 = vcombine.low %v9943, %v9959
      %v9977 = vcombine.high %v9943, %v9959
      %v9979 = vunpack.c.l.s4 1934713408
      %v9980 = vunpack.c.0.s8 %v9979
      %v9981 = vlaneseq
      %v9982 = vshrl.u32 %v9981, 7
      %v9983 = vsub.s32 %v9980, %v9982
      %v9984 = vrot.slane %v9976, %v9983
      %v9986 = vunpack.c.l.s4 1934713408
      %v9987 = vunpack.c.0.s8 %v9986
      %v9988 = vlaneseq
      %v9989 = vshrl.u32 %v9988, 7
      %v9990 = vsub.s32 %v9987, %v9989
      %v9991 = vrot.slane %v9977, %v9990
      %v9992 = vcombine.high %v9968, 0.0
      %v9993 = vcombine.high %v9975, 0.0
      %v9994 = vcombine.high %v9984, 0.0
      %v9995 = vcombine.high %v9991, 0.0
      %9997 = vrot.lane.b32.xlu0 %v9924, 16
      %v9998 = vpop.permute.xlu0 %9997
      %10001 = vrot.lane.b32.xlu0 %v9907, 32
      %v10002 = vpop.permute.xlu0 %10001
      %10005 = vrot.lane.b32.xlu0 %v9925, 48
      %v10006 = vpop.permute.xlu0 %10005
      %10009 = vrot.lane.b32.xlu0 %v9916, 64
      %v10010 = vpop.permute.xlu0 %10009
      %10013 = vrot.lane.b32.xlu0 %v9926, 80
      %v10014 = vpop.permute.xlu0 %10013
      %10017 = vrot.lane.b32.xlu0 %v9923, 96
      %v10018 = vpop.permute.xlu0 %10017
      %10021 = vrot.lane.b32.xlu0 %v9927, 112
      %v10022 = vpop.permute.xlu0 %10021
      %10025 = vrot.lane.b32.xlu0 %v9992, 16
      %v10026 = vpop.permute.xlu0 %10025
      %10029 = vrot.lane.b32.xlu0 %v9975, 32
      %v10030 = vpop.permute.xlu0 %10029
      %10033 = vrot.lane.b32.xlu0 %v9993, 48
      %v10034 = vpop.permute.xlu0 %10033
      %10037 = vrot.lane.b32.xlu0 %v9984, 64
      %v10038 = vpop.permute.xlu0 %10037
      %10041 = vrot.lane.b32.xlu0 %v9994, 80
      %v10042 = vpop.permute.xlu0 %10041
      %10045 = vrot.lane.b32.xlu0 %v9991, 96
      %v10046 = vpop.permute.xlu0 %10045
      %10049 = vrot.lane.b32.xlu0 %v9995, 112
      %v10050 = vpop.permute.xlu0 %10049
      %v10052 = vsel %vm630, %v9900, %v9998
      %v10053 = vsel %vm632, %v10052, %v10002
      %v10054 = vsel %vm634, %v10053, %v10006
      %v10055 = vsel %vm636, %v10054, %v10010
      %v10056 = vsel %vm638, %v10055, %v10014
      %v10057 = vsel %vm640, %v10056, %v10018
      %v10058 = vsel %vm642, %v10057, %v10022
      %v10059 = vsel %vm630, %v9968, %v10026
      %v10060 = vsel %vm632, %v10059, %v10030
      %v10061 = vsel %vm634, %v10060, %v10034
      %v10062 = vsel %vm636, %v10061, %v10038
      %v10063 = vsel %vm638, %v10062, %v10042
      %v10064 = vsel %vm640, %v10063, %v10046
      %v10065 = vsel %vm642, %v10064, %v10050
      %v10068 = vcombine.low %v10058, %v10065
      %10070 = vst [vmem:[%s1134] sm:$0xff] %v10068
      %v10075 = vrot.slane %v9370, 1
      %v10076 = vrot.slane %v9371, 1
      %v10077 = vsel %vm1140, %v10075, %v10076
      %v10078 = vrot.slane %v9372, 1
      %v10079 = vsel %vm1140, %v10076, %v10078
      %v10080 = vrot.slane %v9373, 1
      %v10081 = vrot.slane %v9374, 1
      %v10082 = vsel %vm1140, %v10080, %v10081
      %v10083 = vrot.slane %v9375, 1
      %v10084 = vsel %vm1140, %v10081, %v10083
      %v10085 = vrot.slane %v9376, 1
      %v10086 = vrot.slane %v9377, 1
      %v10087 = vsel %vm1140, %v10085, %v10086
      %v10088 = vrot.slane %v9378, 1
      %v10089 = vsel %vm1140, %v10086, %v10088
      %v10090 = vrot.slane %v9379, 1
      %v10091 = vrot.slane %v9380, 1
      %v10092 = vsel %vm1140, %v10090, %v10091
      %v10093 = vrot.slane %v9381, 1
      %v10094 = vsel %vm1140, %v10091, %v10093
      %v10103 = vcombine.low %v10077, %v10087
      %v10104 = vcombine.high %v10077, %v10087
      %v10106 = vunpack.c.l.s4 1983009808
      %v10107 = vunpack.c.0.s8 %v10106
      %v10108 = vlaneseq
      %v10109 = vshrl.u32 %v10108, 7
      %v10110 = vsub.s32 %v10107, %v10109
      %v10111 = vrot.slane %v10103, %v10110
      %v10113 = vunpack.c.l.s4 1983009808
      %v10114 = vunpack.c.0.s8 %v10113
      %v10115 = vlaneseq
      %v10116 = vshrl.u32 %v10115, 7
      %v10117 = vsub.s32 %v10114, %v10116
      %v10118 = vrot.slane %v10104, %v10117
      %v10119 = vcombine.low %v10082, %v10092
      %v10120 = vcombine.high %v10082, %v10092
      %v10122 = vunpack.c.l.s4 1983009808
      %v10123 = vunpack.c.0.s8 %v10122
      %v10124 = vlaneseq
      %v10125 = vshrl.u32 %v10124, 7
      %v10126 = vsub.s32 %v10123, %v10125
      %v10127 = vrot.slane %v10119, %v10126
      %v10129 = vunpack.c.l.s4 1983009808
      %v10130 = vunpack.c.0.s8 %v10129
      %v10131 = vlaneseq
      %v10132 = vshrl.u32 %v10131, 7
      %v10133 = vsub.s32 %v10130, %v10132
      %v10134 = vrot.slane %v10120, %v10133
      %v10135 = vcombine.low %v10111, %v10127
      %v10136 = vcombine.high %v10111, %v10127
      %v10138 = vunpack.c.l.s4 1934713408
      %v10139 = vunpack.c.0.s8 %v10138
      %v10140 = vlaneseq
      %v10141 = vshrl.u32 %v10140, 7
      %v10142 = vsub.s32 %v10139, %v10141
      %v10143 = vrot.slane %v10135, %v10142
      %v10145 = vunpack.c.l.s4 1934713408
      %v10146 = vunpack.c.0.s8 %v10145
      %v10147 = vlaneseq
      %v10148 = vshrl.u32 %v10147, 7
      %v10149 = vsub.s32 %v10146, %v10148
      %v10150 = vrot.slane %v10136, %v10149
      %v10151 = vcombine.low %v10118, %v10134
      %v10152 = vcombine.high %v10118, %v10134
      %v10154 = vunpack.c.l.s4 1934713408
      %v10155 = vunpack.c.0.s8 %v10154
      %v10156 = vlaneseq
      %v10157 = vshrl.u32 %v10156, 7
      %v10158 = vsub.s32 %v10155, %v10157
      %v10159 = vrot.slane %v10151, %v10158
      %v10161 = vunpack.c.l.s4 1934713408
      %v10162 = vunpack.c.0.s8 %v10161
      %v10163 = vlaneseq
      %v10164 = vshrl.u32 %v10163, 7
      %v10165 = vsub.s32 %v10162, %v10164
      %v10166 = vrot.slane %v10152, %v10165
      %v10167 = vcombine.high %v10143, 0.0
      %v10168 = vcombine.high %v10150, 0.0
      %v10169 = vcombine.high %v10159, 0.0
      %v10170 = vcombine.high %v10166, 0.0
      %v10171 = vcombine.low %v10079, %v10089
      %v10172 = vcombine.high %v10079, %v10089
      %v10174 = vunpack.c.l.s4 1983009808
      %v10175 = vunpack.c.0.s8 %v10174
      %v10176 = vlaneseq
      %v10177 = vshrl.u32 %v10176, 7
      %v10178 = vsub.s32 %v10175, %v10177
      %v10179 = vrot.slane %v10171, %v10178
      %v10181 = vunpack.c.l.s4 1983009808
      %v10182 = vunpack.c.0.s8 %v10181
      %v10183 = vlaneseq
      %v10184 = vshrl.u32 %v10183, 7
      %v10185 = vsub.s32 %v10182, %v10184
      %v10186 = vrot.slane %v10172, %v10185
      %v10187 = vcombine.low %v10084, %v10094
      %v10188 = vcombine.high %v10084, %v10094
      %v10190 = vunpack.c.l.s4 1983009808
      %v10191 = vunpack.c.0.s8 %v10190
      %v10192 = vlaneseq
      %v10193 = vshrl.u32 %v10192, 7
      %v10194 = vsub.s32 %v10191, %v10193
      %v10195 = vrot.slane %v10187, %v10194
      %v10197 = vunpack.c.l.s4 1983009808
      %v10198 = vunpack.c.0.s8 %v10197
      %v10199 = vlaneseq
      %v10200 = vshrl.u32 %v10199, 7
      %v10201 = vsub.s32 %v10198, %v10200
      %v10202 = vrot.slane %v10188, %v10201
      %v10203 = vcombine.low %v10179, %v10195
      %v10204 = vcombine.high %v10179, %v10195
      %v10206 = vunpack.c.l.s4 1934713408
      %v10207 = vunpack.c.0.s8 %v10206
      %v10208 = vlaneseq
      %v10209 = vshrl.u32 %v10208, 7
      %v10210 = vsub.s32 %v10207, %v10209
      %v10211 = vrot.slane %v10203, %v10210
      %v10213 = vunpack.c.l.s4 1934713408
      %v10214 = vunpack.c.0.s8 %v10213
      %v10215 = vlaneseq
      %v10216 = vshrl.u32 %v10215, 7
      %v10217 = vsub.s32 %v10214, %v10216
      %v10218 = vrot.slane %v10204, %v10217
      %v10219 = vcombine.low %v10186, %v10202
      %v10220 = vcombine.high %v10186, %v10202
      %v10222 = vunpack.c.l.s4 1934713408
      %v10223 = vunpack.c.0.s8 %v10222
      %v10224 = vlaneseq
      %v10225 = vshrl.u32 %v10224, 7
      %v10226 = vsub.s32 %v10223, %v10225
      %v10227 = vrot.slane %v10219, %v10226
      %v10229 = vunpack.c.l.s4 1934713408
      %v10230 = vunpack.c.0.s8 %v10229
      %v10231 = vlaneseq
      %v10232 = vshrl.u32 %v10231, 7
      %v10233 = vsub.s32 %v10230, %v10232
      %v10234 = vrot.slane %v10220, %v10233
      %v10235 = vcombine.high %v10211, 0.0
      %v10236 = vcombine.high %v10218, 0.0
      %v10237 = vcombine.high %v10227, 0.0
      %v10238 = vcombine.high %v10234, 0.0
      %10240 = vrot.lane.b32.xlu0 %v10167, 16
      %v10241 = vpop.permute.xlu0 %10240
      %10244 = vrot.lane.b32.xlu0 %v10150, 32
      %v10245 = vpop.permute.xlu0 %10244
      %10248 = vrot.lane.b32.xlu0 %v10168, 48
      %v10249 = vpop.permute.xlu0 %10248
      %10252 = vrot.lane.b32.xlu0 %v10159, 64
      %v10253 = vpop.permute.xlu0 %10252
      %10256 = vrot.lane.b32.xlu0 %v10169, 80
      %v10257 = vpop.permute.xlu0 %10256
      %10260 = vrot.lane.b32.xlu0 %v10166, 96
      %v10261 = vpop.permute.xlu0 %10260
      %10264 = vrot.lane.b32.xlu0 %v10170, 112
      %v10265 = vpop.permute.xlu0 %10264
      %10268 = vrot.lane.b32.xlu0 %v10235, 16
      %v10269 = vpop.permute.xlu0 %10268
      %10272 = vrot.lane.b32.xlu0 %v10218, 32
      %v10273 = vpop.permute.xlu0 %10272
      %10276 = vrot.lane.b32.xlu0 %v10236, 48
      %v10277 = vpop.permute.xlu0 %10276
      %10280 = vrot.lane.b32.xlu0 %v10227, 64
      %v10281 = vpop.permute.xlu0 %10280
      %10284 = vrot.lane.b32.xlu0 %v10237, 80
      %v10285 = vpop.permute.xlu0 %10284
      %10288 = vrot.lane.b32.xlu0 %v10234, 96
      %v10289 = vpop.permute.xlu0 %10288
      %10292 = vrot.lane.b32.xlu0 %v10238, 112
      %v10293 = vpop.permute.xlu0 %10292
      %v10295 = vsel %vm630, %v10143, %v10241
      %v10296 = vsel %vm632, %v10295, %v10245
      %v10297 = vsel %vm634, %v10296, %v10249
      %v10298 = vsel %vm636, %v10297, %v10253
      %v10299 = vsel %vm638, %v10298, %v10257
      %v10300 = vsel %vm640, %v10299, %v10261
      %v10301 = vsel %vm642, %v10300, %v10265
      %v10302 = vsel %vm630, %v10211, %v10269
      %v10303 = vsel %vm632, %v10302, %v10273
      %v10304 = vsel %vm634, %v10303, %v10277
      %v10305 = vsel %vm636, %v10304, %v10281
      %v10306 = vsel %vm638, %v10305, %v10285
      %v10307 = vsel %vm640, %v10306, %v10289
      %v10308 = vsel %vm642, %v10307, %v10293
      %v10311 = vcombine.low %v10301, %v10308
      %10313 = vst [vmem:[%s1379] sm:$0xff] %v10311
      %10314 = vrot.lane.b32.xlu0 %v10077, 127
      %v10315 = vpop.permute.xlu0 %10314
      %10316 = vrot.lane.b32.xlu0 %v10079, 127
      %v10317 = vpop.permute.xlu0 %10316
      %10318 = vrot.lane.b32.xlu0 %v10082, 127
      %v10319 = vpop.permute.xlu0 %10318
      %10320 = vrot.lane.b32.xlu0 %v10084, 127
      %v10321 = vpop.permute.xlu0 %10320
      %10322 = vrot.lane.b32.xlu0 %v10087, 127
      %v10323 = vpop.permute.xlu0 %10322
      %10324 = vrot.lane.b32.xlu0 %v10089, 127
      %v10325 = vpop.permute.xlu0 %10324
      %10326 = vrot.lane.b32.xlu0 %v10092, 127
      %v10327 = vpop.permute.xlu0 %10326
      %10328 = vrot.lane.b32.xlu0 %v10094, 127
      %v10329 = vpop.permute.xlu0 %10328
      %v10338 = vcombine.low %v10315, %v10323
      %v10339 = vcombine.high %v10315, %v10323
      %v10341 = vunpack.c.l.s4 1983009808
      %v10342 = vunpack.c.0.s8 %v10341
      %v10343 = vlaneseq
      %v10344 = vshrl.u32 %v10343, 7
      %v10345 = vsub.s32 %v10342, %v10344
      %v10346 = vrot.slane %v10338, %v10345
      %v10348 = vunpack.c.l.s4 1983009808
      %v10349 = vunpack.c.0.s8 %v10348
      %v10350 = vlaneseq
      %v10351 = vshrl.u32 %v10350, 7
      %v10352 = vsub.s32 %v10349, %v10351
      %v10353 = vrot.slane %v10339, %v10352
      %v10354 = vcombine.low %v10319, %v10327
      %v10355 = vcombine.high %v10319, %v10327
      %v10357 = vunpack.c.l.s4 1983009808
      %v10358 = vunpack.c.0.s8 %v10357
      %v10359 = vlaneseq
      %v10360 = vshrl.u32 %v10359, 7
      %v10361 = vsub.s32 %v10358, %v10360
      %v10362 = vrot.slane %v10354, %v10361
      %v10364 = vunpack.c.l.s4 1983009808
      %v10365 = vunpack.c.0.s8 %v10364
      %v10366 = vlaneseq
      %v10367 = vshrl.u32 %v10366, 7
      %v10368 = vsub.s32 %v10365, %v10367
      %v10369 = vrot.slane %v10355, %v10368
      %v10370 = vcombine.low %v10346, %v10362
      %v10371 = vcombine.high %v10346, %v10362
      %v10373 = vunpack.c.l.s4 1934713408
      %v10374 = vunpack.c.0.s8 %v10373
      %v10375 = vlaneseq
      %v10376 = vshrl.u32 %v10375, 7
      %v10377 = vsub.s32 %v10374, %v10376
      %v10378 = vrot.slane %v10370, %v10377
      %v10380 = vunpack.c.l.s4 1934713408
      %v10381 = vunpack.c.0.s8 %v10380
      %v10382 = vlaneseq
      %v10383 = vshrl.u32 %v10382, 7
      %v10384 = vsub.s32 %v10381, %v10383
      %v10385 = vrot.slane %v10371, %v10384
      %v10386 = vcombine.low %v10353, %v10369
      %v10387 = vcombine.high %v10353, %v10369
      %v10389 = vunpack.c.l.s4 1934713408
      %v10390 = vunpack.c.0.s8 %v10389
      %v10391 = vlaneseq
      %v10392 = vshrl.u32 %v10391, 7
      %v10393 = vsub.s32 %v10390, %v10392
      %v10394 = vrot.slane %v10386, %v10393
      %v10396 = vunpack.c.l.s4 1934713408
      %v10397 = vunpack.c.0.s8 %v10396
      %v10398 = vlaneseq
      %v10399 = vshrl.u32 %v10398, 7
      %v10400 = vsub.s32 %v10397, %v10399
      %v10401 = vrot.slane %v10387, %v10400
      %v10402 = vcombine.high %v10378, 0.0
      %v10403 = vcombine.high %v10385, 0.0
      %v10404 = vcombine.high %v10394, 0.0
      %v10405 = vcombine.high %v10401, 0.0
      %v10406 = vcombine.low %v10317, %v10325
      %v10407 = vcombine.high %v10317, %v10325
      %v10409 = vunpack.c.l.s4 1983009808
      %v10410 = vunpack.c.0.s8 %v10409
      %v10411 = vlaneseq
      %v10412 = vshrl.u32 %v10411, 7
      %v10413 = vsub.s32 %v10410, %v10412
      %v10414 = vrot.slane %v10406, %v10413
      %v10416 = vunpack.c.l.s4 1983009808
      %v10417 = vunpack.c.0.s8 %v10416
      %v10418 = vlaneseq
      %v10419 = vshrl.u32 %v10418, 7
      %v10420 = vsub.s32 %v10417, %v10419
      %v10421 = vrot.slane %v10407, %v10420
      %v10422 = vcombine.low %v10321, %v10329
      %v10423 = vcombine.high %v10321, %v10329
      %v10425 = vunpack.c.l.s4 1983009808
      %v10426 = vunpack.c.0.s8 %v10425
      %v10427 = vlaneseq
      %v10428 = vshrl.u32 %v10427, 7
      %v10429 = vsub.s32 %v10426, %v10428
      %v10430 = vrot.slane %v10422, %v10429
      %v10432 = vunpack.c.l.s4 1983009808
      %v10433 = vunpack.c.0.s8 %v10432
      %v10434 = vlaneseq
      %v10435 = vshrl.u32 %v10434, 7
      %v10436 = vsub.s32 %v10433, %v10435
      %v10437 = vrot.slane %v10423, %v10436
      %v10438 = vcombine.low %v10414, %v10430
      %v10439 = vcombine.high %v10414, %v10430
      %v10441 = vunpack.c.l.s4 1934713408
      %v10442 = vunpack.c.0.s8 %v10441
      %v10443 = vlaneseq
      %v10444 = vshrl.u32 %v10443, 7
      %v10445 = vsub.s32 %v10442, %v10444
      %v10446 = vrot.slane %v10438, %v10445
      %v10448 = vunpack.c.l.s4 1934713408
      %v10449 = vunpack.c.0.s8 %v10448
      %v10450 = vlaneseq
      %v10451 = vshrl.u32 %v10450, 7
      %v10452 = vsub.s32 %v10449, %v10451
      %v10453 = vrot.slane %v10439, %v10452
      %v10454 = vcombine.low %v10421, %v10437
      %v10455 = vcombine.high %v10421, %v10437
      %v10457 = vunpack.c.l.s4 1934713408
      %v10458 = vunpack.c.0.s8 %v10457
      %v10459 = vlaneseq
      %v10460 = vshrl.u32 %v10459, 7
      %v10461 = vsub.s32 %v10458, %v10460
      %v10462 = vrot.slane %v10454, %v10461
      %v10464 = vunpack.c.l.s4 1934713408
      %v10465 = vunpack.c.0.s8 %v10464
      %v10466 = vlaneseq
      %v10467 = vshrl.u32 %v10466, 7
      %v10468 = vsub.s32 %v10465, %v10467
      %v10469 = vrot.slane %v10455, %v10468
      %v10470 = vcombine.high %v10446, 0.0
      %v10471 = vcombine.high %v10453, 0.0
      %v10472 = vcombine.high %v10462, 0.0
      %v10473 = vcombine.high %v10469, 0.0
      %10475 = vrot.lane.b32.xlu0 %v10402, 16
      %v10476 = vpop.permute.xlu0 %10475
      %10479 = vrot.lane.b32.xlu0 %v10385, 32
      %v10480 = vpop.permute.xlu0 %10479
      %10483 = vrot.lane.b32.xlu0 %v10403, 48
      %v10484 = vpop.permute.xlu0 %10483
      %10487 = vrot.lane.b32.xlu0 %v10394, 64
      %v10488 = vpop.permute.xlu0 %10487
      %10491 = vrot.lane.b32.xlu0 %v10404, 80
      %v10492 = vpop.permute.xlu0 %10491
      %10495 = vrot.lane.b32.xlu0 %v10401, 96
      %v10496 = vpop.permute.xlu0 %10495
      %10499 = vrot.lane.b32.xlu0 %v10405, 112
      %v10500 = vpop.permute.xlu0 %10499
      %10503 = vrot.lane.b32.xlu0 %v10470, 16
      %v10504 = vpop.permute.xlu0 %10503
      %10507 = vrot.lane.b32.xlu0 %v10453, 32
      %v10508 = vpop.permute.xlu0 %10507
      %10511 = vrot.lane.b32.xlu0 %v10471, 48
      %v10512 = vpop.permute.xlu0 %10511
      %10515 = vrot.lane.b32.xlu0 %v10462, 64
      %v10516 = vpop.permute.xlu0 %10515
      %10519 = vrot.lane.b32.xlu0 %v10472, 80
      %v10520 = vpop.permute.xlu0 %10519
      %10523 = vrot.lane.b32.xlu0 %v10469, 96
      %v10524 = vpop.permute.xlu0 %10523
      %10527 = vrot.lane.b32.xlu0 %v10473, 112
      %v10528 = vpop.permute.xlu0 %10527
      %v10530 = vsel %vm630, %v10378, %v10476
      %v10531 = vsel %vm632, %v10530, %v10480
      %v10532 = vsel %vm634, %v10531, %v10484
      %v10533 = vsel %vm636, %v10532, %v10488
      %v10534 = vsel %vm638, %v10533, %v10492
      %v10535 = vsel %vm640, %v10534, %v10496
      %v10536 = vsel %vm642, %v10535, %v10500
      %v10537 = vsel %vm630, %v10446, %v10504
      %v10538 = vsel %vm632, %v10537, %v10508
      %v10539 = vsel %vm634, %v10538, %v10512
      %v10540 = vsel %vm636, %v10539, %v10516
      %v10541 = vsel %vm638, %v10540, %v10520
      %v10542 = vsel %vm640, %v10541, %v10524
      %v10543 = vsel %vm642, %v10542, %v10528
      %v10546 = vcombine.low %v10536, %v10543
      %10548 = vst [vmem:[%s1615] sm:$0xff] %v10546
      %10549 = vrot.lane.b32.xlu0 %v10077, 126
      %v10550 = vpop.permute.xlu0 %10549
      %10551 = vrot.lane.b32.xlu0 %v10079, 126
      %v10552 = vpop.permute.xlu0 %10551
      %10553 = vrot.lane.b32.xlu0 %v10082, 126
      %v10554 = vpop.permute.xlu0 %10553
      %10555 = vrot.lane.b32.xlu0 %v10084, 126
      %v10556 = vpop.permute.xlu0 %10555
      %10557 = vrot.lane.b32.xlu0 %v10087, 126
      %v10558 = vpop.permute.xlu0 %10557
      %10559 = vrot.lane.b32.xlu0 %v10089, 126
      %v10560 = vpop.permute.xlu0 %10559
      %10561 = vrot.lane.b32.xlu0 %v10092, 126
      %v10562 = vpop.permute.xlu0 %10561
      %10563 = vrot.lane.b32.xlu0 %v10094, 126
      %v10564 = vpop.permute.xlu0 %10563
      %v10573 = vcombine.low %v10550, %v10558
      %v10574 = vcombine.high %v10550, %v10558
      %v10576 = vunpack.c.l.s4 1983009808
      %v10577 = vunpack.c.0.s8 %v10576
      %v10578 = vlaneseq
      %v10579 = vshrl.u32 %v10578, 7
      %v10580 = vsub.s32 %v10577, %v10579
      %v10581 = vrot.slane %v10573, %v10580
      %v10583 = vunpack.c.l.s4 1983009808
      %v10584 = vunpack.c.0.s8 %v10583
      %v10585 = vlaneseq
      %v10586 = vshrl.u32 %v10585, 7
      %v10587 = vsub.s32 %v10584, %v10586
      %v10588 = vrot.slane %v10574, %v10587
      %v10589 = vcombine.low %v10554, %v10562
      %v10590 = vcombine.high %v10554, %v10562
      %v10592 = vunpack.c.l.s4 1983009808
      %v10593 = vunpack.c.0.s8 %v10592
      %v10594 = vlaneseq
      %v10595 = vshrl.u32 %v10594, 7
      %v10596 = vsub.s32 %v10593, %v10595
      %v10597 = vrot.slane %v10589, %v10596
      %v10599 = vunpack.c.l.s4 1983009808
      %v10600 = vunpack.c.0.s8 %v10599
      %v10601 = vlaneseq
      %v10602 = vshrl.u32 %v10601, 7
      %v10603 = vsub.s32 %v10600, %v10602
      %v10604 = vrot.slane %v10590, %v10603
      %v10605 = vcombine.low %v10581, %v10597
      %v10606 = vcombine.high %v10581, %v10597
      %v10608 = vunpack.c.l.s4 1934713408
      %v10609 = vunpack.c.0.s8 %v10608
      %v10610 = vlaneseq
      %v10611 = vshrl.u32 %v10610, 7
      %v10612 = vsub.s32 %v10609, %v10611
      %v10613 = vrot.slane %v10605, %v10612
      %v10615 = vunpack.c.l.s4 1934713408
      %v10616 = vunpack.c.0.s8 %v10615
      %v10617 = vlaneseq
      %v10618 = vshrl.u32 %v10617, 7
      %v10619 = vsub.s32 %v10616, %v10618
      %v10620 = vrot.slane %v10606, %v10619
      %v10621 = vcombine.low %v10588, %v10604
      %v10622 = vcombine.high %v10588, %v10604
      %v10624 = vunpack.c.l.s4 1934713408
      %v10625 = vunpack.c.0.s8 %v10624
      %v10626 = vlaneseq
      %v10627 = vshrl.u32 %v10626, 7
      %v10628 = vsub.s32 %v10625, %v10627
      %v10629 = vrot.slane %v10621, %v10628
      %v10631 = vunpack.c.l.s4 1934713408
      %v10632 = vunpack.c.0.s8 %v10631
      %v10633 = vlaneseq
      %v10634 = vshrl.u32 %v10633, 7
      %v10635 = vsub.s32 %v10632, %v10634
      %v10636 = vrot.slane %v10622, %v10635
      %v10637 = vcombine.high %v10613, 0.0
      %v10638 = vcombine.high %v10620, 0.0
      %v10639 = vcombine.high %v10629, 0.0
      %v10640 = vcombine.high %v10636, 0.0
      %v10641 = vcombine.low %v10552, %v10560
      %v10642 = vcombine.high %v10552, %v10560
      %v10644 = vunpack.c.l.s4 1983009808
      %v10645 = vunpack.c.0.s8 %v10644
      %v10646 = vlaneseq
      %v10647 = vshrl.u32 %v10646, 7
      %v10648 = vsub.s32 %v10645, %v10647
      %v10649 = vrot.slane %v10641, %v10648
      %v10651 = vunpack.c.l.s4 1983009808
      %v10652 = vunpack.c.0.s8 %v10651
      %v10653 = vlaneseq
      %v10654 = vshrl.u32 %v10653, 7
      %v10655 = vsub.s32 %v10652, %v10654
      %v10656 = vrot.slane %v10642, %v10655
      %v10657 = vcombine.low %v10556, %v10564
      %v10658 = vcombine.high %v10556, %v10564
      %v10660 = vunpack.c.l.s4 1983009808
      %v10661 = vunpack.c.0.s8 %v10660
      %v10662 = vlaneseq
      %v10663 = vshrl.u32 %v10662, 7
      %v10664 = vsub.s32 %v10661, %v10663
      %v10665 = vrot.slane %v10657, %v10664
      %v10667 = vunpack.c.l.s4 1983009808
      %v10668 = vunpack.c.0.s8 %v10667
      %v10669 = vlaneseq
      %v10670 = vshrl.u32 %v10669, 7
      %v10671 = vsub.s32 %v10668, %v10670
      %v10672 = vrot.slane %v10658, %v10671
      %v10673 = vcombine.low %v10649, %v10665
      %v10674 = vcombine.high %v10649, %v10665
      %v10676 = vunpack.c.l.s4 1934713408
      %v10677 = vunpack.c.0.s8 %v10676
      %v10678 = vlaneseq
      %v10679 = vshrl.u32 %v10678, 7
      %v10680 = vsub.s32 %v10677, %v10679
      %v10681 = vrot.slane %v10673, %v10680
      %v10683 = vunpack.c.l.s4 1934713408
      %v10684 = vunpack.c.0.s8 %v10683
      %v10685 = vlaneseq
      %v10686 = vshrl.u32 %v10685, 7
      %v10687 = vsub.s32 %v10684, %v10686
      %v10688 = vrot.slane %v10674, %v10687
      %v10689 = vcombine.low %v10656, %v10672
      %v10690 = vcombine.high %v10656, %v10672
      %v10692 = vunpack.c.l.s4 1934713408
      %v10693 = vunpack.c.0.s8 %v10692
      %v10694 = vlaneseq
      %v10695 = vshrl.u32 %v10694, 7
      %v10696 = vsub.s32 %v10693, %v10695
      %v10697 = vrot.slane %v10689, %v10696
      %v10699 = vunpack.c.l.s4 1934713408
      %v10700 = vunpack.c.0.s8 %v10699
      %v10701 = vlaneseq
      %v10702 = vshrl.u32 %v10701, 7
      %v10703 = vsub.s32 %v10700, %v10702
      %v10704 = vrot.slane %v10690, %v10703
      %v10705 = vcombine.high %v10681, 0.0
      %v10706 = vcombine.high %v10688, 0.0
      %v10707 = vcombine.high %v10697, 0.0
      %v10708 = vcombine.high %v10704, 0.0
      %10710 = vrot.lane.b32.xlu0 %v10637, 16
      %v10711 = vpop.permute.xlu0 %10710
      %10714 = vrot.lane.b32.xlu0 %v10620, 32
      %v10715 = vpop.permute.xlu0 %10714
      %10718 = vrot.lane.b32.xlu0 %v10638, 48
      %v10719 = vpop.permute.xlu0 %10718
      %10722 = vrot.lane.b32.xlu0 %v10629, 64
      %v10723 = vpop.permute.xlu0 %10722
      %10726 = vrot.lane.b32.xlu0 %v10639, 80
      %v10727 = vpop.permute.xlu0 %10726
      %10730 = vrot.lane.b32.xlu0 %v10636, 96
      %v10731 = vpop.permute.xlu0 %10730
      %10734 = vrot.lane.b32.xlu0 %v10640, 112
      %v10735 = vpop.permute.xlu0 %10734
      %10738 = vrot.lane.b32.xlu0 %v10705, 16
      %v10739 = vpop.permute.xlu0 %10738
      %10742 = vrot.lane.b32.xlu0 %v10688, 32
      %v10743 = vpop.permute.xlu0 %10742
      %10746 = vrot.lane.b32.xlu0 %v10706, 48
      %v10747 = vpop.permute.xlu0 %10746
      %10750 = vrot.lane.b32.xlu0 %v10697, 64
      %v10751 = vpop.permute.xlu0 %10750
      %10754 = vrot.lane.b32.xlu0 %v10707, 80
      %v10755 = vpop.permute.xlu0 %10754
      %10758 = vrot.lane.b32.xlu0 %v10704, 96
      %v10759 = vpop.permute.xlu0 %10758
      %10762 = vrot.lane.b32.xlu0 %v10708, 112
      %v10763 = vpop.permute.xlu0 %10762
      %v10765 = vsel %vm630, %v10613, %v10711
      %v10766 = vsel %vm632, %v10765, %v10715
      %v10767 = vsel %vm634, %v10766, %v10719
      %v10768 = vsel %vm636, %v10767, %v10723
      %v10769 = vsel %vm638, %v10768, %v10727
      %v10770 = vsel %vm640, %v10769, %v10731
      %v10771 = vsel %vm642, %v10770, %v10735
      %v10772 = vsel %vm630, %v10681, %v10739
      %v10773 = vsel %vm632, %v10772, %v10743
      %v10774 = vsel %vm634, %v10773, %v10747
      %v10775 = vsel %vm636, %v10774, %v10751
      %v10776 = vsel %vm638, %v10775, %v10755
      %v10777 = vsel %vm640, %v10776, %v10759
      %v10778 = vsel %vm642, %v10777, %v10763
      %v10781 = vcombine.low %v10771, %v10778
      %10783 = vst [vmem:[%s1851] sm:$0xff] %v10781
      %v10784 = vrot.slane %v9370, 2
      %v10785 = vrot.slane %v9371, 2
      %v10786 = vsel %vm1853, %v10784, %v10785
      %v10787 = vrot.slane %v9372, 2
      %v10788 = vsel %vm1853, %v10785, %v10787
      %v10789 = vrot.slane %v9373, 2
      %v10790 = vrot.slane %v9374, 2
      %v10791 = vsel %vm1853, %v10789, %v10790
      %v10792 = vrot.slane %v9375, 2
      %v10793 = vsel %vm1853, %v10790, %v10792
      %v10794 = vrot.slane %v9376, 2
      %v10795 = vrot.slane %v9377, 2
      %v10796 = vsel %vm1853, %v10794, %v10795
      %v10797 = vrot.slane %v9378, 2
      %v10798 = vsel %vm1853, %v10795, %v10797
      %v10799 = vrot.slane %v9379, 2
      %v10800 = vrot.slane %v9380, 2
      %v10801 = vsel %vm1853, %v10799, %v10800
      %v10802 = vrot.slane %v9381, 2
      %v10803 = vsel %vm1853, %v10800, %v10802
      %v10812 = vcombine.low %v10786, %v10796
      %v10813 = vcombine.high %v10786, %v10796
      %v10815 = vunpack.c.l.s4 1983009808
      %v10816 = vunpack.c.0.s8 %v10815
      %v10817 = vlaneseq
      %v10818 = vshrl.u32 %v10817, 7
      %v10819 = vsub.s32 %v10816, %v10818
      %v10820 = vrot.slane %v10812, %v10819
      %v10822 = vunpack.c.l.s4 1983009808
      %v10823 = vunpack.c.0.s8 %v10822
      %v10824 = vlaneseq
      %v10825 = vshrl.u32 %v10824, 7
      %v10826 = vsub.s32 %v10823, %v10825
      %v10827 = vrot.slane %v10813, %v10826
      %v10828 = vcombine.low %v10791, %v10801
      %v10829 = vcombine.high %v10791, %v10801
      %v10831 = vunpack.c.l.s4 1983009808
      %v10832 = vunpack.c.0.s8 %v10831
      %v10833 = vlaneseq
      %v10834 = vshrl.u32 %v10833, 7
      %v10835 = vsub.s32 %v10832, %v10834
      %v10836 = vrot.slane %v10828, %v10835
      %v10838 = vunpack.c.l.s4 1983009808
      %v10839 = vunpack.c.0.s8 %v10838
      %v10840 = vlaneseq
      %v10841 = vshrl.u32 %v10840, 7
      %v10842 = vsub.s32 %v10839, %v10841
      %v10843 = vrot.slane %v10829, %v10842
      %v10844 = vcombine.low %v10820, %v10836
      %v10845 = vcombine.high %v10820, %v10836
      %v10847 = vunpack.c.l.s4 1934713408
      %v10848 = vunpack.c.0.s8 %v10847
      %v10849 = vlaneseq
      %v10850 = vshrl.u32 %v10849, 7
      %v10851 = vsub.s32 %v10848, %v10850
      %v10852 = vrot.slane %v10844, %v10851
      %v10854 = vunpack.c.l.s4 1934713408
      %v10855 = vunpack.c.0.s8 %v10854
      %v10856 = vlaneseq
      %v10857 = vshrl.u32 %v10856, 7
      %v10858 = vsub.s32 %v10855, %v10857
      %v10859 = vrot.slane %v10845, %v10858
      %v10860 = vcombine.low %v10827, %v10843
      %v10861 = vcombine.high %v10827, %v10843
      %v10863 = vunpack.c.l.s4 1934713408
      %v10864 = vunpack.c.0.s8 %v10863
      %v10865 = vlaneseq
      %v10866 = vshrl.u32 %v10865, 7
      %v10867 = vsub.s32 %v10864, %v10866
      %v10868 = vrot.slane %v10860, %v10867
      %v10870 = vunpack.c.l.s4 1934713408
      %v10871 = vunpack.c.0.s8 %v10870
      %v10872 = vlaneseq
      %v10873 = vshrl.u32 %v10872, 7
      %v10874 = vsub.s32 %v10871, %v10873
      %v10875 = vrot.slane %v10861, %v10874
      %v10876 = vcombine.high %v10852, 0.0
      %v10877 = vcombine.high %v10859, 0.0
      %v10878 = vcombine.high %v10868, 0.0
      %v10879 = vcombine.high %v10875, 0.0
      %v10880 = vcombine.low %v10788, %v10798
      %v10881 = vcombine.high %v10788, %v10798
      %v10883 = vunpack.c.l.s4 1983009808
      %v10884 = vunpack.c.0.s8 %v10883
      %v10885 = vlaneseq
      %v10886 = vshrl.u32 %v10885, 7
      %v10887 = vsub.s32 %v10884, %v10886
      %v10888 = vrot.slane %v10880, %v10887
      %v10890 = vunpack.c.l.s4 1983009808
      %v10891 = vunpack.c.0.s8 %v10890
      %v10892 = vlaneseq
      %v10893 = vshrl.u32 %v10892, 7
      %v10894 = vsub.s32 %v10891, %v10893
      %v10895 = vrot.slane %v10881, %v10894
      %v10896 = vcombine.low %v10793, %v10803
      %v10897 = vcombine.high %v10793, %v10803
      %v10899 = vunpack.c.l.s4 1983009808
      %v10900 = vunpack.c.0.s8 %v10899
      %v10901 = vlaneseq
      %v10902 = vshrl.u32 %v10901, 7
      %v10903 = vsub.s32 %v10900, %v10902
      %v10904 = vrot.slane %v10896, %v10903
      %v10906 = vunpack.c.l.s4 1983009808
      %v10907 = vunpack.c.0.s8 %v10906
      %v10908 = vlaneseq
      %v10909 = vshrl.u32 %v10908, 7
      %v10910 = vsub.s32 %v10907, %v10909
      %v10911 = vrot.slane %v10897, %v10910
      %v10912 = vcombine.low %v10888, %v10904
      %v10913 = vcombine.high %v10888, %v10904
      %v10915 = vunpack.c.l.s4 1934713408
      %v10916 = vunpack.c.0.s8 %v10915
      %v10917 = vlaneseq
      %v10918 = vshrl.u32 %v10917, 7
      %v10919 = vsub.s32 %v10916, %v10918
      %v10920 = vrot.slane %v10912, %v10919
      %v10922 = vunpack.c.l.s4 1934713408
      %v10923 = vunpack.c.0.s8 %v10922
      %v10924 = vlaneseq
      %v10925 = vshrl.u32 %v10924, 7
      %v10926 = vsub.s32 %v10923, %v10925
      %v10927 = vrot.slane %v10913, %v10926
      %v10928 = vcombine.low %v10895, %v10911
      %v10929 = vcombine.high %v10895, %v10911
      %v10931 = vunpack.c.l.s4 1934713408
      %v10932 = vunpack.c.0.s8 %v10931
      %v10933 = vlaneseq
      %v10934 = vshrl.u32 %v10933, 7
      %v10935 = vsub.s32 %v10932, %v10934
      %v10936 = vrot.slane %v10928, %v10935
      %v10938 = vunpack.c.l.s4 1934713408
      %v10939 = vunpack.c.0.s8 %v10938
      %v10940 = vlaneseq
      %v10941 = vshrl.u32 %v10940, 7
      %v10942 = vsub.s32 %v10939, %v10941
      %v10943 = vrot.slane %v10929, %v10942
      %v10944 = vcombine.high %v10920, 0.0
      %v10945 = vcombine.high %v10927, 0.0
      %v10946 = vcombine.high %v10936, 0.0
      %v10947 = vcombine.high %v10943, 0.0
      %10949 = vrot.lane.b32.xlu0 %v10876, 16
      %v10950 = vpop.permute.xlu0 %10949
      %10953 = vrot.lane.b32.xlu0 %v10859, 32
      %v10954 = vpop.permute.xlu0 %10953
      %10957 = vrot.lane.b32.xlu0 %v10877, 48
      %v10958 = vpop.permute.xlu0 %10957
      %10961 = vrot.lane.b32.xlu0 %v10868, 64
      %v10962 = vpop.permute.xlu0 %10961
      %10965 = vrot.lane.b32.xlu0 %v10878, 80
      %v10966 = vpop.permute.xlu0 %10965
      %10969 = vrot.lane.b32.xlu0 %v10875, 96
      %v10970 = vpop.permute.xlu0 %10969
      %10973 = vrot.lane.b32.xlu0 %v10879, 112
      %v10974 = vpop.permute.xlu0 %10973
      %10977 = vrot.lane.b32.xlu0 %v10944, 16
      %v10978 = vpop.permute.xlu0 %10977
      %10981 = vrot.lane.b32.xlu0 %v10927, 32
      %v10982 = vpop.permute.xlu0 %10981
      %10985 = vrot.lane.b32.xlu0 %v10945, 48
      %v10986 = vpop.permute.xlu0 %10985
      %10989 = vrot.lane.b32.xlu0 %v10936, 64
      %v10990 = vpop.permute.xlu0 %10989
      %10993 = vrot.lane.b32.xlu0 %v10946, 80
      %v10994 = vpop.permute.xlu0 %10993
      %10997 = vrot.lane.b32.xlu0 %v10943, 96
      %v10998 = vpop.permute.xlu0 %10997
      %11001 = vrot.lane.b32.xlu0 %v10947, 112
      %v11002 = vpop.permute.xlu0 %11001
      %v11004 = vsel %vm630, %v10852, %v10950
      %v11005 = vsel %vm632, %v11004, %v10954
      %v11006 = vsel %vm634, %v11005, %v10958
      %v11007 = vsel %vm636, %v11006, %v10962
      %v11008 = vsel %vm638, %v11007, %v10966
      %v11009 = vsel %vm640, %v11008, %v10970
      %v11010 = vsel %vm642, %v11009, %v10974
      %v11011 = vsel %vm630, %v10920, %v10978
      %v11012 = vsel %vm632, %v11011, %v10982
      %v11013 = vsel %vm634, %v11012, %v10986
      %v11014 = vsel %vm636, %v11013, %v10990
      %v11015 = vsel %vm638, %v11014, %v10994
      %v11016 = vsel %vm640, %v11015, %v10998
      %v11017 = vsel %vm642, %v11016, %v11002
      %v11020 = vcombine.low %v11010, %v11017
      %11022 = vst [vmem:[%s2092] sm:$0xff] %v11020
      %11023 = vrot.lane.b32.xlu0 %v10786, 127
      %v11024 = vpop.permute.xlu0 %11023
      %11025 = vrot.lane.b32.xlu0 %v10788, 127
      %v11026 = vpop.permute.xlu0 %11025
      %11027 = vrot.lane.b32.xlu0 %v10791, 127
      %v11028 = vpop.permute.xlu0 %11027
      %11029 = vrot.lane.b32.xlu0 %v10793, 127
      %v11030 = vpop.permute.xlu0 %11029
      %11031 = vrot.lane.b32.xlu0 %v10796, 127
      %v11032 = vpop.permute.xlu0 %11031
      %11033 = vrot.lane.b32.xlu0 %v10798, 127
      %v11034 = vpop.permute.xlu0 %11033
      %11035 = vrot.lane.b32.xlu0 %v10801, 127
      %v11036 = vpop.permute.xlu0 %11035
      %11037 = vrot.lane.b32.xlu0 %v10803, 127
      %v11038 = vpop.permute.xlu0 %11037
      %v11047 = vcombine.low %v11024, %v11032
      %v11048 = vcombine.high %v11024, %v11032
      %v11050 = vunpack.c.l.s4 1983009808
      %v11051 = vunpack.c.0.s8 %v11050
      %v11052 = vlaneseq
      %v11053 = vshrl.u32 %v11052, 7
      %v11054 = vsub.s32 %v11051, %v11053
      %v11055 = vrot.slane %v11047, %v11054
      %v11057 = vunpack.c.l.s4 1983009808
      %v11058 = vunpack.c.0.s8 %v11057
      %v11059 = vlaneseq
      %v11060 = vshrl.u32 %v11059, 7
      %v11061 = vsub.s32 %v11058, %v11060
      %v11062 = vrot.slane %v11048, %v11061
      %v11063 = vcombine.low %v11028, %v11036
      %v11064 = vcombine.high %v11028, %v11036
      %v11066 = vunpack.c.l.s4 1983009808
      %v11067 = vunpack.c.0.s8 %v11066
      %v11068 = vlaneseq
      %v11069 = vshrl.u32 %v11068, 7
      %v11070 = vsub.s32 %v11067, %v11069
      %v11071 = vrot.slane %v11063, %v11070
      %v11073 = vunpack.c.l.s4 1983009808
      %v11074 = vunpack.c.0.s8 %v11073
      %v11075 = vlaneseq
      %v11076 = vshrl.u32 %v11075, 7
      %v11077 = vsub.s32 %v11074, %v11076
      %v11078 = vrot.slane %v11064, %v11077
      %v11079 = vcombine.low %v11055, %v11071
      %v11080 = vcombine.high %v11055, %v11071
      %v11082 = vunpack.c.l.s4 1934713408
      %v11083 = vunpack.c.0.s8 %v11082
      %v11084 = vlaneseq
      %v11085 = vshrl.u32 %v11084, 7
      %v11086 = vsub.s32 %v11083, %v11085
      %v11087 = vrot.slane %v11079, %v11086
      %v11089 = vunpack.c.l.s4 1934713408
      %v11090 = vunpack.c.0.s8 %v11089
      %v11091 = vlaneseq
      %v11092 = vshrl.u32 %v11091, 7
      %v11093 = vsub.s32 %v11090, %v11092
      %v11094 = vrot.slane %v11080, %v11093
      %v11095 = vcombine.low %v11062, %v11078
      %v11096 = vcombine.high %v11062, %v11078
      %v11098 = vunpack.c.l.s4 1934713408
      %v11099 = vunpack.c.0.s8 %v11098
      %v11100 = vlaneseq
      %v11101 = vshrl.u32 %v11100, 7
      %v11102 = vsub.s32 %v11099, %v11101
      %v11103 = vrot.slane %v11095, %v11102
      %v11105 = vunpack.c.l.s4 1934713408
      %v11106 = vunpack.c.0.s8 %v11105
      %v11107 = vlaneseq
      %v11108 = vshrl.u32 %v11107, 7
      %v11109 = vsub.s32 %v11106, %v11108
      %v11110 = vrot.slane %v11096, %v11109
      %v11111 = vcombine.high %v11087, 0.0
      %v11112 = vcombine.high %v11094, 0.0
      %v11113 = vcombine.high %v11103, 0.0
      %v11114 = vcombine.high %v11110, 0.0
      %v11115 = vcombine.low %v11026, %v11034
      %v11116 = vcombine.high %v11026, %v11034
      %v11118 = vunpack.c.l.s4 1983009808
      %v11119 = vunpack.c.0.s8 %v11118
      %v11120 = vlaneseq
      %v11121 = vshrl.u32 %v11120, 7
      %v11122 = vsub.s32 %v11119, %v11121
      %v11123 = vrot.slane %v11115, %v11122
      %v11125 = vunpack.c.l.s4 1983009808
      %v11126 = vunpack.c.0.s8 %v11125
      %v11127 = vlaneseq
      %v11128 = vshrl.u32 %v11127, 7
      %v11129 = vsub.s32 %v11126, %v11128
      %v11130 = vrot.slane %v11116, %v11129
      %v11131 = vcombine.low %v11030, %v11038
      %v11132 = vcombine.high %v11030, %v11038
      %v11134 = vunpack.c.l.s4 1983009808
      %v11135 = vunpack.c.0.s8 %v11134
      %v11136 = vlaneseq
      %v11137 = vshrl.u32 %v11136, 7
      %v11138 = vsub.s32 %v11135, %v11137
      %v11139 = vrot.slane %v11131, %v11138
      %v11141 = vunpack.c.l.s4 1983009808
      %v11142 = vunpack.c.0.s8 %v11141
      %v11143 = vlaneseq
      %v11144 = vshrl.u32 %v11143, 7
      %v11145 = vsub.s32 %v11142, %v11144
      %v11146 = vrot.slane %v11132, %v11145
      %v11147 = vcombine.low %v11123, %v11139
      %v11148 = vcombine.high %v11123, %v11139
      %v11150 = vunpack.c.l.s4 1934713408
      %v11151 = vunpack.c.0.s8 %v11150
      %v11152 = vlaneseq
      %v11153 = vshrl.u32 %v11152, 7
      %v11154 = vsub.s32 %v11151, %v11153
      %v11155 = vrot.slane %v11147, %v11154
      %v11157 = vunpack.c.l.s4 1934713408
      %v11158 = vunpack.c.0.s8 %v11157
      %v11159 = vlaneseq
      %v11160 = vshrl.u32 %v11159, 7
      %v11161 = vsub.s32 %v11158, %v11160
      %v11162 = vrot.slane %v11148, %v11161
      %v11163 = vcombine.low %v11130, %v11146
      %v11164 = vcombine.high %v11130, %v11146
      %v11166 = vunpack.c.l.s4 1934713408
      %v11167 = vunpack.c.0.s8 %v11166
      %v11168 = vlaneseq
      %v11169 = vshrl.u32 %v11168, 7
      %v11170 = vsub.s32 %v11167, %v11169
      %v11171 = vrot.slane %v11163, %v11170
      %v11173 = vunpack.c.l.s4 1934713408
      %v11174 = vunpack.c.0.s8 %v11173
      %v11175 = vlaneseq
      %v11176 = vshrl.u32 %v11175, 7
      %v11177 = vsub.s32 %v11174, %v11176
      %v11178 = vrot.slane %v11164, %v11177
      %v11179 = vcombine.high %v11155, 0.0
      %v11180 = vcombine.high %v11162, 0.0
      %v11181 = vcombine.high %v11171, 0.0
      %v11182 = vcombine.high %v11178, 0.0
      %11184 = vrot.lane.b32.xlu0 %v11111, 16
      %v11185 = vpop.permute.xlu0 %11184
      %11188 = vrot.lane.b32.xlu0 %v11094, 32
      %v11189 = vpop.permute.xlu0 %11188
      %11192 = vrot.lane.b32.xlu0 %v11112, 48
      %v11193 = vpop.permute.xlu0 %11192
      %11196 = vrot.lane.b32.xlu0 %v11103, 64
      %v11197 = vpop.permute.xlu0 %11196
      %11200 = vrot.lane.b32.xlu0 %v11113, 80
      %v11201 = vpop.permute.xlu0 %11200
      %11204 = vrot.lane.b32.xlu0 %v11110, 96
      %v11205 = vpop.permute.xlu0 %11204
      %11208 = vrot.lane.b32.xlu0 %v11114, 112
      %v11209 = vpop.permute.xlu0 %11208
      %11212 = vrot.lane.b32.xlu0 %v11179, 16
      %v11213 = vpop.permute.xlu0 %11212
      %11216 = vrot.lane.b32.xlu0 %v11162, 32
      %v11217 = vpop.permute.xlu0 %11216
      %11220 = vrot.lane.b32.xlu0 %v11180, 48
      %v11221 = vpop.permute.xlu0 %11220
      %11224 = vrot.lane.b32.xlu0 %v11171, 64
      %v11225 = vpop.permute.xlu0 %11224
      %11228 = vrot.lane.b32.xlu0 %v11181, 80
      %v11229 = vpop.permute.xlu0 %11228
      %11232 = vrot.lane.b32.xlu0 %v11178, 96
      %v11233 = vpop.permute.xlu0 %11232
      %11236 = vrot.lane.b32.xlu0 %v11182, 112
      %v11237 = vpop.permute.xlu0 %11236
      %v11239 = vsel %vm630, %v11087, %v11185
      %v11240 = vsel %vm632, %v11239, %v11189
      %v11241 = vsel %vm634, %v11240, %v11193
      %v11242 = vsel %vm636, %v11241, %v11197
      %v11243 = vsel %vm638, %v11242, %v11201
      %v11244 = vsel %vm640, %v11243, %v11205
      %v11245 = vsel %vm642, %v11244, %v11209
      %v11246 = vsel %vm630, %v11155, %v11213
      %v11247 = vsel %vm632, %v11246, %v11217
      %v11248 = vsel %vm634, %v11247, %v11221
      %v11249 = vsel %vm636, %v11248, %v11225
      %v11250 = vsel %vm638, %v11249, %v11229
      %v11251 = vsel %vm640, %v11250, %v11233
      %v11252 = vsel %vm642, %v11251, %v11237
      %v11255 = vcombine.low %v11245, %v11252
      %11257 = vst [vmem:[%s2328] sm:$0xff] %v11255
      %11258 = vrot.lane.b32.xlu0 %v10786, 126
      %v11259 = vpop.permute.xlu0 %11258
      %11260 = vrot.lane.b32.xlu0 %v10788, 126
      %v11261 = vpop.permute.xlu0 %11260
      %11262 = vrot.lane.b32.xlu0 %v10791, 126
      %v11263 = vpop.permute.xlu0 %11262
      %11264 = vrot.lane.b32.xlu0 %v10793, 126
      %v11265 = vpop.permute.xlu0 %11264
      %11266 = vrot.lane.b32.xlu0 %v10796, 126
      %v11267 = vpop.permute.xlu0 %11266
      %11268 = vrot.lane.b32.xlu0 %v10798, 126
      %v11269 = vpop.permute.xlu0 %11268
      %11270 = vrot.lane.b32.xlu0 %v10801, 126
      %v11271 = vpop.permute.xlu0 %11270
      %11272 = vrot.lane.b32.xlu0 %v10803, 126
      %v11273 = vpop.permute.xlu0 %11272
      %v11282 = vcombine.low %v11259, %v11267
      %v11283 = vcombine.high %v11259, %v11267
      %v11285 = vunpack.c.l.s4 1983009808
      %v11286 = vunpack.c.0.s8 %v11285
      %v11287 = vlaneseq
      %v11288 = vshrl.u32 %v11287, 7
      %v11289 = vsub.s32 %v11286, %v11288
      %v11290 = vrot.slane %v11282, %v11289
      %v11292 = vunpack.c.l.s4 1983009808
      %v11293 = vunpack.c.0.s8 %v11292
      %v11294 = vlaneseq
      %v11295 = vshrl.u32 %v11294, 7
      %v11296 = vsub.s32 %v11293, %v11295
      %v11297 = vrot.slane %v11283, %v11296
      %v11298 = vcombine.low %v11263, %v11271
      %v11299 = vcombine.high %v11263, %v11271
      %v11301 = vunpack.c.l.s4 1983009808
      %v11302 = vunpack.c.0.s8 %v11301
      %v11303 = vlaneseq
      %v11304 = vshrl.u32 %v11303, 7
      %v11305 = vsub.s32 %v11302, %v11304
      %v11306 = vrot.slane %v11298, %v11305
      %v11308 = vunpack.c.l.s4 1983009808
      %v11309 = vunpack.c.0.s8 %v11308
      %v11310 = vlaneseq
      %v11311 = vshrl.u32 %v11310, 7
      %v11312 = vsub.s32 %v11309, %v11311
      %v11313 = vrot.slane %v11299, %v11312
      %v11314 = vcombine.low %v11290, %v11306
      %v11315 = vcombine.high %v11290, %v11306
      %v11317 = vunpack.c.l.s4 1934713408
      %v11318 = vunpack.c.0.s8 %v11317
      %v11319 = vlaneseq
      %v11320 = vshrl.u32 %v11319, 7
      %v11321 = vsub.s32 %v11318, %v11320
      %v11322 = vrot.slane %v11314, %v11321
      %v11324 = vunpack.c.l.s4 1934713408
      %v11325 = vunpack.c.0.s8 %v11324
      %v11326 = vlaneseq
      %v11327 = vshrl.u32 %v11326, 7
      %v11328 = vsub.s32 %v11325, %v11327
      %v11329 = vrot.slane %v11315, %v11328
      %v11330 = vcombine.low %v11297, %v11313
      %v11331 = vcombine.high %v11297, %v11313
      %v11333 = vunpack.c.l.s4 1934713408
      %v11334 = vunpack.c.0.s8 %v11333
      %v11335 = vlaneseq
      %v11336 = vshrl.u32 %v11335, 7
      %v11337 = vsub.s32 %v11334, %v11336
      %v11338 = vrot.slane %v11330, %v11337
      %v11340 = vunpack.c.l.s4 1934713408
      %v11341 = vunpack.c.0.s8 %v11340
      %v11342 = vlaneseq
      %v11343 = vshrl.u32 %v11342, 7
      %v11344 = vsub.s32 %v11341, %v11343
      %v11345 = vrot.slane %v11331, %v11344
      %v11346 = vcombine.high %v11322, 0.0
      %v11347 = vcombine.high %v11329, 0.0
      %v11348 = vcombine.high %v11338, 0.0
      %v11349 = vcombine.high %v11345, 0.0
      %v11350 = vcombine.low %v11261, %v11269
      %v11351 = vcombine.high %v11261, %v11269
      %v11353 = vunpack.c.l.s4 1983009808
      %v11354 = vunpack.c.0.s8 %v11353
      %v11355 = vlaneseq
      %v11356 = vshrl.u32 %v11355, 7
      %v11357 = vsub.s32 %v11354, %v11356
      %v11358 = vrot.slane %v11350, %v11357
      %v11360 = vunpack.c.l.s4 1983009808
      %v11361 = vunpack.c.0.s8 %v11360
      %v11362 = vlaneseq
      %v11363 = vshrl.u32 %v11362, 7
      %v11364 = vsub.s32 %v11361, %v11363
      %v11365 = vrot.slane %v11351, %v11364
      %v11366 = vcombine.low %v11265, %v11273
      %v11367 = vcombine.high %v11265, %v11273
      %v11369 = vunpack.c.l.s4 1983009808
      %v11370 = vunpack.c.0.s8 %v11369
      %v11371 = vlaneseq
      %v11372 = vshrl.u32 %v11371, 7
      %v11373 = vsub.s32 %v11370, %v11372
      %v11374 = vrot.slane %v11366, %v11373
      %v11376 = vunpack.c.l.s4 1983009808
      %v11377 = vunpack.c.0.s8 %v11376
      %v11378 = vlaneseq
      %v11379 = vshrl.u32 %v11378, 7
      %v11380 = vsub.s32 %v11377, %v11379
      %v11381 = vrot.slane %v11367, %v11380
      %v11382 = vcombine.low %v11358, %v11374
      %v11383 = vcombine.high %v11358, %v11374
      %v11385 = vunpack.c.l.s4 1934713408
      %v11386 = vunpack.c.0.s8 %v11385
      %v11387 = vlaneseq
      %v11388 = vshrl.u32 %v11387, 7
      %v11389 = vsub.s32 %v11386, %v11388
      %v11390 = vrot.slane %v11382, %v11389
      %v11392 = vunpack.c.l.s4 1934713408
      %v11393 = vunpack.c.0.s8 %v11392
      %v11394 = vlaneseq
      %v11395 = vshrl.u32 %v11394, 7
      %v11396 = vsub.s32 %v11393, %v11395
      %v11397 = vrot.slane %v11383, %v11396
      %v11398 = vcombine.low %v11365, %v11381
      %v11399 = vcombine.high %v11365, %v11381
      %v11401 = vunpack.c.l.s4 1934713408
      %v11402 = vunpack.c.0.s8 %v11401
      %v11403 = vlaneseq
      %v11404 = vshrl.u32 %v11403, 7
      %v11405 = vsub.s32 %v11402, %v11404
      %v11406 = vrot.slane %v11398, %v11405
      %v11408 = vunpack.c.l.s4 1934713408
      %v11409 = vunpack.c.0.s8 %v11408
      %v11410 = vlaneseq
      %v11411 = vshrl.u32 %v11410, 7
      %v11412 = vsub.s32 %v11409, %v11411
      %v11413 = vrot.slane %v11399, %v11412
      %v11414 = vcombine.high %v11390, 0.0
      %v11415 = vcombine.high %v11397, 0.0
      %v11416 = vcombine.high %v11406, 0.0
      %v11417 = vcombine.high %v11413, 0.0
      %11419 = vrot.lane.b32.xlu0 %v11346, 16
      %v11420 = vpop.permute.xlu0 %11419
      %11423 = vrot.lane.b32.xlu0 %v11329, 32
      %v11424 = vpop.permute.xlu0 %11423
      %11427 = vrot.lane.b32.xlu0 %v11347, 48
      %v11428 = vpop.permute.xlu0 %11427
      %11431 = vrot.lane.b32.xlu0 %v11338, 64
      %v11432 = vpop.permute.xlu0 %11431
      %11435 = vrot.lane.b32.xlu0 %v11348, 80
      %v11436 = vpop.permute.xlu0 %11435
      %11439 = vrot.lane.b32.xlu0 %v11345, 96
      %v11440 = vpop.permute.xlu0 %11439
      %11443 = vrot.lane.b32.xlu0 %v11349, 112
      %v11444 = vpop.permute.xlu0 %11443
      %11447 = vrot.lane.b32.xlu0 %v11414, 16
      %v11448 = vpop.permute.xlu0 %11447
      %11451 = vrot.lane.b32.xlu0 %v11397, 32
      %v11452 = vpop.permute.xlu0 %11451
      %11455 = vrot.lane.b32.xlu0 %v11415, 48
      %v11456 = vpop.permute.xlu0 %11455
      %11459 = vrot.lane.b32.xlu0 %v11406, 64
      %v11460 = vpop.permute.xlu0 %11459
      %11463 = vrot.lane.b32.xlu0 %v11416, 80
      %v11464 = vpop.permute.xlu0 %11463
      %11467 = vrot.lane.b32.xlu0 %v11413, 96
      %v11468 = vpop.permute.xlu0 %11467
      %11471 = vrot.lane.b32.xlu0 %v11417, 112
      %v11472 = vpop.permute.xlu0 %11471
      %v11474 = vsel %vm630, %v11322, %v11420
      %v11475 = vsel %vm632, %v11474, %v11424
      %v11476 = vsel %vm634, %v11475, %v11428
      %v11477 = vsel %vm636, %v11476, %v11432
      %v11478 = vsel %vm638, %v11477, %v11436
      %v11479 = vsel %vm640, %v11478, %v11440
      %v11480 = vsel %vm642, %v11479, %v11444
      %v11481 = vsel %vm630, %v11390, %v11448
      %v11482 = vsel %vm632, %v11481, %v11452
      %v11483 = vsel %vm634, %v11482, %v11456
      %v11484 = vsel %vm636, %v11483, %v11460
      %v11485 = vsel %vm638, %v11484, %v11464
      %v11486 = vsel %vm640, %v11485, %v11468
      %v11487 = vsel %vm642, %v11486, %v11472
      %v11490 = vcombine.low %v11480, %v11487
      %11492 = vst [vmem:[%s2564] sm:$0xff] %v11490
      %v11493 = vld [vmem:[#allocation3] sm:$0xff]
      %v11494 = vld [vmem:[#allocation3 + $0x8] sm:$0xff]
      %v11495 = vld [vmem:[#allocation3 + $0x10] sm:$0xff]
      %v11496 = vld [vmem:[#allocation3 + $0x18] sm:$0xff]
      %v11497 = vld [vmem:[#allocation3 + $0x20] sm:$0xff]
      %v11498 = vld [vmem:[#allocation3 + $0x28] sm:$0xff]
      %v11499 = vld [vmem:[#allocation3 + $0x30] sm:$0xff]
      %v11500 = vld [vmem:[#allocation3 + $0x38] sm:$0xff]
      %v11501 = vld [vmem:[#allocation3 + $0x40] sm:$0xff]
      %s11502 = scalar_lea.vmem %s1, 12
      %v11503 = vld [vmem:[%s11502] sm:$0xf]
      %v11513 = vcombine.low %v11493, %v11494
      %v11514 = vcombine.high %v11493, %v11494
      %v11515 = vcombine.low %v11495, %v11496
      %v11516 = vcombine.high %v11495, %v11496
      %v11517 = vcombine.low %v11497, %v11498
      %v11518 = vcombine.high %v11497, %v11498
      %v11519 = vcombine.low %v11499, %v11500
      %v11520 = vcombine.high %v11499, %v11500
      %v11521 = vcombine.high %v11501, %v11501
      %v11531 = vsel %vm2602, %v11503, 0
      %v11533 = vsel %vm2606, %v11501, 0
      %v11535 = vsel %vm2606, %v11521, 0
      %11537 = vmatprep.subr.mxu0 0.0
      %11538 = vmatpush1.msra.mxu0 0.0
      %11539 = vmatprep.subr.mxu0 0.0
      %11540 = vmatpush1.msra.mxu0 0.0
      %11541 = vmatprep.subr.mxu0 0.0
      %11542 = vmatpush1.msra.mxu0 0.0
      %11543 = vmatprep.subr.mxu0 0.0
      %11544 = vmatpush1.msra.mxu0 0.0
      %11545 = vmatprep.subr.mxu0 0.0
      %11546 = vmatpush1.msra.mxu0 0.0
      %11547 = vmatprep.subr.mxu0 0.0
      %11548 = vmatpush1.msra.mxu0 0.0
      %11549 = vmatprep.subr.mxu0 0.0
      %11550 = vmatpush1.msra.mxu0 0.0
      %11551 = vmatprep.subr.mxu0 0.0
      %11552 = vmatpush1.msra.mxu0 0.0
      %11553 = vmatprep.subr.mxu0 0.0
      %11554 = vmatpush1.msra.mxu0 0.0
      %11555 = vmatprep.subr.mxu0 0.0
      %11556 = vmatpush1.msra.mxu0 0.0
      %11557 = vmatprep.subr.mxu0 0.0
      %11558 = vmatpush1.msra.mxu0 0.0
      %v11559 = vand.u32 %v11535, 4294901760
      %11560 = vmatprep.subr.mxu0 %v11559
      %v11561 = vand.u32 %v11533, 4294901760
      %11562 = vmatpush1.msra.mxu0 %v11561
      %v11563 = vand.u32 %v11520, 4294901760
      %11564 = vmatprep.subr.mxu0 %v11563
      %v11565 = vand.u32 %v11519, 4294901760
      %11566 = vmatpush1.msra.mxu0 %v11565
      %v11567 = vand.u32 %v11518, 4294901760
      %11568 = vmatprep.subr.mxu0 %v11567
      %v11569 = vand.u32 %v11517, 4294901760
      %11570 = vmatpush1.msra.mxu0 %v11569
      %v11571 = vand.u32 %v11516, 4294901760
      %11572 = vmatprep.subr.mxu0 %v11571
      %v11573 = vand.u32 %v11515, 4294901760
      %11574 = vmatpush1.msra.mxu0 %v11573
      %v11575 = vand.u32 %v11514, 4294901760
      %11576 = vmatprep.subr.mxu0 %v11575
      %v11577 = vand.u32 %v11513, 4294901760
      %11578 = vmatpush1.msra.mxu0 %v11577
      %11579 = vmatprep.subr.mxu0 0.0
      %11580 = vmatpush2.msra.mxu0 0.0
      %11581 = vmatprep.subr.mxu0 0.0
      %11582 = vmatpush2.msra.mxu0 0.0
      %11583 = vmatprep.subr.mxu0 0.0
      %11584 = vmatpush2.msra.mxu0 0.0
      %11585 = vmatprep.subr.mxu0 0.0
      %11586 = vmatpush2.msra.mxu0 0.0
      %11587 = vmatprep.subr.mxu0 0.0
      %11588 = vmatpush2.msra.mxu0 0.0
      %11589 = vmatprep.subr.mxu0 0.0
      %11590 = vmatpush2.msra.mxu0 0.0
      %11591 = vmatprep.subr.mxu0 0.0
      %11592 = vmatpush2.msra.mxu0 0.0
      %11593 = vmatprep.subr.mxu0 0.0
      %11594 = vmatpush2.msra.mxu0 0.0
      %11595 = vmatprep.subr.mxu0 0.0
      %11596 = vmatpush2.msra.mxu0 0.0
      %11597 = vmatprep.subr.mxu0 0.0
      %11598 = vmatpush2.msra.mxu0 0.0
      %11599 = vmatprep.subr.mxu0 0.0
      %11600 = vmatpush2.msra.mxu0 0.0
      %11601 = vmatprep.subr.mxu0 0.0
      %11602 = vmatpush2.msra.mxu0 0.0
      %11603 = vmatprep.subr.mxu0 0.0
      %11604 = vmatpush2.msra.mxu0 0.0
      %11605 = vmatprep.subr.mxu0 0.0
      %11606 = vmatpush2.msra.mxu0 0.0
      %11607 = vmatprep.subr.mxu0 0.0
      %11608 = vmatpush2.msra.mxu0 0.0
      %11609 = vmatprep.subr.mxu0 0.0
      %11610 = vmatpush2.msra.mxu0 0.0
      %11611 = vmatprep.mubr.f32.mxu0 0.0
      %v11612 = vand.u32 %v11531, 4294901760
      %v11613 = vsub.f32 %v11531, %v11612
      %v11614 = vand.u32 %v11613, 4294901760
      %v11615 = vsub.f32 %v11613, %v11614
      %v11616 = vand.u32 %v11615, 4294901760
      %11617 = vmatmul.mubr.f32.gmra.mxu0 %v11616
      %v11618 = vpop.f32.mrf.mxu0
      %v11619 = vadd.f32 0.0, %v11618
      %v11620 = vpop.f32.mrf.mxu0
      %v11621 = vadd.f32 0.0, %v11620
      %11622 = vdwg.mxu0
      %11623 = vmatprep.subr.mxu0 0.0
      %11624 = vmatpush1.msra.mxu0 0.0
      %11625 = vmatprep.subr.mxu0 0.0
      %11626 = vmatpush1.msra.mxu0 0.0
      %11627 = vmatprep.subr.mxu0 0.0
      %11628 = vmatpush1.msra.mxu0 0.0
      %11629 = vmatprep.subr.mxu0 0.0
      %11630 = vmatpush1.msra.mxu0 0.0
      %11631 = vmatprep.subr.mxu0 0.0
      %11632 = vmatpush1.msra.mxu0 0.0
      %11633 = vmatprep.subr.mxu0 0.0
      %11634 = vmatpush1.msra.mxu0 0.0
      %11635 = vmatprep.subr.mxu0 0.0
      %11636 = vmatpush1.msra.mxu0 0.0
      %11637 = vmatprep.subr.mxu0 0.0
      %11638 = vmatpush1.msra.mxu0 0.0
      %11639 = vmatprep.subr.mxu0 0.0
      %11640 = vmatpush1.msra.mxu0 0.0
      %11641 = vmatprep.subr.mxu0 0.0
      %11642 = vmatpush1.msra.mxu0 0.0
      %11643 = vmatprep.subr.mxu0 0.0
      %11644 = vmatpush1.msra.mxu0 0.0
      %v11645 = vand.u32 %v11535, 4294901760
      %v11646 = vsub.f32 %v11535, %v11645
      %v11647 = vand.u32 %v11646, 4294901760
      %v11648 = vsub.f32 %v11646, %v11647
      %v11649 = vand.u32 %v11648, 4294901760
      %11650 = vmatprep.subr.mxu0 %v11649
      %v11651 = vand.u32 %v11533, 4294901760
      %v11652 = vsub.f32 %v11533, %v11651
      %v11653 = vand.u32 %v11652, 4294901760
      %v11654 = vsub.f32 %v11652, %v11653
      %v11655 = vand.u32 %v11654, 4294901760
      %11656 = vmatpush1.msra.mxu0 %v11655
      %v11657 = vand.u32 %v11520, 4294901760
      %v11658 = vsub.f32 %v11520, %v11657
      %v11659 = vand.u32 %v11658, 4294901760
      %v11660 = vsub.f32 %v11658, %v11659
      %v11661 = vand.u32 %v11660, 4294901760
      %11662 = vmatprep.subr.mxu0 %v11661
      %v11663 = vand.u32 %v11519, 4294901760
      %v11664 = vsub.f32 %v11519, %v11663
      %v11665 = vand.u32 %v11664, 4294901760
      %v11666 = vsub.f32 %v11664, %v11665
      %v11667 = vand.u32 %v11666, 4294901760
      %11668 = vmatpush1.msra.mxu0 %v11667
      %v11669 = vand.u32 %v11518, 4294901760
      %v11670 = vsub.f32 %v11518, %v11669
      %v11671 = vand.u32 %v11670, 4294901760
      %v11672 = vsub.f32 %v11670, %v11671
      %v11673 = vand.u32 %v11672, 4294901760
      %11674 = vmatprep.subr.mxu0 %v11673
      %v11675 = vand.u32 %v11517, 4294901760
      %v11676 = vsub.f32 %v11517, %v11675
      %v11677 = vand.u32 %v11676, 4294901760
      %v11678 = vsub.f32 %v11676, %v11677
      %v11679 = vand.u32 %v11678, 4294901760
      %11680 = vmatpush1.msra.mxu0 %v11679
      %v11681 = vand.u32 %v11516, 4294901760
      %v11682 = vsub.f32 %v11516, %v11681
      %v11683 = vand.u32 %v11682, 4294901760
      %v11684 = vsub.f32 %v11682, %v11683
      %v11685 = vand.u32 %v11684, 4294901760
      %11686 = vmatprep.subr.mxu0 %v11685
      %v11687 = vand.u32 %v11515, 4294901760
      %v11688 = vsub.f32 %v11515, %v11687
      %v11689 = vand.u32 %v11688, 4294901760
      %v11690 = vsub.f32 %v11688, %v11689
      %v11691 = vand.u32 %v11690, 4294901760
      %11692 = vmatpush1.msra.mxu0 %v11691
      %v11693 = vand.u32 %v11514, 4294901760
      %v11694 = vsub.f32 %v11514, %v11693
      %v11695 = vand.u32 %v11694, 4294901760
      %v11696 = vsub.f32 %v11694, %v11695
      %v11697 = vand.u32 %v11696, 4294901760
      %11698 = vmatprep.subr.mxu0 %v11697
      %v11699 = vand.u32 %v11513, 4294901760
      %v11700 = vsub.f32 %v11513, %v11699
      %v11701 = vand.u32 %v11700, 4294901760
      %v11702 = vsub.f32 %v11700, %v11701
      %v11703 = vand.u32 %v11702, 4294901760
      %11704 = vmatpush1.msra.mxu0 %v11703
      %11705 = vmatprep.subr.mxu0 0.0
      %11706 = vmatpush2.msra.mxu0 0.0
      %11707 = vmatprep.subr.mxu0 0.0
      %11708 = vmatpush2.msra.mxu0 0.0
      %11709 = vmatprep.subr.mxu0 0.0
      %11710 = vmatpush2.msra.mxu0 0.0
      %11711 = vmatprep.subr.mxu0 0.0
      %11712 = vmatpush2.msra.mxu0 0.0
      %11713 = vmatprep.subr.mxu0 0.0
      %11714 = vmatpush2.msra.mxu0 0.0
      %11715 = vmatprep.subr.mxu0 0.0
      %11716 = vmatpush2.msra.mxu0 0.0
      %11717 = vmatprep.subr.mxu0 0.0
      %11718 = vmatpush2.msra.mxu0 0.0
      %11719 = vmatprep.subr.mxu0 0.0
      %11720 = vmatpush2.msra.mxu0 0.0
      %11721 = vmatprep.subr.mxu0 0.0
      %11722 = vmatpush2.msra.mxu0 0.0
      %11723 = vmatprep.subr.mxu0 0.0
      %11724 = vmatpush2.msra.mxu0 0.0
      %11725 = vmatprep.subr.mxu0 0.0
      %11726 = vmatpush2.msra.mxu0 0.0
      %11727 = vmatprep.subr.mxu0 0.0
      %11728 = vmatpush2.msra.mxu0 0.0
      %11729 = vmatprep.subr.mxu0 0.0
      %11730 = vmatpush2.msra.mxu0 0.0
      %11731 = vmatprep.subr.mxu0 0.0
      %11732 = vmatpush2.msra.mxu0 0.0
      %11733 = vmatprep.subr.mxu0 0.0
      %11734 = vmatpush2.msra.mxu0 0.0
      %11735 = vmatprep.subr.mxu0 0.0
      %11736 = vmatpush2.msra.mxu0 0.0
      %11737 = vmatprep.mubr.f32.mxu0 0.0
      %v11738 = vand.u32 %v11531, 4294901760
      %11739 = vmatmul.mubr.f32.gmra.mxu0 %v11738
      %v11740 = vpop.f32.mrf.mxu0
      %v11741 = vadd.f32 %v11619, %v11740
      %v11742 = vpop.f32.mrf.mxu0
      %v11743 = vadd.f32 %v11621, %v11742
      %11744 = vdwg.mxu0
      %11745 = vmatprep.subr.mxu0 0.0
      %11746 = vmatpush1.msra.mxu0 0.0
      %11747 = vmatprep.subr.mxu0 0.0
      %11748 = vmatpush1.msra.mxu0 0.0
      %11749 = vmatprep.subr.mxu0 0.0
      %11750 = vmatpush1.msra.mxu0 0.0
      %11751 = vmatprep.subr.mxu0 0.0
      %11752 = vmatpush1.msra.mxu0 0.0
      %11753 = vmatprep.subr.mxu0 0.0
      %11754 = vmatpush1.msra.mxu0 0.0
      %11755 = vmatprep.subr.mxu0 0.0
      %11756 = vmatpush1.msra.mxu0 0.0
      %11757 = vmatprep.subr.mxu0 0.0
      %11758 = vmatpush1.msra.mxu0 0.0
      %11759 = vmatprep.subr.mxu0 0.0
      %11760 = vmatpush1.msra.mxu0 0.0
      %11761 = vmatprep.subr.mxu0 0.0
      %11762 = vmatpush1.msra.mxu0 0.0
      %11763 = vmatprep.subr.mxu0 0.0
      %11764 = vmatpush1.msra.mxu0 0.0
      %11765 = vmatprep.subr.mxu0 0.0
      %11766 = vmatpush1.msra.mxu0 0.0
      %v11767 = vand.u32 %v11535, 4294901760
      %v11768 = vsub.f32 %v11535, %v11767
      %11769 = vmatprep.subr.mxu0 %v11768
      %v11770 = vand.u32 %v11533, 4294901760
      %v11771 = vsub.f32 %v11533, %v11770
      %11772 = vmatpush1.msra.mxu0 %v11771
      %v11773 = vand.u32 %v11520, 4294901760
      %v11774 = vsub.f32 %v11520, %v11773
      %11775 = vmatprep.subr.mxu0 %v11774
      %v11776 = vand.u32 %v11519, 4294901760
      %v11777 = vsub.f32 %v11519, %v11776
      %11778 = vmatpush1.msra.mxu0 %v11777
      %v11779 = vand.u32 %v11518, 4294901760
      %v11780 = vsub.f32 %v11518, %v11779
      %11781 = vmatprep.subr.mxu0 %v11780
      %v11782 = vand.u32 %v11517, 4294901760
      %v11783 = vsub.f32 %v11517, %v11782
      %11784 = vmatpush1.msra.mxu0 %v11783
      %v11785 = vand.u32 %v11516, 4294901760
      %v11786 = vsub.f32 %v11516, %v11785
      %11787 = vmatprep.subr.mxu0 %v11786
      %v11788 = vand.u32 %v11515, 4294901760
      %v11789 = vsub.f32 %v11515, %v11788
      %11790 = vmatpush1.msra.mxu0 %v11789
      %v11791 = vand.u32 %v11514, 4294901760
      %v11792 = vsub.f32 %v11514, %v11791
      %11793 = vmatprep.subr.mxu0 %v11792
      %v11794 = vand.u32 %v11513, 4294901760
      %v11795 = vsub.f32 %v11513, %v11794
      %11796 = vmatpush1.msra.mxu0 %v11795
      %11797 = vmatprep.subr.mxu0 0.0
      %11798 = vmatpush2.msra.mxu0 0.0
      %11799 = vmatprep.subr.mxu0 0.0
      %11800 = vmatpush2.msra.mxu0 0.0
      %11801 = vmatprep.subr.mxu0 0.0
      %11802 = vmatpush2.msra.mxu0 0.0
      %11803 = vmatprep.subr.mxu0 0.0
      %11804 = vmatpush2.msra.mxu0 0.0
      %11805 = vmatprep.subr.mxu0 0.0
      %11806 = vmatpush2.msra.mxu0 0.0
      %11807 = vmatprep.subr.mxu0 0.0
      %11808 = vmatpush2.msra.mxu0 0.0
      %11809 = vmatprep.subr.mxu0 0.0
      %11810 = vmatpush2.msra.mxu0 0.0
      %11811 = vmatprep.subr.mxu0 0.0
      %11812 = vmatpush2.msra.mxu0 0.0
      %11813 = vmatprep.subr.mxu0 0.0
      %11814 = vmatpush2.msra.mxu0 0.0
      %11815 = vmatprep.subr.mxu0 0.0
      %11816 = vmatpush2.msra.mxu0 0.0
      %11817 = vmatprep.subr.mxu0 0.0
      %11818 = vmatpush2.msra.mxu0 0.0
      %11819 = vmatprep.subr.mxu0 0.0
      %11820 = vmatpush2.msra.mxu0 0.0
      %11821 = vmatprep.subr.mxu0 0.0
      %11822 = vmatpush2.msra.mxu0 0.0
      %11823 = vmatprep.subr.mxu0 0.0
      %11824 = vmatpush2.msra.mxu0 0.0
      %11825 = vmatprep.subr.mxu0 0.0
      %11826 = vmatpush2.msra.mxu0 0.0
      %11827 = vmatprep.subr.mxu0 0.0
      %11828 = vmatpush2.msra.mxu0 0.0
      %11829 = vmatprep.mubr.f32.mxu0 0.0
      %v11830 = vand.u32 %v11531, 4294901760
      %v11831 = vsub.f32 %v11531, %v11830
      %11832 = vmatmul.mubr.f32.gmra.mxu0 %v11831
      %v11833 = vpop.f32.mrf.mxu0
      %v11834 = vadd.f32 %v11741, %v11833
      %v11835 = vpop.f32.mrf.mxu0
      %v11836 = vadd.f32 %v11743, %v11835
      %11837 = vdwg.mxu0
      %11838 = vmatprep.subr.mxu0 0.0
      %11839 = vmatpush1.msra.mxu0 0.0
      %11840 = vmatprep.subr.mxu0 0.0
      %11841 = vmatpush1.msra.mxu0 0.0
      %11842 = vmatprep.subr.mxu0 0.0
      %11843 = vmatpush1.msra.mxu0 0.0
      %11844 = vmatprep.subr.mxu0 0.0
      %11845 = vmatpush1.msra.mxu0 0.0
      %11846 = vmatprep.subr.mxu0 0.0
      %11847 = vmatpush1.msra.mxu0 0.0
      %11848 = vmatprep.subr.mxu0 0.0
      %11849 = vmatpush1.msra.mxu0 0.0
      %11850 = vmatprep.subr.mxu0 0.0
      %11851 = vmatpush1.msra.mxu0 0.0
      %11852 = vmatprep.subr.mxu0 0.0
      %11853 = vmatpush1.msra.mxu0 0.0
      %11854 = vmatprep.subr.mxu0 0.0
      %11855 = vmatpush1.msra.mxu0 0.0
      %11856 = vmatprep.subr.mxu0 0.0
      %11857 = vmatpush1.msra.mxu0 0.0
      %11858 = vmatprep.subr.mxu0 0.0
      %11859 = vmatpush1.msra.mxu0 0.0
      %v11860 = vand.u32 %v11535, 4294901760
      %11861 = vmatprep.subr.mxu0 %v11860
      %v11862 = vand.u32 %v11533, 4294901760
      %11863 = vmatpush1.msra.mxu0 %v11862
      %v11864 = vand.u32 %v11520, 4294901760
      %11865 = vmatprep.subr.mxu0 %v11864
      %v11866 = vand.u32 %v11519, 4294901760
      %11867 = vmatpush1.msra.mxu0 %v11866
      %v11868 = vand.u32 %v11518, 4294901760
      %11869 = vmatprep.subr.mxu0 %v11868
      %v11870 = vand.u32 %v11517, 4294901760
      %11871 = vmatpush1.msra.mxu0 %v11870
      %v11872 = vand.u32 %v11516, 4294901760
      %11873 = vmatprep.subr.mxu0 %v11872
      %v11874 = vand.u32 %v11515, 4294901760
      %11875 = vmatpush1.msra.mxu0 %v11874
      %v11876 = vand.u32 %v11514, 4294901760
      %11877 = vmatprep.subr.mxu0 %v11876
      %v11878 = vand.u32 %v11513, 4294901760
      %11879 = vmatpush1.msra.mxu0 %v11878
      %11880 = vmatprep.subr.mxu0 0.0
      %11881 = vmatpush2.msra.mxu0 0.0
      %11882 = vmatprep.subr.mxu0 0.0
      %11883 = vmatpush2.msra.mxu0 0.0
      %11884 = vmatprep.subr.mxu0 0.0
      %11885 = vmatpush2.msra.mxu0 0.0
      %11886 = vmatprep.subr.mxu0 0.0
      %11887 = vmatpush2.msra.mxu0 0.0
      %11888 = vmatprep.subr.mxu0 0.0
      %11889 = vmatpush2.msra.mxu0 0.0
      %11890 = vmatprep.subr.mxu0 0.0
      %11891 = vmatpush2.msra.mxu0 0.0
      %11892 = vmatprep.subr.mxu0 0.0
      %11893 = vmatpush2.msra.mxu0 0.0
      %11894 = vmatprep.subr.mxu0 0.0
      %11895 = vmatpush2.msra.mxu0 0.0
      %11896 = vmatprep.subr.mxu0 0.0
      %11897 = vmatpush2.msra.mxu0 0.0
      %11898 = vmatprep.subr.mxu0 0.0
      %11899 = vmatpush2.msra.mxu0 0.0
      %11900 = vmatprep.subr.mxu0 0.0
      %11901 = vmatpush2.msra.mxu0 0.0
      %11902 = vmatprep.subr.mxu0 0.0
      %11903 = vmatpush2.msra.mxu0 0.0
      %11904 = vmatprep.subr.mxu0 0.0
      %11905 = vmatpush2.msra.mxu0 0.0
      %11906 = vmatprep.subr.mxu0 0.0
      %11907 = vmatpush2.msra.mxu0 0.0
      %11908 = vmatprep.subr.mxu0 0.0
      %11909 = vmatpush2.msra.mxu0 0.0
      %11910 = vmatprep.subr.mxu0 0.0
      %11911 = vmatpush2.msra.mxu0 0.0
      %11912 = vmatprep.mubr.f32.mxu0 0.0
      %v11913 = vand.u32 %v11531, 4294901760
      %v11914 = vsub.f32 %v11531, %v11913
      %v11915 = vand.u32 %v11914, 4294901760
      %11916 = vmatmul.mubr.f32.gmra.mxu0 %v11915
      %v11917 = vpop.f32.mrf.mxu0
      %v11918 = vadd.f32 %v11834, %v11917
      %v11919 = vpop.f32.mrf.mxu0
      %v11920 = vadd.f32 %v11836, %v11919
      %11921 = vdwg.mxu0
      %11922 = vmatprep.subr.mxu0 0.0
      %11923 = vmatpush1.msra.mxu0 0.0
      %11924 = vmatprep.subr.mxu0 0.0
      %11925 = vmatpush1.msra.mxu0 0.0
      %11926 = vmatprep.subr.mxu0 0.0
      %11927 = vmatpush1.msra.mxu0 0.0
      %11928 = vmatprep.subr.mxu0 0.0
      %11929 = vmatpush1.msra.mxu0 0.0
      %11930 = vmatprep.subr.mxu0 0.0
      %11931 = vmatpush1.msra.mxu0 0.0
      %11932 = vmatprep.subr.mxu0 0.0
      %11933 = vmatpush1.msra.mxu0 0.0
      %11934 = vmatprep.subr.mxu0 0.0
      %11935 = vmatpush1.msra.mxu0 0.0
      %11936 = vmatprep.subr.mxu0 0.0
      %11937 = vmatpush1.msra.mxu0 0.0
      %11938 = vmatprep.subr.mxu0 0.0
      %11939 = vmatpush1.msra.mxu0 0.0
      %11940 = vmatprep.subr.mxu0 0.0
      %11941 = vmatpush1.msra.mxu0 0.0
      %11942 = vmatprep.subr.mxu0 0.0
      %11943 = vmatpush1.msra.mxu0 0.0
      %v11944 = vand.u32 %v11535, 4294901760
      %v11945 = vsub.f32 %v11535, %v11944
      %v11946 = vand.u32 %v11945, 4294901760
      %11947 = vmatprep.subr.mxu0 %v11946
      %v11948 = vand.u32 %v11533, 4294901760
      %v11949 = vsub.f32 %v11533, %v11948
      %v11950 = vand.u32 %v11949, 4294901760
      %11951 = vmatpush1.msra.mxu0 %v11950
      %v11952 = vand.u32 %v11520, 4294901760
      %v11953 = vsub.f32 %v11520, %v11952
      %v11954 = vand.u32 %v11953, 4294901760
      %11955 = vmatprep.subr.mxu0 %v11954
      %v11956 = vand.u32 %v11519, 4294901760
      %v11957 = vsub.f32 %v11519, %v11956
      %v11958 = vand.u32 %v11957, 4294901760
      %11959 = vmatpush1.msra.mxu0 %v11958
      %v11960 = vand.u32 %v11518, 4294901760
      %v11961 = vsub.f32 %v11518, %v11960
      %v11962 = vand.u32 %v11961, 4294901760
      %11963 = vmatprep.subr.mxu0 %v11962
      %v11964 = vand.u32 %v11517, 4294901760
      %v11965 = vsub.f32 %v11517, %v11964
      %v11966 = vand.u32 %v11965, 4294901760
      %11967 = vmatpush1.msra.mxu0 %v11966
      %v11968 = vand.u32 %v11516, 4294901760
      %v11969 = vsub.f32 %v11516, %v11968
      %v11970 = vand.u32 %v11969, 4294901760
      %11971 = vmatprep.subr.mxu0 %v11970
      %v11972 = vand.u32 %v11515, 4294901760
      %v11973 = vsub.f32 %v11515, %v11972
      %v11974 = vand.u32 %v11973, 4294901760
      %11975 = vmatpush1.msra.mxu0 %v11974
      %v11976 = vand.u32 %v11514, 4294901760
      %v11977 = vsub.f32 %v11514, %v11976
      %v11978 = vand.u32 %v11977, 4294901760
      %11979 = vmatprep.subr.mxu0 %v11978
      %v11980 = vand.u32 %v11513, 4294901760
      %v11981 = vsub.f32 %v11513, %v11980
      %v11982 = vand.u32 %v11981, 4294901760
      %11983 = vmatpush1.msra.mxu0 %v11982
      %11984 = vmatprep.subr.mxu0 0.0
      %11985 = vmatpush2.msra.mxu0 0.0
      %11986 = vmatprep.subr.mxu0 0.0
      %11987 = vmatpush2.msra.mxu0 0.0
      %11988 = vmatprep.subr.mxu0 0.0
      %11989 = vmatpush2.msra.mxu0 0.0
      %11990 = vmatprep.subr.mxu0 0.0
      %11991 = vmatpush2.msra.mxu0 0.0
      %11992 = vmatprep.subr.mxu0 0.0
      %11993 = vmatpush2.msra.mxu0 0.0
      %11994 = vmatprep.subr.mxu0 0.0
      %11995 = vmatpush2.msra.mxu0 0.0
      %11996 = vmatprep.subr.mxu0 0.0
      %11997 = vmatpush2.msra.mxu0 0.0
      %11998 = vmatprep.subr.mxu0 0.0
      %11999 = vmatpush2.msra.mxu0 0.0
      %12000 = vmatprep.subr.mxu0 0.0
      %12001 = vmatpush2.msra.mxu0 0.0
      %12002 = vmatprep.subr.mxu0 0.0
      %12003 = vmatpush2.msra.mxu0 0.0
      %12004 = vmatprep.subr.mxu0 0.0
      %12005 = vmatpush2.msra.mxu0 0.0
      %12006 = vmatprep.subr.mxu0 0.0
      %12007 = vmatpush2.msra.mxu0 0.0
      %12008 = vmatprep.subr.mxu0 0.0
      %12009 = vmatpush2.msra.mxu0 0.0
      %12010 = vmatprep.subr.mxu0 0.0
      %12011 = vmatpush2.msra.mxu0 0.0
      %12012 = vmatprep.subr.mxu0 0.0
      %12013 = vmatpush2.msra.mxu0 0.0
      %12014 = vmatprep.subr.mxu0 0.0
      %12015 = vmatpush2.msra.mxu0 0.0
      %12016 = vmatprep.mubr.f32.mxu0 0.0
      %v12017 = vand.u32 %v11531, 4294901760
      %12018 = vmatmul.mubr.f32.gmra.mxu0 %v12017
      %v12019 = vpop.f32.mrf.mxu0
      %v12020 = vadd.f32 %v11918, %v12019
      %v12021 = vpop.f32.mrf.mxu0
      %v12022 = vadd.f32 %v11920, %v12021
      %12023 = vdwg.mxu0
      %12024 = vmatprep.subr.mxu0 0.0
      %12025 = vmatpush1.msra.mxu0 0.0
      %12026 = vmatprep.subr.mxu0 0.0
      %12027 = vmatpush1.msra.mxu0 0.0
      %12028 = vmatprep.subr.mxu0 0.0
      %12029 = vmatpush1.msra.mxu0 0.0
      %12030 = vmatprep.subr.mxu0 0.0
      %12031 = vmatpush1.msra.mxu0 0.0
      %12032 = vmatprep.subr.mxu0 0.0
      %12033 = vmatpush1.msra.mxu0 0.0
      %12034 = vmatprep.subr.mxu0 0.0
      %12035 = vmatpush1.msra.mxu0 0.0
      %12036 = vmatprep.subr.mxu0 0.0
      %12037 = vmatpush1.msra.mxu0 0.0
      %12038 = vmatprep.subr.mxu0 0.0
      %12039 = vmatpush1.msra.mxu0 0.0
      %12040 = vmatprep.subr.mxu0 0.0
      %12041 = vmatpush1.msra.mxu0 0.0
      %12042 = vmatprep.subr.mxu0 0.0
      %12043 = vmatpush1.msra.mxu0 0.0
      %12044 = vmatprep.subr.mxu0 0.0
      %12045 = vmatpush1.msra.mxu0 0.0
      %v12046 = vand.u32 %v11535, 4294901760
      %12047 = vmatprep.subr.mxu0 %v12046
      %v12048 = vand.u32 %v11533, 4294901760
      %12049 = vmatpush1.msra.mxu0 %v12048
      %v12050 = vand.u32 %v11520, 4294901760
      %12051 = vmatprep.subr.mxu0 %v12050
      %v12052 = vand.u32 %v11519, 4294901760
      %12053 = vmatpush1.msra.mxu0 %v12052
      %v12054 = vand.u32 %v11518, 4294901760
      %12055 = vmatprep.subr.mxu0 %v12054
      %v12056 = vand.u32 %v11517, 4294901760
      %12057 = vmatpush1.msra.mxu0 %v12056
      %v12058 = vand.u32 %v11516, 4294901760
      %12059 = vmatprep.subr.mxu0 %v12058
      %v12060 = vand.u32 %v11515, 4294901760
      %12061 = vmatpush1.msra.mxu0 %v12060
      %v12062 = vand.u32 %v11514, 4294901760
      %12063 = vmatprep.subr.mxu0 %v12062
      %v12064 = vand.u32 %v11513, 4294901760
      %12065 = vmatpush1.msra.mxu0 %v12064
      %12066 = vmatprep.subr.mxu0 0.0
      %12067 = vmatpush2.msra.mxu0 0.0
      %12068 = vmatprep.subr.mxu0 0.0
      %12069 = vmatpush2.msra.mxu0 0.0
      %12070 = vmatprep.subr.mxu0 0.0
      %12071 = vmatpush2.msra.mxu0 0.0
      %12072 = vmatprep.subr.mxu0 0.0
      %12073 = vmatpush2.msra.mxu0 0.0
      %12074 = vmatprep.subr.mxu0 0.0
      %12075 = vmatpush2.msra.mxu0 0.0
      %12076 = vmatprep.subr.mxu0 0.0
      %12077 = vmatpush2.msra.mxu0 0.0
      %12078 = vmatprep.subr.mxu0 0.0
      %12079 = vmatpush2.msra.mxu0 0.0
      %12080 = vmatprep.subr.mxu0 0.0
      %12081 = vmatpush2.msra.mxu0 0.0
      %12082 = vmatprep.subr.mxu0 0.0
      %12083 = vmatpush2.msra.mxu0 0.0
      %12084 = vmatprep.subr.mxu0 0.0
      %12085 = vmatpush2.msra.mxu0 0.0
      %12086 = vmatprep.subr.mxu0 0.0
      %12087 = vmatpush2.msra.mxu0 0.0
      %12088 = vmatprep.subr.mxu0 0.0
      %12089 = vmatpush2.msra.mxu0 0.0
      %12090 = vmatprep.subr.mxu0 0.0
      %12091 = vmatpush2.msra.mxu0 0.0
      %12092 = vmatprep.subr.mxu0 0.0
      %12093 = vmatpush2.msra.mxu0 0.0
      %12094 = vmatprep.subr.mxu0 0.0
      %12095 = vmatpush2.msra.mxu0 0.0
      %12096 = vmatprep.subr.mxu0 0.0
      %12097 = vmatpush2.msra.mxu0 0.0
      %12098 = vmatprep.mubr.f32.mxu0 0.0
      %v12099 = vand.u32 %v11531, 4294901760
      %12100 = vmatmul.mubr.f32.gmra.mxu0 %v12099
      %v12101 = vpop.f32.mrf.mxu0
      %v12102 = vadd.f32 %v12020, %v12101
      %v12103 = vpop.f32.mrf.mxu0
      %v12104 = vadd.f32 %v12022, %v12103
      %12105 = vdwg.mxu0
      %s12106 = scalar_lea.vmem %s2, 12
      %v12107 = vld [vmem:[%s12106] sm:$0xf]
      %12109 = vset.pattern.permute.xlu0 0
      %12110 = vperm.xlu0 %12109, %v12107
      %v12111 = vpop.permute.xlu0 %12110
      %v12113 = vmul.f32 %v12102, %v12111
      %v12114 = vmul.f32 %v12104, %v12111
      %s12115 = scalar_lea.vmem %s3, 12
      %v12116 = vld [vmem:[%s12115] sm:$0xf]
      %12118 = vset.pattern.permute.xlu0 0
      %12119 = vperm.xlu0 %12118, %v12116
      %v12120 = vpop.permute.xlu0 %12119
      %v12122 = vadd.f32 %v12113, %v12120
      %v12123 = vadd.f32 %v12114, %v12120
      %v12126 = vcombine.low %v12122, %v12123
      %v12128 = vunpack.c.l.s4 1983009808
      %v12129 = vunpack.c.0.s8 %v12128
      %v12130 = vlaneseq
      %v12131 = vshrl.u32 %v12130, 7
      %v12132 = vsub.s32 %v12129, %v12131
      %v12133 = vrot.slane %v12126, %v12132
      %12135 = vst [vmem:[%s197] sm:$0xf] %v12133
      %p12136 = scmp.lt.s32.totalorder %s15, 1
      %s12137 = scalar_select %p12136, %s15, 1
      %s12138 = smul.addr %s12137, 2
      %s12139 = smul.addr %s12138, 2
      %s12140 = scalar_lea.vmem %s4, %s12139
      // Predicated region
      $region37: #{non_blind_denoising_forward.1} parent=35 // pred_check
        %p12141 = pneg %p122
      $region38: #{non_blind_denoising_forward.1} parent=35 // pred_check_branch
        %12143 = sbr.rel (%p12141) target = $region40
      $region39: #{non_blind_denoising_forward.1} parent=35 // pred_region
        _
      $region40: #{non_blind_denoising_forward.1} parent=35 // pred_fallthru
        _
    $region36: #{non_blind_denoising_forward.1} parent=5 // pred_fallthru
      _
    %p12144 = scmp.le.s32.totalorder 2, %s10
    // Predicated region
    $region41: #{non_blind_denoising_forward.1} parent=5 // pred_check
      %p12145 = pneg %p12144
    $region42: #{non_blind_denoising_forward.1} parent=5 // pred_check_branch
      %12147 = sbr.rel (%p12145) target = $region44
    $region43: #{non_blind_denoising_forward.1} parent=5 // pred_region
      %s12148 = ssub.s32 %s10, 2
      // Predicated region
      $region45: #{non_blind_denoising_forward.1} parent=43 // pred_check
        %p12149 = pneg %p128
      $region46: #{non_blind_denoising_forward.1} parent=43 // pred_check_branch
        %12151 = sbr.rel (%p12149) target = $region48
      $region47: #{non_blind_denoising_forward.1} parent=43 // pred_region
        %p12152 = scmp.lt.s32.totalorder %s16, 1
        %s12153 = scalar_select %p12152, %s16, 1
        %s12154 = smul.addr %s12153, 2
        %s12155 = smul.addr %s12154, 2
        %s12156 = scalar_lea.vmem %s4, %s12155
      $region48: #{non_blind_denoising_forward.1} parent=43 // pred_fallthru
        _
    $region44: #{non_blind_denoising_forward.1} parent=5 // pred_fallthru
      _
  $region6: #{non_blind_denoising_forward.1} parent=0 // loop_footer
    %s14 = sadd.s32 1, %s10
  $region7: #{non_blind_denoising_forward.1} parent=0 // loop_footer_branch
    %9 = sbr.rel target = $region3
  $region8: #{non_blind_denoising_forward.1} parent=0 // loop_exit
    _

</llo_original>
